<compile_context>
chip_gen: v6e
topology: v6e:2x2x1
jax: 0.10.0
libtpu: 0.0.40
codegen_flags: <defaults>
</compile_context>

<pallas_src>
import jax
import jax.numpy as jnp
from jax.experimental import pallas as pl
from jax.experimental.pallas import tpu as pltpu

EPS = 1e-5          # nn.BatchNorm2d default eps
NEG_SLOPE = 0.2     # LeakyReLU slope
CPAD = 16           # channel counts padded to the bf16 sublane multiple (not 128)


def _round_up(x, m):
    return (x + m - 1) // m * m


def _lrelu(x):
    return jnp.where(x >= 0, x, NEG_SLOPE * x)


def _vmem_limit(block_bytes):
    # Double-buffered working set + slack, clamped so the request is always
    # valid on the 64 MiB-VMEM generation.
    need = 2 * block_bytes + (4 << 20)
    return int(min(max(need, 32 << 20), 60 << 20))


# ---------------------------------------------------------------------------
# Fused 3x3-conv kernels (in-kernel tap gather; one image per grid step)
# ---------------------------------------------------------------------------
def _taps_matmul(src_ref, w_ref, ho, roffs, coffs, Wo):
    """Accumulate the 9 kernel taps for one output row as shifted MXU dots."""
    Co = w_ref.shape[-1]
    acc = jnp.zeros((Wo, Co), jnp.float32)
    for kh in range(3):
        row = roffs[kh] + ho                                  # static offset + loop idx
        for kw in range(3):
            xs = src_ref[0, row, pl.ds(coffs[kw], Wo), :]     # (Wo, Cin) bf16, contiguous
            acc = acc + jnp.dot(xs, w_ref[kh * 3 + kw],
                                preferred_element_type=jnp.float32)
    return acc


def _make_plain_conv_kernel(Ho, Wo, roffs, coffs):
    """Conv + bias + LeakyReLU (no BatchNorm) -- used for the first layer."""
    def kernel(src_ref, w_ref, b_ref, y_ref):
        def body(ho, carry):
            acc = _taps_matmul(src_ref, w_ref, ho, roffs, coffs, Wo)
            y = _lrelu(acc + b_ref[...])
            y_ref[0, ho, :, :] = y.astype(y_ref.dtype)
            return carry
        jax.lax.fori_loop(0, Ho, body, 0)
    return kernel


def _make_bn_conv_kernel(Ho, Wo, roffs, coffs):
    """Conv that stores the raw (pre-BN) output in bf16 and emits per-image
    per-channel sum / sum-of-squares partials (f32, from the f32 accumulator)."""
    def kernel(src_ref, w_ref, y_ref, sum_ref, ssq_ref):
        Co = y_ref.shape[-1]

        def body(ho, carry):
            s, ss = carry
            acc = _taps_matmul(src_ref, w_ref, ho, roffs, coffs, Wo)
            y_ref[0, ho, :, :] = acc.astype(y_ref.dtype)
            s = s + jnp.sum(acc, axis=0, keepdims=True)
            ss = ss + jnp.sum(acc * acc, axis=0, keepdims=True)
            return (s, ss)

        init = (jnp.zeros((1, Co), jnp.float32), jnp.zeros((1, Co), jnp.float32))
        s, ss = jax.lax.fori_loop(0, Ho, body, init)
        sum_ref[0] = s
        ssq_ref[0] = ss
    return kernel


def conv_plain(src, w, b, Ho, Wo, roffs, coffs):
    N, Hs, Ws, C = src.shape
    Co = w.shape[-1]
    blk = (Hs * Ws * C + Ho * Wo * Co + w.size) * 2 + Co * 4
    return pl.pallas_call(
        _make_plain_conv_kernel(Ho, Wo, roffs, coffs),
        out_shape=jax.ShapeDtypeStruct((N, Ho, Wo, Co), jnp.bfloat16),
        grid=(N,),
        in_specs=[
            pl.BlockSpec((1, Hs, Ws, C), lambda n: (n, 0, 0, 0)),
            pl.BlockSpec((9, C, Co), lambda n: (0, 0, 0)),      # constant -> fetched once
            pl.BlockSpec((1, Co), lambda n: (0, 0)),
        ],
        out_specs=pl.BlockSpec((1, Ho, Wo, Co), lambda n: (n, 0, 0, 0)),
        compiler_params=pltpu.CompilerParams(
            dimension_semantics=("parallel",),
            vmem_limit_bytes=_vmem_limit(blk)),
    )(src, w, b)


def conv_bn(src, w, Ho, Wo, roffs, coffs):
    N, Hs, Ws, C = src.shape
    Co = w.shape[-1]
    blk = (Hs * Ws * C + Ho * Wo * Co + w.size) * 2 + 2 * Co * 4
    return pl.pallas_call(
        _make_bn_conv_kernel(Ho, Wo, roffs, coffs),
        out_shape=(
            jax.ShapeDtypeStruct((N, Ho, Wo, Co), jnp.bfloat16),   # raw conv output
            jax.ShapeDtypeStruct((N, 1, Co), jnp.float32),         # per-image sum
            jax.ShapeDtypeStruct((N, 1, Co), jnp.float32),         # per-image sum of sq
        ),
        grid=(N,),
        in_specs=[
            pl.BlockSpec((1, Hs, Ws, C), lambda n: (n, 0, 0, 0)),
            pl.BlockSpec((9, C, Co), lambda n: (0, 0, 0)),
        ],
        out_specs=(
            pl.BlockSpec((1, Ho, Wo, Co), lambda n: (n, 0, 0, 0)),
            pl.BlockSpec((1, 1, Co), lambda n: (n, 0, 0)),
            pl.BlockSpec((1, 1, Co), lambda n: (n, 0, 0)),
        ),
        compiler_params=pltpu.CompilerParams(
            dimension_semantics=("parallel",),    # per-image stats -> megacore friendly
            vmem_limit_bytes=_vmem_limit(blk)),
    )(src, w)


# ---------------------------------------------------------------------------
# Fused head: last BN fold + LeakyReLU + AdaptiveAvgPool2d(1) + 3 dense layers
# ---------------------------------------------------------------------------
def _head_kernel(y_ref, sc_ref, sh_ref, w1_ref, b1_ref, w2_ref, b2_ref,
                 w3_ref, b3_ref, o_ref):
    y = y_ref[0].astype(jnp.float32)                        # (S, C) raw last conv
    y = _lrelu(y * sc_ref[...] + sh_ref[...])               # fold last BN + LReLU
    pooled = jnp.mean(y, axis=0, keepdims=True)             # AdaptiveAvgPool2d(1)
    h = jnp.dot(pooled.astype(jnp.bfloat16), w1_ref[...],
                preferred_element_type=jnp.float32) + b1_ref[...]
    h = _lrelu(h)
    h = jnp.dot(h.astype(jnp.bfloat16), w2_ref[...],
                preferred_element_type=jnp.float32) + b2_ref[...]
    h = _lrelu(h)
    h = jnp.dot(h.astype(jnp.bfloat16), w3_ref[...],
                preferred_element_type=jnp.float32) + b3_ref[...]
    o_ref[0] = h                                            # final 1x1 conv: no act


def mlp_head(y, scale, shift, mlp):
    N, S, C = y.shape
    (w1, b1), (w2, b2), (w3, b3) = [(m["w"], m["b"]) for m in mlp]
    co = w3.shape[-1]
    args, weight_specs = [], []
    for w_, b_ in ((w1, b1), (w2, b2), (w3, b3)):
        weight_specs += [pl.BlockSpec(w_.shape, lambda n: (0, 0)),
                         pl.BlockSpec(b_.shape, lambda n: (0, 0))]
        args += [w_, b_]
    blk = S * C * 2 + sum(int(a.size) * 4 for a in args) + 2 * C * 4 + co * 4
    return pl.pallas_call(
        _head_kernel,
        out_shape=jax.ShapeDtypeStruct((N, 1, co), jnp.float32),
        grid=(N,),
        in_specs=[pl.BlockSpec((1, S, C), lambda n: (n, 0, 0)),
                  pl.BlockSpec((1, C), lambda n: (0, 0)),
                  pl.BlockSpec((1, C), lambda n: (0, 0))] + weight_specs,
        out_specs=pl.BlockSpec((1, 1, co), lambda n: (n, 0, 0)),
        compiler_params=pltpu.CompilerParams(
            dimension_semantics=("parallel",),
            vmem_limit_bytes=_vmem_limit(blk)),
    )(y, scale, shift, *args)


# ---------------------------------------------------------------------------
# JAX glue: build the padded conv source (and apply the pending BN fold).
# ---------------------------------------------------------------------------
def prep_source(x, stride, pending, cin_p):
    """Build the zero-padded (and, for stride 2, 2x2-polyphase-rearranged)
    conv source.  The previous BN layer's folded (scale, shift) + LeakyReLU is
    applied here, fused by XLA into the same copy that performs the padding,
    so the padding stays exactly zero and no extra HBM pass is needed."""
    N, H, W, C = x.shape
    a = x.astype(jnp.float32)
    if pending is not None:
        scale, shift = pending
        a = _lrelu(a * scale.reshape(1, 1, 1, -1) + shift.reshape(1, 1, 1, -1))
    a = a.astype(jnp.bfloat16)
    cpad = cin_p - C
    Ho = (H - 1) // stride + 1           # = (H + 2*pad - 3)//stride + 1, pad = 1
    Wo = (W - 1) // stride + 1
    if stride == 1:
        src = jnp.pad(a, ((0, 0), (1, 1), (1, 1), (0, cpad)))
        roffs, coffs = (0, 1, 2), (0, 1, 2)
    else:
        Hp, Wp = 2 * Ho + 2, 2 * Wo + 2
        src = jnp.pad(a, ((0, 0), (1, Hp - H - 1), (1, Wp - W - 1), (0, cpad)))
        # polyphase: src[p*(Ho+1)+i, q*(Wo+1)+j] = padded[2i+p, 2j+q]
        src = (src.reshape(N, Ho + 1, 2, Wo + 1, 2, cin_p)
                  .transpose(0, 2, 1, 4, 3, 5)
                  .reshape(N, Hp, Wp, cin_p))
        # tap (kh, kw) -> phase (kh%2, kw%2) with offset (kh//2, kw//2)
        roffs = (0, Ho + 1, 1)
        coffs = (0, Wo + 1, 1)
    return src, Ho, Wo, roffs, coffs


# ---------------------------------------------------------------------------
# Parameter init (mirrors torch: Normal(0, 0.001) conv weights, zero bias,
# BN gamma=1 / beta=0).  Channels are padded only to multiples of 16; padded
# channels have zero weights and gamma=0 so they stay exactly zero throughout.
# ---------------------------------------------------------------------------
def init_params(key, feature_maps: int = 16):
    fm = feature_maps
    cfg = [
        # (in_ch, out_ch, stride, batch_norm)
        (1, fm, 1, False),
        (fm, fm, 2, True),
        (fm, 2 * fm, 1, True),
        (2 * fm, 2 * fm, 2, True),
        (2 * fm, 4 * fm, 1, True),
        (4 * fm, 4 * fm, 2, True),
        (4 * fm, 8 * fm, 1, True),
        (8 * fm, 8 * fm, 2, True),
    ]
    convs = []
    for ci, co, stride, bn in cfg:
        ci_p, co_p = _round_up(ci, CPAD), _round_up(co, CPAD)
        key, sub = jax.random.split(key)
        w = jax.random.normal(sub, (3, 3, ci, co), jnp.float32) * 1e-3
        w_p = jnp.zeros((3, 3, ci_p, co_p), jnp.float32).at[:, :, :ci, :co].set(w)
        convs.append(dict(
            w=w_p.reshape(9, ci_p, co_p).astype(jnp.bfloat16),
            b=jnp.zeros((1, co_p), jnp.float32),
            gamma=jnp.zeros((1, co_p), jnp.float32).at[:, :co].set(1.0),
            beta=jnp.zeros((1, co_p), jnp.float32),
            stride=stride,
            bn=bn,
        ))

    mlp_cfg = [(8 * fm, 16 * fm), (16 * fm, 16 * fm), (16 * fm, 1)]
    mlp = []
    for ci, co in mlp_cfg:
        ci_p = _round_up(ci, CPAD)
        co_p = _round_up(co, CPAD) if co > 1 else 8
        key, sub = jax.random.split(key)
        w = jax.random.normal(sub, (ci, co), jnp.float32) * 1e-3
        w_p = jnp.zeros((ci_p, co_p), jnp.float32).at[:ci, :co].set(w)
        mlp.append(dict(w=w_p.astype(jnp.bfloat16),
                        b=jnp.zeros((1, co_p), jnp.float32)))
    return dict(convs=convs, mlp=mlp, out_features=1)


# ---------------------------------------------------------------------------
# Forward pass
# ---------------------------------------------------------------------------
def discriminator_forward(x_nchw, params):
    x = jnp.transpose(x_nchw, (0, 2, 3, 1))                  # NCHW -> NHWC
    act, pending = x, None                                   # pending = (scale, shift)

    for layer in params["convs"]:
        cin_p = layer["w"].shape[1]
        src, Ho, Wo, roffs, coffs = prep_source(act, layer["stride"], pending, cin_p)
        if layer["bn"]:
            # Conv bias skipped: train-mode BatchNorm cancels it exactly.
            y, psum, pssq = conv_bn(src, layer["w"], Ho, Wo, roffs, coffs)
            count = jnp.float32(y.shape[0] * Ho * Wo)
            mean = jnp.sum(psum, axis=0) / count                       # (1, Co)
            # E[x^2]-E[x]^2 in f32; fine at this weight scale (see review note).
            var = jnp.maximum(jnp.sum(pssq, axis=0) / count - mean * mean, 0.0)
            scale = layer["gamma"] * jax.lax.rsqrt(var + EPS)
            shift = layer["beta"] - mean * scale
            act, pending = y, (scale, shift)
        else:
            act = conv_plain(src, layer["w"], layer["b"], Ho, Wo, roffs, coffs)
            pending = None

    # Head reads the raw last activation once: BN fold + LReLU + pool + MLP.
    N, Ho, Wo, C = act.shape
    scale, shift = pending
    out = mlp_head(act.reshape(N, Ho * Wo, C), scale, shift, params["mlp"])
    return out[:, 0, :params["out_features"]]                 # (N, 1), f32


# ---------------------------------------------------------------------------
if __name__ == "__main__":
    key = jax.random.PRNGKey(0)
    key, pkey, xkey = jax.random.split(key, 3)

    feature_maps = 16                                        # small, consistent scale
    params = init_params(pkey, feature_maps=feature_maps)

    x = jax.random.normal(xkey, (2, 1, 16, 16), jnp.float32)  # NCHW, 1 input channel

    fwd = jax.jit(lambda inp: discriminator_forward(inp, params))
    out = jax.block_until_ready(fwd(x))

    assert out.shape == (2, 1), out.shape
    assert out.dtype == jnp.float32
    assert bool(jnp.all(jnp.isfinite(out)))
    print("KERNEL_OK")
</pallas_src>

<mosaic_0001>
module attributes {stable_mosaic.version = 11 : i64} {
  func.func @kernel(%arg0: i32, %arg1: memref<1x18x18x16xbf16, #tpu.memory_space<vmem>>, %arg2: memref<9x16x16xbf16, #tpu.memory_space<vmem>>, %arg3: memref<1x16xf32, #tpu.memory_space<vmem>>, %arg4: memref<1x16x16x16xbf16, #tpu.memory_space<vmem>>) attributes {dimension_semantics = [#tpu.dimension_semantics<parallel>], iteration_bounds = array<i64: 2>, scalar_prefetch = 0 : i64, scratch_operands = 0 : i64, tpu.core_type = #tpu.core_type<tc>, window_params = [{transform_indices = @transform_0, window_bounds = array<i64: 1, 18, 18, 16>}, {pipeline_mode = #tpu.pipeline_mode<synchronous>, transform_indices = @transform_1, window_bounds = array<i64: 9, 16, 16>}, {pipeline_mode = #tpu.pipeline_mode<synchronous>, transform_indices = @transform_2, window_bounds = array<i64: 1, 16>}, {transform_indices = @transform_3, window_bounds = array<i64: 1, 16, 16, 16>}]} {
    %c0_i32 = arith.constant 0 : i32
    %c16_i32 = arith.constant 16 : i32
    %0 = arith.addi %c0_i32, %c16_i32 : i32
    %c1_i32 = arith.constant 1 : i32
    scf.for %arg5 = %c0_i32 to %0 step %c1_i32  : i32 {
      %cst = arith.constant 0.000000e+00 : f32
      %1 = vector.broadcast %cst : f32 to vector<16x16xf32>
      %c0_i32_1 = arith.constant 0 : i32
      %2 = arith.addi %c0_i32_1, %arg5 : i32
      %c0 = arith.constant 0 : index
      %3 = arith.index_cast %2 : i32 to index
      %c0_2 = arith.constant 0 : index
      %c0_3 = arith.constant 0 : index
      %4 = vector.load %arg1[%c0, %3, %c0_2, %c0_3] : memref<1x18x18x16xbf16, #tpu.memory_space<vmem>>, vector<1x1x16x16xbf16>
      %5 = vector.shape_cast %4 : vector<1x1x16x16xbf16> to vector<16x16xbf16>
      %c0_4 = arith.constant 0 : index
      %c0_5 = arith.constant 0 : index
      %c0_6 = arith.constant 0 : index
      %6 = vector.load %arg2[%c0_4, %c0_5, %c0_6] : memref<9x16x16xbf16, #tpu.memory_space<vmem>>, vector<1x16x16xbf16>
      %7 = vector.shape_cast %6 : vector<1x16x16xbf16> to vector<16x16xbf16>
      %cst_7 = arith.constant dense<0.000000e+00> : vector<16x16xf32>
      %8 = tpu.matmul %5, %7, %cst_7 {dimension_numbers = #tpu.dot_dimension_numbers<[1], [0], [0], [1], [0, 0, 1, 1], [], []>} : vector<16x16xbf16>, vector<16x16xbf16>, vector<16x16xf32> -> vector<16x16xf32>
      %9 = arith.addf %1, %8 : vector<16x16xf32>
      %c0_8 = arith.constant 0 : index
      %10 = arith.index_cast %2 : i32 to index
      %c1 = arith.constant 1 : index
      %c0_9 = arith.constant 0 : index
      %11 = vector.load %arg1[%c0_8, %10, %c1, %c0_9] : memref<1x18x18x16xbf16, #tpu.memory_space<vmem>>, vector<1x1x16x16xbf16>
      %12 = vector.shape_cast %11 : vector<1x1x16x16xbf16> to vector<16x16xbf16>
      %c1_10 = arith.constant 1 : index
      %c0_11 = arith.constant 0 : index
      %c0_12 = arith.constant 0 : index
      %13 = vector.load %arg2[%c1_10, %c0_11, %c0_12] : memref<9x16x16xbf16, #tpu.memory_space<vmem>>, vector<1x16x16xbf16>
      %14 = vector.shape_cast %13 : vector<1x16x16xbf16> to vector<16x16xbf16>
      %cst_13 = arith.constant dense<0.000000e+00> : vector<16x16xf32>
      %15 = tpu.matmul %12, %14, %cst_13 {dimension_numbers = #tpu.dot_dimension_numbers<[1], [0], [0], [1], [0, 0, 1, 1], [], []>} : vector<16x16xbf16>, vector<16x16xbf16>, vector<16x16xf32> -> vector<16x16xf32>
      %16 = arith.addf %9, %15 : vector<16x16xf32>
      %c0_14 = arith.constant 0 : index
      %17 = arith.index_cast %2 : i32 to index
      %c2 = arith.constant 2 : index
      %c0_15 = arith.constant 0 : index
      %18 = vector.load %arg1[%c0_14, %17, %c2, %c0_15] : memref<1x18x18x16xbf16, #tpu.memory_space<vmem>>, vector<1x1x16x16xbf16>
      %19 = vector.shape_cast %18 : vector<1x1x16x16xbf16> to vector<16x16xbf16>
      %c2_16 = arith.constant 2 : index
      %c0_17 = arith.constant 0 : index
      %c0_18 = arith.constant 0 : index
      %20 = vector.load %arg2[%c2_16, %c0_17, %c0_18] : memref<9x16x16xbf16, #tpu.memory_space<vmem>>, vector<1x16x16xbf16>
      %21 = vector.shape_cast %20 : vector<1x16x16xbf16> to vector<16x16xbf16>
      %cst_19 = arith.constant dense<0.000000e+00> : vector<16x16xf32>
      %22 = tpu.matmul %19, %21, %cst_19 {dimension_numbers = #tpu.dot_dimension_numbers<[1], [0], [0], [1], [0, 0, 1, 1], [], []>} : vector<16x16xbf16>, vector<16x16xbf16>, vector<16x16xf32> -> vector<16x16xf32>
      %23 = arith.addf %16, %22 : vector<16x16xf32>
      %c1_i32_20 = arith.constant 1 : i32
      %24 = arith.addi %c1_i32_20, %arg5 : i32
      %c0_21 = arith.constant 0 : index
      %25 = arith.index_cast %24 : i32 to index
      %c0_22 = arith.constant 0 : index
      %c0_23 = arith.constant 0 : index
      %26 = vector.load %arg1[%c0_21, %25, %c0_22, %c0_23] : memref<1x18x18x16xbf16, #tpu.memory_space<vmem>>, vector<1x1x16x16xbf16>
      %27 = vector.shape_cast %26 : vector<1x1x16x16xbf16> to vector<16x16xbf16>
      %c3 = arith.constant 3 : index
      %c0_24 = arith.constant 0 : index
      %c0_25 = arith.constant 0 : index
      %28 = vector.load %arg2[%c3, %c0_24, %c0_25] : memref<9x16x16xbf16, #tpu.memory_space<vmem>>, vector<1x16x16xbf16>
      %29 = vector.shape_cast %28 : vector<1x16x16xbf16> to vector<16x16xbf16>
      %cst_26 = arith.constant dense<0.000000e+00> : vector<16x16xf32>
      %30 = tpu.matmul %27, %29, %cst_26 {dimension_numbers = #tpu.dot_dimension_numbers<[1], [0], [0], [1], [0, 0, 1, 1], [], []>} : vector<16x16xbf16>, vector<16x16xbf16>, vector<16x16xf32> -> vector<16x16xf32>
      %31 = arith.addf %23, %30 : vector<16x16xf32>
      %c0_27 = arith.constant 0 : index
      %32 = arith.index_cast %24 : i32 to index
      %c1_28 = arith.constant 1 : index
      %c0_29 = arith.constant 0 : index
      %33 = vector.load %arg1[%c0_27, %32, %c1_28, %c0_29] : memref<1x18x18x16xbf16, #tpu.memory_space<vmem>>, vector<1x1x16x16xbf16>
      %34 = vector.shape_cast %33 : vector<1x1x16x16xbf16> to vector<16x16xbf16>
      %c4 = arith.constant 4 : index
      %c0_30 = arith.constant 0 : index
      %c0_31 = arith.constant 0 : index
      %35 = vector.load %arg2[%c4, %c0_30, %c0_31] : memref<9x16x16xbf16, #tpu.memory_space<vmem>>, vector<1x16x16xbf16>
      %36 = vector.shape_cast %35 : vector<1x16x16xbf16> to vector<16x16xbf16>
      %cst_32 = arith.constant dense<0.000000e+00> : vector<16x16xf32>
      %37 = tpu.matmul %34, %36, %cst_32 {dimension_numbers = #tpu.dot_dimension_numbers<[1], [0], [0], [1], [0, 0, 1, 1], [], []>} : vector<16x16xbf16>, vector<16x16xbf16>, vector<16x16xf32> -> vector<16x16xf32>
      %38 = arith.addf %31, %37 : vector<16x16xf32>
      %c0_33 = arith.constant 0 : index
      %39 = arith.index_cast %24 : i32 to index
      %c2_34 = arith.constant 2 : index
      %c0_35 = arith.constant 0 : index
      %40 = vector.load %arg1[%c0_33, %39, %c2_34, %c0_35] : memref<1x18x18x16xbf16, #tpu.memory_space<vmem>>, vector<1x1x16x16xbf16>
      %41 = vector.shape_cast %40 : vector<1x1x16x16xbf16> to vector<16x16xbf16>
      %c5 = arith.constant 5 : index
      %c0_36 = arith.constant 0 : index
      %c0_37 = arith.constant 0 : index
      %42 = vector.load %arg2[%c5, %c0_36, %c0_37] : memref<9x16x16xbf16, #tpu.memory_space<vmem>>, vector<1x16x16xbf16>
      %43 = vector.shape_cast %42 : vector<1x16x16xbf16> to vector<16x16xbf16>
      %cst_38 = arith.constant dense<0.000000e+00> : vector<16x16xf32>
      %44 = tpu.matmul %41, %43, %cst_38 {dimension_numbers = #tpu.dot_dimension_numbers<[1], [0], [0], [1], [0, 0, 1, 1], [], []>} : vector<16x16xbf16>, vector<16x16xbf16>, vector<16x16xf32> -> vector<16x16xf32>
      %45 = arith.addf %38, %44 : vector<16x16xf32>
      %c2_i32 = arith.constant 2 : i32
      %46 = arith.addi %c2_i32, %arg5 : i32
      %c0_39 = arith.constant 0 : index
      %47 = arith.index_cast %46 : i32 to index
      %c0_40 = arith.constant 0 : index
      %c0_41 = arith.constant 0 : index
      %48 = vector.load %arg1[%c0_39, %47, %c0_40, %c0_41] : memref<1x18x18x16xbf16, #tpu.memory_space<vmem>>, vector<1x1x16x16xbf16>
      %49 = vector.shape_cast %48 : vector<1x1x16x16xbf16> to vector<16x16xbf16>
      %c6 = arith.constant 6 : index
      %c0_42 = arith.constant 0 : index
      %c0_43 = arith.constant 0 : index
      %50 = vector.load %arg2[%c6, %c0_42, %c0_43] : memref<9x16x16xbf16, #tpu.memory_space<vmem>>, vector<1x16x16xbf16>
      %51 = vector.shape_cast %50 : vector<1x16x16xbf16> to vector<16x16xbf16>
      %cst_44 = arith.constant dense<0.000000e+00> : vector<16x16xf32>
      %52 = tpu.matmul %49, %51, %cst_44 {dimension_numbers = #tpu.dot_dimension_numbers<[1], [0], [0], [1], [0, 0, 1, 1], [], []>} : vector<16x16xbf16>, vector<16x16xbf16>, vector<16x16xf32> -> vector<16x16xf32>
      %53 = arith.addf %45, %52 : vector<16x16xf32>
      %c0_45 = arith.constant 0 : index
      %54 = arith.index_cast %46 : i32 to index
      %c1_46 = arith.constant 1 : index
      %c0_47 = arith.constant 0 : index
      %55 = vector.load %arg1[%c0_45, %54, %c1_46, %c0_47] : memref<1x18x18x16xbf16, #tpu.memory_space<vmem>>, vector<1x1x16x16xbf16>
      %56 = vector.shape_cast %55 : vector<1x1x16x16xbf16> to vector<16x16xbf16>
      %c7 = arith.constant 7 : index
      %c0_48 = arith.constant 0 : index
      %c0_49 = arith.constant 0 : index
      %57 = vector.load %arg2[%c7, %c0_48, %c0_49] : memref<9x16x16xbf16, #tpu.memory_space<vmem>>, vector<1x16x16xbf16>
      %58 = vector.shape_cast %57 : vector<1x16x16xbf16> to vector<16x16xbf16>
      %cst_50 = arith.constant dense<0.000000e+00> : vector<16x16xf32>
      %59 = tpu.matmul %56, %58, %cst_50 {dimension_numbers = #tpu.dot_dimension_numbers<[1], [0], [0], [1], [0, 0, 1, 1], [], []>} : vector<16x16xbf16>, vector<16x16xbf16>, vector<16x16xf32> -> vector<16x16xf32>
      %60 = arith.addf %53, %59 : vector<16x16xf32>
      %c0_51 = arith.constant 0 : index
      %61 = arith.index_cast %46 : i32 to index
      %c2_52 = arith.constant 2 : index
      %c0_53 = arith.constant 0 : index
      %62 = vector.load %arg1[%c0_51, %61, %c2_52, %c0_53] : memref<1x18x18x16xbf16, #tpu.memory_space<vmem>>, vector<1x1x16x16xbf16>
      %63 = vector.shape_cast %62 : vector<1x1x16x16xbf16> to vector<16x16xbf16>
      %c8 = arith.constant 8 : index
      %c0_54 = arith.constant 0 : index
      %c0_55 = arith.constant 0 : index
      %64 = vector.load %arg2[%c8, %c0_54, %c0_55] : memref<9x16x16xbf16, #tpu.memory_space<vmem>>, vector<1x16x16xbf16>
      %65 = vector.shape_cast %64 : vector<1x16x16xbf16> to vector<16x16xbf16>
      %cst_56 = arith.constant dense<0.000000e+00> : vector<16x16xf32>
      %66 = tpu.matmul %63, %65, %cst_56 {dimension_numbers = #tpu.dot_dimension_numbers<[1], [0], [0], [1], [0, 0, 1, 1], [], []>} : vector<16x16xbf16>, vector<16x16xbf16>, vector<16x16xf32> -> vector<16x16xf32>
      %67 = arith.addf %60, %66 : vector<16x16xf32>
      %c0_57 = arith.constant 0 : index
      %c0_58 = arith.constant 0 : index
      %68 = vector.load %arg3[%c0_57, %c0_58] : memref<1x16xf32, #tpu.memory_space<vmem>>, vector<1x16xf32>
      %69 = vector.broadcast %68 : vector<1x16xf32> to vector<16x16xf32>
      %70 = arith.addf %67, %69 : vector<16x16xf32>
      %cst_59 = arith.constant 0.000000e+00 : f32
      %71 = vector.broadcast %cst_59 : f32 to vector<16x16xf32>
      %72 = arith.cmpf oge, %70, %71 : vector<16x16xf32>
      %cst_60 = arith.constant 2.000000e-01 : f32
      %73 = vector.broadcast %cst_60 : f32 to vector<16x16xf32>
      %74 = arith.mulf %73, %70 : vector<16x16xf32>
      %75 = arith.select %72, %70, %74 : vector<16x16xi1>, vector<16x16xf32>
      %76 = arith.truncf %75 : vector<16x16xf32> to vector<16x16xbf16>
      %c0_61 = arith.constant 0 : index
      %77 = arith.index_cast %arg5 : i32 to index
      %c0_62 = arith.constant 0 : index
      %c0_63 = arith.constant 0 : index
      %78 = vector.load %arg4[%c0_61, %77, %c0_62, %c0_63] : memref<1x16x16x16xbf16, #tpu.memory_space<vmem>>, vector<1x1x16x16xbf16>
      %79 = vector.shape_cast %78 : vector<1x1x16x16xbf16> to vector<16x16xbf16>
      %80 = vector.shape_cast %76 : vector<16x16xbf16> to vector<1x1x16x16xbf16>
      tpu.vector_store %arg4[%c0_61, %77, %c0_62, %c0_63], %80 {strides = array<i32>} : memref<1x16x16x16xbf16, #tpu.memory_space<vmem>>, vector<1x1x16x16xbf16>,
    }
    %c16_i32_0 = arith.constant 16 : i32
    return
  }
  func.func @transform_0(%arg0: i32) -> (i32, i32, i32, i32) {
    %c0_i32 = arith.constant 0 : i32
    %c0_i32_0 = arith.constant 0 : i32
    %c0_i32_1 = arith.constant 0 : i32
    %c0_i32_2 = arith.constant 0 : i32
    return %arg0, %c0_i32, %c0_i32_0, %c0_i32_1 : i32, i32, i32, i32
  }
  func.func @transform_1(%arg0: i32) -> (i32, i32, i32) {
    %c0_i32 = arith.constant 0 : i32
    %c0_i32_0 = arith.constant 0 : i32
    %c0_i32_1 = arith.constant 0 : i32
    %c0_i32_2 = arith.constant 0 : i32
    return %c0_i32, %c0_i32_0, %c0_i32_1 : i32, i32, i32
  }
  func.func @transform_2(%arg0: i32) -> (i32, i32) {
    %c0_i32 = arith.constant 0 : i32
    %c0_i32_0 = arith.constant 0 : i32
    %c0_i32_1 = arith.constant 0 : i32
    return %c0_i32, %c0_i32_0 : i32, i32
  }
  func.func @transform_3(%arg0: i32) -> (i32, i32, i32, i32) {
    %c0_i32 = arith.constant 0 : i32
    %c0_i32_0 = arith.constant 0 : i32
    %c0_i32_1 = arith.constant 0 : i32
    %c0_i32_2 = arith.constant 0 : i32
    return %arg0, %c0_i32, %c0_i32_0, %c0_i32_1 : i32, i32, i32, i32
  }
}

module attributes {stable_mosaic.version = 11 : i64} {
  func.func @kernel(%arg0: i32, %arg1: memref<1x18x18x16xbf16, #tpu.memory_space<vmem>>, %arg2: memref<9x16x16xbf16, #tpu.memory_space<vmem>>, %arg3: memref<1x8x8x16xbf16, #tpu.memory_space<vmem>>, %arg4: memref<1x1x16xf32, #tpu.memory_space<vmem>>, %arg5: memref<1x1x16xf32, #tpu.memory_space<vmem>>) attributes {dimension_semantics = [#tpu.dimension_semantics<parallel>], iteration_bounds = array<i64: 2>, scalar_prefetch = 0 : i64, scratch_operands = 0 : i64, tpu.core_type = #tpu.core_type<tc>, window_params = [{transform_indices = @transform_0, window_bounds = array<i64: 1, 18, 18, 16>}, {pipeline_mode = #tpu.pipeline_mode<synchronous>, transform_indices = @transform_1, window_bounds = array<i64: 9, 16, 16>}, {transform_indices = @transform_2, window_bounds = array<i64: 1, 8, 8, 16>}, {transform_indices = @transform_3, window_bounds = array<i64: 1, 1, 16>}, {transform_indices = @transform_4, window_bounds = array<i64: 1, 1, 16>}]} {
    %cst = arith.constant 0.000000e+00 : f32
    %0 = vector.broadcast %cst : f32 to vector<1x16xf32>
    %cst_0 = arith.constant 0.000000e+00 : f32
    %1 = vector.broadcast %cst_0 : f32 to vector<1x16xf32>
    %c0_i32 = arith.constant 0 : i32
    %c8_i32 = arith.constant 8 : i32
    %2 = arith.addi %c0_i32, %c8_i32 : i32
    %c1_i32 = arith.constant 1 : i32
    %3:2 = scf.for %arg6 = %c0_i32 to %2 step %c1_i32 iter_args(%arg7 = %0, %arg8 = %1) -> (vector<1x16xf32>, vector<1x16xf32>)  : i32 {
      %cst_7 = arith.constant 0.000000e+00 : f32
      %10 = vector.broadcast %cst_7 : f32 to vector<8x16xf32>
      %c0_i32_8 = arith.constant 0 : i32
      %11 = arith.addi %c0_i32_8, %arg6 : i32
      %c0_9 = arith.constant 0 : index
      %12 = arith.index_cast %11 : i32 to index
      %c0_10 = arith.constant 0 : index
      %c0_11 = arith.constant 0 : index
      %13 = vector.load %arg1[%c0_9, %12, %c0_10, %c0_11] : memref<1x18x18x16xbf16, #tpu.memory_space<vmem>>, vector<1x1x8x16xbf16>
      %14 = vector.shape_cast %13 : vector<1x1x8x16xbf16> to vector<8x16xbf16>
      %c0_12 = arith.constant 0 : index
      %c0_13 = arith.constant 0 : index
      %c0_14 = arith.constant 0 : index
      %15 = vector.load %arg2[%c0_12, %c0_13, %c0_14] : memref<9x16x16xbf16, #tpu.memory_space<vmem>>, vector<1x16x16xbf16>
      %16 = vector.shape_cast %15 : vector<1x16x16xbf16> to vector<16x16xbf16>
      %cst_15 = arith.constant dense<0.000000e+00> : vector<8x16xf32>
      %17 = tpu.matmul %14, %16, %cst_15 {dimension_numbers = #tpu.dot_dimension_numbers<[1], [0], [0], [1], [0, 0, 1, 1], [], []>} : vector<8x16xbf16>, vector<16x16xbf16>, vector<8x16xf32> -> vector<8x16xf32>
      %18 = arith.addf %10, %17 : vector<8x16xf32>
      %c0_16 = arith.constant 0 : index
      %19 = arith.index_cast %11 : i32 to index
      %c9 = arith.constant 9 : index
      %c0_17 = arith.constant 0 : index
      %20 = vector.load %arg1[%c0_16, %19, %c9, %c0_17] : memref<1x18x18x16xbf16, #tpu.memory_space<vmem>>, vector<1x1x8x16xbf16>
      %21 = vector.shape_cast %20 : vector<1x1x8x16xbf16> to vector<8x16xbf16>
      %c1 = arith.constant 1 : index
      %c0_18 = arith.constant 0 : index
      %c0_19 = arith.constant 0 : index
      %22 = vector.load %arg2[%c1, %c0_18, %c0_19] : memref<9x16x16xbf16, #tpu.memory_space<vmem>>, vector<1x16x16xbf16>
      %23 = vector.shape_cast %22 : vector<1x16x16xbf16> to vector<16x16xbf16>
      %cst_20 = arith.constant dense<0.000000e+00> : vector<8x16xf32>
      %24 = tpu.matmul %21, %23, %cst_20 {dimension_numbers = #tpu.dot_dimension_numbers<[1], [0], [0], [1], [0, 0, 1, 1], [], []>} : vector<8x16xbf16>, vector<16x16xbf16>, vector<8x16xf32> -> vector<8x16xf32>
      %25 = arith.addf %18, %24 : vector<8x16xf32>
      %c0_21 = arith.constant 0 : index
      %26 = arith.index_cast %11 : i32 to index
      %c1_22 = arith.constant 1 : index
      %c0_23 = arith.constant 0 : index
      %27 = vector.load %arg1[%c0_21, %26, %c1_22, %c0_23] : memref<1x18x18x16xbf16, #tpu.memory_space<vmem>>, vector<1x1x8x16xbf16>
      %28 = vector.shape_cast %27 : vector<1x1x8x16xbf16> to vector<8x16xbf16>
      %c2 = arith.constant 2 : index
      %c0_24 = arith.constant 0 : index
      %c0_25 = arith.constant 0 : index
      %29 = vector.load %arg2[%c2, %c0_24, %c0_25] : memref<9x16x16xbf16, #tpu.memory_space<vmem>>, vector<1x16x16xbf16>
      %30 = vector.shape_cast %29 : vector<1x16x16xbf16> to vector<16x16xbf16>
      %cst_26 = arith.constant dense<0.000000e+00> : vector<8x16xf32>
      %31 = tpu.matmul %28, %30, %cst_26 {dimension_numbers = #tpu.dot_dimension_numbers<[1], [0], [0], [1], [0, 0, 1, 1], [], []>} : vector<8x16xbf16>, vector<16x16xbf16>, vector<8x16xf32> -> vector<8x16xf32>
      %32 = arith.addf %25, %31 : vector<8x16xf32>
      %c9_i32 = arith.constant 9 : i32
      %33 = arith.addi %c9_i32, %arg6 : i32
      %c0_27 = arith.constant 0 : index
      %34 = arith.index_cast %33 : i32 to index
      %c0_28 = arith.constant 0 : index
      %c0_29 = arith.constant 0 : index
      %35 = vector.load %arg1[%c0_27, %34, %c0_28, %c0_29] : memref<1x18x18x16xbf16, #tpu.memory_space<vmem>>, vector<1x1x8x16xbf16>
      %36 = vector.shape_cast %35 : vector<1x1x8x16xbf16> to vector<8x16xbf16>
      %c3 = arith.constant 3 : index
      %c0_30 = arith.constant 0 : index
      %c0_31 = arith.constant 0 : index
      %37 = vector.load %arg2[%c3, %c0_30, %c0_31] : memref<9x16x16xbf16, #tpu.memory_space<vmem>>, vector<1x16x16xbf16>
      %38 = vector.shape_cast %37 : vector<1x16x16xbf16> to vector<16x16xbf16>
      %cst_32 = arith.constant dense<0.000000e+00> : vector<8x16xf32>
      %39 = tpu.matmul %36, %38, %cst_32 {dimension_numbers = #tpu.dot_dimension_numbers<[1], [0], [0], [1], [0, 0, 1, 1], [], []>} : vector<8x16xbf16>, vector<16x16xbf16>, vector<8x16xf32> -> vector<8x16xf32>
      %40 = arith.addf %32, %39 : vector<8x16xf32>
      %c0_33 = arith.constant 0 : index
      %41 = arith.index_cast %33 : i32 to index
      %c9_34 = arith.constant 9 : index
      %c0_35 = arith.constant 0 : index
      %42 = vector.load %arg1[%c0_33, %41, %c9_34, %c0_35] : memref<1x18x18x16xbf16, #tpu.memory_space<vmem>>, vector<1x1x8x16xbf16>
      %43 = vector.shape_cast %42 : vector<1x1x8x16xbf16> to vector<8x16xbf16>
      %c4 = arith.constant 4 : index
      %c0_36 = arith.constant 0 : index
      %c0_37 = arith.constant 0 : index
      %44 = vector.load %arg2[%c4, %c0_36, %c0_37] : memref<9x16x16xbf16, #tpu.memory_space<vmem>>, vector<1x16x16xbf16>
      %45 = vector.shape_cast %44 : vector<1x16x16xbf16> to vector<16x16xbf16>
      %cst_38 = arith.constant dense<0.000000e+00> : vector<8x16xf32>
      %46 = tpu.matmul %43, %45, %cst_38 {dimension_numbers = #tpu.dot_dimension_numbers<[1], [0], [0], [1], [0, 0, 1, 1], [], []>} : vector<8x16xbf16>, vector<16x16xbf16>, vector<8x16xf32> -> vector<8x16xf32>
      %47 = arith.addf %40, %46 : vector<8x16xf32>
      %c0_39 = arith.constant 0 : index
      %48 = arith.index_cast %33 : i32 to index
      %c1_40 = arith.constant 1 : index
      %c0_41 = arith.constant 0 : index
      %49 = vector.load %arg1[%c0_39, %48, %c1_40, %c0_41] : memref<1x18x18x16xbf16, #tpu.memory_space<vmem>>, vector<1x1x8x16xbf16>
      %50 = vector.shape_cast %49 : vector<1x1x8x16xbf16> to vector<8x16xbf16>
      %c5 = arith.constant 5 : index
      %c0_42 = arith.constant 0 : index
      %c0_43 = arith.constant 0 : index
      %51 = vector.load %arg2[%c5, %c0_42, %c0_43] : memref<9x16x16xbf16, #tpu.memory_space<vmem>>, vector<1x16x16xbf16>
      %52 = vector.shape_cast %51 : vector<1x16x16xbf16> to vector<16x16xbf16>
      %cst_44 = arith.constant dense<0.000000e+00> : vector<8x16xf32>
      %53 = tpu.matmul %50, %52, %cst_44 {dimension_numbers = #tpu.dot_dimension_numbers<[1], [0], [0], [1], [0, 0, 1, 1], [], []>} : vector<8x16xbf16>, vector<16x16xbf16>, vector<8x16xf32> -> vector<8x16xf32>
      %54 = arith.addf %47, %53 : vector<8x16xf32>
      %c1_i32_45 = arith.constant 1 : i32
      %55 = arith.addi %c1_i32_45, %arg6 : i32
      %c0_46 = arith.constant 0 : index
      %56 = arith.index_cast %55 : i32 to index
      %c0_47 = arith.constant 0 : index
      %c0_48 = arith.constant 0 : index
      %57 = vector.load %arg1[%c0_46, %56, %c0_47, %c0_48] : memref<1x18x18x16xbf16, #tpu.memory_space<vmem>>, vector<1x1x8x16xbf16>
      %58 = vector.shape_cast %57 : vector<1x1x8x16xbf16> to vector<8x16xbf16>
      %c6 = arith.constant 6 : index
      %c0_49 = arith.constant 0 : index
      %c0_50 = arith.constant 0 : index
      %59 = vector.load %arg2[%c6, %c0_49, %c0_50] : memref<9x16x16xbf16, #tpu.memory_space<vmem>>, vector<1x16x16xbf16>
      %60 = vector.shape_cast %59 : vector<1x16x16xbf16> to vector<16x16xbf16>
      %cst_51 = arith.constant dense<0.000000e+00> : vector<8x16xf32>
      %61 = tpu.matmul %58, %60, %cst_51 {dimension_numbers = #tpu.dot_dimension_numbers<[1], [0], [0], [1], [0, 0, 1, 1], [], []>} : vector<8x16xbf16>, vector<16x16xbf16>, vector<8x16xf32> -> vector<8x16xf32>
      %62 = arith.addf %54, %61 : vector<8x16xf32>
      %c0_52 = arith.constant 0 : index
      %63 = arith.index_cast %55 : i32 to index
      %c9_53 = arith.constant 9 : index
      %c0_54 = arith.constant 0 : index
      %64 = vector.load %arg1[%c0_52, %63, %c9_53, %c0_54] : memref<1x18x18x16xbf16, #tpu.memory_space<vmem>>, vector<1x1x8x16xbf16>
      %65 = vector.shape_cast %64 : vector<1x1x8x16xbf16> to vector<8x16xbf16>
      %c7 = arith.constant 7 : index
      %c0_55 = arith.constant 0 : index
      %c0_56 = arith.constant 0 : index
      %66 = vector.load %arg2[%c7, %c0_55, %c0_56] : memref<9x16x16xbf16, #tpu.memory_space<vmem>>, vector<1x16x16xbf16>
      %67 = vector.shape_cast %66 : vector<1x16x16xbf16> to vector<16x16xbf16>
      %cst_57 = arith.constant dense<0.000000e+00> : vector<8x16xf32>
      %68 = tpu.matmul %65, %67, %cst_57 {dimension_numbers = #tpu.dot_dimension_numbers<[1], [0], [0], [1], [0, 0, 1, 1], [], []>} : vector<8x16xbf16>, vector<16x16xbf16>, vector<8x16xf32> -> vector<8x16xf32>
      %69 = arith.addf %62, %68 : vector<8x16xf32>
      %c0_58 = arith.constant 0 : index
      %70 = arith.index_cast %55 : i32 to index
      %c1_59 = arith.constant 1 : index
      %c0_60 = arith.constant 0 : index
      %71 = vector.load %arg1[%c0_58, %70, %c1_59, %c0_60] : memref<1x18x18x16xbf16, #tpu.memory_space<vmem>>, vector<1x1x8x16xbf16>
      %72 = vector.shape_cast %71 : vector<1x1x8x16xbf16> to vector<8x16xbf16>
      %c8 = arith.constant 8 : index
      %c0_61 = arith.constant 0 : index
      %c0_62 = arith.constant 0 : index
      %73 = vector.load %arg2[%c8, %c0_61, %c0_62] : memref<9x16x16xbf16, #tpu.memory_space<vmem>>, vector<1x16x16xbf16>
      %74 = vector.shape_cast %73 : vector<1x16x16xbf16> to vector<16x16xbf16>
      %cst_63 = arith.constant dense<0.000000e+00> : vector<8x16xf32>
      %75 = tpu.matmul %72, %74, %cst_63 {dimension_numbers = #tpu.dot_dimension_numbers<[1], [0], [0], [1], [0, 0, 1, 1], [], []>} : vector<8x16xbf16>, vector<16x16xbf16>, vector<8x16xf32> -> vector<8x16xf32>
      %76 = arith.addf %69, %75 : vector<8x16xf32>
      %77 = arith.truncf %76 : vector<8x16xf32> to vector<8x16xbf16>
      %c0_64 = arith.constant 0 : index
      %78 = arith.index_cast %arg6 : i32 to index
      %c0_65 = arith.constant 0 : index
      %c0_66 = arith.constant 0 : index
      %79 = vector.load %arg3[%c0_64, %78, %c0_65, %c0_66] : memref<1x8x8x16xbf16, #tpu.memory_space<vmem>>, vector<1x1x8x16xbf16>
      %80 = vector.shape_cast %79 : vector<1x1x8x16xbf16> to vector<8x16xbf16>
      %81 = vector.shape_cast %77 : vector<8x16xbf16> to vector<1x1x8x16xbf16>
      tpu.vector_store %arg3[%c0_64, %78, %c0_65, %c0_66], %81 {strides = array<i32>} : memref<1x8x8x16xbf16, #tpu.memory_space<vmem>>, vector<1x1x8x16xbf16>,
      %cst_67 = arith.constant dense<0.000000e+00> : vector<16xf32>
      %82 = vector.multi_reduction <add>, %76, %cst_67 [0] : vector<8x16xf32> to vector<16xf32>
      %83 = vector.shape_cast %82 : vector<16xf32> to vector<1x16xf32>
      %84 = arith.addf %arg7, %83 : vector<1x16xf32>
      %85 = arith.mulf %76, %76 : vector<8x16xf32>
      %cst_68 = arith.constant dense<0.000000e+00> : vector<16xf32>
      %86 = vector.multi_reduction <add>, %85, %cst_68 [0] : vector<8x16xf32> to vector<16xf32>
      %87 = vector.shape_cast %86 : vector<16xf32> to vector<1x16xf32>
      %88 = arith.addf %arg8, %87 : vector<1x16xf32>
      scf.yield %84, %88 : vector<1x16xf32>, vector<1x16xf32>
    }
    %c8_i32_1 = arith.constant 8 : i32
    %c0 = arith.constant 0 : index
    %c0_2 = arith.constant 0 : index
    %c0_3 = arith.constant 0 : index
    %4 = vector.load %arg4[%c0, %c0_2, %c0_3] : memref<1x1x16xf32, #tpu.memory_space<vmem>>, vector<1x1x16xf32>
    %5 = vector.shape_cast %4 : vector<1x1x16xf32> to vector<1x16xf32>
    %6 = vector.shape_cast %3#0 : vector<1x16xf32> to vector<1x1x16xf32>
    tpu.vector_store %arg4[%c0, %c0_2, %c0_3], %6 {strides = array<i32>} : memref<1x1x16xf32, #tpu.memory_space<vmem>>, vector<1x1x16xf32>,
    %c0_4 = arith.constant 0 : index
    %c0_5 = arith.constant 0 : index
    %c0_6 = arith.constant 0 : index
    %7 = vector.load %arg5[%c0_4, %c0_5, %c0_6] : memref<1x1x16xf32, #tpu.memory_space<vmem>>, vector<1x1x16xf32>
    %8 = vector.shape_cast %7 : vector<1x1x16xf32> to vector<1x16xf32>
    %9 = vector.shape_cast %3#1 : vector<1x16xf32> to vector<1x1x16xf32>
    tpu.vector_store %arg5[%c0_4, %c0_5, %c0_6], %9 {strides = array<i32>} : memref<1x1x16xf32, #tpu.memory_space<vmem>>, vector<1x1x16xf32>,
    return
  }
  func.func @transform_0(%arg0: i32) -> (i32, i32, i32, i32) {
    %c0_i32 = arith.constant 0 : i32
    %c0_i32_0 = arith.constant 0 : i32
    %c0_i32_1 = arith.constant 0 : i32
    %c0_i32_2 = arith.constant 0 : i32
    return %arg0, %c0_i32, %c0_i32_0, %c0_i32_1 : i32, i32, i32, i32
  }
  func.func @transform_1(%arg0: i32) -> (i32, i32, i32) {
    %c0_i32 = arith.constant 0 : i32
    %c0_i32_0 = arith.constant 0 : i32
    %c0_i32_1 = arith.constant 0 : i32
    %c0_i32_2 = arith.constant 0 : i32
    return %c0_i32, %c0_i32_0, %c0_i32_1 : i32, i32, i32
  }
  func.func @transform_2(%arg0: i32) -> (i32, i32, i32, i32) {
    %c0_i32 = arith.constant 0 : i32
    %c0_i32_0 = arith.constant 0 : i32
    %c0_i32_1 = arith.constant 0 : i32
    %c0_i32_2 = arith.constant 0 : i32
    return %arg0, %c0_i32, %c0_i32_0, %c0_i32_1 : i32, i32, i32, i32
  }
  func.func @transform_3(%arg0: i32) -> (i32, i32, i32) {
    %c0_i32 = arith.constant 0 : i32
    %c0_i32_0 = arith.constant 0 : i32
    %c0_i32_1 = arith.constant 0 : i32
    return %arg0, %c0_i32, %c0_i32_0 : i32, i32, i32
  }
  func.func @transform_4(%arg0: i32) -> (i32, i32, i32) {
    %c0_i32 = arith.constant 0 : i32
    %c0_i32_0 = arith.constant 0 : i32
    %c0_i32_1 = arith.constant 0 : i32
    return %arg0, %c0_i32, %c0_i32_0 : i32, i32, i32
  }
}

module attributes {stable_mosaic.version = 11 : i64} {
  func.func @kernel(%arg0: i32, %arg1: memref<1x10x10x16xbf16, #tpu.memory_space<vmem>>, %arg2: memref<9x16x32xbf16, #tpu.memory_space<vmem>>, %arg3: memref<1x8x8x32xbf16, #tpu.memory_space<vmem>>, %arg4: memref<1x1x32xf32, #tpu.memory_space<vmem>>, %arg5: memref<1x1x32xf32, #tpu.memory_space<vmem>>) attributes {dimension_semantics = [#tpu.dimension_semantics<parallel>], iteration_bounds = array<i64: 2>, scalar_prefetch = 0 : i64, scratch_operands = 0 : i64, tpu.core_type = #tpu.core_type<tc>, window_params = [{transform_indices = @transform_0, window_bounds = array<i64: 1, 10, 10, 16>}, {pipeline_mode = #tpu.pipeline_mode<synchronous>, transform_indices = @transform_1, window_bounds = array<i64: 9, 16, 32>}, {transform_indices = @transform_2, window_bounds = array<i64: 1, 8, 8, 32>}, {transform_indices = @transform_3, window_bounds = array<i64: 1, 1, 32>}, {transform_indices = @transform_4, window_bounds = array<i64: 1, 1, 32>}]} {
    %cst = arith.constant 0.000000e+00 : f32
    %0 = vector.broadcast %cst : f32 to vector<1x32xf32>
    %cst_0 = arith.constant 0.000000e+00 : f32
    %1 = vector.broadcast %cst_0 : f32 to vector<1x32xf32>
    %c0_i32 = arith.constant 0 : i32
    %c8_i32 = arith.constant 8 : i32
    %2 = arith.addi %c0_i32, %c8_i32 : i32
    %c1_i32 = arith.constant 1 : i32
    %3:2 = scf.for %arg6 = %c0_i32 to %2 step %c1_i32 iter_args(%arg7 = %0, %arg8 = %1) -> (vector<1x32xf32>, vector<1x32xf32>)  : i32 {
      %cst_7 = arith.constant 0.000000e+00 : f32
      %10 = vector.broadcast %cst_7 : f32 to vector<8x32xf32>
      %c0_i32_8 = arith.constant 0 : i32
      %11 = arith.addi %c0_i32_8, %arg6 : i32
      %c0_9 = arith.constant 0 : index
      %12 = arith.index_cast %11 : i32 to index
      %c0_10 = arith.constant 0 : index
      %c0_11 = arith.constant 0 : index
      %13 = vector.load %arg1[%c0_9, %12, %c0_10, %c0_11] : memref<1x10x10x16xbf16, #tpu.memory_space<vmem>>, vector<1x1x8x16xbf16>
      %14 = vector.shape_cast %13 : vector<1x1x8x16xbf16> to vector<8x16xbf16>
      %c0_12 = arith.constant 0 : index
      %c0_13 = arith.constant 0 : index
      %c0_14 = arith.constant 0 : index
      %15 = vector.load %arg2[%c0_12, %c0_13, %c0_14] : memref<9x16x32xbf16, #tpu.memory_space<vmem>>, vector<1x16x32xbf16>
      %16 = vector.shape_cast %15 : vector<1x16x32xbf16> to vector<16x32xbf16>
      %cst_15 = arith.constant dense<0.000000e+00> : vector<8x32xf32>
      %17 = tpu.matmul %14, %16, %cst_15 {dimension_numbers = #tpu.dot_dimension_numbers<[1], [0], [0], [1], [0, 0, 1, 1], [], []>} : vector<8x16xbf16>, vector<16x32xbf16>, vector<8x32xf32> -> vector<8x32xf32>
      %18 = arith.addf %10, %17 : vector<8x32xf32>
      %c0_16 = arith.constant 0 : index
      %19 = arith.index_cast %11 : i32 to index
      %c1 = arith.constant 1 : index
      %c0_17 = arith.constant 0 : index
      %20 = vector.load %arg1[%c0_16, %19, %c1, %c0_17] : memref<1x10x10x16xbf16, #tpu.memory_space<vmem>>, vector<1x1x8x16xbf16>
      %21 = vector.shape_cast %20 : vector<1x1x8x16xbf16> to vector<8x16xbf16>
      %c1_18 = arith.constant 1 : index
      %c0_19 = arith.constant 0 : index
      %c0_20 = arith.constant 0 : index
      %22 = vector.load %arg2[%c1_18, %c0_19, %c0_20] : memref<9x16x32xbf16, #tpu.memory_space<vmem>>, vector<1x16x32xbf16>
      %23 = vector.shape_cast %22 : vector<1x16x32xbf16> to vector<16x32xbf16>
      %cst_21 = arith.constant dense<0.000000e+00> : vector<8x32xf32>
      %24 = tpu.matmul %21, %23, %cst_21 {dimension_numbers = #tpu.dot_dimension_numbers<[1], [0], [0], [1], [0, 0, 1, 1], [], []>} : vector<8x16xbf16>, vector<16x32xbf16>, vector<8x32xf32> -> vector<8x32xf32>
      %25 = arith.addf %18, %24 : vector<8x32xf32>
      %c0_22 = arith.constant 0 : index
      %26 = arith.index_cast %11 : i32 to index
      %c2 = arith.constant 2 : index
      %c0_23 = arith.constant 0 : index
      %27 = vector.load %arg1[%c0_22, %26, %c2, %c0_23] : memref<1x10x10x16xbf16, #tpu.memory_space<vmem>>, vector<1x1x8x16xbf16>
      %28 = vector.shape_cast %27 : vector<1x1x8x16xbf16> to vector<8x16xbf16>
      %c2_24 = arith.constant 2 : index
      %c0_25 = arith.constant 0 : index
      %c0_26 = arith.constant 0 : index
      %29 = vector.load %arg2[%c2_24, %c0_25, %c0_26] : memref<9x16x32xbf16, #tpu.memory_space<vmem>>, vector<1x16x32xbf16>
      %30 = vector.shape_cast %29 : vector<1x16x32xbf16> to vector<16x32xbf16>
      %cst_27 = arith.constant dense<0.000000e+00> : vector<8x32xf32>
      %31 = tpu.matmul %28, %30, %cst_27 {dimension_numbers = #tpu.dot_dimension_numbers<[1], [0], [0], [1], [0, 0, 1, 1], [], []>} : vector<8x16xbf16>, vector<16x32xbf16>, vector<8x32xf32> -> vector<8x32xf32>
      %32 = arith.addf %25, %31 : vector<8x32xf32>
      %c1_i32_28 = arith.constant 1 : i32
      %33 = arith.addi %c1_i32_28, %arg6 : i32
      %c0_29 = arith.constant 0 : index
      %34 = arith.index_cast %33 : i32 to index
      %c0_30 = arith.constant 0 : index
      %c0_31 = arith.constant 0 : index
      %35 = vector.load %arg1[%c0_29, %34, %c0_30, %c0_31] : memref<1x10x10x16xbf16, #tpu.memory_space<vmem>>, vector<1x1x8x16xbf16>
      %36 = vector.shape_cast %35 : vector<1x1x8x16xbf16> to vector<8x16xbf16>
      %c3 = arith.constant 3 : index
      %c0_32 = arith.constant 0 : index
      %c0_33 = arith.constant 0 : index
      %37 = vector.load %arg2[%c3, %c0_32, %c0_33] : memref<9x16x32xbf16, #tpu.memory_space<vmem>>, vector<1x16x32xbf16>
      %38 = vector.shape_cast %37 : vector<1x16x32xbf16> to vector<16x32xbf16>
      %cst_34 = arith.constant dense<0.000000e+00> : vector<8x32xf32>
      %39 = tpu.matmul %36, %38, %cst_34 {dimension_numbers = #tpu.dot_dimension_numbers<[1], [0], [0], [1], [0, 0, 1, 1], [], []>} : vector<8x16xbf16>, vector<16x32xbf16>, vector<8x32xf32> -> vector<8x32xf32>
      %40 = arith.addf %32, %39 : vector<8x32xf32>
      %c0_35 = arith.constant 0 : index
      %41 = arith.index_cast %33 : i32 to index
      %c1_36 = arith.constant 1 : index
      %c0_37 = arith.constant 0 : index
      %42 = vector.load %arg1[%c0_35, %41, %c1_36, %c0_37] : memref<1x10x10x16xbf16, #tpu.memory_space<vmem>>, vector<1x1x8x16xbf16>
      %43 = vector.shape_cast %42 : vector<1x1x8x16xbf16> to vector<8x16xbf16>
      %c4 = arith.constant 4 : index
      %c0_38 = arith.constant 0 : index
      %c0_39 = arith.constant 0 : index
      %44 = vector.load %arg2[%c4, %c0_38, %c0_39] : memref<9x16x32xbf16, #tpu.memory_space<vmem>>, vector<1x16x32xbf16>
      %45 = vector.shape_cast %44 : vector<1x16x32xbf16> to vector<16x32xbf16>
      %cst_40 = arith.constant dense<0.000000e+00> : vector<8x32xf32>
      %46 = tpu.matmul %43, %45, %cst_40 {dimension_numbers = #tpu.dot_dimension_numbers<[1], [0], [0], [1], [0, 0, 1, 1], [], []>} : vector<8x16xbf16>, vector<16x32xbf16>, vector<8x32xf32> -> vector<8x32xf32>
      %47 = arith.addf %40, %46 : vector<8x32xf32>
      %c0_41 = arith.constant 0 : index
      %48 = arith.index_cast %33 : i32 to index
      %c2_42 = arith.constant 2 : index
      %c0_43 = arith.constant 0 : index
      %49 = vector.load %arg1[%c0_41, %48, %c2_42, %c0_43] : memref<1x10x10x16xbf16, #tpu.memory_space<vmem>>, vector<1x1x8x16xbf16>
      %50 = vector.shape_cast %49 : vector<1x1x8x16xbf16> to vector<8x16xbf16>
      %c5 = arith.constant 5 : index
      %c0_44 = arith.constant 0 : index
      %c0_45 = arith.constant 0 : index
      %51 = vector.load %arg2[%c5, %c0_44, %c0_45] : memref<9x16x32xbf16, #tpu.memory_space<vmem>>, vector<1x16x32xbf16>
      %52 = vector.shape_cast %51 : vector<1x16x32xbf16> to vector<16x32xbf16>
      %cst_46 = arith.constant dense<0.000000e+00> : vector<8x32xf32>
      %53 = tpu.matmul %50, %52, %cst_46 {dimension_numbers = #tpu.dot_dimension_numbers<[1], [0], [0], [1], [0, 0, 1, 1], [], []>} : vector<8x16xbf16>, vector<16x32xbf16>, vector<8x32xf32> -> vector<8x32xf32>
      %54 = arith.addf %47, %53 : vector<8x32xf32>
      %c2_i32 = arith.constant 2 : i32
      %55 = arith.addi %c2_i32, %arg6 : i32
      %c0_47 = arith.constant 0 : index
      %56 = arith.index_cast %55 : i32 to index
      %c0_48 = arith.constant 0 : index
      %c0_49 = arith.constant 0 : index
      %57 = vector.load %arg1[%c0_47, %56, %c0_48, %c0_49] : memref<1x10x10x16xbf16, #tpu.memory_space<vmem>>, vector<1x1x8x16xbf16>
      %58 = vector.shape_cast %57 : vector<1x1x8x16xbf16> to vector<8x16xbf16>
      %c6 = arith.constant 6 : index
      %c0_50 = arith.constant 0 : index
      %c0_51 = arith.constant 0 : index
      %59 = vector.load %arg2[%c6, %c0_50, %c0_51] : memref<9x16x32xbf16, #tpu.memory_space<vmem>>, vector<1x16x32xbf16>
      %60 = vector.shape_cast %59 : vector<1x16x32xbf16> to vector<16x32xbf16>
      %cst_52 = arith.constant dense<0.000000e+00> : vector<8x32xf32>
      %61 = tpu.matmul %58, %60, %cst_52 {dimension_numbers = #tpu.dot_dimension_numbers<[1], [0], [0], [1], [0, 0, 1, 1], [], []>} : vector<8x16xbf16>, vector<16x32xbf16>, vector<8x32xf32> -> vector<8x32xf32>
      %62 = arith.addf %54, %61 : vector<8x32xf32>
      %c0_53 = arith.constant 0 : index
      %63 = arith.index_cast %55 : i32 to index
      %c1_54 = arith.constant 1 : index
      %c0_55 = arith.constant 0 : index
      %64 = vector.load %arg1[%c0_53, %63, %c1_54, %c0_55] : memref<1x10x10x16xbf16, #tpu.memory_space<vmem>>, vector<1x1x8x16xbf16>
      %65 = vector.shape_cast %64 : vector<1x1x8x16xbf16> to vector<8x16xbf16>
      %c7 = arith.constant 7 : index
      %c0_56 = arith.constant 0 : index
      %c0_57 = arith.constant 0 : index
      %66 = vector.load %arg2[%c7, %c0_56, %c0_57] : memref<9x16x32xbf16, #tpu.memory_space<vmem>>, vector<1x16x32xbf16>
      %67 = vector.shape_cast %66 : vector<1x16x32xbf16> to vector<16x32xbf16>
      %cst_58 = arith.constant dense<0.000000e+00> : vector<8x32xf32>
      %68 = tpu.matmul %65, %67, %cst_58 {dimension_numbers = #tpu.dot_dimension_numbers<[1], [0], [0], [1], [0, 0, 1, 1], [], []>} : vector<8x16xbf16>, vector<16x32xbf16>, vector<8x32xf32> -> vector<8x32xf32>
      %69 = arith.addf %62, %68 : vector<8x32xf32>
      %c0_59 = arith.constant 0 : index
      %70 = arith.index_cast %55 : i32 to index
      %c2_60 = arith.constant 2 : index
      %c0_61 = arith.constant 0 : index
      %71 = vector.load %arg1[%c0_59, %70, %c2_60, %c0_61] : memref<1x10x10x16xbf16, #tpu.memory_space<vmem>>, vector<1x1x8x16xbf16>
      %72 = vector.shape_cast %71 : vector<1x1x8x16xbf16> to vector<8x16xbf16>
      %c8 = arith.constant 8 : index
      %c0_62 = arith.constant 0 : index
      %c0_63 = arith.constant 0 : index
      %73 = vector.load %arg2[%c8, %c0_62, %c0_63] : memref<9x16x32xbf16, #tpu.memory_space<vmem>>, vector<1x16x32xbf16>
      %74 = vector.shape_cast %73 : vector<1x16x32xbf16> to vector<16x32xbf16>
      %cst_64 = arith.constant dense<0.000000e+00> : vector<8x32xf32>
      %75 = tpu.matmul %72, %74, %cst_64 {dimension_numbers = #tpu.dot_dimension_numbers<[1], [0], [0], [1], [0, 0, 1, 1], [], []>} : vector<8x16xbf16>, vector<16x32xbf16>, vector<8x32xf32> -> vector<8x32xf32>
      %76 = arith.addf %69, %75 : vector<8x32xf32>
      %77 = arith.truncf %76 : vector<8x32xf32> to vector<8x32xbf16>
      %c0_65 = arith.constant 0 : index
      %78 = arith.index_cast %arg6 : i32 to index
      %c0_66 = arith.constant 0 : index
      %c0_67 = arith.constant 0 : index
      %79 = vector.load %arg3[%c0_65, %78, %c0_66, %c0_67] : memref<1x8x8x32xbf16, #tpu.memory_space<vmem>>, vector<1x1x8x32xbf16>
      %80 = vector.shape_cast %79 : vector<1x1x8x32xbf16> to vector<8x32xbf16>
      %81 = vector.shape_cast %77 : vector<8x32xbf16> to vector<1x1x8x32xbf16>
      tpu.vector_store %arg3[%c0_65, %78, %c0_66, %c0_67], %81 {strides = array<i32>} : memref<1x8x8x32xbf16, #tpu.memory_space<vmem>>, vector<1x1x8x32xbf16>,
      %cst_68 = arith.constant dense<0.000000e+00> : vector<32xf32>
      %82 = vector.multi_reduction <add>, %76, %cst_68 [0] : vector<8x32xf32> to vector<32xf32>
      %83 = vector.shape_cast %82 : vector<32xf32> to vector<1x32xf32>
      %84 = arith.addf %arg7, %83 : vector<1x32xf32>
      %85 = arith.mulf %76, %76 : vector<8x32xf32>
      %cst_69 = arith.constant dense<0.000000e+00> : vector<32xf32>
      %86 = vector.multi_reduction <add>, %85, %cst_69 [0] : vector<8x32xf32> to vector<32xf32>
      %87 = vector.shape_cast %86 : vector<32xf32> to vector<1x32xf32>
      %88 = arith.addf %arg8, %87 : vector<1x32xf32>
      scf.yield %84, %88 : vector<1x32xf32>, vector<1x32xf32>
    }
    %c8_i32_1 = arith.constant 8 : i32
    %c0 = arith.constant 0 : index
    %c0_2 = arith.constant 0 : index
    %c0_3 = arith.constant 0 : index
    %4 = vector.load %arg4[%c0, %c0_2, %c0_3] : memref<1x1x32xf32, #tpu.memory_space<vmem>>, vector<1x1x32xf32>
    %5 = vector.shape_cast %4 : vector<1x1x32xf32> to vector<1x32xf32>
    %6 = vector.shape_cast %3#0 : vector<1x32xf32> to vector<1x1x32xf32>
    tpu.vector_store %arg4[%c0, %c0_2, %c0_3], %6 {strides = array<i32>} : memref<1x1x32xf32, #tpu.memory_space<vmem>>, vector<1x1x32xf32>,
    %c0_4 = arith.constant 0 : index
    %c0_5 = arith.constant 0 : index
    %c0_6 = arith.constant 0 : index
    %7 = vector.load %arg5[%c0_4, %c0_5, %c0_6] : memref<1x1x32xf32, #tpu.memory_space<vmem>>, vector<1x1x32xf32>
    %8 = vector.shape_cast %7 : vector<1x1x32xf32> to vector<1x32xf32>
    %9 = vector.shape_cast %3#1 : vector<1x32xf32> to vector<1x1x32xf32>
    tpu.vector_store %arg5[%c0_4, %c0_5, %c0_6], %9 {strides = array<i32>} : memref<1x1x32xf32, #tpu.memory_space<vmem>>, vector<1x1x32xf32>,
    return
  }
  func.func @transform_0(%arg0: i32) -> (i32, i32, i32, i32) {
    %c0_i32 = arith.constant 0 : i32
    %c0_i32_0 = arith.constant 0 : i32
    %c0_i32_1 = arith.constant 0 : i32
    %c0_i32_2 = arith.constant 0 : i32
    return %arg0, %c0_i32, %c0_i32_0, %c0_i32_1 : i32, i32, i32, i32
  }
  func.func @transform_1(%arg0: i32) -> (i32, i32, i32) {
    %c0_i32 = arith.constant 0 : i32
    %c0_i32_0 = arith.constant 0 : i32
    %c0_i32_1 = arith.constant 0 : i32
    %c0_i32_2 = arith.constant 0 : i32
    return %c0_i32, %c0_i32_0, %c0_i32_1 : i32, i32, i32
  }
  func.func @transform_2(%arg0: i32) -> (i32, i32, i32, i32) {
    %c0_i32 = arith.constant 0 : i32
    %c0_i32_0 = arith.constant 0 : i32
    %c0_i32_1 = arith.constant 0 : i32
    %c0_i32_2 = arith.constant 0 : i32
    return %arg0, %c0_i32, %c0_i32_0, %c0_i32_1 : i32, i32, i32, i32
  }
  func.func @transform_3(%arg0: i32) -> (i32, i32, i32) {
    %c0_i32 = arith.constant 0 : i32
    %c0_i32_0 = arith.constant 0 : i32
    %c0_i32_1 = arith.constant 0 : i32
    return %arg0, %c0_i32, %c0_i32_0 : i32, i32, i32
  }
  func.func @transform_4(%arg0: i32) -> (i32, i32, i32) {
    %c0_i32 = arith.constant 0 : i32
    %c0_i32_0 = arith.constant 0 : i32
    %c0_i32_1 = arith.constant 0 : i32
    return %arg0, %c0_i32, %c0_i32_0 : i32, i32, i32
  }
}

module attributes {stable_mosaic.version = 11 : i64} {
  func.func @kernel(%arg0: i32, %arg1: memref<1x10x10x32xbf16, #tpu.memory_space<vmem>>, %arg2: memref<9x32x32xbf16, #tpu.memory_space<vmem>>, %arg3: memref<1x4x4x32xbf16, #tpu.memory_space<vmem>>, %arg4: memref<1x1x32xf32, #tpu.memory_space<vmem>>, %arg5: memref<1x1x32xf32, #tpu.memory_space<vmem>>) attributes {dimension_semantics = [#tpu.dimension_semantics<parallel>], iteration_bounds = array<i64: 2>, scalar_prefetch = 0 : i64, scratch_operands = 0 : i64, tpu.core_type = #tpu.core_type<tc>, window_params = [{transform_indices = @transform_0, window_bounds = array<i64: 1, 10, 10, 32>}, {pipeline_mode = #tpu.pipeline_mode<synchronous>, transform_indices = @transform_1, window_bounds = array<i64: 9, 32, 32>}, {transform_indices = @transform_2, window_bounds = array<i64: 1, 4, 4, 32>}, {transform_indices = @transform_3, window_bounds = array<i64: 1, 1, 32>}, {transform_indices = @transform_4, window_bounds = array<i64: 1, 1, 32>}]} {
    %cst = arith.constant 0.000000e+00 : f32
    %0 = vector.broadcast %cst : f32 to vector<1x32xf32>
    %cst_0 = arith.constant 0.000000e+00 : f32
    %1 = vector.broadcast %cst_0 : f32 to vector<1x32xf32>
    %c0_i32 = arith.constant 0 : i32
    %c4_i32 = arith.constant 4 : i32
    %2 = arith.addi %c0_i32, %c4_i32 : i32
    %c1_i32 = arith.constant 1 : i32
    %3:2 = scf.for %arg6 = %c0_i32 to %2 step %c1_i32 iter_args(%arg7 = %0, %arg8 = %1) -> (vector<1x32xf32>, vector<1x32xf32>)  : i32 {
      %cst_7 = arith.constant 0.000000e+00 : f32
      %10 = vector.broadcast %cst_7 : f32 to vector<4x32xf32>
      %c0_i32_8 = arith.constant 0 : i32
      %11 = arith.addi %c0_i32_8, %arg6 : i32
      %c0_9 = arith.constant 0 : index
      %12 = arith.index_cast %11 : i32 to index
      %c0_10 = arith.constant 0 : index
      %c0_11 = arith.constant 0 : index
      %13 = vector.load %arg1[%c0_9, %12, %c0_10, %c0_11] : memref<1x10x10x32xbf16, #tpu.memory_space<vmem>>, vector<1x1x4x32xbf16>
      %14 = vector.shape_cast %13 : vector<1x1x4x32xbf16> to vector<4x32xbf16>
      %c0_12 = arith.constant 0 : index
      %c0_13 = arith.constant 0 : index
      %c0_14 = arith.constant 0 : index
      %15 = vector.load %arg2[%c0_12, %c0_13, %c0_14] : memref<9x32x32xbf16, #tpu.memory_space<vmem>>, vector<1x32x32xbf16>
      %16 = vector.shape_cast %15 : vector<1x32x32xbf16> to vector<32x32xbf16>
      %cst_15 = arith.constant dense<0.000000e+00> : vector<4x32xf32>
      %17 = tpu.matmul %14, %16, %cst_15 {dimension_numbers = #tpu.dot_dimension_numbers<[1], [0], [0], [1], [0, 0, 1, 1], [], []>} : vector<4x32xbf16>, vector<32x32xbf16>, vector<4x32xf32> -> vector<4x32xf32>
      %18 = arith.addf %10, %17 : vector<4x32xf32>
      %c0_16 = arith.constant 0 : index
      %19 = arith.index_cast %11 : i32 to index
      %c5 = arith.constant 5 : index
      %c0_17 = arith.constant 0 : index
      %20 = vector.load %arg1[%c0_16, %19, %c5, %c0_17] : memref<1x10x10x32xbf16, #tpu.memory_space<vmem>>, vector<1x1x4x32xbf16>
      %21 = vector.shape_cast %20 : vector<1x1x4x32xbf16> to vector<4x32xbf16>
      %c1 = arith.constant 1 : index
      %c0_18 = arith.constant 0 : index
      %c0_19 = arith.constant 0 : index
      %22 = vector.load %arg2[%c1, %c0_18, %c0_19] : memref<9x32x32xbf16, #tpu.memory_space<vmem>>, vector<1x32x32xbf16>
      %23 = vector.shape_cast %22 : vector<1x32x32xbf16> to vector<32x32xbf16>
      %cst_20 = arith.constant dense<0.000000e+00> : vector<4x32xf32>
      %24 = tpu.matmul %21, %23, %cst_20 {dimension_numbers = #tpu.dot_dimension_numbers<[1], [0], [0], [1], [0, 0, 1, 1], [], []>} : vector<4x32xbf16>, vector<32x32xbf16>, vector<4x32xf32> -> vector<4x32xf32>
      %25 = arith.addf %18, %24 : vector<4x32xf32>
      %c0_21 = arith.constant 0 : index
      %26 = arith.index_cast %11 : i32 to index
      %c1_22 = arith.constant 1 : index
      %c0_23 = arith.constant 0 : index
      %27 = vector.load %arg1[%c0_21, %26, %c1_22, %c0_23] : memref<1x10x10x32xbf16, #tpu.memory_space<vmem>>, vector<1x1x4x32xbf16>
      %28 = vector.shape_cast %27 : vector<1x1x4x32xbf16> to vector<4x32xbf16>
      %c2 = arith.constant 2 : index
      %c0_24 = arith.constant 0 : index
      %c0_25 = arith.constant 0 : index
      %29 = vector.load %arg2[%c2, %c0_24, %c0_25] : memref<9x32x32xbf16, #tpu.memory_space<vmem>>, vector<1x32x32xbf16>
      %30 = vector.shape_cast %29 : vector<1x32x32xbf16> to vector<32x32xbf16>
      %cst_26 = arith.constant dense<0.000000e+00> : vector<4x32xf32>
      %31 = tpu.matmul %28, %30, %cst_26 {dimension_numbers = #tpu.dot_dimension_numbers<[1], [0], [0], [1], [0, 0, 1, 1], [], []>} : vector<4x32xbf16>, vector<32x32xbf16>, vector<4x32xf32> -> vector<4x32xf32>
      %32 = arith.addf %25, %31 : vector<4x32xf32>
      %c5_i32 = arith.constant 5 : i32
      %33 = arith.addi %c5_i32, %arg6 : i32
      %c0_27 = arith.constant 0 : index
      %34 = arith.index_cast %33 : i32 to index
      %c0_28 = arith.constant 0 : index
      %c0_29 = arith.constant 0 : index
      %35 = vector.load %arg1[%c0_27, %34, %c0_28, %c0_29] : memref<1x10x10x32xbf16, #tpu.memory_space<vmem>>, vector<1x1x4x32xbf16>
      %36 = vector.shape_cast %35 : vector<1x1x4x32xbf16> to vector<4x32xbf16>
      %c3 = arith.constant 3 : index
      %c0_30 = arith.constant 0 : index
      %c0_31 = arith.constant 0 : index
      %37 = vector.load %arg2[%c3, %c0_30, %c0_31] : memref<9x32x32xbf16, #tpu.memory_space<vmem>>, vector<1x32x32xbf16>
      %38 = vector.shape_cast %37 : vector<1x32x32xbf16> to vector<32x32xbf16>
      %cst_32 = arith.constant dense<0.000000e+00> : vector<4x32xf32>
      %39 = tpu.matmul %36, %38, %cst_32 {dimension_numbers = #tpu.dot_dimension_numbers<[1], [0], [0], [1], [0, 0, 1, 1], [], []>} : vector<4x32xbf16>, vector<32x32xbf16>, vector<4x32xf32> -> vector<4x32xf32>
      %40 = arith.addf %32, %39 : vector<4x32xf32>
      %c0_33 = arith.constant 0 : index
      %41 = arith.index_cast %33 : i32 to index
      %c5_34 = arith.constant 5 : index
      %c0_35 = arith.constant 0 : index
      %42 = vector.load %arg1[%c0_33, %41, %c5_34, %c0_35] : memref<1x10x10x32xbf16, #tpu.memory_space<vmem>>, vector<1x1x4x32xbf16>
      %43 = vector.shape_cast %42 : vector<1x1x4x32xbf16> to vector<4x32xbf16>
      %c4 = arith.constant 4 : index
      %c0_36 = arith.constant 0 : index
      %c0_37 = arith.constant 0 : index
      %44 = vector.load %arg2[%c4, %c0_36, %c0_37] : memref<9x32x32xbf16, #tpu.memory_space<vmem>>, vector<1x32x32xbf16>
      %45 = vector.shape_cast %44 : vector<1x32x32xbf16> to vector<32x32xbf16>
      %cst_38 = arith.constant dense<0.000000e+00> : vector<4x32xf32>
      %46 = tpu.matmul %43, %45, %cst_38 {dimension_numbers = #tpu.dot_dimension_numbers<[1], [0], [0], [1], [0, 0, 1, 1], [], []>} : vector<4x32xbf16>, vector<32x32xbf16>, vector<4x32xf32> -> vector<4x32xf32>
      %47 = arith.addf %40, %46 : vector<4x32xf32>
      %c0_39 = arith.constant 0 : index
      %48 = arith.index_cast %33 : i32 to index
      %c1_40 = arith.constant 1 : index
      %c0_41 = arith.constant 0 : index
      %49 = vector.load %arg1[%c0_39, %48, %c1_40, %c0_41] : memref<1x10x10x32xbf16, #tpu.memory_space<vmem>>, vector<1x1x4x32xbf16>
      %50 = vector.shape_cast %49 : vector<1x1x4x32xbf16> to vector<4x32xbf16>
      %c5_42 = arith.constant 5 : index
      %c0_43 = arith.constant 0 : index
      %c0_44 = arith.constant 0 : index
      %51 = vector.load %arg2[%c5_42, %c0_43, %c0_44] : memref<9x32x32xbf16, #tpu.memory_space<vmem>>, vector<1x32x32xbf16>
      %52 = vector.shape_cast %51 : vector<1x32x32xbf16> to vector<32x32xbf16>
      %cst_45 = arith.constant dense<0.000000e+00> : vector<4x32xf32>
      %53 = tpu.matmul %50, %52, %cst_45 {dimension_numbers = #tpu.dot_dimension_numbers<[1], [0], [0], [1], [0, 0, 1, 1], [], []>} : vector<4x32xbf16>, vector<32x32xbf16>, vector<4x32xf32> -> vector<4x32xf32>
      %54 = arith.addf %47, %53 : vector<4x32xf32>
      %c1_i32_46 = arith.constant 1 : i32
      %55 = arith.addi %c1_i32_46, %arg6 : i32
      %c0_47 = arith.constant 0 : index
      %56 = arith.index_cast %55 : i32 to index
      %c0_48 = arith.constant 0 : index
      %c0_49 = arith.constant 0 : index
      %57 = vector.load %arg1[%c0_47, %56, %c0_48, %c0_49] : memref<1x10x10x32xbf16, #tpu.memory_space<vmem>>, vector<1x1x4x32xbf16>
      %58 = vector.shape_cast %57 : vector<1x1x4x32xbf16> to vector<4x32xbf16>
      %c6 = arith.constant 6 : index
      %c0_50 = arith.constant 0 : index
      %c0_51 = arith.constant 0 : index
      %59 = vector.load %arg2[%c6, %c0_50, %c0_51] : memref<9x32x32xbf16, #tpu.memory_space<vmem>>, vector<1x32x32xbf16>
      %60 = vector.shape_cast %59 : vector<1x32x32xbf16> to vector<32x32xbf16>
      %cst_52 = arith.constant dense<0.000000e+00> : vector<4x32xf32>
      %61 = tpu.matmul %58, %60, %cst_52 {dimension_numbers = #tpu.dot_dimension_numbers<[1], [0], [0], [1], [0, 0, 1, 1], [], []>} : vector<4x32xbf16>, vector<32x32xbf16>, vector<4x32xf32> -> vector<4x32xf32>
      %62 = arith.addf %54, %61 : vector<4x32xf32>
      %c0_53 = arith.constant 0 : index
      %63 = arith.index_cast %55 : i32 to index
      %c5_54 = arith.constant 5 : index
      %c0_55 = arith.constant 0 : index
      %64 = vector.load %arg1[%c0_53, %63, %c5_54, %c0_55] : memref<1x10x10x32xbf16, #tpu.memory_space<vmem>>, vector<1x1x4x32xbf16>
      %65 = vector.shape_cast %64 : vector<1x1x4x32xbf16> to vector<4x32xbf16>
      %c7 = arith.constant 7 : index
      %c0_56 = arith.constant 0 : index
      %c0_57 = arith.constant 0 : index
      %66 = vector.load %arg2[%c7, %c0_56, %c0_57] : memref<9x32x32xbf16, #tpu.memory_space<vmem>>, vector<1x32x32xbf16>
      %67 = vector.shape_cast %66 : vector<1x32x32xbf16> to vector<32x32xbf16>
      %cst_58 = arith.constant dense<0.000000e+00> : vector<4x32xf32>
      %68 = tpu.matmul %65, %67, %cst_58 {dimension_numbers = #tpu.dot_dimension_numbers<[1], [0], [0], [1], [0, 0, 1, 1], [], []>} : vector<4x32xbf16>, vector<32x32xbf16>, vector<4x32xf32> -> vector<4x32xf32>
      %69 = arith.addf %62, %68 : vector<4x32xf32>
      %c0_59 = arith.constant 0 : index
      %70 = arith.index_cast %55 : i32 to index
      %c1_60 = arith.constant 1 : index
      %c0_61 = arith.constant 0 : index
      %71 = vector.load %arg1[%c0_59, %70, %c1_60, %c0_61] : memref<1x10x10x32xbf16, #tpu.memory_space<vmem>>, vector<1x1x4x32xbf16>
      %72 = vector.shape_cast %71 : vector<1x1x4x32xbf16> to vector<4x32xbf16>
      %c8 = arith.constant 8 : index
      %c0_62 = arith.constant 0 : index
      %c0_63 = arith.constant 0 : index
      %73 = vector.load %arg2[%c8, %c0_62, %c0_63] : memref<9x32x32xbf16, #tpu.memory_space<vmem>>, vector<1x32x32xbf16>
      %74 = vector.shape_cast %73 : vector<1x32x32xbf16> to vector<32x32xbf16>
      %cst_64 = arith.constant dense<0.000000e+00> : vector<4x32xf32>
      %75 = tpu.matmul %72, %74, %cst_64 {dimension_numbers = #tpu.dot_dimension_numbers<[1], [0], [0], [1], [0, 0, 1, 1], [], []>} : vector<4x32xbf16>, vector<32x32xbf16>, vector<4x32xf32> -> vector<4x32xf32>
      %76 = arith.addf %69, %75 : vector<4x32xf32>
      %77 = arith.truncf %76 : vector<4x32xf32> to vector<4x32xbf16>
      %c0_65 = arith.constant 0 : index
      %78 = arith.index_cast %arg6 : i32 to index
      %c0_66 = arith.constant 0 : index
      %c0_67 = arith.constant 0 : index
      %79 = vector.load %arg3[%c0_65, %78, %c0_66, %c0_67] : memref<1x4x4x32xbf16, #tpu.memory_space<vmem>>, vector<1x1x4x32xbf16>
      %80 = vector.shape_cast %79 : vector<1x1x4x32xbf16> to vector<4x32xbf16>
      %81 = vector.shape_cast %77 : vector<4x32xbf16> to vector<1x1x4x32xbf16>
      tpu.vector_store %arg3[%c0_65, %78, %c0_66, %c0_67], %81 {strides = array<i32>} : memref<1x4x4x32xbf16, #tpu.memory_space<vmem>>, vector<1x1x4x32xbf16>,
      %cst_68 = arith.constant dense<0.000000e+00> : vector<32xf32>
      %82 = vector.multi_reduction <add>, %76, %cst_68 [0] : vector<4x32xf32> to vector<32xf32>
      %83 = vector.shape_cast %82 : vector<32xf32> to vector<1x32xf32>
      %84 = arith.addf %arg7, %83 : vector<1x32xf32>
      %85 = arith.mulf %76, %76 : vector<4x32xf32>
      %cst_69 = arith.constant dense<0.000000e+00> : vector<32xf32>
      %86 = vector.multi_reduction <add>, %85, %cst_69 [0] : vector<4x32xf32> to vector<32xf32>
      %87 = vector.shape_cast %86 : vector<32xf32> to vector<1x32xf32>
      %88 = arith.addf %arg8, %87 : vector<1x32xf32>
      scf.yield %84, %88 : vector<1x32xf32>, vector<1x32xf32>
    }
    %c4_i32_1 = arith.constant 4 : i32
    %c0 = arith.constant 0 : index
    %c0_2 = arith.constant 0 : index
    %c0_3 = arith.constant 0 : index
    %4 = vector.load %arg4[%c0, %c0_2, %c0_3] : memref<1x1x32xf32, #tpu.memory_space<vmem>>, vector<1x1x32xf32>
    %5 = vector.shape_cast %4 : vector<1x1x32xf32> to vector<1x32xf32>
    %6 = vector.shape_cast %3#0 : vector<1x32xf32> to vector<1x1x32xf32>
    tpu.vector_store %arg4[%c0, %c0_2, %c0_3], %6 {strides = array<i32>} : memref<1x1x32xf32, #tpu.memory_space<vmem>>, vector<1x1x32xf32>,
    %c0_4 = arith.constant 0 : index
    %c0_5 = arith.constant 0 : index
    %c0_6 = arith.constant 0 : index
    %7 = vector.load %arg5[%c0_4, %c0_5, %c0_6] : memref<1x1x32xf32, #tpu.memory_space<vmem>>, vector<1x1x32xf32>
    %8 = vector.shape_cast %7 : vector<1x1x32xf32> to vector<1x32xf32>
    %9 = vector.shape_cast %3#1 : vector<1x32xf32> to vector<1x1x32xf32>
    tpu.vector_store %arg5[%c0_4, %c0_5, %c0_6], %9 {strides = array<i32>} : memref<1x1x32xf32, #tpu.memory_space<vmem>>, vector<1x1x32xf32>,
    return
  }
  func.func @transform_0(%arg0: i32) -> (i32, i32, i32, i32) {
    %c0_i32 = arith.constant 0 : i32
    %c0_i32_0 = arith.constant 0 : i32
    %c0_i32_1 = arith.constant 0 : i32
    %c0_i32_2 = arith.constant 0 : i32
    return %arg0, %c0_i32, %c0_i32_0, %c0_i32_1 : i32, i32, i32, i32
  }
  func.func @transform_1(%arg0: i32) -> (i32, i32, i32) {
    %c0_i32 = arith.constant 0 : i32
    %c0_i32_0 = arith.constant 0 : i32
    %c0_i32_1 = arith.constant 0 : i32
    %c0_i32_2 = arith.constant 0 : i32
    return %c0_i32, %c0_i32_0, %c0_i32_1 : i32, i32, i32
  }
  func.func @transform_2(%arg0: i32) -> (i32, i32, i32, i32) {
    %c0_i32 = arith.constant 0 : i32
    %c0_i32_0 = arith.constant 0 : i32
    %c0_i32_1 = arith.constant 0 : i32
    %c0_i32_2 = arith.constant 0 : i32
    return %arg0, %c0_i32, %c0_i32_0, %c0_i32_1 : i32, i32, i32, i32
  }
  func.func @transform_3(%arg0: i32) -> (i32, i32, i32) {
    %c0_i32 = arith.constant 0 : i32
    %c0_i32_0 = arith.constant 0 : i32
    %c0_i32_1 = arith.constant 0 : i32
    return %arg0, %c0_i32, %c0_i32_0 : i32, i32, i32
  }
  func.func @transform_4(%arg0: i32) -> (i32, i32, i32) {
    %c0_i32 = arith.constant 0 : i32
    %c0_i32_0 = arith.constant 0 : i32
    %c0_i32_1 = arith.constant 0 : i32
    return %arg0, %c0_i32, %c0_i32_0 : i32, i32, i32
  }
}

module attributes {stable_mosaic.version = 11 : i64} {
  func.func @kernel(%arg0: i32, %arg1: memref<1x6x6x32xbf16, #tpu.memory_space<vmem>>, %arg2: memref<9x32x64xbf16, #tpu.memory_space<vmem>>, %arg3: memref<1x4x4x64xbf16, #tpu.memory_space<vmem>>, %arg4: memref<1x1x64xf32, #tpu.memory_space<vmem>>, %arg5: memref<1x1x64xf32, #tpu.memory_space<vmem>>) attributes {dimension_semantics = [#tpu.dimension_semantics<parallel>], iteration_bounds = array<i64: 2>, scalar_prefetch = 0 : i64, scratch_operands = 0 : i64, tpu.core_type = #tpu.core_type<tc>, window_params = [{transform_indices = @transform_0, window_bounds = array<i64: 1, 6, 6, 32>}, {pipeline_mode = #tpu.pipeline_mode<synchronous>, transform_indices = @transform_1, window_bounds = array<i64: 9, 32, 64>}, {transform_indices = @transform_2, window_bounds = array<i64: 1, 4, 4, 64>}, {transform_indices = @transform_3, window_bounds = array<i64: 1, 1, 64>}, {transform_indices = @transform_4, window_bounds = array<i64: 1, 1, 64>}]} {
    %cst = arith.constant 0.000000e+00 : f32
    %0 = vector.broadcast %cst : f32 to vector<1x64xf32>
    %cst_0 = arith.constant 0.000000e+00 : f32
    %1 = vector.broadcast %cst_0 : f32 to vector<1x64xf32>
    %c0_i32 = arith.constant 0 : i32
    %c4_i32 = arith.constant 4 : i32
    %2 = arith.addi %c0_i32, %c4_i32 : i32
    %c1_i32 = arith.constant 1 : i32
    %3:2 = scf.for %arg6 = %c0_i32 to %2 step %c1_i32 iter_args(%arg7 = %0, %arg8 = %1) -> (vector<1x64xf32>, vector<1x64xf32>)  : i32 {
      %cst_7 = arith.constant 0.000000e+00 : f32
      %10 = vector.broadcast %cst_7 : f32 to vector<4x64xf32>
      %c0_i32_8 = arith.constant 0 : i32
      %11 = arith.addi %c0_i32_8, %arg6 : i32
      %c0_9 = arith.constant 0 : index
      %12 = arith.index_cast %11 : i32 to index
      %c0_10 = arith.constant 0 : index
      %c0_11 = arith.constant 0 : index
      %13 = vector.load %arg1[%c0_9, %12, %c0_10, %c0_11] : memref<1x6x6x32xbf16, #tpu.memory_space<vmem>>, vector<1x1x4x32xbf16>
      %14 = vector.shape_cast %13 : vector<1x1x4x32xbf16> to vector<4x32xbf16>
      %c0_12 = arith.constant 0 : index
      %c0_13 = arith.constant 0 : index
      %c0_14 = arith.constant 0 : index
      %15 = vector.load %arg2[%c0_12, %c0_13, %c0_14] : memref<9x32x64xbf16, #tpu.memory_space<vmem>>, vector<1x32x64xbf16>
      %16 = vector.shape_cast %15 : vector<1x32x64xbf16> to vector<32x64xbf16>
      %cst_15 = arith.constant dense<0.000000e+00> : vector<4x64xf32>
      %17 = tpu.matmul %14, %16, %cst_15 {dimension_numbers = #tpu.dot_dimension_numbers<[1], [0], [0], [1], [0, 0, 1, 1], [], []>} : vector<4x32xbf16>, vector<32x64xbf16>, vector<4x64xf32> -> vector<4x64xf32>
      %18 = arith.addf %10, %17 : vector<4x64xf32>
      %c0_16 = arith.constant 0 : index
      %19 = arith.index_cast %11 : i32 to index
      %c1 = arith.constant 1 : index
      %c0_17 = arith.constant 0 : index
      %20 = vector.load %arg1[%c0_16, %19, %c1, %c0_17] : memref<1x6x6x32xbf16, #tpu.memory_space<vmem>>, vector<1x1x4x32xbf16>
      %21 = vector.shape_cast %20 : vector<1x1x4x32xbf16> to vector<4x32xbf16>
      %c1_18 = arith.constant 1 : index
      %c0_19 = arith.constant 0 : index
      %c0_20 = arith.constant 0 : index
      %22 = vector.load %arg2[%c1_18, %c0_19, %c0_20] : memref<9x32x64xbf16, #tpu.memory_space<vmem>>, vector<1x32x64xbf16>
      %23 = vector.shape_cast %22 : vector<1x32x64xbf16> to vector<32x64xbf16>
      %cst_21 = arith.constant dense<0.000000e+00> : vector<4x64xf32>
      %24 = tpu.matmul %21, %23, %cst_21 {dimension_numbers = #tpu.dot_dimension_numbers<[1], [0], [0], [1], [0, 0, 1, 1], [], []>} : vector<4x32xbf16>, vector<32x64xbf16>, vector<4x64xf32> -> vector<4x64xf32>
      %25 = arith.addf %18, %24 : vector<4x64xf32>
      %c0_22 = arith.constant 0 : index
      %26 = arith.index_cast %11 : i32 to index
      %c2 = arith.constant 2 : index
      %c0_23 = arith.constant 0 : index
      %27 = vector.load %arg1[%c0_22, %26, %c2, %c0_23] : memref<1x6x6x32xbf16, #tpu.memory_space<vmem>>, vector<1x1x4x32xbf16>
      %28 = vector.shape_cast %27 : vector<1x1x4x32xbf16> to vector<4x32xbf16>
      %c2_24 = arith.constant 2 : index
      %c0_25 = arith.constant 0 : index
      %c0_26 = arith.constant 0 : index
      %29 = vector.load %arg2[%c2_24, %c0_25, %c0_26] : memref<9x32x64xbf16, #tpu.memory_space<vmem>>, vector<1x32x64xbf16>
      %30 = vector.shape_cast %29 : vector<1x32x64xbf16> to vector<32x64xbf16>
      %cst_27 = arith.constant dense<0.000000e+00> : vector<4x64xf32>
      %31 = tpu.matmul %28, %30, %cst_27 {dimension_numbers = #tpu.dot_dimension_numbers<[1], [0], [0], [1], [0, 0, 1, 1], [], []>} : vector<4x32xbf16>, vector<32x64xbf16>, vector<4x64xf32> -> vector<4x64xf32>
      %32 = arith.addf %25, %31 : vector<4x64xf32>
      %c1_i32_28 = arith.constant 1 : i32
      %33 = arith.addi %c1_i32_28, %arg6 : i32
      %c0_29 = arith.constant 0 : index
      %34 = arith.index_cast %33 : i32 to index
      %c0_30 = arith.constant 0 : index
      %c0_31 = arith.constant 0 : index
      %35 = vector.load %arg1[%c0_29, %34, %c0_30, %c0_31] : memref<1x6x6x32xbf16, #tpu.memory_space<vmem>>, vector<1x1x4x32xbf16>
      %36 = vector.shape_cast %35 : vector<1x1x4x32xbf16> to vector<4x32xbf16>
      %c3 = arith.constant 3 : index
      %c0_32 = arith.constant 0 : index
      %c0_33 = arith.constant 0 : index
      %37 = vector.load %arg2[%c3, %c0_32, %c0_33] : memref<9x32x64xbf16, #tpu.memory_space<vmem>>, vector<1x32x64xbf16>
      %38 = vector.shape_cast %37 : vector<1x32x64xbf16> to vector<32x64xbf16>
      %cst_34 = arith.constant dense<0.000000e+00> : vector<4x64xf32>
      %39 = tpu.matmul %36, %38, %cst_34 {dimension_numbers = #tpu.dot_dimension_numbers<[1], [0], [0], [1], [0, 0, 1, 1], [], []>} : vector<4x32xbf16>, vector<32x64xbf16>, vector<4x64xf32> -> vector<4x64xf32>
      %40 = arith.addf %32, %39 : vector<4x64xf32>
      %c0_35 = arith.constant 0 : index
      %41 = arith.index_cast %33 : i32 to index
      %c1_36 = arith.constant 1 : index
      %c0_37 = arith.constant 0 : index
      %42 = vector.load %arg1[%c0_35, %41, %c1_36, %c0_37] : memref<1x6x6x32xbf16, #tpu.memory_space<vmem>>, vector<1x1x4x32xbf16>
      %43 = vector.shape_cast %42 : vector<1x1x4x32xbf16> to vector<4x32xbf16>
      %c4 = arith.constant 4 : index
      %c0_38 = arith.constant 0 : index
      %c0_39 = arith.constant 0 : index
      %44 = vector.load %arg2[%c4, %c0_38, %c0_39] : memref<9x32x64xbf16, #tpu.memory_space<vmem>>, vector<1x32x64xbf16>
      %45 = vector.shape_cast %44 : vector<1x32x64xbf16> to vector<32x64xbf16>
      %cst_40 = arith.constant dense<0.000000e+00> : vector<4x64xf32>
      %46 = tpu.matmul %43, %45, %cst_40 {dimension_numbers = #tpu.dot_dimension_numbers<[1], [0], [0], [1], [0, 0, 1, 1], [], []>} : vector<4x32xbf16>, vector<32x64xbf16>, vector<4x64xf32> -> vector<4x64xf32>
      %47 = arith.addf %40, %46 : vector<4x64xf32>
      %c0_41 = arith.constant 0 : index
      %48 = arith.index_cast %33 : i32 to index
      %c2_42 = arith.constant 2 : index
      %c0_43 = arith.constant 0 : index
      %49 = vector.load %arg1[%c0_41, %48, %c2_42, %c0_43] : memref<1x6x6x32xbf16, #tpu.memory_space<vmem>>, vector<1x1x4x32xbf16>
      %50 = vector.shape_cast %49 : vector<1x1x4x32xbf16> to vector<4x32xbf16>
      %c5 = arith.constant 5 : index
      %c0_44 = arith.constant 0 : index
      %c0_45 = arith.constant 0 : index
      %51 = vector.load %arg2[%c5, %c0_44, %c0_45] : memref<9x32x64xbf16, #tpu.memory_space<vmem>>, vector<1x32x64xbf16>
      %52 = vector.shape_cast %51 : vector<1x32x64xbf16> to vector<32x64xbf16>
      %cst_46 = arith.constant dense<0.000000e+00> : vector<4x64xf32>
      %53 = tpu.matmul %50, %52, %cst_46 {dimension_numbers = #tpu.dot_dimension_numbers<[1], [0], [0], [1], [0, 0, 1, 1], [], []>} : vector<4x32xbf16>, vector<32x64xbf16>, vector<4x64xf32> -> vector<4x64xf32>
      %54 = arith.addf %47, %53 : vector<4x64xf32>
      %c2_i32 = arith.constant 2 : i32
      %55 = arith.addi %c2_i32, %arg6 : i32
      %c0_47 = arith.constant 0 : index
      %56 = arith.index_cast %55 : i32 to index
      %c0_48 = arith.constant 0 : index
      %c0_49 = arith.constant 0 : index
      %57 = vector.load %arg1[%c0_47, %56, %c0_48, %c0_49] : memref<1x6x6x32xbf16, #tpu.memory_space<vmem>>, vector<1x1x4x32xbf16>
      %58 = vector.shape_cast %57 : vector<1x1x4x32xbf16> to vector<4x32xbf16>
      %c6 = arith.constant 6 : index
      %c0_50 = arith.constant 0 : index
      %c0_51 = arith.constant 0 : index
      %59 = vector.load %arg2[%c6, %c0_50, %c0_51] : memref<9x32x64xbf16, #tpu.memory_space<vmem>>, vector<1x32x64xbf16>
      %60 = vector.shape_cast %59 : vector<1x32x64xbf16> to vector<32x64xbf16>
      %cst_52 = arith.constant dense<0.000000e+00> : vector<4x64xf32>
      %61 = tpu.matmul %58, %60, %cst_52 {dimension_numbers = #tpu.dot_dimension_numbers<[1], [0], [0], [1], [0, 0, 1, 1], [], []>} : vector<4x32xbf16>, vector<32x64xbf16>, vector<4x64xf32> -> vector<4x64xf32>
      %62 = arith.addf %54, %61 : vector<4x64xf32>
      %c0_53 = arith.constant 0 : index
      %63 = arith.index_cast %55 : i32 to index
      %c1_54 = arith.constant 1 : index
      %c0_55 = arith.constant 0 : index
      %64 = vector.load %arg1[%c0_53, %63, %c1_54, %c0_55] : memref<1x6x6x32xbf16, #tpu.memory_space<vmem>>, vector<1x1x4x32xbf16>
      %65 = vector.shape_cast %64 : vector<1x1x4x32xbf16> to vector<4x32xbf16>
      %c7 = arith.constant 7 : index
      %c0_56 = arith.constant 0 : index
      %c0_57 = arith.constant 0 : index
      %66 = vector.load %arg2[%c7, %c0_56, %c0_57] : memref<9x32x64xbf16, #tpu.memory_space<vmem>>, vector<1x32x64xbf16>
      %67 = vector.shape_cast %66 : vector<1x32x64xbf16> to vector<32x64xbf16>
      %cst_58 = arith.constant dense<0.000000e+00> : vector<4x64xf32>
      %68 = tpu.matmul %65, %67, %cst_58 {dimension_numbers = #tpu.dot_dimension_numbers<[1], [0], [0], [1], [0, 0, 1, 1], [], []>} : vector<4x32xbf16>, vector<32x64xbf16>, vector<4x64xf32> -> vector<4x64xf32>
      %69 = arith.addf %62, %68 : vector<4x64xf32>
      %c0_59 = arith.constant 0 : index
      %70 = arith.index_cast %55 : i32 to index
      %c2_60 = arith.constant 2 : index
      %c0_61 = arith.constant 0 : index
      %71 = vector.load %arg1[%c0_59, %70, %c2_60, %c0_61] : memref<1x6x6x32xbf16, #tpu.memory_space<vmem>>, vector<1x1x4x32xbf16>
      %72 = vector.shape_cast %71 : vector<1x1x4x32xbf16> to vector<4x32xbf16>
      %c8 = arith.constant 8 : index
      %c0_62 = arith.constant 0 : index
      %c0_63 = arith.constant 0 : index
      %73 = vector.load %arg2[%c8, %c0_62, %c0_63] : memref<9x32x64xbf16, #tpu.memory_space<vmem>>, vector<1x32x64xbf16>
      %74 = vector.shape_cast %73 : vector<1x32x64xbf16> to vector<32x64xbf16>
      %cst_64 = arith.constant dense<0.000000e+00> : vector<4x64xf32>
      %75 = tpu.matmul %72, %74, %cst_64 {dimension_numbers = #tpu.dot_dimension_numbers<[1], [0], [0], [1], [0, 0, 1, 1], [], []>} : vector<4x32xbf16>, vector<32x64xbf16>, vector<4x64xf32> -> vector<4x64xf32>
      %76 = arith.addf %69, %75 : vector<4x64xf32>
      %77 = arith.truncf %76 : vector<4x64xf32> to vector<4x64xbf16>
      %c0_65 = arith.constant 0 : index
      %78 = arith.index_cast %arg6 : i32 to index
      %c0_66 = arith.constant 0 : index
      %c0_67 = arith.constant 0 : index
      %79 = vector.load %arg3[%c0_65, %78, %c0_66, %c0_67] : memref<1x4x4x64xbf16, #tpu.memory_space<vmem>>, vector<1x1x4x64xbf16>
      %80 = vector.shape_cast %79 : vector<1x1x4x64xbf16> to vector<4x64xbf16>
      %81 = vector.shape_cast %77 : vector<4x64xbf16> to vector<1x1x4x64xbf16>
      tpu.vector_store %arg3[%c0_65, %78, %c0_66, %c0_67], %81 {strides = array<i32>} : memref<1x4x4x64xbf16, #tpu.memory_space<vmem>>, vector<1x1x4x64xbf16>,
      %cst_68 = arith.constant dense<0.000000e+00> : vector<64xf32>
      %82 = vector.multi_reduction <add>, %76, %cst_68 [0] : vector<4x64xf32> to vector<64xf32>
      %83 = vector.shape_cast %82 : vector<64xf32> to vector<1x64xf32>
      %84 = arith.addf %arg7, %83 : vector<1x64xf32>
      %85 = arith.mulf %76, %76 : vector<4x64xf32>
      %cst_69 = arith.constant dense<0.000000e+00> : vector<64xf32>
      %86 = vector.multi_reduction <add>, %85, %cst_69 [0] : vector<4x64xf32> to vector<64xf32>
      %87 = vector.shape_cast %86 : vector<64xf32> to vector<1x64xf32>
      %88 = arith.addf %arg8, %87 : vector<1x64xf32>
      scf.yield %84, %88 : vector<1x64xf32>, vector<1x64xf32>
    }
    %c4_i32_1 = arith.constant 4 : i32
    %c0 = arith.constant 0 : index
    %c0_2 = arith.constant 0 : index
    %c0_3 = arith.constant 0 : index
    %4 = vector.load %arg4[%c0, %c0_2, %c0_3] : memref<1x1x64xf32, #tpu.memory_space<vmem>>, vector<1x1x64xf32>
    %5 = vector.shape_cast %4 : vector<1x1x64xf32> to vector<1x64xf32>
    %6 = vector.shape_cast %3#0 : vector<1x64xf32> to vector<1x1x64xf32>
    tpu.vector_store %arg4[%c0, %c0_2, %c0_3], %6 {strides = array<i32>} : memref<1x1x64xf32, #tpu.memory_space<vmem>>, vector<1x1x64xf32>,
    %c0_4 = arith.constant 0 : index
    %c0_5 = arith.constant 0 : index
    %c0_6 = arith.constant 0 : index
    %7 = vector.load %arg5[%c0_4, %c0_5, %c0_6] : memref<1x1x64xf32, #tpu.memory_space<vmem>>, vector<1x1x64xf32>
    %8 = vector.shape_cast %7 : vector<1x1x64xf32> to vector<1x64xf32>
    %9 = vector.shape_cast %3#1 : vector<1x64xf32> to vector<1x1x64xf32>
    tpu.vector_store %arg5[%c0_4, %c0_5, %c0_6], %9 {strides = array<i32>} : memref<1x1x64xf32, #tpu.memory_space<vmem>>, vector<1x1x64xf32>,
    return
  }
  func.func @transform_0(%arg0: i32) -> (i32, i32, i32, i32) {
    %c0_i32 = arith.constant 0 : i32
    %c0_i32_0 = arith.constant 0 : i32
    %c0_i32_1 = arith.constant 0 : i32
    %c0_i32_2 = arith.constant 0 : i32
    return %arg0, %c0_i32, %c0_i32_0, %c0_i32_1 : i32, i32, i32, i32
  }
  func.func @transform_1(%arg0: i32) -> (i32, i32, i32) {
    %c0_i32 = arith.constant 0 : i32
    %c0_i32_0 = arith.constant 0 : i32
    %c0_i32_1 = arith.constant 0 : i32
    %c0_i32_2 = arith.constant 0 : i32
    return %c0_i32, %c0_i32_0, %c0_i32_1 : i32, i32, i32
  }
  func.func @transform_2(%arg0: i32) -> (i32, i32, i32, i32) {
    %c0_i32 = arith.constant 0 : i32
    %c0_i32_0 = arith.constant 0 : i32
    %c0_i32_1 = arith.constant 0 : i32
    %c0_i32_2 = arith.constant 0 : i32
    return %arg0, %c0_i32, %c0_i32_0, %c0_i32_1 : i32, i32, i32, i32
  }
  func.func @transform_3(%arg0: i32) -> (i32, i32, i32) {
    %c0_i32 = arith.constant 0 : i32
    %c0_i32_0 = arith.constant 0 : i32
    %c0_i32_1 = arith.constant 0 : i32
    return %arg0, %c0_i32, %c0_i32_0 : i32, i32, i32
  }
  func.func @transform_4(%arg0: i32) -> (i32, i32, i32) {
    %c0_i32 = arith.constant 0 : i32
    %c0_i32_0 = arith.constant 0 : i32
    %c0_i32_1 = arith.constant 0 : i32
    return %arg0, %c0_i32, %c0_i32_0 : i32, i32, i32
  }
}

module attributes {stable_mosaic.version = 11 : i64} {
  func.func @kernel(%arg0: i32, %arg1: memref<1x6x6x64xbf16, #tpu.memory_space<vmem>>, %arg2: memref<9x64x64xbf16, #tpu.memory_space<vmem>>, %arg3: memref<1x2x2x64xbf16, #tpu.memory_space<vmem>>, %arg4: memref<1x1x64xf32, #tpu.memory_space<vmem>>, %arg5: memref<1x1x64xf32, #tpu.memory_space<vmem>>) attributes {dimension_semantics = [#tpu.dimension_semantics<parallel>], iteration_bounds = array<i64: 2>, scalar_prefetch = 0 : i64, scratch_operands = 0 : i64, tpu.core_type = #tpu.core_type<tc>, window_params = [{transform_indices = @transform_0, window_bounds = array<i64: 1, 6, 6, 64>}, {pipeline_mode = #tpu.pipeline_mode<synchronous>, transform_indices = @transform_1, window_bounds = array<i64: 9, 64, 64>}, {transform_indices = @transform_2, window_bounds = array<i64: 1, 2, 2, 64>}, {transform_indices = @transform_3, window_bounds = array<i64: 1, 1, 64>}, {transform_indices = @transform_4, window_bounds = array<i64: 1, 1, 64>}]} {
    %cst = arith.constant 0.000000e+00 : f32
    %0 = vector.broadcast %cst : f32 to vector<1x64xf32>
    %cst_0 = arith.constant 0.000000e+00 : f32
    %1 = vector.broadcast %cst_0 : f32 to vector<1x64xf32>
    %c0_i32 = arith.constant 0 : i32
    %c2_i32 = arith.constant 2 : i32
    %2 = arith.addi %c0_i32, %c2_i32 : i32
    %c1_i32 = arith.constant 1 : i32
    %3:2 = scf.for %arg6 = %c0_i32 to %2 step %c1_i32 iter_args(%arg7 = %0, %arg8 = %1) -> (vector<1x64xf32>, vector<1x64xf32>)  : i32 {
      %cst_7 = arith.constant 0.000000e+00 : f32
      %10 = vector.broadcast %cst_7 : f32 to vector<2x64xf32>
      %c0_i32_8 = arith.constant 0 : i32
      %11 = arith.addi %c0_i32_8, %arg6 : i32
      %c0_9 = arith.constant 0 : index
      %12 = arith.index_cast %11 : i32 to index
      %c0_10 = arith.constant 0 : index
      %c0_11 = arith.constant 0 : index
      %13 = vector.load %arg1[%c0_9, %12, %c0_10, %c0_11] : memref<1x6x6x64xbf16, #tpu.memory_space<vmem>>, vector<1x1x2x64xbf16>
      %14 = vector.shape_cast %13 : vector<1x1x2x64xbf16> to vector<2x64xbf16>
      %c0_12 = arith.constant 0 : index
      %c0_13 = arith.constant 0 : index
      %c0_14 = arith.constant 0 : index
      %15 = vector.load %arg2[%c0_12, %c0_13, %c0_14] : memref<9x64x64xbf16, #tpu.memory_space<vmem>>, vector<1x64x64xbf16>
      %16 = vector.shape_cast %15 : vector<1x64x64xbf16> to vector<64x64xbf16>
      %cst_15 = arith.constant dense<0.000000e+00> : vector<2x64xf32>
      %17 = tpu.matmul %14, %16, %cst_15 {dimension_numbers = #tpu.dot_dimension_numbers<[1], [0], [0], [1], [0, 0, 1, 1], [], []>} : vector<2x64xbf16>, vector<64x64xbf16>, vector<2x64xf32> -> vector<2x64xf32>
      %18 = arith.addf %10, %17 : vector<2x64xf32>
      %c0_16 = arith.constant 0 : index
      %19 = arith.index_cast %11 : i32 to index
      %c3 = arith.constant 3 : index
      %c0_17 = arith.constant 0 : index
      %20 = vector.load %arg1[%c0_16, %19, %c3, %c0_17] : memref<1x6x6x64xbf16, #tpu.memory_space<vmem>>, vector<1x1x2x64xbf16>
      %21 = vector.shape_cast %20 : vector<1x1x2x64xbf16> to vector<2x64xbf16>
      %c1 = arith.constant 1 : index
      %c0_18 = arith.constant 0 : index
      %c0_19 = arith.constant 0 : index
      %22 = vector.load %arg2[%c1, %c0_18, %c0_19] : memref<9x64x64xbf16, #tpu.memory_space<vmem>>, vector<1x64x64xbf16>
      %23 = vector.shape_cast %22 : vector<1x64x64xbf16> to vector<64x64xbf16>
      %cst_20 = arith.constant dense<0.000000e+00> : vector<2x64xf32>
      %24 = tpu.matmul %21, %23, %cst_20 {dimension_numbers = #tpu.dot_dimension_numbers<[1], [0], [0], [1], [0, 0, 1, 1], [], []>} : vector<2x64xbf16>, vector<64x64xbf16>, vector<2x64xf32> -> vector<2x64xf32>
      %25 = arith.addf %18, %24 : vector<2x64xf32>
      %c0_21 = arith.constant 0 : index
      %26 = arith.index_cast %11 : i32 to index
      %c1_22 = arith.constant 1 : index
      %c0_23 = arith.constant 0 : index
      %27 = vector.load %arg1[%c0_21, %26, %c1_22, %c0_23] : memref<1x6x6x64xbf16, #tpu.memory_space<vmem>>, vector<1x1x2x64xbf16>
      %28 = vector.shape_cast %27 : vector<1x1x2x64xbf16> to vector<2x64xbf16>
      %c2 = arith.constant 2 : index
      %c0_24 = arith.constant 0 : index
      %c0_25 = arith.constant 0 : index
      %29 = vector.load %arg2[%c2, %c0_24, %c0_25] : memref<9x64x64xbf16, #tpu.memory_space<vmem>>, vector<1x64x64xbf16>
      %30 = vector.shape_cast %29 : vector<1x64x64xbf16> to vector<64x64xbf16>
      %cst_26 = arith.constant dense<0.000000e+00> : vector<2x64xf32>
      %31 = tpu.matmul %28, %30, %cst_26 {dimension_numbers = #tpu.dot_dimension_numbers<[1], [0], [0], [1], [0, 0, 1, 1], [], []>} : vector<2x64xbf16>, vector<64x64xbf16>, vector<2x64xf32> -> vector<2x64xf32>
      %32 = arith.addf %25, %31 : vector<2x64xf32>
      %c3_i32 = arith.constant 3 : i32
      %33 = arith.addi %c3_i32, %arg6 : i32
      %c0_27 = arith.constant 0 : index
      %34 = arith.index_cast %33 : i32 to index
      %c0_28 = arith.constant 0 : index
      %c0_29 = arith.constant 0 : index
      %35 = vector.load %arg1[%c0_27, %34, %c0_28, %c0_29] : memref<1x6x6x64xbf16, #tpu.memory_space<vmem>>, vector<1x1x2x64xbf16>
      %36 = vector.shape_cast %35 : vector<1x1x2x64xbf16> to vector<2x64xbf16>
      %c3_30 = arith.constant 3 : index
      %c0_31 = arith.constant 0 : index
      %c0_32 = arith.constant 0 : index
      %37 = vector.load %arg2[%c3_30, %c0_31, %c0_32] : memref<9x64x64xbf16, #tpu.memory_space<vmem>>, vector<1x64x64xbf16>
      %38 = vector.shape_cast %37 : vector<1x64x64xbf16> to vector<64x64xbf16>
      %cst_33 = arith.constant dense<0.000000e+00> : vector<2x64xf32>
      %39 = tpu.matmul %36, %38, %cst_33 {dimension_numbers = #tpu.dot_dimension_numbers<[1], [0], [0], [1], [0, 0, 1, 1], [], []>} : vector<2x64xbf16>, vector<64x64xbf16>, vector<2x64xf32> -> vector<2x64xf32>
      %40 = arith.addf %32, %39 : vector<2x64xf32>
      %c0_34 = arith.constant 0 : index
      %41 = arith.index_cast %33 : i32 to index
      %c3_35 = arith.constant 3 : index
      %c0_36 = arith.constant 0 : index
      %42 = vector.load %arg1[%c0_34, %41, %c3_35, %c0_36] : memref<1x6x6x64xbf16, #tpu.memory_space<vmem>>, vector<1x1x2x64xbf16>
      %43 = vector.shape_cast %42 : vector<1x1x2x64xbf16> to vector<2x64xbf16>
      %c4 = arith.constant 4 : index
      %c0_37 = arith.constant 0 : index
      %c0_38 = arith.constant 0 : index
      %44 = vector.load %arg2[%c4, %c0_37, %c0_38] : memref<9x64x64xbf16, #tpu.memory_space<vmem>>, vector<1x64x64xbf16>
      %45 = vector.shape_cast %44 : vector<1x64x64xbf16> to vector<64x64xbf16>
      %cst_39 = arith.constant dense<0.000000e+00> : vector<2x64xf32>
      %46 = tpu.matmul %43, %45, %cst_39 {dimension_numbers = #tpu.dot_dimension_numbers<[1], [0], [0], [1], [0, 0, 1, 1], [], []>} : vector<2x64xbf16>, vector<64x64xbf16>, vector<2x64xf32> -> vector<2x64xf32>
      %47 = arith.addf %40, %46 : vector<2x64xf32>
      %c0_40 = arith.constant 0 : index
      %48 = arith.index_cast %33 : i32 to index
      %c1_41 = arith.constant 1 : index
      %c0_42 = arith.constant 0 : index
      %49 = vector.load %arg1[%c0_40, %48, %c1_41, %c0_42] : memref<1x6x6x64xbf16, #tpu.memory_space<vmem>>, vector<1x1x2x64xbf16>
      %50 = vector.shape_cast %49 : vector<1x1x2x64xbf16> to vector<2x64xbf16>
      %c5 = arith.constant 5 : index
      %c0_43 = arith.constant 0 : index
      %c0_44 = arith.constant 0 : index
      %51 = vector.load %arg2[%c5, %c0_43, %c0_44] : memref<9x64x64xbf16, #tpu.memory_space<vmem>>, vector<1x64x64xbf16>
      %52 = vector.shape_cast %51 : vector<1x64x64xbf16> to vector<64x64xbf16>
      %cst_45 = arith.constant dense<0.000000e+00> : vector<2x64xf32>
      %53 = tpu.matmul %50, %52, %cst_45 {dimension_numbers = #tpu.dot_dimension_numbers<[1], [0], [0], [1], [0, 0, 1, 1], [], []>} : vector<2x64xbf16>, vector<64x64xbf16>, vector<2x64xf32> -> vector<2x64xf32>
      %54 = arith.addf %47, %53 : vector<2x64xf32>
      %c1_i32_46 = arith.constant 1 : i32
      %55 = arith.addi %c1_i32_46, %arg6 : i32
      %c0_47 = arith.constant 0 : index
      %56 = arith.index_cast %55 : i32 to index
      %c0_48 = arith.constant 0 : index
      %c0_49 = arith.constant 0 : index
      %57 = vector.load %arg1[%c0_47, %56, %c0_48, %c0_49] : memref<1x6x6x64xbf16, #tpu.memory_space<vmem>>, vector<1x1x2x64xbf16>
      %58 = vector.shape_cast %57 : vector<1x1x2x64xbf16> to vector<2x64xbf16>
      %c6 = arith.constant 6 : index
      %c0_50 = arith.constant 0 : index
      %c0_51 = arith.constant 0 : index
      %59 = vector.load %arg2[%c6, %c0_50, %c0_51] : memref<9x64x64xbf16, #tpu.memory_space<vmem>>, vector<1x64x64xbf16>
      %60 = vector.shape_cast %59 : vector<1x64x64xbf16> to vector<64x64xbf16>
      %cst_52 = arith.constant dense<0.000000e+00> : vector<2x64xf32>
      %61 = tpu.matmul %58, %60, %cst_52 {dimension_numbers = #tpu.dot_dimension_numbers<[1], [0], [0], [1], [0, 0, 1, 1], [], []>} : vector<2x64xbf16>, vector<64x64xbf16>, vector<2x64xf32> -> vector<2x64xf32>
      %62 = arith.addf %54, %61 : vector<2x64xf32>
      %c0_53 = arith.constant 0 : index
      %63 = arith.index_cast %55 : i32 to index
      %c3_54 = arith.constant 3 : index
      %c0_55 = arith.constant 0 : index
      %64 = vector.load %arg1[%c0_53, %63, %c3_54, %c0_55] : memref<1x6x6x64xbf16, #tpu.memory_space<vmem>>, vector<1x1x2x64xbf16>
      %65 = vector.shape_cast %64 : vector<1x1x2x64xbf16> to vector<2x64xbf16>
      %c7 = arith.constant 7 : index
      %c0_56 = arith.constant 0 : index
      %c0_57 = arith.constant 0 : index
      %66 = vector.load %arg2[%c7, %c0_56, %c0_57] : memref<9x64x64xbf16, #tpu.memory_space<vmem>>, vector<1x64x64xbf16>
      %67 = vector.shape_cast %66 : vector<1x64x64xbf16> to vector<64x64xbf16>
      %cst_58 = arith.constant dense<0.000000e+00> : vector<2x64xf32>
      %68 = tpu.matmul %65, %67, %cst_58 {dimension_numbers = #tpu.dot_dimension_numbers<[1], [0], [0], [1], [0, 0, 1, 1], [], []>} : vector<2x64xbf16>, vector<64x64xbf16>, vector<2x64xf32> -> vector<2x64xf32>
      %69 = arith.addf %62, %68 : vector<2x64xf32>
      %c0_59 = arith.constant 0 : index
      %70 = arith.index_cast %55 : i32 to index
      %c1_60 = arith.constant 1 : index
      %c0_61 = arith.constant 0 : index
      %71 = vector.load %arg1[%c0_59, %70, %c1_60, %c0_61] : memref<1x6x6x64xbf16, #tpu.memory_space<vmem>>, vector<1x1x2x64xbf16>
      %72 = vector.shape_cast %71 : vector<1x1x2x64xbf16> to vector<2x64xbf16>
      %c8 = arith.constant 8 : index
      %c0_62 = arith.constant 0 : index
      %c0_63 = arith.constant 0 : index
      %73 = vector.load %arg2[%c8, %c0_62, %c0_63] : memref<9x64x64xbf16, #tpu.memory_space<vmem>>, vector<1x64x64xbf16>
      %74 = vector.shape_cast %73 : vector<1x64x64xbf16> to vector<64x64xbf16>
      %cst_64 = arith.constant dense<0.000000e+00> : vector<2x64xf32>
      %75 = tpu.matmul %72, %74, %cst_64 {dimension_numbers = #tpu.dot_dimension_numbers<[1], [0], [0], [1], [0, 0, 1, 1], [], []>} : vector<2x64xbf16>, vector<64x64xbf16>, vector<2x64xf32> -> vector<2x64xf32>
      %76 = arith.addf %69, %75 : vector<2x64xf32>
      %77 = arith.truncf %76 : vector<2x64xf32> to vector<2x64xbf16>
      %c0_65 = arith.constant 0 : index
      %78 = arith.index_cast %arg6 : i32 to index
      %c0_66 = arith.constant 0 : index
      %c0_67 = arith.constant 0 : index
      %79 = vector.load %arg3[%c0_65, %78, %c0_66, %c0_67] : memref<1x2x2x64xbf16, #tpu.memory_space<vmem>>, vector<1x1x2x64xbf16>
      %80 = vector.shape_cast %79 : vector<1x1x2x64xbf16> to vector<2x64xbf16>
      %81 = vector.shape_cast %77 : vector<2x64xbf16> to vector<1x1x2x64xbf16>
      tpu.vector_store %arg3[%c0_65, %78, %c0_66, %c0_67], %81 {strides = array<i32>} : memref<1x2x2x64xbf16, #tpu.memory_space<vmem>>, vector<1x1x2x64xbf16>,
      %cst_68 = arith.constant dense<0.000000e+00> : vector<64xf32>
      %82 = vector.multi_reduction <add>, %76, %cst_68 [0] : vector<2x64xf32> to vector<64xf32>
      %83 = vector.shape_cast %82 : vector<64xf32> to vector<1x64xf32>
      %84 = arith.addf %arg7, %83 : vector<1x64xf32>
      %85 = arith.mulf %76, %76 : vector<2x64xf32>
      %cst_69 = arith.constant dense<0.000000e+00> : vector<64xf32>
      %86 = vector.multi_reduction <add>, %85, %cst_69 [0] : vector<2x64xf32> to vector<64xf32>
      %87 = vector.shape_cast %86 : vector<64xf32> to vector<1x64xf32>
      %88 = arith.addf %arg8, %87 : vector<1x64xf32>
      scf.yield %84, %88 : vector<1x64xf32>, vector<1x64xf32>
    }
    %c2_i32_1 = arith.constant 2 : i32
    %c0 = arith.constant 0 : index
    %c0_2 = arith.constant 0 : index
    %c0_3 = arith.constant 0 : index
    %4 = vector.load %arg4[%c0, %c0_2, %c0_3] : memref<1x1x64xf32, #tpu.memory_space<vmem>>, vector<1x1x64xf32>
    %5 = vector.shape_cast %4 : vector<1x1x64xf32> to vector<1x64xf32>
    %6 = vector.shape_cast %3#0 : vector<1x64xf32> to vector<1x1x64xf32>
    tpu.vector_store %arg4[%c0, %c0_2, %c0_3], %6 {strides = array<i32>} : memref<1x1x64xf32, #tpu.memory_space<vmem>>, vector<1x1x64xf32>,
    %c0_4 = arith.constant 0 : index
    %c0_5 = arith.constant 0 : index
    %c0_6 = arith.constant 0 : index
    %7 = vector.load %arg5[%c0_4, %c0_5, %c0_6] : memref<1x1x64xf32, #tpu.memory_space<vmem>>, vector<1x1x64xf32>
    %8 = vector.shape_cast %7 : vector<1x1x64xf32> to vector<1x64xf32>
    %9 = vector.shape_cast %3#1 : vector<1x64xf32> to vector<1x1x64xf32>
    tpu.vector_store %arg5[%c0_4, %c0_5, %c0_6], %9 {strides = array<i32>} : memref<1x1x64xf32, #tpu.memory_space<vmem>>, vector<1x1x64xf32>,
    return
  }
  func.func @transform_0(%arg0: i32) -> (i32, i32, i32, i32) {
    %c0_i32 = arith.constant 0 : i32
    %c0_i32_0 = arith.constant 0 : i32
    %c0_i32_1 = arith.constant 0 : i32
    %c0_i32_2 = arith.constant 0 : i32
    return %arg0, %c0_i32, %c0_i32_0, %c0_i32_1 : i32, i32, i32, i32
  }
  func.func @transform_1(%arg0: i32) -> (i32, i32, i32) {
    %c0_i32 = arith.constant 0 : i32
    %c0_i32_0 = arith.constant 0 : i32
    %c0_i32_1 = arith.constant 0 : i32
    %c0_i32_2 = arith.constant 0 : i32
    return %c0_i32, %c0_i32_0, %c0_i32_1 : i32, i32, i32
  }
  func.func @transform_2(%arg0: i32) -> (i32, i32, i32, i32) {
    %c0_i32 = arith.constant 0 : i32
    %c0_i32_0 = arith.constant 0 : i32
    %c0_i32_1 = arith.constant 0 : i32
    %c0_i32_2 = arith.constant 0 : i32
    return %arg0, %c0_i32, %c0_i32_0, %c0_i32_1 : i32, i32, i32, i32
  }
  func.func @transform_3(%arg0: i32) -> (i32, i32, i32) {
    %c0_i32 = arith.constant 0 : i32
    %c0_i32_0 = arith.constant 0 : i32
    %c0_i32_1 = arith.constant 0 : i32
    return %arg0, %c0_i32, %c0_i32_0 : i32, i32, i32
  }
  func.func @transform_4(%arg0: i32) -> (i32, i32, i32) {
    %c0_i32 = arith.constant 0 : i32
    %c0_i32_0 = arith.constant 0 : i32
    %c0_i32_1 = arith.constant 0 : i32
    return %arg0, %c0_i32, %c0_i32_0 : i32, i32, i32
  }
}

module attributes {stable_mosaic.version = 11 : i64} {
  func.func @kernel(%arg0: i32, %arg1: memref<1x4x4x64xbf16, #tpu.memory_space<vmem>>, %arg2: memref<9x64x128xbf16, #tpu.memory_space<vmem>>, %arg3: memref<1x2x2x128xbf16, #tpu.memory_space<vmem>>, %arg4: memref<1x1x128xf32, #tpu.memory_space<vmem>>, %arg5: memref<1x1x128xf32, #tpu.memory_space<vmem>>) attributes {dimension_semantics = [#tpu.dimension_semantics<parallel>], iteration_bounds = array<i64: 2>, scalar_prefetch = 0 : i64, scratch_operands = 0 : i64, tpu.core_type = #tpu.core_type<tc>, window_params = [{transform_indices = @transform_0, window_bounds = array<i64: 1, 4, 4, 64>}, {pipeline_mode = #tpu.pipeline_mode<synchronous>, transform_indices = @transform_1, window_bounds = array<i64: 9, 64, 128>}, {transform_indices = @transform_2, window_bounds = array<i64: 1, 2, 2, 128>}, {transform_indices = @transform_3, window_bounds = array<i64: 1, 1, 128>}, {transform_indices = @transform_4, window_bounds = array<i64: 1, 1, 128>}]} {
    %cst = arith.constant 0.000000e+00 : f32
    %0 = vector.broadcast %cst : f32 to vector<1x128xf32>
    %cst_0 = arith.constant 0.000000e+00 : f32
    %1 = vector.broadcast %cst_0 : f32 to vector<1x128xf32>
    %c0_i32 = arith.constant 0 : i32
    %c2_i32 = arith.constant 2 : i32
    %2 = arith.addi %c0_i32, %c2_i32 : i32
    %c1_i32 = arith.constant 1 : i32
    %3:2 = scf.for %arg6 = %c0_i32 to %2 step %c1_i32 iter_args(%arg7 = %0, %arg8 = %1) -> (vector<1x128xf32>, vector<1x128xf32>)  : i32 {
      %cst_7 = arith.constant 0.000000e+00 : f32
      %10 = vector.broadcast %cst_7 : f32 to vector<2x128xf32>
      %c0_i32_8 = arith.constant 0 : i32
      %11 = arith.addi %c0_i32_8, %arg6 : i32
      %c0_9 = arith.constant 0 : index
      %12 = arith.index_cast %11 : i32 to index
      %c0_10 = arith.constant 0 : index
      %c0_11 = arith.constant 0 : index
      %13 = vector.load %arg1[%c0_9, %12, %c0_10, %c0_11] : memref<1x4x4x64xbf16, #tpu.memory_space<vmem>>, vector<1x1x2x64xbf16>
      %14 = vector.shape_cast %13 : vector<1x1x2x64xbf16> to vector<2x64xbf16>
      %c0_12 = arith.constant 0 : index
      %c0_13 = arith.constant 0 : index
      %c0_14 = arith.constant 0 : index
      %15 = vector.load %arg2[%c0_12, %c0_13, %c0_14] : memref<9x64x128xbf16, #tpu.memory_space<vmem>>, vector<1x64x128xbf16>
      %16 = vector.shape_cast %15 : vector<1x64x128xbf16> to vector<64x128xbf16>
      %cst_15 = arith.constant dense<0.000000e+00> : vector<2x128xf32>
      %17 = tpu.matmul %14, %16, %cst_15 {dimension_numbers = #tpu.dot_dimension_numbers<[1], [0], [0], [1], [0, 0, 1, 1], [], []>} : vector<2x64xbf16>, vector<64x128xbf16>, vector<2x128xf32> -> vector<2x128xf32>
      %18 = arith.addf %10, %17 : vector<2x128xf32>
      %c0_16 = arith.constant 0 : index
      %19 = arith.index_cast %11 : i32 to index
      %c1 = arith.constant 1 : index
      %c0_17 = arith.constant 0 : index
      %20 = vector.load %arg1[%c0_16, %19, %c1, %c0_17] : memref<1x4x4x64xbf16, #tpu.memory_space<vmem>>, vector<1x1x2x64xbf16>
      %21 = vector.shape_cast %20 : vector<1x1x2x64xbf16> to vector<2x64xbf16>
      %c1_18 = arith.constant 1 : index
      %c0_19 = arith.constant 0 : index
      %c0_20 = arith.constant 0 : index
      %22 = vector.load %arg2[%c1_18, %c0_19, %c0_20] : memref<9x64x128xbf16, #tpu.memory_space<vmem>>, vector<1x64x128xbf16>
      %23 = vector.shape_cast %22 : vector<1x64x128xbf16> to vector<64x128xbf16>
      %cst_21 = arith.constant dense<0.000000e+00> : vector<2x128xf32>
      %24 = tpu.matmul %21, %23, %cst_21 {dimension_numbers = #tpu.dot_dimension_numbers<[1], [0], [0], [1], [0, 0, 1, 1], [], []>} : vector<2x64xbf16>, vector<64x128xbf16>, vector<2x128xf32> -> vector<2x128xf32>
      %25 = arith.addf %18, %24 : vector<2x128xf32>
      %c0_22 = arith.constant 0 : index
      %26 = arith.index_cast %11 : i32 to index
      %c2 = arith.constant 2 : index
      %c0_23 = arith.constant 0 : index
      %27 = vector.load %arg1[%c0_22, %26, %c2, %c0_23] : memref<1x4x4x64xbf16, #tpu.memory_space<vmem>>, vector<1x1x2x64xbf16>
      %28 = vector.shape_cast %27 : vector<1x1x2x64xbf16> to vector<2x64xbf16>
      %c2_24 = arith.constant 2 : index
      %c0_25 = arith.constant 0 : index
      %c0_26 = arith.constant 0 : index
      %29 = vector.load %arg2[%c2_24, %c0_25, %c0_26] : memref<9x64x128xbf16, #tpu.memory_space<vmem>>, vector<1x64x128xbf16>
      %30 = vector.shape_cast %29 : vector<1x64x128xbf16> to vector<64x128xbf16>
      %cst_27 = arith.constant dense<0.000000e+00> : vector<2x128xf32>
      %31 = tpu.matmul %28, %30, %cst_27 {dimension_numbers = #tpu.dot_dimension_numbers<[1], [0], [0], [1], [0, 0, 1, 1], [], []>} : vector<2x64xbf16>, vector<64x128xbf16>, vector<2x128xf32> -> vector<2x128xf32>
      %32 = arith.addf %25, %31 : vector<2x128xf32>
      %c1_i32_28 = arith.constant 1 : i32
      %33 = arith.addi %c1_i32_28, %arg6 : i32
      %c0_29 = arith.constant 0 : index
      %34 = arith.index_cast %33 : i32 to index
      %c0_30 = arith.constant 0 : index
      %c0_31 = arith.constant 0 : index
      %35 = vector.load %arg1[%c0_29, %34, %c0_30, %c0_31] : memref<1x4x4x64xbf16, #tpu.memory_space<vmem>>, vector<1x1x2x64xbf16>
      %36 = vector.shape_cast %35 : vector<1x1x2x64xbf16> to vector<2x64xbf16>
      %c3 = arith.constant 3 : index
      %c0_32 = arith.constant 0 : index
      %c0_33 = arith.constant 0 : index
      %37 = vector.load %arg2[%c3, %c0_32, %c0_33] : memref<9x64x128xbf16, #tpu.memory_space<vmem>>, vector<1x64x128xbf16>
      %38 = vector.shape_cast %37 : vector<1x64x128xbf16> to vector<64x128xbf16>
      %cst_34 = arith.constant dense<0.000000e+00> : vector<2x128xf32>
      %39 = tpu.matmul %36, %38, %cst_34 {dimension_numbers = #tpu.dot_dimension_numbers<[1], [0], [0], [1], [0, 0, 1, 1], [], []>} : vector<2x64xbf16>, vector<64x128xbf16>, vector<2x128xf32> -> vector<2x128xf32>
      %40 = arith.addf %32, %39 : vector<2x128xf32>
      %c0_35 = arith.constant 0 : index
      %41 = arith.index_cast %33 : i32 to index
      %c1_36 = arith.constant 1 : index
      %c0_37 = arith.constant 0 : index
      %42 = vector.load %arg1[%c0_35, %41, %c1_36, %c0_37] : memref<1x4x4x64xbf16, #tpu.memory_space<vmem>>, vector<1x1x2x64xbf16>
      %43 = vector.shape_cast %42 : vector<1x1x2x64xbf16> to vector<2x64xbf16>
      %c4 = arith.constant 4 : index
      %c0_38 = arith.constant 0 : index
      %c0_39 = arith.constant 0 : index
      %44 = vector.load %arg2[%c4, %c0_38, %c0_39] : memref<9x64x128xbf16, #tpu.memory_space<vmem>>, vector<1x64x128xbf16>
      %45 = vector.shape_cast %44 : vector<1x64x128xbf16> to vector<64x128xbf16>
      %cst_40 = arith.constant dense<0.000000e+00> : vector<2x128xf32>
      %46 = tpu.matmul %43, %45, %cst_40 {dimension_numbers = #tpu.dot_dimension_numbers<[1], [0], [0], [1], [0, 0, 1, 1], [], []>} : vector<2x64xbf16>, vector<64x128xbf16>, vector<2x128xf32> -> vector<2x128xf32>
      %47 = arith.addf %40, %46 : vector<2x128xf32>
      %c0_41 = arith.constant 0 : index
      %48 = arith.index_cast %33 : i32 to index
      %c2_42 = arith.constant 2 : index
      %c0_43 = arith.constant 0 : index
      %49 = vector.load %arg1[%c0_41, %48, %c2_42, %c0_43] : memref<1x4x4x64xbf16, #tpu.memory_space<vmem>>, vector<1x1x2x64xbf16>
      %50 = vector.shape_cast %49 : vector<1x1x2x64xbf16> to vector<2x64xbf16>
      %c5 = arith.constant 5 : index
      %c0_44 = arith.constant 0 : index
      %c0_45 = arith.constant 0 : index
      %51 = vector.load %arg2[%c5, %c0_44, %c0_45] : memref<9x64x128xbf16, #tpu.memory_space<vmem>>, vector<1x64x128xbf16>
      %52 = vector.shape_cast %51 : vector<1x64x128xbf16> to vector<64x128xbf16>
      %cst_46 = arith.constant dense<0.000000e+00> : vector<2x128xf32>
      %53 = tpu.matmul %50, %52, %cst_46 {dimension_numbers = #tpu.dot_dimension_numbers<[1], [0], [0], [1], [0, 0, 1, 1], [], []>} : vector<2x64xbf16>, vector<64x128xbf16>, vector<2x128xf32> -> vector<2x128xf32>
      %54 = arith.addf %47, %53 : vector<2x128xf32>
      %c2_i32_47 = arith.constant 2 : i32
      %55 = arith.addi %c2_i32_47, %arg6 : i32
      %c0_48 = arith.constant 0 : index
      %56 = arith.index_cast %55 : i32 to index
      %c0_49 = arith.constant 0 : index
      %c0_50 = arith.constant 0 : index
      %57 = vector.load %arg1[%c0_48, %56, %c0_49, %c0_50] : memref<1x4x4x64xbf16, #tpu.memory_space<vmem>>, vector<1x1x2x64xbf16>
      %58 = vector.shape_cast %57 : vector<1x1x2x64xbf16> to vector<2x64xbf16>
      %c6 = arith.constant 6 : index
      %c0_51 = arith.constant 0 : index
      %c0_52 = arith.constant 0 : index
      %59 = vector.load %arg2[%c6, %c0_51, %c0_52] : memref<9x64x128xbf16, #tpu.memory_space<vmem>>, vector<1x64x128xbf16>
      %60 = vector.shape_cast %59 : vector<1x64x128xbf16> to vector<64x128xbf16>
      %cst_53 = arith.constant dense<0.000000e+00> : vector<2x128xf32>
      %61 = tpu.matmul %58, %60, %cst_53 {dimension_numbers = #tpu.dot_dimension_numbers<[1], [0], [0], [1], [0, 0, 1, 1], [], []>} : vector<2x64xbf16>, vector<64x128xbf16>, vector<2x128xf32> -> vector<2x128xf32>
      %62 = arith.addf %54, %61 : vector<2x128xf32>
      %c0_54 = arith.constant 0 : index
      %63 = arith.index_cast %55 : i32 to index
      %c1_55 = arith.constant 1 : index
      %c0_56 = arith.constant 0 : index
      %64 = vector.load %arg1[%c0_54, %63, %c1_55, %c0_56] : memref<1x4x4x64xbf16, #tpu.memory_space<vmem>>, vector<1x1x2x64xbf16>
      %65 = vector.shape_cast %64 : vector<1x1x2x64xbf16> to vector<2x64xbf16>
      %c7 = arith.constant 7 : index
      %c0_57 = arith.constant 0 : index
      %c0_58 = arith.constant 0 : index
      %66 = vector.load %arg2[%c7, %c0_57, %c0_58] : memref<9x64x128xbf16, #tpu.memory_space<vmem>>, vector<1x64x128xbf16>
      %67 = vector.shape_cast %66 : vector<1x64x128xbf16> to vector<64x128xbf16>
      %cst_59 = arith.constant dense<0.000000e+00> : vector<2x128xf32>
      %68 = tpu.matmul %65, %67, %cst_59 {dimension_numbers = #tpu.dot_dimension_numbers<[1], [0], [0], [1], [0, 0, 1, 1], [], []>} : vector<2x64xbf16>, vector<64x128xbf16>, vector<2x128xf32> -> vector<2x128xf32>
      %69 = arith.addf %62, %68 : vector<2x128xf32>
      %c0_60 = arith.constant 0 : index
      %70 = arith.index_cast %55 : i32 to index
      %c2_61 = arith.constant 2 : index
      %c0_62 = arith.constant 0 : index
      %71 = vector.load %arg1[%c0_60, %70, %c2_61, %c0_62] : memref<1x4x4x64xbf16, #tpu.memory_space<vmem>>, vector<1x1x2x64xbf16>
      %72 = vector.shape_cast %71 : vector<1x1x2x64xbf16> to vector<2x64xbf16>
      %c8 = arith.constant 8 : index
      %c0_63 = arith.constant 0 : index
      %c0_64 = arith.constant 0 : index
      %73 = vector.load %arg2[%c8, %c0_63, %c0_64] : memref<9x64x128xbf16, #tpu.memory_space<vmem>>, vector<1x64x128xbf16>
      %74 = vector.shape_cast %73 : vector<1x64x128xbf16> to vector<64x128xbf16>
      %cst_65 = arith.constant dense<0.000000e+00> : vector<2x128xf32>
      %75 = tpu.matmul %72, %74, %cst_65 {dimension_numbers = #tpu.dot_dimension_numbers<[1], [0], [0], [1], [0, 0, 1, 1], [], []>} : vector<2x64xbf16>, vector<64x128xbf16>, vector<2x128xf32> -> vector<2x128xf32>
      %76 = arith.addf %69, %75 : vector<2x128xf32>
      %77 = arith.truncf %76 : vector<2x128xf32> to vector<2x128xbf16>
      %c0_66 = arith.constant 0 : index
      %78 = arith.index_cast %arg6 : i32 to index
      %c0_67 = arith.constant 0 : index
      %c0_68 = arith.constant 0 : index
      %79 = vector.load %arg3[%c0_66, %78, %c0_67, %c0_68] : memref<1x2x2x128xbf16, #tpu.memory_space<vmem>>, vector<1x1x2x128xbf16>
      %80 = vector.shape_cast %79 : vector<1x1x2x128xbf16> to vector<2x128xbf16>
      %81 = vector.shape_cast %77 : vector<2x128xbf16> to vector<1x1x2x128xbf16>
      tpu.vector_store %arg3[%c0_66, %78, %c0_67, %c0_68], %81 {strides = array<i32>} : memref<1x2x2x128xbf16, #tpu.memory_space<vmem>>, vector<1x1x2x128xbf16>,
      %cst_69 = arith.constant dense<0.000000e+00> : vector<128xf32>
      %82 = vector.multi_reduction <add>, %76, %cst_69 [0] : vector<2x128xf32> to vector<128xf32>
      %83 = vector.shape_cast %82 : vector<128xf32> to vector<1x128xf32>
      %84 = arith.addf %arg7, %83 : vector<1x128xf32>
      %85 = arith.mulf %76, %76 : vector<2x128xf32>
      %cst_70 = arith.constant dense<0.000000e+00> : vector<128xf32>
      %86 = vector.multi_reduction <add>, %85, %cst_70 [0] : vector<2x128xf32> to vector<128xf32>
      %87 = vector.shape_cast %86 : vector<128xf32> to vector<1x128xf32>
      %88 = arith.addf %arg8, %87 : vector<1x128xf32>
      scf.yield %84, %88 : vector<1x128xf32>, vector<1x128xf32>
    }
    %c2_i32_1 = arith.constant 2 : i32
    %c0 = arith.constant 0 : index
    %c0_2 = arith.constant 0 : index
    %c0_3 = arith.constant 0 : index
    %4 = vector.load %arg4[%c0, %c0_2, %c0_3] : memref<1x1x128xf32, #tpu.memory_space<vmem>>, vector<1x1x128xf32>
    %5 = vector.shape_cast %4 : vector<1x1x128xf32> to vector<1x128xf32>
    %6 = vector.shape_cast %3#0 : vector<1x128xf32> to vector<1x1x128xf32>
    tpu.vector_store %arg4[%c0, %c0_2, %c0_3], %6 {strides = array<i32>} : memref<1x1x128xf32, #tpu.memory_space<vmem>>, vector<1x1x128xf32>,
    %c0_4 = arith.constant 0 : index
    %c0_5 = arith.constant 0 : index
    %c0_6 = arith.constant 0 : index
    %7 = vector.load %arg5[%c0_4, %c0_5, %c0_6] : memref<1x1x128xf32, #tpu.memory_space<vmem>>, vector<1x1x128xf32>
    %8 = vector.shape_cast %7 : vector<1x1x128xf32> to vector<1x128xf32>
    %9 = vector.shape_cast %3#1 : vector<1x128xf32> to vector<1x1x128xf32>
    tpu.vector_store %arg5[%c0_4, %c0_5, %c0_6], %9 {strides = array<i32>} : memref<1x1x128xf32, #tpu.memory_space<vmem>>, vector<1x1x128xf32>,
    return
  }
  func.func @transform_0(%arg0: i32) -> (i32, i32, i32, i32) {
    %c0_i32 = arith.constant 0 : i32
    %c0_i32_0 = arith.constant 0 : i32
    %c0_i32_1 = arith.constant 0 : i32
    %c0_i32_2 = arith.constant 0 : i32
    return %arg0, %c0_i32, %c0_i32_0, %c0_i32_1 : i32, i32, i32, i32
  }
  func.func @transform_1(%arg0: i32) -> (i32, i32, i32) {
    %c0_i32 = arith.constant 0 : i32
    %c0_i32_0 = arith.constant 0 : i32
    %c0_i32_1 = arith.constant 0 : i32
    %c0_i32_2 = arith.constant 0 : i32
    return %c0_i32, %c0_i32_0, %c0_i32_1 : i32, i32, i32
  }
  func.func @transform_2(%arg0: i32) -> (i32, i32, i32, i32) {
    %c0_i32 = arith.constant 0 : i32
    %c0_i32_0 = arith.constant 0 : i32
    %c0_i32_1 = arith.constant 0 : i32
    %c0_i32_2 = arith.constant 0 : i32
    return %arg0, %c0_i32, %c0_i32_0, %c0_i32_1 : i32, i32, i32, i32
  }
  func.func @transform_3(%arg0: i32) -> (i32, i32, i32) {
    %c0_i32 = arith.constant 0 : i32
    %c0_i32_0 = arith.constant 0 : i32
    %c0_i32_1 = arith.constant 0 : i32
    return %arg0, %c0_i32, %c0_i32_0 : i32, i32, i32
  }
  func.func @transform_4(%arg0: i32) -> (i32, i32, i32) {
    %c0_i32 = arith.constant 0 : i32
    %c0_i32_0 = arith.constant 0 : i32
    %c0_i32_1 = arith.constant 0 : i32
    return %arg0, %c0_i32, %c0_i32_0 : i32, i32, i32
  }
}

module attributes {stable_mosaic.version = 11 : i64} {
  func.func @kernel(%arg0: i32, %arg1: memref<1x4x4x128xbf16, #tpu.memory_space<vmem>>, %arg2: memref<9x128x128xbf16, #tpu.memory_space<vmem>>, %arg3: memref<1x1x1x128xbf16, #tpu.memory_space<vmem>>, %arg4: memref<1x1x128xf32, #tpu.memory_space<vmem>>, %arg5: memref<1x1x128xf32, #tpu.memory_space<vmem>>) attributes {dimension_semantics = [#tpu.dimension_semantics<parallel>], iteration_bounds = array<i64: 2>, scalar_prefetch = 0 : i64, scratch_operands = 0 : i64, tpu.core_type = #tpu.core_type<tc>, window_params = [{transform_indices = @transform_0, window_bounds = array<i64: 1, 4, 4, 128>}, {pipeline_mode = #tpu.pipeline_mode<synchronous>, transform_indices = @transform_1, window_bounds = array<i64: 9, 128, 128>}, {transform_indices = @transform_2, window_bounds = array<i64: 1, 1, 1, 128>}, {transform_indices = @transform_3, window_bounds = array<i64: 1, 1, 128>}, {transform_indices = @transform_4, window_bounds = array<i64: 1, 1, 128>}]} {
    %cst = arith.constant 0.000000e+00 : f32
    %0 = vector.broadcast %cst : f32 to vector<1x128xf32>
    %cst_0 = arith.constant 0.000000e+00 : f32
    %1 = vector.broadcast %cst_0 : f32 to vector<1x128xf32>
    %c0_i32 = arith.constant 0 : i32
    %cst_1 = arith.constant 0.000000e+00 : f32
    %2 = vector.broadcast %cst_1 : f32 to vector<1x128xf32>
    %c0_i32_2 = arith.constant 0 : i32
    %3 = arith.addi %c0_i32_2, %c0_i32 : i32
    %c0 = arith.constant 0 : index
    %4 = arith.index_cast %3 : i32 to index
    %c0_3 = arith.constant 0 : index
    %c0_4 = arith.constant 0 : index
    %5 = vector.load %arg1[%c0, %4, %c0_3, %c0_4] : memref<1x4x4x128xbf16, #tpu.memory_space<vmem>>, vector<1x1x1x128xbf16>
    %6 = vector.shape_cast %5 : vector<1x1x1x128xbf16> to vector<1x128xbf16>
    %c0_5 = arith.constant 0 : index
    %c0_6 = arith.constant 0 : index
    %c0_7 = arith.constant 0 : index
    %7 = vector.load %arg2[%c0_5, %c0_6, %c0_7] : memref<9x128x128xbf16, #tpu.memory_space<vmem>>, vector<1x128x128xbf16>
    %8 = vector.shape_cast %7 : vector<1x128x128xbf16> to vector<128x128xbf16>
    %cst_8 = arith.constant dense<0.000000e+00> : vector<1x128xf32>
    %9 = tpu.matmul %6, %8, %cst_8 {dimension_numbers = #tpu.dot_dimension_numbers<[1], [0], [0], [1], [0, 0, 1, 1], [], []>} : vector<1x128xbf16>, vector<128x128xbf16>, vector<1x128xf32> -> vector<1x128xf32>
    %10 = arith.addf %2, %9 : vector<1x128xf32>
    %c0_9 = arith.constant 0 : index
    %11 = arith.index_cast %3 : i32 to index
    %c2 = arith.constant 2 : index
    %c0_10 = arith.constant 0 : index
    %12 = vector.load %arg1[%c0_9, %11, %c2, %c0_10] : memref<1x4x4x128xbf16, #tpu.memory_space<vmem>>, vector<1x1x1x128xbf16>
    %13 = vector.shape_cast %12 : vector<1x1x1x128xbf16> to vector<1x128xbf16>
    %c1 = arith.constant 1 : index
    %c0_11 = arith.constant 0 : index
    %c0_12 = arith.constant 0 : index
    %14 = vector.load %arg2[%c1, %c0_11, %c0_12] : memref<9x128x128xbf16, #tpu.memory_space<vmem>>, vector<1x128x128xbf16>
    %15 = vector.shape_cast %14 : vector<1x128x128xbf16> to vector<128x128xbf16>
    %cst_13 = arith.constant dense<0.000000e+00> : vector<1x128xf32>
    %16 = tpu.matmul %13, %15, %cst_13 {dimension_numbers = #tpu.dot_dimension_numbers<[1], [0], [0], [1], [0, 0, 1, 1], [], []>} : vector<1x128xbf16>, vector<128x128xbf16>, vector<1x128xf32> -> vector<1x128xf32>
    %17 = arith.addf %10, %16 : vector<1x128xf32>
    %c0_14 = arith.constant 0 : index
    %18 = arith.index_cast %3 : i32 to index
    %c1_15 = arith.constant 1 : index
    %c0_16 = arith.constant 0 : index
    %19 = vector.load %arg1[%c0_14, %18, %c1_15, %c0_16] : memref<1x4x4x128xbf16, #tpu.memory_space<vmem>>, vector<1x1x1x128xbf16>
    %20 = vector.shape_cast %19 : vector<1x1x1x128xbf16> to vector<1x128xbf16>
    %c2_17 = arith.constant 2 : index
    %c0_18 = arith.constant 0 : index
    %c0_19 = arith.constant 0 : index
    %21 = vector.load %arg2[%c2_17, %c0_18, %c0_19] : memref<9x128x128xbf16, #tpu.memory_space<vmem>>, vector<1x128x128xbf16>
    %22 = vector.shape_cast %21 : vector<1x128x128xbf16> to vector<128x128xbf16>
    %cst_20 = arith.constant dense<0.000000e+00> : vector<1x128xf32>
    %23 = tpu.matmul %20, %22, %cst_20 {dimension_numbers = #tpu.dot_dimension_numbers<[1], [0], [0], [1], [0, 0, 1, 1], [], []>} : vector<1x128xbf16>, vector<128x128xbf16>, vector<1x128xf32> -> vector<1x128xf32>
    %24 = arith.addf %17, %23 : vector<1x128xf32>
    %c2_i32 = arith.constant 2 : i32
    %25 = arith.addi %c2_i32, %c0_i32 : i32
    %c0_21 = arith.constant 0 : index
    %26 = arith.index_cast %25 : i32 to index
    %c0_22 = arith.constant 0 : index
    %c0_23 = arith.constant 0 : index
    %27 = vector.load %arg1[%c0_21, %26, %c0_22, %c0_23] : memref<1x4x4x128xbf16, #tpu.memory_space<vmem>>, vector<1x1x1x128xbf16>
    %28 = vector.shape_cast %27 : vector<1x1x1x128xbf16> to vector<1x128xbf16>
    %c3 = arith.constant 3 : index
    %c0_24 = arith.constant 0 : index
    %c0_25 = arith.constant 0 : index
    %29 = vector.load %arg2[%c3, %c0_24, %c0_25] : memref<9x128x128xbf16, #tpu.memory_space<vmem>>, vector<1x128x128xbf16>
    %30 = vector.shape_cast %29 : vector<1x128x128xbf16> to vector<128x128xbf16>
    %cst_26 = arith.constant dense<0.000000e+00> : vector<1x128xf32>
    %31 = tpu.matmul %28, %30, %cst_26 {dimension_numbers = #tpu.dot_dimension_numbers<[1], [0], [0], [1], [0, 0, 1, 1], [], []>} : vector<1x128xbf16>, vector<128x128xbf16>, vector<1x128xf32> -> vector<1x128xf32>
    %32 = arith.addf %24, %31 : vector<1x128xf32>
    %c0_27 = arith.constant 0 : index
    %33 = arith.index_cast %25 : i32 to index
    %c2_28 = arith.constant 2 : index
    %c0_29 = arith.constant 0 : index
    %34 = vector.load %arg1[%c0_27, %33, %c2_28, %c0_29] : memref<1x4x4x128xbf16, #tpu.memory_space<vmem>>, vector<1x1x1x128xbf16>
    %35 = vector.shape_cast %34 : vector<1x1x1x128xbf16> to vector<1x128xbf16>
    %c4 = arith.constant 4 : index
    %c0_30 = arith.constant 0 : index
    %c0_31 = arith.constant 0 : index
    %36 = vector.load %arg2[%c4, %c0_30, %c0_31] : memref<9x128x128xbf16, #tpu.memory_space<vmem>>, vector<1x128x128xbf16>
    %37 = vector.shape_cast %36 : vector<1x128x128xbf16> to vector<128x128xbf16>
    %cst_32 = arith.constant dense<0.000000e+00> : vector<1x128xf32>
    %38 = tpu.matmul %35, %37, %cst_32 {dimension_numbers = #tpu.dot_dimension_numbers<[1], [0], [0], [1], [0, 0, 1, 1], [], []>} : vector<1x128xbf16>, vector<128x128xbf16>, vector<1x128xf32> -> vector<1x128xf32>
    %39 = arith.addf %32, %38 : vector<1x128xf32>
    %c0_33 = arith.constant 0 : index
    %40 = arith.index_cast %25 : i32 to index
    %c1_34 = arith.constant 1 : index
    %c0_35 = arith.constant 0 : index
    %41 = vector.load %arg1[%c0_33, %40, %c1_34, %c0_35] : memref<1x4x4x128xbf16, #tpu.memory_space<vmem>>, vector<1x1x1x128xbf16>
    %42 = vector.shape_cast %41 : vector<1x1x1x128xbf16> to vector<1x128xbf16>
    %c5 = arith.constant 5 : index
    %c0_36 = arith.constant 0 : index
    %c0_37 = arith.constant 0 : index
    %43 = vector.load %arg2[%c5, %c0_36, %c0_37] : memref<9x128x128xbf16, #tpu.memory_space<vmem>>, vector<1x128x128xbf16>
    %44 = vector.shape_cast %43 : vector<1x128x128xbf16> to vector<128x128xbf16>
    %cst_38 = arith.constant dense<0.000000e+00> : vector<1x128xf32>
    %45 = tpu.matmul %42, %44, %cst_38 {dimension_numbers = #tpu.dot_dimension_numbers<[1], [0], [0], [1], [0, 0, 1, 1], [], []>} : vector<1x128xbf16>, vector<128x128xbf16>, vector<1x128xf32> -> vector<1x128xf32>
    %46 = arith.addf %39, %45 : vector<1x128xf32>
    %c1_i32 = arith.constant 1 : i32
    %47 = arith.addi %c1_i32, %c0_i32 : i32
    %c0_39 = arith.constant 0 : index
    %48 = arith.index_cast %47 : i32 to index
    %c0_40 = arith.constant 0 : index
    %c0_41 = arith.constant 0 : index
    %49 = vector.load %arg1[%c0_39, %48, %c0_40, %c0_41] : memref<1x4x4x128xbf16, #tpu.memory_space<vmem>>, vector<1x1x1x128xbf16>
    %50 = vector.shape_cast %49 : vector<1x1x1x128xbf16> to vector<1x128xbf16>
    %c6 = arith.constant 6 : index
    %c0_42 = arith.constant 0 : index
    %c0_43 = arith.constant 0 : index
    %51 = vector.load %arg2[%c6, %c0_42, %c0_43] : memref<9x128x128xbf16, #tpu.memory_space<vmem>>, vector<1x128x128xbf16>
    %52 = vector.shape_cast %51 : vector<1x128x128xbf16> to vector<128x128xbf16>
    %cst_44 = arith.constant dense<0.000000e+00> : vector<1x128xf32>
    %53 = tpu.matmul %50, %52, %cst_44 {dimension_numbers = #tpu.dot_dimension_numbers<[1], [0], [0], [1], [0, 0, 1, 1], [], []>} : vector<1x128xbf16>, vector<128x128xbf16>, vector<1x128xf32> -> vector<1x128xf32>
    %54 = arith.addf %46, %53 : vector<1x128xf32>
    %c0_45 = arith.constant 0 : index
    %55 = arith.index_cast %47 : i32 to index
    %c2_46 = arith.constant 2 : index
    %c0_47 = arith.constant 0 : index
    %56 = vector.load %arg1[%c0_45, %55, %c2_46, %c0_47] : memref<1x4x4x128xbf16, #tpu.memory_space<vmem>>, vector<1x1x1x128xbf16>
    %57 = vector.shape_cast %56 : vector<1x1x1x128xbf16> to vector<1x128xbf16>
    %c7 = arith.constant 7 : index
    %c0_48 = arith.constant 0 : index
    %c0_49 = arith.constant 0 : index
    %58 = vector.load %arg2[%c7, %c0_48, %c0_49] : memref<9x128x128xbf16, #tpu.memory_space<vmem>>, vector<1x128x128xbf16>
    %59 = vector.shape_cast %58 : vector<1x128x128xbf16> to vector<128x128xbf16>
    %cst_50 = arith.constant dense<0.000000e+00> : vector<1x128xf32>
    %60 = tpu.matmul %57, %59, %cst_50 {dimension_numbers = #tpu.dot_dimension_numbers<[1], [0], [0], [1], [0, 0, 1, 1], [], []>} : vector<1x128xbf16>, vector<128x128xbf16>, vector<1x128xf32> -> vector<1x128xf32>
    %61 = arith.addf %54, %60 : vector<1x128xf32>
    %c0_51 = arith.constant 0 : index
    %62 = arith.index_cast %47 : i32 to index
    %c1_52 = arith.constant 1 : index
    %c0_53 = arith.constant 0 : index
    %63 = vector.load %arg1[%c0_51, %62, %c1_52, %c0_53] : memref<1x4x4x128xbf16, #tpu.memory_space<vmem>>, vector<1x1x1x128xbf16>
    %64 = vector.shape_cast %63 : vector<1x1x1x128xbf16> to vector<1x128xbf16>
    %c8 = arith.constant 8 : index
    %c0_54 = arith.constant 0 : index
    %c0_55 = arith.constant 0 : index
    %65 = vector.load %arg2[%c8, %c0_54, %c0_55] : memref<9x128x128xbf16, #tpu.memory_space<vmem>>, vector<1x128x128xbf16>
    %66 = vector.shape_cast %65 : vector<1x128x128xbf16> to vector<128x128xbf16>
    %cst_56 = arith.constant dense<0.000000e+00> : vector<1x128xf32>
    %67 = tpu.matmul %64, %66, %cst_56 {dimension_numbers = #tpu.dot_dimension_numbers<[1], [0], [0], [1], [0, 0, 1, 1], [], []>} : vector<1x128xbf16>, vector<128x128xbf16>, vector<1x128xf32> -> vector<1x128xf32>
    %68 = arith.addf %61, %67 : vector<1x128xf32>
    %69 = arith.truncf %68 : vector<1x128xf32> to vector<1x128xbf16>
    %c0_57 = arith.constant 0 : index
    %70 = arith.index_cast %c0_i32 : i32 to index
    %c0_58 = arith.constant 0 : index
    %c0_59 = arith.constant 0 : index
    %71 = vector.load %arg3[%c0_57, %70, %c0_58, %c0_59] : memref<1x1x1x128xbf16, #tpu.memory_space<vmem>>, vector<1x1x1x128xbf16>
    %72 = vector.shape_cast %71 : vector<1x1x1x128xbf16> to vector<1x128xbf16>
    %73 = vector.shape_cast %69 : vector<1x128xbf16> to vector<1x1x1x128xbf16>
    tpu.vector_store %arg3[%c0_57, %70, %c0_58, %c0_59], %73 {strides = array<i32>} : memref<1x1x1x128xbf16, #tpu.memory_space<vmem>>, vector<1x1x1x128xbf16>,
    %cst_60 = arith.constant dense<0.000000e+00> : vector<128xf32>
    %74 = vector.multi_reduction <add>, %68, %cst_60 [0] : vector<1x128xf32> to vector<128xf32>
    %75 = vector.shape_cast %74 : vector<128xf32> to vector<1x128xf32>
    %76 = arith.addf %0, %75 : vector<1x128xf32>
    %77 = arith.mulf %68, %68 : vector<1x128xf32>
    %cst_61 = arith.constant dense<0.000000e+00> : vector<128xf32>
    %78 = vector.multi_reduction <add>, %77, %cst_61 [0] : vector<1x128xf32> to vector<128xf32>
    %79 = vector.shape_cast %78 : vector<128xf32> to vector<1x128xf32>
    %80 = arith.addf %1, %79 : vector<1x128xf32>
    %c1_i32_62 = arith.constant 1 : i32
    %c0_63 = arith.constant 0 : index
    %c0_64 = arith.constant 0 : index
    %c0_65 = arith.constant 0 : index
    %81 = vector.load %arg4[%c0_63, %c0_64, %c0_65] : memref<1x1x128xf32, #tpu.memory_space<vmem>>, vector<1x1x128xf32>
    %82 = vector.shape_cast %81 : vector<1x1x128xf32> to vector<1x128xf32>
    %83 = vector.shape_cast %76 : vector<1x128xf32> to vector<1x1x128xf32>
    tpu.vector_store %arg4[%c0_63, %c0_64, %c0_65], %83 {strides = array<i32>} : memref<1x1x128xf32, #tpu.memory_space<vmem>>, vector<1x1x128xf32>,
    %c0_66 = arith.constant 0 : index
    %c0_67 = arith.constant 0 : index
    %c0_68 = arith.constant 0 : index
    %84 = vector.load %arg5[%c0_66, %c0_67, %c0_68] : memref<1x1x128xf32, #tpu.memory_space<vmem>>, vector<1x1x128xf32>
    %85 = vector.shape_cast %84 : vector<1x1x128xf32> to vector<1x128xf32>
    %86 = vector.shape_cast %80 : vector<1x128xf32> to vector<1x1x128xf32>
    tpu.vector_store %arg5[%c0_66, %c0_67, %c0_68], %86 {strides = array<i32>} : memref<1x1x128xf32, #tpu.memory_space<vmem>>, vector<1x1x128xf32>,
    return
  }
  func.func @transform_0(%arg0: i32) -> (i32, i32, i32, i32) {
    %c0_i32 = arith.constant 0 : i32
    %c0_i32_0 = arith.constant 0 : i32
    %c0_i32_1 = arith.constant 0 : i32
    %c0_i32_2 = arith.constant 0 : i32
    return %arg0, %c0_i32, %c0_i32_0, %c0_i32_1 : i32, i32, i32, i32
  }
  func.func @transform_1(%arg0: i32) -> (i32, i32, i32) {
    %c0_i32 = arith.constant 0 : i32
    %c0_i32_0 = arith.constant 0 : i32
    %c0_i32_1 = arith.constant 0 : i32
    %c0_i32_2 = arith.constant 0 : i32
    return %c0_i32, %c0_i32_0, %c0_i32_1 : i32, i32, i32
  }
  func.func @transform_2(%arg0: i32) -> (i32, i32, i32, i32) {
    %c0_i32 = arith.constant 0 : i32
    %c0_i32_0 = arith.constant 0 : i32
    %c0_i32_1 = arith.constant 0 : i32
    %c0_i32_2 = arith.constant 0 : i32
    return %arg0, %c0_i32, %c0_i32_0, %c0_i32_1 : i32, i32, i32, i32
  }
  func.func @transform_3(%arg0: i32) -> (i32, i32, i32) {
    %c0_i32 = arith.constant 0 : i32
    %c0_i32_0 = arith.constant 0 : i32
    %c0_i32_1 = arith.constant 0 : i32
    return %arg0, %c0_i32, %c0_i32_0 : i32, i32, i32
  }
  func.func @transform_4(%arg0: i32) -> (i32, i32, i32) {
    %c0_i32 = arith.constant 0 : i32
    %c0_i32_0 = arith.constant 0 : i32
    %c0_i32_1 = arith.constant 0 : i32
    return %arg0, %c0_i32, %c0_i32_0 : i32, i32, i32
  }
}

module attributes {stable_mosaic.version = 11 : i64} {
  func.func @_head_kernel(%arg0: i32, %arg1: memref<1x1x128xbf16, #tpu.memory_space<vmem>>, %arg2: memref<1x128xf32, #tpu.memory_space<vmem>>, %arg3: memref<1x128xf32, #tpu.memory_space<vmem>>, %arg4: memref<128x256xbf16, #tpu.memory_space<vmem>>, %arg5: memref<1x256xf32, #tpu.memory_space<vmem>>, %arg6: memref<256x256xbf16, #tpu.memory_space<vmem>>, %arg7: memref<1x256xf32, #tpu.memory_space<vmem>>, %arg8: memref<256x8xbf16, #tpu.memory_space<vmem>>, %arg9: memref<1x8xf32, #tpu.memory_space<vmem>>, %arg10: memref<1x1x8xf32, #tpu.memory_space<vmem>>) attributes {dimension_semantics = [#tpu.dimension_semantics<parallel>], iteration_bounds = array<i64: 2>, scalar_prefetch = 0 : i64, scratch_operands = 0 : i64, tpu.core_type = #tpu.core_type<tc>, window_params = [{transform_indices = @transform_0, window_bounds = array<i64: 1, 1, 128>}, {pipeline_mode = #tpu.pipeline_mode<synchronous>, transform_indices = @transform_1, window_bounds = array<i64: 1, 128>}, {pipeline_mode = #tpu.pipeline_mode<synchronous>, transform_indices = @transform_2, window_bounds = array<i64: 1, 128>}, {pipeline_mode = #tpu.pipeline_mode<synchronous>, transform_indices = @transform_3, window_bounds = array<i64: 128, 256>}, {pipeline_mode = #tpu.pipeline_mode<synchronous>, transform_indices = @transform_4, window_bounds = array<i64: 1, 256>}, {pipeline_mode = #tpu.pipeline_mode<synchronous>, transform_indices = @transform_5, window_bounds = array<i64: 256, 256>}, {pipeline_mode = #tpu.pipeline_mode<synchronous>, transform_indices = @transform_6, window_bounds = array<i64: 1, 256>}, {pipeline_mode = #tpu.pipeline_mode<synchronous>, transform_indices = @transform_7, window_bounds = array<i64: 256, 8>}, {pipeline_mode = #tpu.pipeline_mode<synchronous>, transform_indices = @transform_8, window_bounds = array<i64: 1, 8>}, {transform_indices = @transform_9, window_bounds = array<i64: 1, 1, 8>}]} {
    %c0 = arith.constant 0 : index
    %c0_0 = arith.constant 0 : index
    %c0_1 = arith.constant 0 : index
    %0 = vector.load %arg1[%c0, %c0_0, %c0_1] : memref<1x1x128xbf16, #tpu.memory_space<vmem>>, vector<1x1x128xbf16>
    %1 = vector.shape_cast %0 : vector<1x1x128xbf16> to vector<1x128xbf16>
    %2 = arith.extf %1 : vector<1x128xbf16> to vector<1x128xf32>
    %c0_2 = arith.constant 0 : index
    %c0_3 = arith.constant 0 : index
    %3 = vector.load %arg2[%c0_2, %c0_3] : memref<1x128xf32, #tpu.memory_space<vmem>>, vector<1x128xf32>
    %4 = arith.mulf %2, %3 : vector<1x128xf32>
    %c0_4 = arith.constant 0 : index
    %c0_5 = arith.constant 0 : index
    %5 = vector.load %arg3[%c0_4, %c0_5] : memref<1x128xf32, #tpu.memory_space<vmem>>, vector<1x128xf32>
    %6 = arith.addf %4, %5 : vector<1x128xf32>
    %cst = arith.constant 0.000000e+00 : f32
    %7 = vector.broadcast %cst : f32 to vector<1x128xf32>
    %8 = arith.cmpf oge, %6, %7 : vector<1x128xf32>
    %cst_6 = arith.constant 2.000000e-01 : f32
    %9 = vector.broadcast %cst_6 : f32 to vector<1x128xf32>
    %10 = arith.mulf %9, %6 : vector<1x128xf32>
    %11 = arith.select %8, %6, %10 : vector<1x128xi1>, vector<1x128xf32>
    %cst_7 = arith.constant dense<0.000000e+00> : vector<128xf32>
    %12 = vector.multi_reduction <add>, %11, %cst_7 [0] : vector<1x128xf32> to vector<128xf32>
    %13 = vector.shape_cast %12 : vector<128xf32> to vector<1x128xf32>
    %cst_8 = arith.constant 1.000000e+00 : f32
    %14 = vector.broadcast %cst_8 : f32 to vector<1x128xf32>
    %15 = arith.divf %13, %14 : vector<1x128xf32>
    %16 = arith.truncf %15 : vector<1x128xf32> to vector<1x128xbf16>
    %c0_9 = arith.constant 0 : index
    %c0_10 = arith.constant 0 : index
    %17 = vector.load %arg4[%c0_9, %c0_10] : memref<128x256xbf16, #tpu.memory_space<vmem>>, vector<128x256xbf16>
    %cst_11 = arith.constant dense<0.000000e+00> : vector<1x256xf32>
    %18 = tpu.matmul %16, %17, %cst_11 {dimension_numbers = #tpu.dot_dimension_numbers<[1], [0], [0], [1], [0, 0, 1, 1], [], []>} : vector<1x128xbf16>, vector<128x256xbf16>, vector<1x256xf32> -> vector<1x256xf32>
    %c0_12 = arith.constant 0 : index
    %c0_13 = arith.constant 0 : index
    %19 = vector.load %arg5[%c0_12, %c0_13] : memref<1x256xf32, #tpu.memory_space<vmem>>, vector<1x256xf32>
    %20 = arith.addf %18, %19 : vector<1x256xf32>
    %cst_14 = arith.constant 0.000000e+00 : f32
    %21 = vector.broadcast %cst_14 : f32 to vector<1x256xf32>
    %22 = arith.cmpf oge, %20, %21 : vector<1x256xf32>
    %cst_15 = arith.constant 2.000000e-01 : f32
    %23 = vector.broadcast %cst_15 : f32 to vector<1x256xf32>
    %24 = arith.mulf %23, %20 : vector<1x256xf32>
    %25 = arith.select %22, %20, %24 : vector<1x256xi1>, vector<1x256xf32>
    %26 = arith.truncf %25 : vector<1x256xf32> to vector<1x256xbf16>
    %c0_16 = arith.constant 0 : index
    %c0_17 = arith.constant 0 : index
    %27 = vector.load %arg6[%c0_16, %c0_17] : memref<256x256xbf16, #tpu.memory_space<vmem>>, vector<256x256xbf16>
    %cst_18 = arith.constant dense<0.000000e+00> : vector<1x256xf32>
    %28 = tpu.matmul %26, %27, %cst_18 {dimension_numbers = #tpu.dot_dimension_numbers<[1], [0], [0], [1], [0, 0, 1, 1], [], []>} : vector<1x256xbf16>, vector<256x256xbf16>, vector<1x256xf32> -> vector<1x256xf32>
    %c0_19 = arith.constant 0 : index
    %c0_20 = arith.constant 0 : index
    %29 = vector.load %arg7[%c0_19, %c0_20] : memref<1x256xf32, #tpu.memory_space<vmem>>, vector<1x256xf32>
    %30 = arith.addf %28, %29 : vector<1x256xf32>
    %cst_21 = arith.constant 0.000000e+00 : f32
    %31 = vector.broadcast %cst_21 : f32 to vector<1x256xf32>
    %32 = arith.cmpf oge, %30, %31 : vector<1x256xf32>
    %cst_22 = arith.constant 2.000000e-01 : f32
    %33 = vector.broadcast %cst_22 : f32 to vector<1x256xf32>
    %34 = arith.mulf %33, %30 : vector<1x256xf32>
    %35 = arith.select %32, %30, %34 : vector<1x256xi1>, vector<1x256xf32>
    %36 = arith.truncf %35 : vector<1x256xf32> to vector<1x256xbf16>
    %c0_23 = arith.constant 0 : index
    %c0_24 = arith.constant 0 : index
    %37 = vector.load %arg8[%c0_23, %c0_24] : memref<256x8xbf16, #tpu.memory_space<vmem>>, vector<256x8xbf16>
    %cst_25 = arith.constant dense<0.000000e+00> : vector<1x8xf32>
    %38 = tpu.matmul %36, %37, %cst_25 {dimension_numbers = #tpu.dot_dimension_numbers<[1], [0], [0], [1], [0, 0, 1, 1], [], []>} : vector<1x256xbf16>, vector<256x8xbf16>, vector<1x8xf32> -> vector<1x8xf32>
    %c0_26 = arith.constant 0 : index
    %c0_27 = arith.constant 0 : index
    %39 = vector.load %arg9[%c0_26, %c0_27] : memref<1x8xf32, #tpu.memory_space<vmem>>, vector<1x8xf32>
    %40 = arith.addf %38, %39 : vector<1x8xf32>
    %c0_28 = arith.constant 0 : index
    %c0_29 = arith.constant 0 : index
    %c0_30 = arith.constant 0 : index
    %41 = vector.load %arg10[%c0_28, %c0_29, %c0_30] : memref<1x1x8xf32, #tpu.memory_space<vmem>>, vector<1x1x8xf32>
    %42 = vector.shape_cast %41 : vector<1x1x8xf32> to vector<1x8xf32>
    %43 = vector.shape_cast %40 : vector<1x8xf32> to vector<1x1x8xf32>
    tpu.vector_store %arg10[%c0_28, %c0_29, %c0_30], %43 {strides = array<i32>} : memref<1x1x8xf32, #tpu.memory_space<vmem>>, vector<1x1x8xf32>,
    return
  }
  func.func @transform_0(%arg0: i32) -> (i32, i32, i32) {
    %c0_i32 = arith.constant 0 : i32
    %c0_i32_0 = arith.constant 0 : i32
    %c0_i32_1 = arith.constant 0 : i32
    return %arg0, %c0_i32, %c0_i32_0 : i32, i32, i32
  }
  func.func @transform_1(%arg0: i32) -> (i32, i32) {
    %c0_i32 = arith.constant 0 : i32
    %c0_i32_0 = arith.constant 0 : i32
    %c0_i32_1 = arith.constant 0 : i32
    return %c0_i32, %c0_i32_0 : i32, i32
  }
  func.func @transform_2(%arg0: i32) -> (i32, i32) {
    %c0_i32 = arith.constant 0 : i32
    %c0_i32_0 = arith.constant 0 : i32
    %c0_i32_1 = arith.constant 0 : i32
    return %c0_i32, %c0_i32_0 : i32, i32
  }
  func.func @transform_3(%arg0: i32) -> (i32, i32) {
    %c0_i32 = arith.constant 0 : i32
    %c0_i32_0 = arith.constant 0 : i32
    %c0_i32_1 = arith.constant 0 : i32
    return %c0_i32, %c0_i32_0 : i32, i32
  }
  func.func @transform_4(%arg0: i32) -> (i32, i32) {
    %c0_i32 = arith.constant 0 : i32
    %c0_i32_0 = arith.constant 0 : i32
    %c0_i32_1 = arith.constant 0 : i32
    return %c0_i32, %c0_i32_0 : i32, i32
  }
  func.func @transform_5(%arg0: i32) -> (i32, i32) {
    %c0_i32 = arith.constant 0 : i32
    %c0_i32_0 = arith.constant 0 : i32
    %c0_i32_1 = arith.constant 0 : i32
    return %c0_i32, %c0_i32_0 : i32, i32
  }
  func.func @transform_6(%arg0: i32) -> (i32, i32) {
    %c0_i32 = arith.constant 0 : i32
    %c0_i32_0 = arith.constant 0 : i32
    %c0_i32_1 = arith.constant 0 : i32
    return %c0_i32, %c0_i32_0 : i32, i32
  }
  func.func @transform_7(%arg0: i32) -> (i32, i32) {
    %c0_i32 = arith.constant 0 : i32
    %c0_i32_0 = arith.constant 0 : i32
    %c0_i32_1 = arith.constant 0 : i32
    return %c0_i32, %c0_i32_0 : i32, i32
  }
  func.func @transform_8(%arg0: i32) -> (i32, i32) {
    %c0_i32 = arith.constant 0 : i32
    %c0_i32_0 = arith.constant 0 : i32
    %c0_i32_1 = arith.constant 0 : i32
    return %c0_i32, %c0_i32_0 : i32, i32
  }
  func.func @transform_9(%arg0: i32) -> (i32, i32, i32) {
    %c0_i32 = arith.constant 0 : i32
    %c0_i32_0 = arith.constant 0 : i32
    %c0_i32_1 = arith.constant 0 : i32
    return %arg0, %c0_i32, %c0_i32_0 : i32, i32, i32
  }
}

</mosaic_0001>

<llo_original>
// kernel: _lambda_.9
$region0: #{_lambda_.9}
  #allocation0 [shape = 'u32[]', space=smem, size = 0x4, offset = 0x4, fixed_abs, tag = 'smem constant byte address 0x4 - core index']
  #allocation1 [shape = 'u32[144,128]{1,0:T(1,128)}', space=vmem, size = 0x12000, scoped, tag = 'internal scratch']
  %s0 = inlined_call_operand.vmem [shape: bf16[2,18,18,16], index: 0, kind: input, shape index: {}]
  %s1 = inlined_call_operand.vmem [shape: bf16[9,16,16], index: 1, kind: input, shape index: {}]
  %s2 = inlined_call_operand.vmem [shape: f32[1,16], index: 2, kind: input, shape index: {}]
  %s3 = inlined_call_operand.vmem [shape: bf16[2,16,16,16], index: 3, kind: output, shape index: {}]
  %s4 = sld [smem:[#allocation0]]
  $region52: #{_lambda_.9} parent=0
    _
  %s6 = ssub.s32 1, %s4
  %s7 = scalar_select 0, %s6, %s4
  loop: start=0, step=1, limit=4
  $region2: #{_lambda_.9} parent=0 // loop_pre_header
    _
  $region3: #{_lambda_.9} parent=0 // loop_header
    %s9 = sphi 0, %s13
    %p10 = scmp.ge.s32.totalorder %s9, 4
    %s19 = sphi 0, %s21
    %s22 = sphi 0, %s19
    %s23 = sphi 0, %s22
    %s39 = sphi 0, %s23
    %s43 = sphi 0, %s43
    %s45 = sphi 0, %s43
    %s46 = sphi 0, %s45
    %s60 = sphi 0, %s46
    %s64 = sphi 0, %s64
    %s66 = sphi 0, %s64
    %s67 = sphi 0, %s66
    %s81 = sphi 0, %s67
    %s87 = sphi 0, %s89
    %s90 = sphi 0, %s87
    %s91 = sphi 0, %s90
    %s107 = sphi 0, %s91
  $region4: #{_lambda_.9} parent=0 // loop_header_branch
    %12 = sbr.rel (%p10) target = $region8
  $region5: #{_lambda_.9} parent=0 // loop_body
    %s14 = ssub.s32 %s9, 1
    %s15 = ssub.s32 %s9, 2
    %s16 = sadd.s32 %s9, 1
    %s17 = ssub.s32 %s9, %s16
    %p18 = scmp.eq.s32.totalorder %s17, 0
    %s20 = sadd.s32 %s19, 1
    %s21 = scalar_select %p18, %s19, %s20
    %p24 = pneg %p18
    %p25 = scmp.eq.s32.totalorder %s9, 1
    %p26 = por %p24, %p25
    %p27 = scmp.ne.s32.totalorder %s19, %s22
    %p28 = scmp.eq.s32.totalorder %s9, 0
    %p29 = por %p27, %p28
    %p30 = scmp.ne.s32.totalorder %s19, %s22
    %p31 = scmp.eq.s32.totalorder %s14, 1
    %p32 = por %p30, %p31
    %p33 = scmp.ne.s32.totalorder %s22, %s23
    %p34 = scmp.eq.s32.totalorder %s14, 0
    %p35 = por %p33, %p34
    %p36 = scmp.ne.s32.totalorder %s22, %s23
    %p37 = scmp.eq.s32.totalorder %s15, 1
    %p38 = por %p36, %p37
    %p40 = scmp.ne.s32.totalorder %s23, %s39
    %p41 = scmp.eq.s32.totalorder %s15, 0
    %p42 = por %p40, %p41
    %s44 = sadd.s32 %s43, 1
    %p47 = scmp.eq.s32.totalorder %s9, 1
    %p48 = scmp.ne.s32.totalorder %s43, %s45
    %p49 = scmp.eq.s32.totalorder %s9, 0
    %p50 = por %p48, %p49
    %p51 = scmp.ne.s32.totalorder %s43, %s45
    %p52 = scmp.eq.s32.totalorder %s14, 1
    %p53 = por %p51, %p52
    %p54 = scmp.ne.s32.totalorder %s45, %s46
    %p55 = scmp.eq.s32.totalorder %s14, 0
    %p56 = por %p54, %p55
    %p57 = scmp.ne.s32.totalorder %s45, %s46
    %p58 = scmp.eq.s32.totalorder %s15, 1
    %p59 = por %p57, %p58
    %p61 = scmp.ne.s32.totalorder %s46, %s60
    %p62 = scmp.eq.s32.totalorder %s15, 0
    %p63 = por %p61, %p62
    %s65 = sadd.s32 %s64, 1
    %p68 = scmp.eq.s32.totalorder %s9, 1
    %p69 = scmp.ne.s32.totalorder %s64, %s66
    %p70 = scmp.eq.s32.totalorder %s9, 0
    %p71 = por %p69, %p70
    %p72 = scmp.ne.s32.totalorder %s64, %s66
    %p73 = scmp.eq.s32.totalorder %s14, 1
    %p74 = por %p72, %p73
    %p75 = scmp.ne.s32.totalorder %s66, %s67
    %p76 = scmp.eq.s32.totalorder %s14, 0
    %p77 = por %p75, %p76
    %p78 = scmp.ne.s32.totalorder %s66, %s67
    %p79 = scmp.eq.s32.totalorder %s15, 1
    %p80 = por %p78, %p79
    %p82 = scmp.ne.s32.totalorder %s67, %s81
    %p83 = scmp.eq.s32.totalorder %s15, 0
    %p84 = por %p82, %p83
    %s85 = ssub.s32 %s9, %s16
    %p86 = scmp.eq.s32.totalorder %s85, 0
    %s88 = sadd.s32 %s87, 1
    %s89 = scalar_select %p86, %s87, %s88
    %p92 = pneg %p86
    %p93 = scmp.eq.s32.totalorder %s9, 1
    %p94 = por %p92, %p93
    %p95 = scmp.ne.s32.totalorder %s87, %s90
    %p96 = scmp.eq.s32.totalorder %s9, 0
    %p97 = por %p95, %p96
    %p98 = scmp.ne.s32.totalorder %s87, %s90
    %p99 = scmp.eq.s32.totalorder %s14, 1
    %p100 = por %p98, %p99
    %p101 = scmp.ne.s32.totalorder %s90, %s91
    %p102 = scmp.eq.s32.totalorder %s14, 0
    %p103 = por %p101, %p102
    %p104 = scmp.ne.s32.totalorder %s90, %s91
    %p105 = scmp.eq.s32.totalorder %s15, 1
    %p106 = por %p104, %p105
    %p108 = scmp.ne.s32.totalorder %s91, %s107
    %p109 = scmp.eq.s32.totalorder %s15, 0
    %p110 = por %p108, %p109
    %p111 = scmp.le.s32.totalorder 1, %s9
    %p112 = scmp.lt.s32.totalorder %s9, 3
    %p113 = pnand %p111, %p112
    %p114 = pneg %p113
    // Predicated region
    $region9: #{_lambda_.9} parent=5 // pred_check
      _
    $region10: #{_lambda_.9} parent=5 // pred_check_branch
      %116 = sbr.rel (%p113) target = $region12
    $region11: #{_lambda_.9} parent=5 // pred_region
      %s117 = ssub.s32 %s9, 1
      // Predicated region
      $region13: #{_lambda_.9} parent=11 // pred_check
        %p118 = pneg %p56
      $region14: #{_lambda_.9} parent=11 // pred_check_branch
        %120 = sbr.rel (%p118) target = $region16
      $region15: #{_lambda_.9} parent=11 // pred_region
        _
      $region16: #{_lambda_.9} parent=11 // pred_fallthru
        _
      // Predicated region
      $region17: #{_lambda_.9} parent=11 // pred_check
        %p121 = pneg %p77
      $region18: #{_lambda_.9} parent=11 // pred_check_branch
        %123 = sbr.rel (%p121) target = $region20
      $region19: #{_lambda_.9} parent=11 // pred_region
        _
      $region20: #{_lambda_.9} parent=11 // pred_fallthru
        _
    $region12: #{_lambda_.9} parent=5 // pred_fallthru
      _
    %p124 = scmp.lt.s32.totalorder %s9, 2
    // Predicated region
    $region21: #{_lambda_.9} parent=5 // pred_check
      %p125 = pneg %p124
    $region22: #{_lambda_.9} parent=5 // pred_check_branch
      %127 = sbr.rel (%p125) target = $region24
    $region23: #{_lambda_.9} parent=5 // pred_region
      // Predicated region
      $region25: #{_lambda_.9} parent=23 // pred_check
        %p128 = pneg %p29
      $region26: #{_lambda_.9} parent=23 // pred_check_branch
        %130 = sbr.rel (%p128) target = $region28
      $region27: #{_lambda_.9} parent=23 // pred_region
        %p131 = scmp.lt.s32.totalorder %s9, 1
        %s132 = scalar_select %p131, %s9, 1
        %s133 = smul.addr %s132, 54
        %s134 = smul.addr %s133, 4
        %s135 = scalar_lea.vmem %s0, %s134
      $region28: #{_lambda_.9} parent=23 // pred_fallthru
        _
    $region24: #{_lambda_.9} parent=5 // pred_fallthru
      _
    %p136 = scmp.le.s32.totalorder 1, %s9
    %p137 = scmp.lt.s32.totalorder %s9, 3
    %p138 = pnand %p136, %p137
    %p139 = pneg %p138
    // Predicated region
    $region29: #{_lambda_.9} parent=5 // pred_check
      _
    $region30: #{_lambda_.9} parent=5 // pred_check_branch
      %141 = sbr.rel (%p138) target = $region32
    $region31: #{_lambda_.9} parent=5 // pred_region
      %s142 = ssub.s32 %s9, 1
      %p143 = scmp.lt.s32.totalorder %s14, 1
      %s144 = scalar_select %p143, %s14, 1
      %s145 = smul.addr %s144, 54
      %s146 = smul.addr %s145, 4
      %s147 = scalar_lea.vmem %s0, %s146
      %p148 = pneg %p35
      %p149 = pneg %p32
      %p150 = pneg %p56
      %p151 = pneg %p53
      %p152 = pneg %p77
      %p153 = pneg %p74
      %p154 = pneg %p103
      %p155 = pneg %p100
      %p156 = scmp.lt.s32.totalorder %s14, 1
      %s157 = scalar_select %p156, %s14, 1
      %s158 = smul.addr %s157, 32
      %s159 = smul.addr %s158, 4
      %s160 = scalar_lea.vmem %s3, %s159
      %p161 = scmp.lt.s32.totalorder %s14, 1
      %s162 = scalar_select %p161, %s14, 1
      %s163 = smul.addr %s162, 54
      %s164 = smul.addr %s163, 4
      %s165 = scalar_lea.vmem %s0, %s164
      %p166 = scmp.lt.s32.totalorder %s14, 1
      %s167 = scalar_select %p166, %s14, 1
      %s168 = smul.addr %s167, 32
      %s169 = smul.addr %s168, 4
      %s170 = scalar_lea.vmem %s3, %s169
      loop: start=0, step=1, limit=16
      $region33: #{_lambda_.9} parent=31 // loop_pre_header
        _
      $region34: #{_lambda_.9} parent=31 // loop_header
        %s173 = sphi 0, %s177
        %p174 = scmp.ge.s32.totalorder %s173, 16
      $region35: #{_lambda_.9} parent=31 // loop_header_branch
        %176 = sbr.rel (%p174) target = $region39
      $region36: #{_lambda_.9} parent=31 // loop_body
        %s178 = smul.u32 %s173, 3
        %s179 = smul.addr %s178, 4
        %s180 = scalar_lea.vmem %s165, %s179
        %v181 = vld [vmem:[%s180] sm:$0xf]
        %v182 = vld [vmem:[%s180 + $0x4] sm:$0xf]
        %v183 = vld [vmem:[%s1] sm:$0xf]
        %v184 = vld [vmem:[%s1 + $0x4] sm:$0xf]
        %v185 = vld [vmem:[%s180 + $0x8] sm:$0x1]
        %s186 = scalar_lea.vmem %s1, 8
        %v187 = vld [vmem:[%s186] sm:$0xf]
        %v188 = vld [vmem:[%s186 + $0x4] sm:$0xf]
        %v192 = vunpack.c.l.b16 %v181
        %v193 = vunpack.c.l.b16 %v182
        %v194 = vunpack.c.l.b16 %v185
        %v195 = vpack.c.b16 %v193, %v192
        %v196 = vpack.c.b16 %v194, %v194
        %vm197 = vsmask.f32 7424
        %v199 = vshrl.u32 %v195, 16
        %v201 = vshll.u32 %v195, 16
        %v203 = vrot.slane %v201, 1
        %v204 = vor.u32 %v199, %v203
        %v206 = vshll.u32 %v196, 16
        %v208 = vrot.slane %v206, 1
        %v209 = vsel %vm197, %v204, %v208
        %v212 = vunpack.c.l.b16 %v187
        %v213 = vunpack.c.l.b16 %v188
        %v214 = vpack.c.b16 %v213, %v212
        %vm216 = vcmask 130048
        %v218 = vsel %vm216, %v209, 0
        %220 = vmatprep.subr.bf16.mxu0 0
        %221 = vmatpush1.bf16.msra.mxu0 0
        %222 = vmatprep.subr.bf16.mxu0 0
        %223 = vmatpush1.bf16.msra.mxu0 0
        %224 = vmatprep.subr.bf16.mxu0 0
        %225 = vmatpush1.bf16.msra.mxu0 0
        %226 = vmatprep.subr.bf16.mxu0 0
        %227 = vmatpush1.bf16.msra.mxu0 0
        %228 = vmatprep.subr.bf16.mxu0 0
        %229 = vmatpush1.bf16.msra.mxu0 0
        %230 = vmatprep.subr.bf16.mxu0 0
        %231 = vmatpush1.bf16.msra.mxu0 0
        %232 = vmatprep.subr.bf16.mxu0 0
        %233 = vmatpush1.bf16.msra.mxu0 0
        %234 = vmatprep.subr.bf16.mxu0 0
        %235 = vmatpush1.bf16.msra.mxu0 %v214
        %236 = vmatprep.subr.bf16.mxu0 0
        %237 = vmatpush2.bf16.msra.mxu0 0
        %238 = vmatprep.subr.bf16.mxu0 0
        %239 = vmatpush2.bf16.msra.mxu0 0
        %240 = vmatprep.subr.bf16.mxu0 0
        %241 = vmatpush2.bf16.msra.mxu0 0
        %242 = vmatprep.subr.bf16.mxu0 0
        %243 = vmatpush2.bf16.msra.mxu0 0
        %244 = vmatprep.subr.bf16.mxu0 0
        %245 = vmatpush2.bf16.msra.mxu0 0
        %246 = vmatprep.subr.bf16.mxu0 0
        %247 = vmatpush2.bf16.msra.mxu0 0
        %248 = vmatprep.subr.bf16.mxu0 0
        %249 = vmatpush2.bf16.msra.mxu0 0
        %250 = vmatprep.subr.bf16.mxu0 0
        %251 = vmatpush2.bf16.msra.mxu0 0
        %252 = vmatprep.mubr.bf16.mxu0 0
        %253 = vmatmul.mubr.bf16.gmra.mxu0 %v218
        %v254 = vpop.f32.mrf.mxu0
        %v255 = vadd.f32 0.0, %v254
        %v256 = vpop.f32.mrf.mxu0
        %v257 = vpop.f32.mrf.mxu0
        %v258 = vadd.f32 0.0, %v257
        %v259 = vpop.f32.mrf.mxu0
        %260 = vdwg.mxu0
        %v263 = vunpack.c.l.b16 %v183
        %v264 = vunpack.c.l.b16 %v184
        %v265 = vpack.c.b16 %v264, %v263
        %v267 = vsel %vm216, %v195, 0
        %269 = vmatprep.subr.bf16.mxu0 0
        %270 = vmatpush1.bf16.msra.mxu0 0
        %271 = vmatprep.subr.bf16.mxu0 0
        %272 = vmatpush1.bf16.msra.mxu0 0
        %273 = vmatprep.subr.bf16.mxu0 0
        %274 = vmatpush1.bf16.msra.mxu0 0
        %275 = vmatprep.subr.bf16.mxu0 0
        %276 = vmatpush1.bf16.msra.mxu0 0
        %277 = vmatprep.subr.bf16.mxu0 0
        %278 = vmatpush1.bf16.msra.mxu0 0
        %279 = vmatprep.subr.bf16.mxu0 0
        %280 = vmatpush1.bf16.msra.mxu0 0
        %281 = vmatprep.subr.bf16.mxu0 0
        %282 = vmatpush1.bf16.msra.mxu0 0
        %283 = vmatprep.subr.bf16.mxu0 0
        %284 = vmatpush1.bf16.msra.mxu0 %v265
        %285 = vmatprep.subr.bf16.mxu0 0
        %286 = vmatpush2.bf16.msra.mxu0 0
        %287 = vmatprep.subr.bf16.mxu0 0
        %288 = vmatpush2.bf16.msra.mxu0 0
        %289 = vmatprep.subr.bf16.mxu0 0
        %290 = vmatpush2.bf16.msra.mxu0 0
        %291 = vmatprep.subr.bf16.mxu0 0
        %292 = vmatpush2.bf16.msra.mxu0 0
        %293 = vmatprep.subr.bf16.mxu0 0
        %294 = vmatpush2.bf16.msra.mxu0 0
        %295 = vmatprep.subr.bf16.mxu0 0
        %296 = vmatpush2.bf16.msra.mxu0 0
        %297 = vmatprep.subr.bf16.mxu0 0
        %298 = vmatpush2.bf16.msra.mxu0 0
        %299 = vmatprep.subr.bf16.mxu0 0
        %300 = vmatpush2.bf16.msra.mxu0 0
        %301 = vmatprep.mubr.bf16.mxu0 0
        %302 = vmatmul.mubr.bf16.gmra.mxu0 %v267
        %v303 = vpop.f32.mrf.mxu0
        %v304 = vadd.f32 %v255, %v303
        %v305 = vpop.f32.mrf.mxu0
        %v306 = vpop.f32.mrf.mxu0
        %v307 = vadd.f32 %v258, %v306
        %v308 = vpop.f32.mrf.mxu0
        %309 = vdwg.mxu0
        %v310 = vld [vmem:[%s180] sm:$0xe]
        %s311 = scalar_lea.vmem %s1, 16
        %v312 = vld [vmem:[%s311] sm:$0xf]
        %v313 = vld [vmem:[%s311 + $0x4] sm:$0xf]
        %v315 = vunpack.c.l.b16 %v310
        %v316 = vpack.c.b16 %v193, %v315
        %vm317 = vcmask 1046528
        %v318 = vrot.slane %v316, 1
        %v319 = vrot.slane %v196, 1
        %v320 = vsel %vm317, %v318, %v319
        %v323 = vunpack.c.l.b16 %v312
        %v324 = vunpack.c.l.b16 %v313
        %v325 = vpack.c.b16 %v324, %v323
        %v328 = vsel %vm216, %v320, 0
        %330 = vmatprep.subr.bf16.mxu0 0
        %331 = vmatpush1.bf16.msra.mxu0 0
        %332 = vmatprep.subr.bf16.mxu0 0
        %333 = vmatpush1.bf16.msra.mxu0 0
        %334 = vmatprep.subr.bf16.mxu0 0
        %335 = vmatpush1.bf16.msra.mxu0 0
        %336 = vmatprep.subr.bf16.mxu0 0
        %337 = vmatpush1.bf16.msra.mxu0 0
        %338 = vmatprep.subr.bf16.mxu0 0
        %339 = vmatpush1.bf16.msra.mxu0 0
        %340 = vmatprep.subr.bf16.mxu0 0
        %341 = vmatpush1.bf16.msra.mxu0 0
        %342 = vmatprep.subr.bf16.mxu0 0
        %343 = vmatpush1.bf16.msra.mxu0 0
        %344 = vmatprep.subr.bf16.mxu0 0
        %345 = vmatpush1.bf16.msra.mxu0 %v325
        %346 = vmatprep.subr.bf16.mxu0 0
        %347 = vmatpush2.bf16.msra.mxu0 0
        %348 = vmatprep.subr.bf16.mxu0 0
        %349 = vmatpush2.bf16.msra.mxu0 0
        %350 = vmatprep.subr.bf16.mxu0 0
        %351 = vmatpush2.bf16.msra.mxu0 0
        %352 = vmatprep.subr.bf16.mxu0 0
        %353 = vmatpush2.bf16.msra.mxu0 0
        %354 = vmatprep.subr.bf16.mxu0 0
        %355 = vmatpush2.bf16.msra.mxu0 0
        %356 = vmatprep.subr.bf16.mxu0 0
        %357 = vmatpush2.bf16.msra.mxu0 0
        %358 = vmatprep.subr.bf16.mxu0 0
        %359 = vmatpush2.bf16.msra.mxu0 0
        %360 = vmatprep.subr.bf16.mxu0 0
        %361 = vmatpush2.bf16.msra.mxu0 0
        %362 = vmatprep.mubr.bf16.mxu0 0
        %363 = vmatmul.mubr.bf16.gmra.mxu0 %v328
        %v364 = vpop.f32.mrf.mxu0
        %v365 = vadd.f32 0.0, %v364
        %v366 = vpop.f32.mrf.mxu0
        %v367 = vpop.f32.mrf.mxu0
        %v368 = vadd.f32 0.0, %v367
        %v369 = vpop.f32.mrf.mxu0
        %370 = vdwg.mxu0
        %v371 = vadd.f32 %v304, %v365
        %v372 = vadd.f32 %v307, %v368
        %s373 = sadd.s32 %s173, 1
        %s374 = smul.u32 %s373, 3
        %s375 = smul.addr %s374, 4
        %s376 = scalar_lea.vmem %s165, %s375
        %v377 = vld [vmem:[%s376] sm:$0xf]
        %v378 = vld [vmem:[%s376 + $0x4] sm:$0xf]
        %s379 = scalar_lea.vmem %s1, 24
        %v380 = vld [vmem:[%s379] sm:$0xf]
        %v381 = vld [vmem:[%s379 + $0x4] sm:$0xf]
        %v384 = vunpack.c.l.b16 %v377
        %v385 = vunpack.c.l.b16 %v378
        %v386 = vpack.c.b16 %v385, %v384
        %v389 = vunpack.c.l.b16 %v380
        %v390 = vunpack.c.l.b16 %v381
        %v391 = vpack.c.b16 %v390, %v389
        %v394 = vsel %vm216, %v386, 0
        %396 = vmatprep.subr.bf16.mxu0 0
        %397 = vmatpush1.bf16.msra.mxu0 0
        %398 = vmatprep.subr.bf16.mxu0 0
        %399 = vmatpush1.bf16.msra.mxu0 0
        %400 = vmatprep.subr.bf16.mxu0 0
        %401 = vmatpush1.bf16.msra.mxu0 0
        %402 = vmatprep.subr.bf16.mxu0 0
        %403 = vmatpush1.bf16.msra.mxu0 0
        %404 = vmatprep.subr.bf16.mxu0 0
        %405 = vmatpush1.bf16.msra.mxu0 0
        %406 = vmatprep.subr.bf16.mxu0 0
        %407 = vmatpush1.bf16.msra.mxu0 0
        %408 = vmatprep.subr.bf16.mxu0 0
        %409 = vmatpush1.bf16.msra.mxu0 0
        %410 = vmatprep.subr.bf16.mxu0 0
        %411 = vmatpush1.bf16.msra.mxu0 %v391
        %412 = vmatprep.subr.bf16.mxu0 0
        %413 = vmatpush2.bf16.msra.mxu0 0
        %414 = vmatprep.subr.bf16.mxu0 0
        %415 = vmatpush2.bf16.msra.mxu0 0
        %416 = vmatprep.subr.bf16.mxu0 0
        %417 = vmatpush2.bf16.msra.mxu0 0
        %418 = vmatprep.subr.bf16.mxu0 0
        %419 = vmatpush2.bf16.msra.mxu0 0
        %420 = vmatprep.subr.bf16.mxu0 0
        %421 = vmatpush2.bf16.msra.mxu0 0
        %422 = vmatprep.subr.bf16.mxu0 0
        %423 = vmatpush2.bf16.msra.mxu0 0
        %424 = vmatprep.subr.bf16.mxu0 0
        %425 = vmatpush2.bf16.msra.mxu0 0
        %426 = vmatprep.subr.bf16.mxu0 0
        %427 = vmatpush2.bf16.msra.mxu0 0
        %428 = vmatprep.mubr.bf16.mxu0 0
        %429 = vmatmul.mubr.bf16.gmra.mxu0 %v394
        %v430 = vpop.f32.mrf.mxu0
        %v431 = vadd.f32 0.0, %v430
        %v432 = vpop.f32.mrf.mxu0
        %v433 = vpop.f32.mrf.mxu0
        %v434 = vadd.f32 0.0, %v433
        %v435 = vpop.f32.mrf.mxu0
        %436 = vdwg.mxu0
        %v437 = vadd.f32 %v371, %v431
        %v438 = vadd.f32 %v372, %v434
        %v439 = vld [vmem:[%s376] sm:$0xf]
        %v440 = vld [vmem:[%s376 + $0x4] sm:$0xf]
        %v441 = vld [vmem:[%s376 + $0x8] sm:$0x1]
        %s442 = scalar_lea.vmem %s1, 32
        %v443 = vld [vmem:[%s442] sm:$0xf]
        %v444 = vld [vmem:[%s442 + $0x4] sm:$0xf]
        %v448 = vunpack.c.l.b16 %v439
        %v449 = vunpack.c.l.b16 %v440
        %v450 = vunpack.c.l.b16 %v441
        %v451 = vpack.c.b16 %v449, %v448
        %v452 = vpack.c.b16 %v450, %v450
        %v454 = vshrl.u32 %v451, 16
        %v456 = vshll.u32 %v451, 16
        %v458 = vrot.slane %v456, 1
        %v459 = vor.u32 %v454, %v458
        %v461 = vshll.u32 %v452, 16
        %v463 = vrot.slane %v461, 1
        %v464 = vsel %vm197, %v459, %v463
        %v467 = vunpack.c.l.b16 %v443
        %v468 = vunpack.c.l.b16 %v444
        %v469 = vpack.c.b16 %v468, %v467
        %v472 = vsel %vm216, %v464, 0
        %474 = vmatprep.subr.bf16.mxu0 0
        %475 = vmatpush1.bf16.msra.mxu0 0
        %476 = vmatprep.subr.bf16.mxu0 0
        %477 = vmatpush1.bf16.msra.mxu0 0
        %478 = vmatprep.subr.bf16.mxu0 0
        %479 = vmatpush1.bf16.msra.mxu0 0
        %480 = vmatprep.subr.bf16.mxu0 0
        %481 = vmatpush1.bf16.msra.mxu0 0
        %482 = vmatprep.subr.bf16.mxu0 0
        %483 = vmatpush1.bf16.msra.mxu0 0
        %484 = vmatprep.subr.bf16.mxu0 0
        %485 = vmatpush1.bf16.msra.mxu0 0
        %486 = vmatprep.subr.bf16.mxu0 0
        %487 = vmatpush1.bf16.msra.mxu0 0
        %488 = vmatprep.subr.bf16.mxu0 0
        %489 = vmatpush1.bf16.msra.mxu0 %v469
        %490 = vmatprep.subr.bf16.mxu0 0
        %491 = vmatpush2.bf16.msra.mxu0 0
        %492 = vmatprep.subr.bf16.mxu0 0
        %493 = vmatpush2.bf16.msra.mxu0 0
        %494 = vmatprep.subr.bf16.mxu0 0
        %495 = vmatpush2.bf16.msra.mxu0 0
        %496 = vmatprep.subr.bf16.mxu0 0
        %497 = vmatpush2.bf16.msra.mxu0 0
        %498 = vmatprep.subr.bf16.mxu0 0
        %499 = vmatpush2.bf16.msra.mxu0 0
        %500 = vmatprep.subr.bf16.mxu0 0
        %501 = vmatpush2.bf16.msra.mxu0 0
        %502 = vmatprep.subr.bf16.mxu0 0
        %503 = vmatpush2.bf16.msra.mxu0 0
        %504 = vmatprep.subr.bf16.mxu0 0
        %505 = vmatpush2.bf16.msra.mxu0 0
        %506 = vmatprep.mubr.bf16.mxu0 0
        %507 = vmatmul.mubr.bf16.gmra.mxu0 %v472
        %v508 = vpop.f32.mrf.mxu0
        %v509 = vadd.f32 0.0, %v508
        %v510 = vpop.f32.mrf.mxu0
        %v511 = vpop.f32.mrf.mxu0
        %v512 = vadd.f32 0.0, %v511
        %v513 = vpop.f32.mrf.mxu0
        %514 = vdwg.mxu0
        %v515 = vadd.f32 %v437, %v509
        %v516 = vadd.f32 %v438, %v512
        %v517 = vld [vmem:[%s376] sm:$0xe]
        %s518 = scalar_lea.vmem %s1, 40
        %v519 = vld [vmem:[%s518] sm:$0xf]
        %v520 = vld [vmem:[%s518 + $0x4] sm:$0xf]
        %v522 = vunpack.c.l.b16 %v517
        %v523 = vpack.c.b16 %v449, %v522
        %v524 = vrot.slane %v523, 1
        %v525 = vrot.slane %v452, 1
        %v526 = vsel %vm317, %v524, %v525
        %v529 = vunpack.c.l.b16 %v519
        %v530 = vunpack.c.l.b16 %v520
        %v531 = vpack.c.b16 %v530, %v529
        %v534 = vsel %vm216, %v526, 0
        %536 = vmatprep.subr.bf16.mxu0 0
        %537 = vmatpush1.bf16.msra.mxu0 0
        %538 = vmatprep.subr.bf16.mxu0 0
        %539 = vmatpush1.bf16.msra.mxu0 0
        %540 = vmatprep.subr.bf16.mxu0 0
        %541 = vmatpush1.bf16.msra.mxu0 0
        %542 = vmatprep.subr.bf16.mxu0 0
        %543 = vmatpush1.bf16.msra.mxu0 0
        %544 = vmatprep.subr.bf16.mxu0 0
        %545 = vmatpush1.bf16.msra.mxu0 0
        %546 = vmatprep.subr.bf16.mxu0 0
        %547 = vmatpush1.bf16.msra.mxu0 0
        %548 = vmatprep.subr.bf16.mxu0 0
        %549 = vmatpush1.bf16.msra.mxu0 0
        %550 = vmatprep.subr.bf16.mxu0 0
        %551 = vmatpush1.bf16.msra.mxu0 %v531
        %552 = vmatprep.subr.bf16.mxu0 0
        %553 = vmatpush2.bf16.msra.mxu0 0
        %554 = vmatprep.subr.bf16.mxu0 0
        %555 = vmatpush2.bf16.msra.mxu0 0
        %556 = vmatprep.subr.bf16.mxu0 0
        %557 = vmatpush2.bf16.msra.mxu0 0
        %558 = vmatprep.subr.bf16.mxu0 0
        %559 = vmatpush2.bf16.msra.mxu0 0
        %560 = vmatprep.subr.bf16.mxu0 0
        %561 = vmatpush2.bf16.msra.mxu0 0
        %562 = vmatprep.subr.bf16.mxu0 0
        %563 = vmatpush2.bf16.msra.mxu0 0
        %564 = vmatprep.subr.bf16.mxu0 0
        %565 = vmatpush2.bf16.msra.mxu0 0
        %566 = vmatprep.subr.bf16.mxu0 0
        %567 = vmatpush2.bf16.msra.mxu0 0
        %568 = vmatprep.mubr.bf16.mxu0 0
        %569 = vmatmul.mubr.bf16.gmra.mxu0 %v534
        %v570 = vpop.f32.mrf.mxu0
        %v571 = vadd.f32 0.0, %v570
        %v572 = vpop.f32.mrf.mxu0
        %v573 = vpop.f32.mrf.mxu0
        %v574 = vadd.f32 0.0, %v573
        %v575 = vpop.f32.mrf.mxu0
        %576 = vdwg.mxu0
        %v577 = vadd.f32 %v515, %v571
        %v578 = vadd.f32 %v516, %v574
        %s579 = sadd.s32 %s173, 2
        %s580 = smul.u32 %s579, 3
        %s581 = smul.addr %s580, 4
        %s582 = scalar_lea.vmem %s165, %s581
        %v583 = vld [vmem:[%s582] sm:$0xf]
        %v584 = vld [vmem:[%s582 + $0x4] sm:$0xf]
        %s585 = scalar_lea.vmem %s1, 48
        %v586 = vld [vmem:[%s585] sm:$0xf]
        %v587 = vld [vmem:[%s585 + $0x4] sm:$0xf]
        %v590 = vunpack.c.l.b16 %v583
        %v591 = vunpack.c.l.b16 %v584
        %v592 = vpack.c.b16 %v591, %v590
        %v595 = vunpack.c.l.b16 %v586
        %v596 = vunpack.c.l.b16 %v587
        %v597 = vpack.c.b16 %v596, %v595
        %v600 = vsel %vm216, %v592, 0
        %602 = vmatprep.subr.bf16.mxu0 0
        %603 = vmatpush1.bf16.msra.mxu0 0
        %604 = vmatprep.subr.bf16.mxu0 0
        %605 = vmatpush1.bf16.msra.mxu0 0
        %606 = vmatprep.subr.bf16.mxu0 0
        %607 = vmatpush1.bf16.msra.mxu0 0
        %608 = vmatprep.subr.bf16.mxu0 0
        %609 = vmatpush1.bf16.msra.mxu0 0
        %610 = vmatprep.subr.bf16.mxu0 0
        %611 = vmatpush1.bf16.msra.mxu0 0
        %612 = vmatprep.subr.bf16.mxu0 0
        %613 = vmatpush1.bf16.msra.mxu0 0
        %614 = vmatprep.subr.bf16.mxu0 0
        %615 = vmatpush1.bf16.msra.mxu0 0
        %616 = vmatprep.subr.bf16.mxu0 0
        %617 = vmatpush1.bf16.msra.mxu0 %v597
        %618 = vmatprep.subr.bf16.mxu0 0
        %619 = vmatpush2.bf16.msra.mxu0 0
        %620 = vmatprep.subr.bf16.mxu0 0
        %621 = vmatpush2.bf16.msra.mxu0 0
        %622 = vmatprep.subr.bf16.mxu0 0
        %623 = vmatpush2.bf16.msra.mxu0 0
        %624 = vmatprep.subr.bf16.mxu0 0
        %625 = vmatpush2.bf16.msra.mxu0 0
        %626 = vmatprep.subr.bf16.mxu0 0
        %627 = vmatpush2.bf16.msra.mxu0 0
        %628 = vmatprep.subr.bf16.mxu0 0
        %629 = vmatpush2.bf16.msra.mxu0 0
        %630 = vmatprep.subr.bf16.mxu0 0
        %631 = vmatpush2.bf16.msra.mxu0 0
        %632 = vmatprep.subr.bf16.mxu0 0
        %633 = vmatpush2.bf16.msra.mxu0 0
        %634 = vmatprep.mubr.bf16.mxu0 0
        %635 = vmatmul.mubr.bf16.gmra.mxu0 %v600
        %v636 = vpop.f32.mrf.mxu0
        %v637 = vadd.f32 0.0, %v636
        %v638 = vpop.f32.mrf.mxu0
        %v639 = vpop.f32.mrf.mxu0
        %v640 = vadd.f32 0.0, %v639
        %v641 = vpop.f32.mrf.mxu0
        %642 = vdwg.mxu0
        %v643 = vadd.f32 %v577, %v637
        %v644 = vadd.f32 %v578, %v640
        %v645 = vld [vmem:[%s582] sm:$0xf]
        %v646 = vld [vmem:[%s582 + $0x4] sm:$0xf]
        %v647 = vld [vmem:[%s582 + $0x8] sm:$0x1]
        %s648 = scalar_lea.vmem %s1, 56
        %v649 = vld [vmem:[%s648] sm:$0xf]
        %v650 = vld [vmem:[%s648 + $0x4] sm:$0xf]
        %v654 = vunpack.c.l.b16 %v645
        %v655 = vunpack.c.l.b16 %v646
        %v656 = vunpack.c.l.b16 %v647
        %v657 = vpack.c.b16 %v655, %v654
        %v658 = vpack.c.b16 %v656, %v656
        %v660 = vshrl.u32 %v657, 16
        %v662 = vshll.u32 %v657, 16
        %v664 = vrot.slane %v662, 1
        %v665 = vor.u32 %v660, %v664
        %v667 = vshll.u32 %v658, 16
        %v669 = vrot.slane %v667, 1
        %v670 = vsel %vm197, %v665, %v669
        %v673 = vunpack.c.l.b16 %v649
        %v674 = vunpack.c.l.b16 %v650
        %v675 = vpack.c.b16 %v674, %v673
        %v678 = vsel %vm216, %v670, 0
        %680 = vmatprep.subr.bf16.mxu0 0
        %681 = vmatpush1.bf16.msra.mxu0 0
        %682 = vmatprep.subr.bf16.mxu0 0
        %683 = vmatpush1.bf16.msra.mxu0 0
        %684 = vmatprep.subr.bf16.mxu0 0
        %685 = vmatpush1.bf16.msra.mxu0 0
        %686 = vmatprep.subr.bf16.mxu0 0
        %687 = vmatpush1.bf16.msra.mxu0 0
        %688 = vmatprep.subr.bf16.mxu0 0
        %689 = vmatpush1.bf16.msra.mxu0 0
        %690 = vmatprep.subr.bf16.mxu0 0
        %691 = vmatpush1.bf16.msra.mxu0 0
        %692 = vmatprep.subr.bf16.mxu0 0
        %693 = vmatpush1.bf16.msra.mxu0 0
        %694 = vmatprep.subr.bf16.mxu0 0
        %695 = vmatpush1.bf16.msra.mxu0 %v675
        %696 = vmatprep.subr.bf16.mxu0 0
        %697 = vmatpush2.bf16.msra.mxu0 0
        %698 = vmatprep.subr.bf16.mxu0 0
        %699 = vmatpush2.bf16.msra.mxu0 0
        %700 = vmatprep.subr.bf16.mxu0 0
        %701 = vmatpush2.bf16.msra.mxu0 0
        %702 = vmatprep.subr.bf16.mxu0 0
        %703 = vmatpush2.bf16.msra.mxu0 0
        %704 = vmatprep.subr.bf16.mxu0 0
        %705 = vmatpush2.bf16.msra.mxu0 0
        %706 = vmatprep.subr.bf16.mxu0 0
        %707 = vmatpush2.bf16.msra.mxu0 0
        %708 = vmatprep.subr.bf16.mxu0 0
        %709 = vmatpush2.bf16.msra.mxu0 0
        %710 = vmatprep.subr.bf16.mxu0 0
        %711 = vmatpush2.bf16.msra.mxu0 0
        %712 = vmatprep.mubr.bf16.mxu0 0
        %713 = vmatmul.mubr.bf16.gmra.mxu0 %v678
        %v714 = vpop.f32.mrf.mxu0
        %v715 = vadd.f32 0.0, %v714
        %v716 = vpop.f32.mrf.mxu0
        %v717 = vpop.f32.mrf.mxu0
        %v718 = vadd.f32 0.0, %v717
        %v719 = vpop.f32.mrf.mxu0
        %720 = vdwg.mxu0
        %v721 = vadd.f32 %v643, %v715
        %v722 = vadd.f32 %v644, %v718
        %v723 = vld [vmem:[%s582] sm:$0xe]
        %s724 = scalar_lea.vmem %s1, 64
        %v725 = vld [vmem:[%s724] sm:$0xf]
        %v726 = vld [vmem:[%s724 + $0x4] sm:$0xf]
        %v728 = vunpack.c.l.b16 %v723
        %v729 = vpack.c.b16 %v655, %v728
        %v730 = vrot.slane %v729, 1
        %v731 = vrot.slane %v658, 1
        %v732 = vsel %vm317, %v730, %v731
        %v735 = vunpack.c.l.b16 %v725
        %v736 = vunpack.c.l.b16 %v726
        %v737 = vpack.c.b16 %v736, %v735
        %v740 = vsel %vm216, %v732, 0
        %742 = vmatprep.subr.bf16.mxu0 0
        %743 = vmatpush1.bf16.msra.mxu0 0
        %744 = vmatprep.subr.bf16.mxu0 0
        %745 = vmatpush1.bf16.msra.mxu0 0
        %746 = vmatprep.subr.bf16.mxu0 0
        %747 = vmatpush1.bf16.msra.mxu0 0
        %748 = vmatprep.subr.bf16.mxu0 0
        %749 = vmatpush1.bf16.msra.mxu0 0
        %750 = vmatprep.subr.bf16.mxu0 0
        %751 = vmatpush1.bf16.msra.mxu0 0
        %752 = vmatprep.subr.bf16.mxu0 0
        %753 = vmatpush1.bf16.msra.mxu0 0
        %754 = vmatprep.subr.bf16.mxu0 0
        %755 = vmatpush1.bf16.msra.mxu0 0
        %756 = vmatprep.subr.bf16.mxu0 0
        %757 = vmatpush1.bf16.msra.mxu0 %v737
        %758 = vmatprep.subr.bf16.mxu0 0
        %759 = vmatpush2.bf16.msra.mxu0 0
        %760 = vmatprep.subr.bf16.mxu0 0
        %761 = vmatpush2.bf16.msra.mxu0 0
        %762 = vmatprep.subr.bf16.mxu0 0
        %763 = vmatpush2.bf16.msra.mxu0 0
        %764 = vmatprep.subr.bf16.mxu0 0
        %765 = vmatpush2.bf16.msra.mxu0 0
        %766 = vmatprep.subr.bf16.mxu0 0
        %767 = vmatpush2.bf16.msra.mxu0 0
        %768 = vmatprep.subr.bf16.mxu0 0
        %769 = vmatpush2.bf16.msra.mxu0 0
        %770 = vmatprep.subr.bf16.mxu0 0
        %771 = vmatpush2.bf16.msra.mxu0 0
        %772 = vmatprep.subr.bf16.mxu0 0
        %773 = vmatpush2.bf16.msra.mxu0 0
        %774 = vmatprep.mubr.bf16.mxu0 0
        %775 = vmatmul.mubr.bf16.gmra.mxu0 %v740
        %v776 = vpop.f32.mrf.mxu0
        %v777 = vadd.f32 0.0, %v776
        %v778 = vpop.f32.mrf.mxu0
        %v779 = vpop.f32.mrf.mxu0
        %v780 = vadd.f32 0.0, %v779
        %v781 = vpop.f32.mrf.mxu0
        %782 = vdwg.mxu0
        %v783 = vadd.f32 %v721, %v777
        %v784 = vadd.f32 %v722, %v780
        %v785 = vld [vmem:[%s2] sm:$0x1]
        %v787 = vlaneseq
        %v788 = vshrl.u32 %v787, 7
        %v789 = vsub.s32 0, %v788
        %v790 = vrot.slane %v785, %v789
        %v792 = vadd.f32 %v783, %v790
        %v793 = vadd.f32 %v784, %v790
        %vm794 = vcmp.ge.f32.partialorder %v792, 0.0
        %vm795 = vcmp.ge.f32.partialorder %v793, 0.0
        %v796 = vmul.f32 %v792, 0.2
        %v797 = vmul.f32 %v793, 0.2
        %v798 = vsel %vm794, %v792, %v796
        %v799 = vsel %vm795, %v793, %v797
        %v800 = vpack.c.bf16 %v799, %v798
        %v802 = vunpack.c.l.b16 %v800
        %v803 = vunpack.c.h.b16 %v800
        %v804 = vpack.c.b16 %v802, %v802
        %v805 = vpack.c.b16 %v803, %v803
        %s808 = smul.u32 %s173, 2
        %s809 = smul.addr %s808, 4
        %s810 = scalar_lea.vmem %s170, %s809
        %vm811 = vcmask 125952
        %812 = vst.msk [vmem:[%s810] sm:$0xf] %vm811, %v804
        %813 = vst.msk [vmem:[%s810 + $0x4] sm:$0xf] %vm811, %v805
      $region37: #{_lambda_.9} parent=31 // loop_footer
        %s177 = sadd.s32 1, %s173
      $region38: #{_lambda_.9} parent=31 // loop_footer_branch
        %172 = sbr.rel target = $region34
      $region39: #{_lambda_.9} parent=31 // loop_exit
        _
      %p814 = scmp.lt.s32.totalorder %s14, 1
      %s815 = scalar_select %p814, %s14, 1
      %s816 = smul.addr %s815, 32
      %s817 = smul.addr %s816, 4
      %s818 = scalar_lea.vmem %s3, %s817
      // Predicated region
      $region40: #{_lambda_.9} parent=31 // pred_check
        %p819 = pneg %p100
      $region41: #{_lambda_.9} parent=31 // pred_check_branch
        %821 = sbr.rel (%p819) target = $region43
      $region42: #{_lambda_.9} parent=31 // pred_region
        _
      $region43: #{_lambda_.9} parent=31 // pred_fallthru
        _
    $region32: #{_lambda_.9} parent=5 // pred_fallthru
      _
    %p822 = scmp.le.s32.totalorder 2, %s9
    // Predicated region
    $region44: #{_lambda_.9} parent=5 // pred_check
      %p823 = pneg %p822
    $region45: #{_lambda_.9} parent=5 // pred_check_branch
      %825 = sbr.rel (%p823) target = $region47
    $region46: #{_lambda_.9} parent=5 // pred_region
      %s826 = ssub.s32 %s9, 2
      // Predicated region
      $region48: #{_lambda_.9} parent=46 // pred_check
        %p827 = pneg %p106
      $region49: #{_lambda_.9} parent=46 // pred_check_branch
        %829 = sbr.rel (%p827) target = $region51
      $region50: #{_lambda_.9} parent=46 // pred_region
        %p830 = scmp.lt.s32.totalorder %s15, 1
        %s831 = scalar_select %p830, %s15, 1
        %s832 = smul.addr %s831, 32
        %s833 = smul.addr %s832, 4
        %s834 = scalar_lea.vmem %s3, %s833
      $region51: #{_lambda_.9} parent=46 // pred_fallthru
        _
    $region47: #{_lambda_.9} parent=5 // pred_fallthru
      _
  $region6: #{_lambda_.9} parent=0 // loop_footer
    %s13 = sadd.s32 1, %s9
  $region7: #{_lambda_.9} parent=0 // loop_footer_branch
    %8 = sbr.rel target = $region3
  $region8: #{_lambda_.9} parent=0 // loop_exit
    _

// kernel: _lambda_.10
$region0: #{_lambda_.10}
  #allocation0 [shape = 'u32[]', space=smem, size = 0x4, offset = 0x4, fixed_abs, tag = 'smem constant byte address 0x4 - core index']
  #allocation1 [shape = 'u32[144,128]{1,0:T(1,128)}', space=vmem, size = 0x12000, scoped, tag = 'internal scratch']
  %s0 = inlined_call_operand.vmem [shape: bf16[2,18,18,16], index: 0, kind: input, shape index: {}]
  %s1 = inlined_call_operand.vmem [shape: bf16[9,16,16], index: 1, kind: input, shape index: {}]
  %s2 = inlined_call_operand.vmem [shape: bf16[2,8,8,16], index: 2, kind: output, shape index: {0}]
  %s3 = inlined_call_operand.vmem [shape: f32[2,1,16], index: 3, kind: output, shape index: {1}]
  %s4 = inlined_call_operand.vmem [shape: f32[2,1,16], index: 4, kind: output, shape index: {2}]
  %5 = xla_tuple %s2, %s3, %s4
  %s6 = sld [smem:[#allocation0]]
  $region64: #{_lambda_.10} parent=0
    _
  %s8 = ssub.s32 1, %s6
  %s9 = scalar_select 0, %s8, %s6
  loop: start=0, step=1, limit=4
  $region2: #{_lambda_.10} parent=0 // loop_pre_header
    _
  $region3: #{_lambda_.10} parent=0 // loop_header
    %s11 = sphi 0, %s15
    %p12 = scmp.ge.s32.totalorder %s11, 4
    %s21 = sphi 0, %s23
    %s24 = sphi 0, %s21
    %s25 = sphi 0, %s24
    %s41 = sphi 0, %s25
    %s45 = sphi 0, %s45
    %s47 = sphi 0, %s45
    %s48 = sphi 0, %s47
    %s62 = sphi 0, %s48
    %s68 = sphi 0, %s70
    %s71 = sphi 0, %s68
    %s72 = sphi 0, %s71
    %s88 = sphi 0, %s72
    %s94 = sphi 0, %s96
    %s97 = sphi 0, %s94
    %s98 = sphi 0, %s97
    %s114 = sphi 0, %s98
    %s120 = sphi 0, %s122
    %s123 = sphi 0, %s120
    %s124 = sphi 0, %s123
    %s140 = sphi 0, %s124
  $region4: #{_lambda_.10} parent=0 // loop_header_branch
    %14 = sbr.rel (%p12) target = $region8
  $region5: #{_lambda_.10} parent=0 // loop_body
    %s16 = ssub.s32 %s11, 1
    %s17 = ssub.s32 %s11, 2
    %s18 = sadd.s32 %s11, 1
    %s19 = ssub.s32 %s11, %s18
    %p20 = scmp.eq.s32.totalorder %s19, 0
    %s22 = sadd.s32 %s21, 1
    %s23 = scalar_select %p20, %s21, %s22
    %p26 = pneg %p20
    %p27 = scmp.eq.s32.totalorder %s11, 1
    %p28 = por %p26, %p27
    %p29 = scmp.ne.s32.totalorder %s21, %s24
    %p30 = scmp.eq.s32.totalorder %s11, 0
    %p31 = por %p29, %p30
    %p32 = scmp.ne.s32.totalorder %s21, %s24
    %p33 = scmp.eq.s32.totalorder %s16, 1
    %p34 = por %p32, %p33
    %p35 = scmp.ne.s32.totalorder %s24, %s25
    %p36 = scmp.eq.s32.totalorder %s16, 0
    %p37 = por %p35, %p36
    %p38 = scmp.ne.s32.totalorder %s24, %s25
    %p39 = scmp.eq.s32.totalorder %s17, 1
    %p40 = por %p38, %p39
    %p42 = scmp.ne.s32.totalorder %s25, %s41
    %p43 = scmp.eq.s32.totalorder %s17, 0
    %p44 = por %p42, %p43
    %s46 = sadd.s32 %s45, 1
    %p49 = scmp.eq.s32.totalorder %s11, 1
    %p50 = scmp.ne.s32.totalorder %s45, %s47
    %p51 = scmp.eq.s32.totalorder %s11, 0
    %p52 = por %p50, %p51
    %p53 = scmp.ne.s32.totalorder %s45, %s47
    %p54 = scmp.eq.s32.totalorder %s16, 1
    %p55 = por %p53, %p54
    %p56 = scmp.ne.s32.totalorder %s47, %s48
    %p57 = scmp.eq.s32.totalorder %s16, 0
    %p58 = por %p56, %p57
    %p59 = scmp.ne.s32.totalorder %s47, %s48
    %p60 = scmp.eq.s32.totalorder %s17, 1
    %p61 = por %p59, %p60
    %p63 = scmp.ne.s32.totalorder %s48, %s62
    %p64 = scmp.eq.s32.totalorder %s17, 0
    %p65 = por %p63, %p64
    %s66 = ssub.s32 %s11, %s18
    %p67 = scmp.eq.s32.totalorder %s66, 0
    %s69 = sadd.s32 %s68, 1
    %s70 = scalar_select %p67, %s68, %s69
    %p73 = pneg %p67
    %p74 = scmp.eq.s32.totalorder %s11, 1
    %p75 = por %p73, %p74
    %p76 = scmp.ne.s32.totalorder %s68, %s71
    %p77 = scmp.eq.s32.totalorder %s11, 0
    %p78 = por %p76, %p77
    %p79 = scmp.ne.s32.totalorder %s68, %s71
    %p80 = scmp.eq.s32.totalorder %s16, 1
    %p81 = por %p79, %p80
    %p82 = scmp.ne.s32.totalorder %s71, %s72
    %p83 = scmp.eq.s32.totalorder %s16, 0
    %p84 = por %p82, %p83
    %p85 = scmp.ne.s32.totalorder %s71, %s72
    %p86 = scmp.eq.s32.totalorder %s17, 1
    %p87 = por %p85, %p86
    %p89 = scmp.ne.s32.totalorder %s72, %s88
    %p90 = scmp.eq.s32.totalorder %s17, 0
    %p91 = por %p89, %p90
    %s92 = ssub.s32 %s11, %s18
    %p93 = scmp.eq.s32.totalorder %s92, 0
    %s95 = sadd.s32 %s94, 1
    %s96 = scalar_select %p93, %s94, %s95
    %p99 = pneg %p93
    %p100 = scmp.eq.s32.totalorder %s11, 1
    %p101 = por %p99, %p100
    %p102 = scmp.ne.s32.totalorder %s94, %s97
    %p103 = scmp.eq.s32.totalorder %s11, 0
    %p104 = por %p102, %p103
    %p105 = scmp.ne.s32.totalorder %s94, %s97
    %p106 = scmp.eq.s32.totalorder %s16, 1
    %p107 = por %p105, %p106
    %p108 = scmp.ne.s32.totalorder %s97, %s98
    %p109 = scmp.eq.s32.totalorder %s16, 0
    %p110 = por %p108, %p109
    %p111 = scmp.ne.s32.totalorder %s97, %s98
    %p112 = scmp.eq.s32.totalorder %s17, 1
    %p113 = por %p111, %p112
    %p115 = scmp.ne.s32.totalorder %s98, %s114
    %p116 = scmp.eq.s32.totalorder %s17, 0
    %p117 = por %p115, %p116
    %s118 = ssub.s32 %s11, %s18
    %p119 = scmp.eq.s32.totalorder %s118, 0
    %s121 = sadd.s32 %s120, 1
    %s122 = scalar_select %p119, %s120, %s121
    %p125 = pneg %p119
    %p126 = scmp.eq.s32.totalorder %s11, 1
    %p127 = por %p125, %p126
    %p128 = scmp.ne.s32.totalorder %s120, %s123
    %p129 = scmp.eq.s32.totalorder %s11, 0
    %p130 = por %p128, %p129
    %p131 = scmp.ne.s32.totalorder %s120, %s123
    %p132 = scmp.eq.s32.totalorder %s16, 1
    %p133 = por %p131, %p132
    %p134 = scmp.ne.s32.totalorder %s123, %s124
    %p135 = scmp.eq.s32.totalorder %s16, 0
    %p136 = por %p134, %p135
    %p137 = scmp.ne.s32.totalorder %s123, %s124
    %p138 = scmp.eq.s32.totalorder %s17, 1
    %p139 = por %p137, %p138
    %p141 = scmp.ne.s32.totalorder %s124, %s140
    %p142 = scmp.eq.s32.totalorder %s17, 0
    %p143 = por %p141, %p142
    %p144 = scmp.le.s32.totalorder 1, %s11
    %p145 = scmp.lt.s32.totalorder %s11, 3
    %p146 = pnand %p144, %p145
    %p147 = pneg %p146
    // Predicated region
    $region9: #{_lambda_.10} parent=5 // pred_check
      _
    $region10: #{_lambda_.10} parent=5 // pred_check_branch
      %149 = sbr.rel (%p146) target = $region12
    $region11: #{_lambda_.10} parent=5 // pred_region
      %s150 = ssub.s32 %s11, 1
      // Predicated region
      $region13: #{_lambda_.10} parent=11 // pred_check
        %p151 = pneg %p58
      $region14: #{_lambda_.10} parent=11 // pred_check_branch
        %153 = sbr.rel (%p151) target = $region16
      $region15: #{_lambda_.10} parent=11 // pred_region
        _
      $region16: #{_lambda_.10} parent=11 // pred_fallthru
        _
    $region12: #{_lambda_.10} parent=5 // pred_fallthru
      _
    %p154 = scmp.lt.s32.totalorder %s11, 2
    // Predicated region
    $region17: #{_lambda_.10} parent=5 // pred_check
      %p155 = pneg %p154
    $region18: #{_lambda_.10} parent=5 // pred_check_branch
      %157 = sbr.rel (%p155) target = $region20
    $region19: #{_lambda_.10} parent=5 // pred_region
      // Predicated region
      $region21: #{_lambda_.10} parent=19 // pred_check
        %p158 = pneg %p31
      $region22: #{_lambda_.10} parent=19 // pred_check_branch
        %160 = sbr.rel (%p158) target = $region24
      $region23: #{_lambda_.10} parent=19 // pred_region
        %p161 = scmp.lt.s32.totalorder %s11, 1
        %s162 = scalar_select %p161, %s11, 1
        %s163 = smul.addr %s162, 54
        %s164 = smul.addr %s163, 4
        %s165 = scalar_lea.vmem %s0, %s164
      $region24: #{_lambda_.10} parent=19 // pred_fallthru
        _
    $region20: #{_lambda_.10} parent=5 // pred_fallthru
      _
    %p166 = scmp.le.s32.totalorder 1, %s11
    %p167 = scmp.lt.s32.totalorder %s11, 3
    %p168 = pnand %p166, %p167
    %p169 = pneg %p168
    // Predicated region
    $region25: #{_lambda_.10} parent=5 // pred_check
      _
    $region26: #{_lambda_.10} parent=5 // pred_check_branch
      %171 = sbr.rel (%p168) target = $region28
    $region27: #{_lambda_.10} parent=5 // pred_region
      %s172 = ssub.s32 %s11, 1
      %p173 = scmp.lt.s32.totalorder %s16, 1
      %s174 = scalar_select %p173, %s16, 1
      %s175 = smul.addr %s174, 54
      %s176 = smul.addr %s175, 4
      %s177 = scalar_lea.vmem %s0, %s176
      %p178 = pneg %p37
      %p179 = pneg %p34
      %p180 = pneg %p58
      %p181 = pneg %p55
      %p182 = pneg %p84
      %p183 = pneg %p81
      %p184 = scmp.lt.s32.totalorder %s16, 1
      %s185 = scalar_select %p184, %s16, 1
      %s186 = smul.addr %s185, 8
      %s187 = smul.addr %s186, 4
      %s188 = scalar_lea.vmem %s2, %s187
      %p189 = pneg %p110
      %p190 = pneg %p107
      %p191 = scmp.lt.s32.totalorder %s16, 1
      %s192 = scalar_select %p191, %s16, 1
      %s193 = scalar_lea.vmem %s3, %s192
      %p194 = pneg %p136
      %p195 = pneg %p133
      %p196 = scmp.lt.s32.totalorder %s16, 1
      %s197 = scalar_select %p196, %s16, 1
      %s198 = scalar_lea.vmem %s4, %s197
      %p199 = scmp.lt.s32.totalorder %s16, 1
      %s200 = scalar_select %p199, %s16, 1
      %s201 = smul.addr %s200, 54
      %s202 = smul.addr %s201, 4
      %s203 = scalar_lea.vmem %s0, %s202
      %p204 = scmp.lt.s32.totalorder %s16, 1
      %s205 = scalar_select %p204, %s16, 1
      %s206 = smul.addr %s205, 8
      %s207 = smul.addr %s206, 4
      %s208 = scalar_lea.vmem %s2, %s207
      %p209 = scmp.lt.s32.totalorder %s16, 1
      %s210 = scalar_select %p209, %s16, 1
      %s211 = scalar_lea.vmem %s3, %s210
      %p212 = scmp.lt.s32.totalorder %s16, 1
      %s213 = scalar_select %p212, %s16, 1
      %s214 = scalar_lea.vmem %s4, %s213
      loop: start=0, step=1, limit=8
      $region29: #{_lambda_.10} parent=27 // loop_pre_header
        _
      $region30: #{_lambda_.10} parent=27 // loop_header
        %s217 = sphi 0, %s221
        %p218 = scmp.ge.s32.totalorder %s217, 8
        %v222 = vphi 0.0, %v809
        %v223 = vphi 0.0, %v818
      $region31: #{_lambda_.10} parent=27 // loop_header_branch
        %220 = sbr.rel (%p218) target = $region35
      $region32: #{_lambda_.10} parent=27 // loop_body
        %s224 = smul.u32 %s217, 3
        %s225 = smul.addr %s224, 4
        %s226 = scalar_lea.vmem %s203, %s225
        %v227 = vld [vmem:[%s226] sm:$0xf]
        %v228 = vld [vmem:[%s1] sm:$0xf]
        %v229 = vld [vmem:[%s1 + $0x4] sm:$0xf]
        %v230 = vld [vmem:[%s226 + $0x4] sm:$0xf]
        %v231 = vld [vmem:[%s226 + $0x8] sm:$0x1]
        %s232 = scalar_lea.vmem %s1, 8
        %v233 = vld [vmem:[%s232] sm:$0xf]
        %v234 = vld [vmem:[%s232 + $0x4] sm:$0xf]
        %v237 = vunpack.c.l.b16 %v230
        %v238 = vunpack.c.l.b16 %v231
        %v239 = vpack.c.b16 %v238, %v237
        %v241 = vshrl.u32 %v239, 16
        %v243 = vshll.u32 %v239, 16
        %v245 = vrot.slane %v243, 1
        %v246 = vor.u32 %v241, %v245
        %v249 = vunpack.c.l.b16 %v233
        %v250 = vunpack.c.l.b16 %v234
        %v251 = vpack.c.b16 %v250, %v249
        %vm253 = vcmask 130048
        %v255 = vsel %vm253, %v246, 0
        %257 = vmatprep.subr.bf16.mxu0 0
        %258 = vmatpush1.bf16.msra.mxu0 0
        %259 = vmatprep.subr.bf16.mxu0 0
        %260 = vmatpush1.bf16.msra.mxu0 0
        %261 = vmatprep.subr.bf16.mxu0 0
        %262 = vmatpush1.bf16.msra.mxu0 0
        %263 = vmatprep.subr.bf16.mxu0 0
        %264 = vmatpush1.bf16.msra.mxu0 0
        %265 = vmatprep.subr.bf16.mxu0 0
        %266 = vmatpush1.bf16.msra.mxu0 0
        %267 = vmatprep.subr.bf16.mxu0 0
        %268 = vmatpush1.bf16.msra.mxu0 0
        %269 = vmatprep.subr.bf16.mxu0 0
        %270 = vmatpush1.bf16.msra.mxu0 0
        %271 = vmatprep.subr.bf16.mxu0 0
        %272 = vmatpush1.bf16.msra.mxu0 %v251
        %273 = vmatprep.subr.bf16.mxu0 0
        %274 = vmatpush2.bf16.msra.mxu0 0
        %275 = vmatprep.subr.bf16.mxu0 0
        %276 = vmatpush2.bf16.msra.mxu0 0
        %277 = vmatprep.subr.bf16.mxu0 0
        %278 = vmatpush2.bf16.msra.mxu0 0
        %279 = vmatprep.subr.bf16.mxu0 0
        %280 = vmatpush2.bf16.msra.mxu0 0
        %281 = vmatprep.subr.bf16.mxu0 0
        %282 = vmatpush2.bf16.msra.mxu0 0
        %283 = vmatprep.subr.bf16.mxu0 0
        %284 = vmatpush2.bf16.msra.mxu0 0
        %285 = vmatprep.subr.bf16.mxu0 0
        %286 = vmatpush2.bf16.msra.mxu0 0
        %287 = vmatprep.subr.bf16.mxu0 0
        %288 = vmatpush2.bf16.msra.mxu0 0
        %289 = vmatprep.mubr.bf16.mxu0 0
        %290 = vmatmul.mubr.bf16.gmra.mxu0 %v255
        %v291 = vpop.f32.mrf.mxu0
        %v292 = vadd.f32 0.0, %v291
        %v293 = vpop.f32.mrf.mxu0
        %v294 = vpop.f32.mrf.mxu0
        %v295 = vpop.f32.mrf.mxu0
        %296 = vdwg.mxu0
        %v299 = vunpack.c.l.b16 %v228
        %v300 = vunpack.c.l.b16 %v229
        %v301 = vpack.c.b16 %v300, %v299
        %v304 = vsel %vm253, %v227, 0
        %306 = vmatprep.subr.bf16.mxu0 0
        %307 = vmatpush1.bf16.msra.mxu0 0
        %308 = vmatprep.subr.bf16.mxu0 0
        %309 = vmatpush1.bf16.msra.mxu0 0
        %310 = vmatprep.subr.bf16.mxu0 0
        %311 = vmatpush1.bf16.msra.mxu0 0
        %312 = vmatprep.subr.bf16.mxu0 0
        %313 = vmatpush1.bf16.msra.mxu0 0
        %314 = vmatprep.subr.bf16.mxu0 0
        %315 = vmatpush1.bf16.msra.mxu0 0
        %316 = vmatprep.subr.bf16.mxu0 0
        %317 = vmatpush1.bf16.msra.mxu0 0
        %318 = vmatprep.subr.bf16.mxu0 0
        %319 = vmatpush1.bf16.msra.mxu0 0
        %320 = vmatprep.subr.bf16.mxu0 0
        %321 = vmatpush1.bf16.msra.mxu0 %v301
        %322 = vmatprep.subr.bf16.mxu0 0
        %323 = vmatpush2.bf16.msra.mxu0 0
        %324 = vmatprep.subr.bf16.mxu0 0
        %325 = vmatpush2.bf16.msra.mxu0 0
        %326 = vmatprep.subr.bf16.mxu0 0
        %327 = vmatpush2.bf16.msra.mxu0 0
        %328 = vmatprep.subr.bf16.mxu0 0
        %329 = vmatpush2.bf16.msra.mxu0 0
        %330 = vmatprep.subr.bf16.mxu0 0
        %331 = vmatpush2.bf16.msra.mxu0 0
        %332 = vmatprep.subr.bf16.mxu0 0
        %333 = vmatpush2.bf16.msra.mxu0 0
        %334 = vmatprep.subr.bf16.mxu0 0
        %335 = vmatpush2.bf16.msra.mxu0 0
        %336 = vmatprep.subr.bf16.mxu0 0
        %337 = vmatpush2.bf16.msra.mxu0 0
        %338 = vmatprep.mubr.bf16.mxu0 0
        %339 = vmatmul.mubr.bf16.gmra.mxu0 %v304
        %v340 = vpop.f32.mrf.mxu0
        %v341 = vadd.f32 %v292, %v340
        %v342 = vpop.f32.mrf.mxu0
        %v343 = vpop.f32.mrf.mxu0
        %v344 = vpop.f32.mrf.mxu0
        %345 = vdwg.mxu0
        %v346 = vld [vmem:[%s226] sm:$0xf]
        %v347 = vld [vmem:[%s226 + $0x4] sm:$0x1]
        %s348 = scalar_lea.vmem %s1, 16
        %v349 = vld [vmem:[%s348] sm:$0xf]
        %v350 = vld [vmem:[%s348 + $0x4] sm:$0xf]
        %v353 = vunpack.c.l.b16 %v346
        %v354 = vunpack.c.l.b16 %v347
        %v355 = vpack.c.b16 %v354, %v353
        %v357 = vshrl.u32 %v355, 16
        %v359 = vshll.u32 %v355, 16
        %v361 = vrot.slane %v359, 1
        %v362 = vor.u32 %v357, %v361
        %v365 = vunpack.c.l.b16 %v349
        %v366 = vunpack.c.l.b16 %v350
        %v367 = vpack.c.b16 %v366, %v365
        %v370 = vsel %vm253, %v362, 0
        %372 = vmatprep.subr.bf16.mxu0 0
        %373 = vmatpush1.bf16.msra.mxu0 0
        %374 = vmatprep.subr.bf16.mxu0 0
        %375 = vmatpush1.bf16.msra.mxu0 0
        %376 = vmatprep.subr.bf16.mxu0 0
        %377 = vmatpush1.bf16.msra.mxu0 0
        %378 = vmatprep.subr.bf16.mxu0 0
        %379 = vmatpush1.bf16.msra.mxu0 0
        %380 = vmatprep.subr.bf16.mxu0 0
        %381 = vmatpush1.bf16.msra.mxu0 0
        %382 = vmatprep.subr.bf16.mxu0 0
        %383 = vmatpush1.bf16.msra.mxu0 0
        %384 = vmatprep.subr.bf16.mxu0 0
        %385 = vmatpush1.bf16.msra.mxu0 0
        %386 = vmatprep.subr.bf16.mxu0 0
        %387 = vmatpush1.bf16.msra.mxu0 %v367
        %388 = vmatprep.subr.bf16.mxu0 0
        %389 = vmatpush2.bf16.msra.mxu0 0
        %390 = vmatprep.subr.bf16.mxu0 0
        %391 = vmatpush2.bf16.msra.mxu0 0
        %392 = vmatprep.subr.bf16.mxu0 0
        %393 = vmatpush2.bf16.msra.mxu0 0
        %394 = vmatprep.subr.bf16.mxu0 0
        %395 = vmatpush2.bf16.msra.mxu0 0
        %396 = vmatprep.subr.bf16.mxu0 0
        %397 = vmatpush2.bf16.msra.mxu0 0
        %398 = vmatprep.subr.bf16.mxu0 0
        %399 = vmatpush2.bf16.msra.mxu0 0
        %400 = vmatprep.subr.bf16.mxu0 0
        %401 = vmatpush2.bf16.msra.mxu0 0
        %402 = vmatprep.subr.bf16.mxu0 0
        %403 = vmatpush2.bf16.msra.mxu0 0
        %404 = vmatprep.mubr.bf16.mxu0 0
        %405 = vmatmul.mubr.bf16.gmra.mxu0 %v370
        %v406 = vpop.f32.mrf.mxu0
        %v407 = vadd.f32 0.0, %v406
        %v408 = vpop.f32.mrf.mxu0
        %v409 = vpop.f32.mrf.mxu0
        %v410 = vpop.f32.mrf.mxu0
        %411 = vdwg.mxu0
        %v412 = vadd.f32 %v341, %v407
        %s413 = sadd.s32 %s217, 9
        %s414 = smul.u32 %s413, 3
        %s415 = smul.addr %s414, 4
        %s416 = scalar_lea.vmem %s203, %s415
        %v417 = vld [vmem:[%s416] sm:$0xf]
        %s418 = scalar_lea.vmem %s1, 24
        %v419 = vld [vmem:[%s418] sm:$0xf]
        %v420 = vld [vmem:[%s418 + $0x4] sm:$0xf]
        %v423 = vunpack.c.l.b16 %v419
        %v424 = vunpack.c.l.b16 %v420
        %v425 = vpack.c.b16 %v424, %v423
        %v428 = vsel %vm253, %v417, 0
        %430 = vmatprep.subr.bf16.mxu0 0
        %431 = vmatpush1.bf16.msra.mxu0 0
        %432 = vmatprep.subr.bf16.mxu0 0
        %433 = vmatpush1.bf16.msra.mxu0 0
        %434 = vmatprep.subr.bf16.mxu0 0
        %435 = vmatpush1.bf16.msra.mxu0 0
        %436 = vmatprep.subr.bf16.mxu0 0
        %437 = vmatpush1.bf16.msra.mxu0 0
        %438 = vmatprep.subr.bf16.mxu0 0
        %439 = vmatpush1.bf16.msra.mxu0 0
        %440 = vmatprep.subr.bf16.mxu0 0
        %441 = vmatpush1.bf16.msra.mxu0 0
        %442 = vmatprep.subr.bf16.mxu0 0
        %443 = vmatpush1.bf16.msra.mxu0 0
        %444 = vmatprep.subr.bf16.mxu0 0
        %445 = vmatpush1.bf16.msra.mxu0 %v425
        %446 = vmatprep.subr.bf16.mxu0 0
        %447 = vmatpush2.bf16.msra.mxu0 0
        %448 = vmatprep.subr.bf16.mxu0 0
        %449 = vmatpush2.bf16.msra.mxu0 0
        %450 = vmatprep.subr.bf16.mxu0 0
        %451 = vmatpush2.bf16.msra.mxu0 0
        %452 = vmatprep.subr.bf16.mxu0 0
        %453 = vmatpush2.bf16.msra.mxu0 0
        %454 = vmatprep.subr.bf16.mxu0 0
        %455 = vmatpush2.bf16.msra.mxu0 0
        %456 = vmatprep.subr.bf16.mxu0 0
        %457 = vmatpush2.bf16.msra.mxu0 0
        %458 = vmatprep.subr.bf16.mxu0 0
        %459 = vmatpush2.bf16.msra.mxu0 0
        %460 = vmatprep.subr.bf16.mxu0 0
        %461 = vmatpush2.bf16.msra.mxu0 0
        %462 = vmatprep.mubr.bf16.mxu0 0
        %463 = vmatmul.mubr.bf16.gmra.mxu0 %v428
        %v464 = vpop.f32.mrf.mxu0
        %v465 = vadd.f32 0.0, %v464
        %v466 = vpop.f32.mrf.mxu0
        %v467 = vpop.f32.mrf.mxu0
        %v468 = vpop.f32.mrf.mxu0
        %469 = vdwg.mxu0
        %v470 = vadd.f32 %v412, %v465
        %v471 = vld [vmem:[%s416 + $0x4] sm:$0xf]
        %v472 = vld [vmem:[%s416 + $0x8] sm:$0x1]
        %s473 = scalar_lea.vmem %s1, 32
        %v474 = vld [vmem:[%s473] sm:$0xf]
        %v475 = vld [vmem:[%s473 + $0x4] sm:$0xf]
        %v478 = vunpack.c.l.b16 %v471
        %v479 = vunpack.c.l.b16 %v472
        %v480 = vpack.c.b16 %v479, %v478
        %v482 = vshrl.u32 %v480, 16
        %v484 = vshll.u32 %v480, 16
        %v486 = vrot.slane %v484, 1
        %v487 = vor.u32 %v482, %v486
        %v490 = vunpack.c.l.b16 %v474
        %v491 = vunpack.c.l.b16 %v475
        %v492 = vpack.c.b16 %v491, %v490
        %v495 = vsel %vm253, %v487, 0
        %497 = vmatprep.subr.bf16.mxu0 0
        %498 = vmatpush1.bf16.msra.mxu0 0
        %499 = vmatprep.subr.bf16.mxu0 0
        %500 = vmatpush1.bf16.msra.mxu0 0
        %501 = vmatprep.subr.bf16.mxu0 0
        %502 = vmatpush1.bf16.msra.mxu0 0
        %503 = vmatprep.subr.bf16.mxu0 0
        %504 = vmatpush1.bf16.msra.mxu0 0
        %505 = vmatprep.subr.bf16.mxu0 0
        %506 = vmatpush1.bf16.msra.mxu0 0
        %507 = vmatprep.subr.bf16.mxu0 0
        %508 = vmatpush1.bf16.msra.mxu0 0
        %509 = vmatprep.subr.bf16.mxu0 0
        %510 = vmatpush1.bf16.msra.mxu0 0
        %511 = vmatprep.subr.bf16.mxu0 0
        %512 = vmatpush1.bf16.msra.mxu0 %v492
        %513 = vmatprep.subr.bf16.mxu0 0
        %514 = vmatpush2.bf16.msra.mxu0 0
        %515 = vmatprep.subr.bf16.mxu0 0
        %516 = vmatpush2.bf16.msra.mxu0 0
        %517 = vmatprep.subr.bf16.mxu0 0
        %518 = vmatpush2.bf16.msra.mxu0 0
        %519 = vmatprep.subr.bf16.mxu0 0
        %520 = vmatpush2.bf16.msra.mxu0 0
        %521 = vmatprep.subr.bf16.mxu0 0
        %522 = vmatpush2.bf16.msra.mxu0 0
        %523 = vmatprep.subr.bf16.mxu0 0
        %524 = vmatpush2.bf16.msra.mxu0 0
        %525 = vmatprep.subr.bf16.mxu0 0
        %526 = vmatpush2.bf16.msra.mxu0 0
        %527 = vmatprep.subr.bf16.mxu0 0
        %528 = vmatpush2.bf16.msra.mxu0 0
        %529 = vmatprep.mubr.bf16.mxu0 0
        %530 = vmatmul.mubr.bf16.gmra.mxu0 %v495
        %v531 = vpop.f32.mrf.mxu0
        %v532 = vadd.f32 0.0, %v531
        %v533 = vpop.f32.mrf.mxu0
        %v534 = vpop.f32.mrf.mxu0
        %v535 = vpop.f32.mrf.mxu0
        %536 = vdwg.mxu0
        %v537 = vadd.f32 %v470, %v532
        %v538 = vld [vmem:[%s416] sm:$0xf]
        %v539 = vld [vmem:[%s416 + $0x4] sm:$0x1]
        %s540 = scalar_lea.vmem %s1, 40
        %v541 = vld [vmem:[%s540] sm:$0xf]
        %v542 = vld [vmem:[%s540 + $0x4] sm:$0xf]
        %v545 = vunpack.c.l.b16 %v538
        %v546 = vunpack.c.l.b16 %v539
        %v547 = vpack.c.b16 %v546, %v545
        %v549 = vshrl.u32 %v547, 16
        %v551 = vshll.u32 %v547, 16
        %v553 = vrot.slane %v551, 1
        %v554 = vor.u32 %v549, %v553
        %v557 = vunpack.c.l.b16 %v541
        %v558 = vunpack.c.l.b16 %v542
        %v559 = vpack.c.b16 %v558, %v557
        %v562 = vsel %vm253, %v554, 0
        %564 = vmatprep.subr.bf16.mxu0 0
        %565 = vmatpush1.bf16.msra.mxu0 0
        %566 = vmatprep.subr.bf16.mxu0 0
        %567 = vmatpush1.bf16.msra.mxu0 0
        %568 = vmatprep.subr.bf16.mxu0 0
        %569 = vmatpush1.bf16.msra.mxu0 0
        %570 = vmatprep.subr.bf16.mxu0 0
        %571 = vmatpush1.bf16.msra.mxu0 0
        %572 = vmatprep.subr.bf16.mxu0 0
        %573 = vmatpush1.bf16.msra.mxu0 0
        %574 = vmatprep.subr.bf16.mxu0 0
        %575 = vmatpush1.bf16.msra.mxu0 0
        %576 = vmatprep.subr.bf16.mxu0 0
        %577 = vmatpush1.bf16.msra.mxu0 0
        %578 = vmatprep.subr.bf16.mxu0 0
        %579 = vmatpush1.bf16.msra.mxu0 %v559
        %580 = vmatprep.subr.bf16.mxu0 0
        %581 = vmatpush2.bf16.msra.mxu0 0
        %582 = vmatprep.subr.bf16.mxu0 0
        %583 = vmatpush2.bf16.msra.mxu0 0
        %584 = vmatprep.subr.bf16.mxu0 0
        %585 = vmatpush2.bf16.msra.mxu0 0
        %586 = vmatprep.subr.bf16.mxu0 0
        %587 = vmatpush2.bf16.msra.mxu0 0
        %588 = vmatprep.subr.bf16.mxu0 0
        %589 = vmatpush2.bf16.msra.mxu0 0
        %590 = vmatprep.subr.bf16.mxu0 0
        %591 = vmatpush2.bf16.msra.mxu0 0
        %592 = vmatprep.subr.bf16.mxu0 0
        %593 = vmatpush2.bf16.msra.mxu0 0
        %594 = vmatprep.subr.bf16.mxu0 0
        %595 = vmatpush2.bf16.msra.mxu0 0
        %596 = vmatprep.mubr.bf16.mxu0 0
        %597 = vmatmul.mubr.bf16.gmra.mxu0 %v562
        %v598 = vpop.f32.mrf.mxu0
        %v599 = vadd.f32 0.0, %v598
        %v600 = vpop.f32.mrf.mxu0
        %v601 = vpop.f32.mrf.mxu0
        %v602 = vpop.f32.mrf.mxu0
        %603 = vdwg.mxu0
        %v604 = vadd.f32 %v537, %v599
        %s605 = sadd.s32 %s217, 1
        %s606 = smul.u32 %s605, 3
        %s607 = smul.addr %s606, 4
        %s608 = scalar_lea.vmem %s203, %s607
        %v609 = vld [vmem:[%s608] sm:$0xf]
        %s610 = scalar_lea.vmem %s1, 48
        %v611 = vld [vmem:[%s610] sm:$0xf]
        %v612 = vld [vmem:[%s610 + $0x4] sm:$0xf]
        %v615 = vunpack.c.l.b16 %v611
        %v616 = vunpack.c.l.b16 %v612
        %v617 = vpack.c.b16 %v616, %v615
        %v620 = vsel %vm253, %v609, 0
        %622 = vmatprep.subr.bf16.mxu0 0
        %623 = vmatpush1.bf16.msra.mxu0 0
        %624 = vmatprep.subr.bf16.mxu0 0
        %625 = vmatpush1.bf16.msra.mxu0 0
        %626 = vmatprep.subr.bf16.mxu0 0
        %627 = vmatpush1.bf16.msra.mxu0 0
        %628 = vmatprep.subr.bf16.mxu0 0
        %629 = vmatpush1.bf16.msra.mxu0 0
        %630 = vmatprep.subr.bf16.mxu0 0
        %631 = vmatpush1.bf16.msra.mxu0 0
        %632 = vmatprep.subr.bf16.mxu0 0
        %633 = vmatpush1.bf16.msra.mxu0 0
        %634 = vmatprep.subr.bf16.mxu0 0
        %635 = vmatpush1.bf16.msra.mxu0 0
        %636 = vmatprep.subr.bf16.mxu0 0
        %637 = vmatpush1.bf16.msra.mxu0 %v617
        %638 = vmatprep.subr.bf16.mxu0 0
        %639 = vmatpush2.bf16.msra.mxu0 0
        %640 = vmatprep.subr.bf16.mxu0 0
        %641 = vmatpush2.bf16.msra.mxu0 0
        %642 = vmatprep.subr.bf16.mxu0 0
        %643 = vmatpush2.bf16.msra.mxu0 0
        %644 = vmatprep.subr.bf16.mxu0 0
        %645 = vmatpush2.bf16.msra.mxu0 0
        %646 = vmatprep.subr.bf16.mxu0 0
        %647 = vmatpush2.bf16.msra.mxu0 0
        %648 = vmatprep.subr.bf16.mxu0 0
        %649 = vmatpush2.bf16.msra.mxu0 0
        %650 = vmatprep.subr.bf16.mxu0 0
        %651 = vmatpush2.bf16.msra.mxu0 0
        %652 = vmatprep.subr.bf16.mxu0 0
        %653 = vmatpush2.bf16.msra.mxu0 0
        %654 = vmatprep.mubr.bf16.mxu0 0
        %655 = vmatmul.mubr.bf16.gmra.mxu0 %v620
        %v656 = vpop.f32.mrf.mxu0
        %v657 = vadd.f32 0.0, %v656
        %v658 = vpop.f32.mrf.mxu0
        %v659 = vpop.f32.mrf.mxu0
        %v660 = vpop.f32.mrf.mxu0
        %661 = vdwg.mxu0
        %v662 = vadd.f32 %v604, %v657
        %v663 = vld [vmem:[%s608 + $0x4] sm:$0xf]
        %v664 = vld [vmem:[%s608 + $0x8] sm:$0x1]
        %s665 = scalar_lea.vmem %s1, 56
        %v666 = vld [vmem:[%s665] sm:$0xf]
        %v667 = vld [vmem:[%s665 + $0x4] sm:$0xf]
        %v670 = vunpack.c.l.b16 %v663
        %v671 = vunpack.c.l.b16 %v664
        %v672 = vpack.c.b16 %v671, %v670
        %v674 = vshrl.u32 %v672, 16
        %v676 = vshll.u32 %v672, 16
        %v678 = vrot.slane %v676, 1
        %v679 = vor.u32 %v674, %v678
        %v682 = vunpack.c.l.b16 %v666
        %v683 = vunpack.c.l.b16 %v667
        %v684 = vpack.c.b16 %v683, %v682
        %v687 = vsel %vm253, %v679, 0
        %689 = vmatprep.subr.bf16.mxu0 0
        %690 = vmatpush1.bf16.msra.mxu0 0
        %691 = vmatprep.subr.bf16.mxu0 0
        %692 = vmatpush1.bf16.msra.mxu0 0
        %693 = vmatprep.subr.bf16.mxu0 0
        %694 = vmatpush1.bf16.msra.mxu0 0
        %695 = vmatprep.subr.bf16.mxu0 0
        %696 = vmatpush1.bf16.msra.mxu0 0
        %697 = vmatprep.subr.bf16.mxu0 0
        %698 = vmatpush1.bf16.msra.mxu0 0
        %699 = vmatprep.subr.bf16.mxu0 0
        %700 = vmatpush1.bf16.msra.mxu0 0
        %701 = vmatprep.subr.bf16.mxu0 0
        %702 = vmatpush1.bf16.msra.mxu0 0
        %703 = vmatprep.subr.bf16.mxu0 0
        %704 = vmatpush1.bf16.msra.mxu0 %v684
        %705 = vmatprep.subr.bf16.mxu0 0
        %706 = vmatpush2.bf16.msra.mxu0 0
        %707 = vmatprep.subr.bf16.mxu0 0
        %708 = vmatpush2.bf16.msra.mxu0 0
        %709 = vmatprep.subr.bf16.mxu0 0
        %710 = vmatpush2.bf16.msra.mxu0 0
        %711 = vmatprep.subr.bf16.mxu0 0
        %712 = vmatpush2.bf16.msra.mxu0 0
        %713 = vmatprep.subr.bf16.mxu0 0
        %714 = vmatpush2.bf16.msra.mxu0 0
        %715 = vmatprep.subr.bf16.mxu0 0
        %716 = vmatpush2.bf16.msra.mxu0 0
        %717 = vmatprep.subr.bf16.mxu0 0
        %718 = vmatpush2.bf16.msra.mxu0 0
        %719 = vmatprep.subr.bf16.mxu0 0
        %720 = vmatpush2.bf16.msra.mxu0 0
        %721 = vmatprep.mubr.bf16.mxu0 0
        %722 = vmatmul.mubr.bf16.gmra.mxu0 %v687
        %v723 = vpop.f32.mrf.mxu0
        %v724 = vadd.f32 0.0, %v723
        %v725 = vpop.f32.mrf.mxu0
        %v726 = vpop.f32.mrf.mxu0
        %v727 = vpop.f32.mrf.mxu0
        %728 = vdwg.mxu0
        %v729 = vadd.f32 %v662, %v724
        %v730 = vld [vmem:[%s608] sm:$0xf]
        %v731 = vld [vmem:[%s608 + $0x4] sm:$0x1]
        %s732 = scalar_lea.vmem %s1, 64
        %v733 = vld [vmem:[%s732] sm:$0xf]
        %v734 = vld [vmem:[%s732 + $0x4] sm:$0xf]
        %v737 = vunpack.c.l.b16 %v730
        %v738 = vunpack.c.l.b16 %v731
        %v739 = vpack.c.b16 %v738, %v737
        %v741 = vshrl.u32 %v739, 16
        %v743 = vshll.u32 %v739, 16
        %v745 = vrot.slane %v743, 1
        %v746 = vor.u32 %v741, %v745
        %v749 = vunpack.c.l.b16 %v733
        %v750 = vunpack.c.l.b16 %v734
        %v751 = vpack.c.b16 %v750, %v749
        %v754 = vsel %vm253, %v746, 0
        %756 = vmatprep.subr.bf16.mxu0 0
        %757 = vmatpush1.bf16.msra.mxu0 0
        %758 = vmatprep.subr.bf16.mxu0 0
        %759 = vmatpush1.bf16.msra.mxu0 0
        %760 = vmatprep.subr.bf16.mxu0 0
        %761 = vmatpush1.bf16.msra.mxu0 0
        %762 = vmatprep.subr.bf16.mxu0 0
        %763 = vmatpush1.bf16.msra.mxu0 0
        %764 = vmatprep.subr.bf16.mxu0 0
        %765 = vmatpush1.bf16.msra.mxu0 0
        %766 = vmatprep.subr.bf16.mxu0 0
        %767 = vmatpush1.bf16.msra.mxu0 0
        %768 = vmatprep.subr.bf16.mxu0 0
        %769 = vmatpush1.bf16.msra.mxu0 0
        %770 = vmatprep.subr.bf16.mxu0 0
        %771 = vmatpush1.bf16.msra.mxu0 %v751
        %772 = vmatprep.subr.bf16.mxu0 0
        %773 = vmatpush2.bf16.msra.mxu0 0
        %774 = vmatprep.subr.bf16.mxu0 0
        %775 = vmatpush2.bf16.msra.mxu0 0
        %776 = vmatprep.subr.bf16.mxu0 0
        %777 = vmatpush2.bf16.msra.mxu0 0
        %778 = vmatprep.subr.bf16.mxu0 0
        %779 = vmatpush2.bf16.msra.mxu0 0
        %780 = vmatprep.subr.bf16.mxu0 0
        %781 = vmatpush2.bf16.msra.mxu0 0
        %782 = vmatprep.subr.bf16.mxu0 0
        %783 = vmatpush2.bf16.msra.mxu0 0
        %784 = vmatprep.subr.bf16.mxu0 0
        %785 = vmatpush2.bf16.msra.mxu0 0
        %786 = vmatprep.subr.bf16.mxu0 0
        %787 = vmatpush2.bf16.msra.mxu0 0
        %788 = vmatprep.mubr.bf16.mxu0 0
        %789 = vmatmul.mubr.bf16.gmra.mxu0 %v754
        %v790 = vpop.f32.mrf.mxu0
        %v791 = vadd.f32 0.0, %v790
        %v792 = vpop.f32.mrf.mxu0
        %v793 = vpop.f32.mrf.mxu0
        %v794 = vpop.f32.mrf.mxu0
        %795 = vdwg.mxu0
        %v796 = vadd.f32 %v729, %v791
        %v797 = vpack.c.bf16 %v796, %v796
        %s798 = smul.addr %s217, 4
        %s799 = scalar_lea.vmem %s208, %s798
        %vm800 = vcmask 125952
        %801 = vst.msk [vmem:[%s799] sm:$0xf] %vm800, %v797
        %v802 = vsel %vm253, %v796, 0.0
        %v803 = vrot.slane %v802, 4
        %v804 = vadd.f32 %v802, %v803
        %v805 = vrot.slane %v804, 2
        %v806 = vadd.f32 %v804, %v805
        %v807 = vrot.slane %v806, 1
        %v808 = vadd.f32 %v806, %v807
        %v809 = vadd.f32 %v222, %v808
        %v810 = vmul.f32 %v796, %v796
        %v811 = vsel %vm253, %v810, 0.0
        %v812 = vrot.slane %v811, 4
        %v813 = vadd.f32 %v811, %v812
        %v814 = vrot.slane %v813, 2
        %v815 = vadd.f32 %v813, %v814
        %v816 = vrot.slane %v815, 1
        %v817 = vadd.f32 %v815, %v816
        %v818 = vadd.f32 %v223, %v817
      $region33: #{_lambda_.10} parent=27 // loop_footer
        %s221 = sadd.s32 1, %s217
      $region34: #{_lambda_.10} parent=27 // loop_footer_branch
        %216 = sbr.rel target = $region30
      $region35: #{_lambda_.10} parent=27 // loop_exit
        _
      %vm819 = vcmask 122880
      %820 = vst.msk [vmem:[%s211] sm:$0x1] %vm819, %v222
      %821 = vst.msk [vmem:[%s214] sm:$0x1] %vm819, %v223
      %p822 = scmp.lt.s32.totalorder %s16, 1
      %s823 = scalar_select %p822, %s16, 1
      %s824 = smul.addr %s823, 8
      %s825 = smul.addr %s824, 4
      %s826 = scalar_lea.vmem %s2, %s825
      %p827 = scmp.lt.s32.totalorder %s16, 1
      %s828 = scalar_select %p827, %s16, 1
      %s829 = scalar_lea.vmem %s3, %s828
      %p830 = scmp.lt.s32.totalorder %s16, 1
      %s831 = scalar_select %p830, %s16, 1
      %s832 = scalar_lea.vmem %s4, %s831
      // Predicated region
      $region36: #{_lambda_.10} parent=27 // pred_check
        %p833 = pneg %p81
      $region37: #{_lambda_.10} parent=27 // pred_check_branch
        %835 = sbr.rel (%p833) target = $region39
      $region38: #{_lambda_.10} parent=27 // pred_region
        _
      $region39: #{_lambda_.10} parent=27 // pred_fallthru
        _
      // Predicated region
      $region40: #{_lambda_.10} parent=27 // pred_check
        %p836 = pneg %p107
      $region41: #{_lambda_.10} parent=27 // pred_check_branch
        %838 = sbr.rel (%p836) target = $region43
      $region42: #{_lambda_.10} parent=27 // pred_region
        _
      $region43: #{_lambda_.10} parent=27 // pred_fallthru
        _
      // Predicated region
      $region44: #{_lambda_.10} parent=27 // pred_check
        %p839 = pneg %p133
      $region45: #{_lambda_.10} parent=27 // pred_check_branch
        %841 = sbr.rel (%p839) target = $region47
      $region46: #{_lambda_.10} parent=27 // pred_region
        _
      $region47: #{_lambda_.10} parent=27 // pred_fallthru
        _
    $region28: #{_lambda_.10} parent=5 // pred_fallthru
      _
    %p842 = scmp.le.s32.totalorder 2, %s11
    // Predicated region
    $region48: #{_lambda_.10} parent=5 // pred_check
      %p843 = pneg %p842
    $region49: #{_lambda_.10} parent=5 // pred_check_branch
      %845 = sbr.rel (%p843) target = $region51
    $region50: #{_lambda_.10} parent=5 // pred_region
      %s846 = ssub.s32 %s11, 2
      // Predicated region
      $region52: #{_lambda_.10} parent=50 // pred_check
        %p847 = pneg %p87
      $region53: #{_lambda_.10} parent=50 // pred_check_branch
        %849 = sbr.rel (%p847) target = $region55
      $region54: #{_lambda_.10} parent=50 // pred_region
        %p850 = scmp.lt.s32.totalorder %s17, 1
        %s851 = scalar_select %p850, %s17, 1
        %s852 = smul.addr %s851, 8
        %s853 = smul.addr %s852, 4
        %s854 = scalar_lea.vmem %s2, %s853
      $region55: #{_lambda_.10} parent=50 // pred_fallthru
        _
      // Predicated region
      $region56: #{_lambda_.10} parent=50 // pred_check
        %p855 = pneg %p113
      $region57: #{_lambda_.10} parent=50 // pred_check_branch
        %857 = sbr.rel (%p855) target = $region59
      $region58: #{_lambda_.10} parent=50 // pred_region
        %p858 = scmp.lt.s32.totalorder %s17, 1
        %s859 = scalar_select %p858, %s17, 1
        %s860 = scalar_lea.vmem %s3, %s859
      $region59: #{_lambda_.10} parent=50 // pred_fallthru
        _
      // Predicated region
      $region60: #{_lambda_.10} parent=50 // pred_check
        %p861 = pneg %p139
      $region61: #{_lambda_.10} parent=50 // pred_check_branch
        %863 = sbr.rel (%p861) target = $region63
      $region62: #{_lambda_.10} parent=50 // pred_region
        %p864 = scmp.lt.s32.totalorder %s17, 1
        %s865 = scalar_select %p864, %s17, 1
        %s866 = scalar_lea.vmem %s4, %s865
      $region63: #{_lambda_.10} parent=50 // pred_fallthru
        _
    $region51: #{_lambda_.10} parent=5 // pred_fallthru
      _
  $region6: #{_lambda_.10} parent=0 // loop_footer
    %s15 = sadd.s32 1, %s11
  $region7: #{_lambda_.10} parent=0 // loop_footer_branch
    %10 = sbr.rel target = $region3
  $region8: #{_lambda_.10} parent=0 // loop_exit
    _

// kernel: _lambda_.11
$region0: #{_lambda_.11}
  #allocation0 [shape = 'u32[]', space=smem, size = 0x4, offset = 0x4, fixed_abs, tag = 'smem constant byte address 0x4 - core index']
  #allocation1 [shape = 'u32[144,128]{1,0:T(1,128)}', space=vmem, size = 0x12000, scoped, tag = 'internal scratch']
  %s0 = inlined_call_operand.vmem [shape: bf16[2,10,10,16], index: 0, kind: input, shape index: {}]
  %s1 = inlined_call_operand.vmem [shape: bf16[9,16,32], index: 1, kind: input, shape index: {}]
  %s2 = inlined_call_operand.vmem [shape: bf16[2,8,8,32], index: 2, kind: output, shape index: {0}]
  %s3 = inlined_call_operand.vmem [shape: f32[2,1,32], index: 3, kind: output, shape index: {1}]
  %s4 = inlined_call_operand.vmem [shape: f32[2,1,32], index: 4, kind: output, shape index: {2}]
  %5 = xla_tuple %s2, %s3, %s4
  %s6 = sld [smem:[#allocation0]]
  $region64: #{_lambda_.11} parent=0
    _
  %s8 = ssub.s32 1, %s6
  %s9 = scalar_select 0, %s8, %s6
  loop: start=0, step=1, limit=4
  $region2: #{_lambda_.11} parent=0 // loop_pre_header
    _
  $region3: #{_lambda_.11} parent=0 // loop_header
    %s11 = sphi 0, %s15
    %p12 = scmp.ge.s32.totalorder %s11, 4
    %s21 = sphi 0, %s23
    %s24 = sphi 0, %s21
    %s25 = sphi 0, %s24
    %s41 = sphi 0, %s25
    %s45 = sphi 0, %s45
    %s47 = sphi 0, %s45
    %s48 = sphi 0, %s47
    %s62 = sphi 0, %s48
    %s68 = sphi 0, %s70
    %s71 = sphi 0, %s68
    %s72 = sphi 0, %s71
    %s88 = sphi 0, %s72
    %s94 = sphi 0, %s96
    %s97 = sphi 0, %s94
    %s98 = sphi 0, %s97
    %s114 = sphi 0, %s98
    %s120 = sphi 0, %s122
    %s123 = sphi 0, %s120
    %s124 = sphi 0, %s123
    %s140 = sphi 0, %s124
  $region4: #{_lambda_.11} parent=0 // loop_header_branch
    %14 = sbr.rel (%p12) target = $region8
  $region5: #{_lambda_.11} parent=0 // loop_body
    %s16 = ssub.s32 %s11, 1
    %s17 = ssub.s32 %s11, 2
    %s18 = sadd.s32 %s11, 1
    %s19 = ssub.s32 %s11, %s18
    %p20 = scmp.eq.s32.totalorder %s19, 0
    %s22 = sadd.s32 %s21, 1
    %s23 = scalar_select %p20, %s21, %s22
    %p26 = pneg %p20
    %p27 = scmp.eq.s32.totalorder %s11, 1
    %p28 = por %p26, %p27
    %p29 = scmp.ne.s32.totalorder %s21, %s24
    %p30 = scmp.eq.s32.totalorder %s11, 0
    %p31 = por %p29, %p30
    %p32 = scmp.ne.s32.totalorder %s21, %s24
    %p33 = scmp.eq.s32.totalorder %s16, 1
    %p34 = por %p32, %p33
    %p35 = scmp.ne.s32.totalorder %s24, %s25
    %p36 = scmp.eq.s32.totalorder %s16, 0
    %p37 = por %p35, %p36
    %p38 = scmp.ne.s32.totalorder %s24, %s25
    %p39 = scmp.eq.s32.totalorder %s17, 1
    %p40 = por %p38, %p39
    %p42 = scmp.ne.s32.totalorder %s25, %s41
    %p43 = scmp.eq.s32.totalorder %s17, 0
    %p44 = por %p42, %p43
    %s46 = sadd.s32 %s45, 1
    %p49 = scmp.eq.s32.totalorder %s11, 1
    %p50 = scmp.ne.s32.totalorder %s45, %s47
    %p51 = scmp.eq.s32.totalorder %s11, 0
    %p52 = por %p50, %p51
    %p53 = scmp.ne.s32.totalorder %s45, %s47
    %p54 = scmp.eq.s32.totalorder %s16, 1
    %p55 = por %p53, %p54
    %p56 = scmp.ne.s32.totalorder %s47, %s48
    %p57 = scmp.eq.s32.totalorder %s16, 0
    %p58 = por %p56, %p57
    %p59 = scmp.ne.s32.totalorder %s47, %s48
    %p60 = scmp.eq.s32.totalorder %s17, 1
    %p61 = por %p59, %p60
    %p63 = scmp.ne.s32.totalorder %s48, %s62
    %p64 = scmp.eq.s32.totalorder %s17, 0
    %p65 = por %p63, %p64
    %s66 = ssub.s32 %s11, %s18
    %p67 = scmp.eq.s32.totalorder %s66, 0
    %s69 = sadd.s32 %s68, 1
    %s70 = scalar_select %p67, %s68, %s69
    %p73 = pneg %p67
    %p74 = scmp.eq.s32.totalorder %s11, 1
    %p75 = por %p73, %p74
    %p76 = scmp.ne.s32.totalorder %s68, %s71
    %p77 = scmp.eq.s32.totalorder %s11, 0
    %p78 = por %p76, %p77
    %p79 = scmp.ne.s32.totalorder %s68, %s71
    %p80 = scmp.eq.s32.totalorder %s16, 1
    %p81 = por %p79, %p80
    %p82 = scmp.ne.s32.totalorder %s71, %s72
    %p83 = scmp.eq.s32.totalorder %s16, 0
    %p84 = por %p82, %p83
    %p85 = scmp.ne.s32.totalorder %s71, %s72
    %p86 = scmp.eq.s32.totalorder %s17, 1
    %p87 = por %p85, %p86
    %p89 = scmp.ne.s32.totalorder %s72, %s88
    %p90 = scmp.eq.s32.totalorder %s17, 0
    %p91 = por %p89, %p90
    %s92 = ssub.s32 %s11, %s18
    %p93 = scmp.eq.s32.totalorder %s92, 0
    %s95 = sadd.s32 %s94, 1
    %s96 = scalar_select %p93, %s94, %s95
    %p99 = pneg %p93
    %p100 = scmp.eq.s32.totalorder %s11, 1
    %p101 = por %p99, %p100
    %p102 = scmp.ne.s32.totalorder %s94, %s97
    %p103 = scmp.eq.s32.totalorder %s11, 0
    %p104 = por %p102, %p103
    %p105 = scmp.ne.s32.totalorder %s94, %s97
    %p106 = scmp.eq.s32.totalorder %s16, 1
    %p107 = por %p105, %p106
    %p108 = scmp.ne.s32.totalorder %s97, %s98
    %p109 = scmp.eq.s32.totalorder %s16, 0
    %p110 = por %p108, %p109
    %p111 = scmp.ne.s32.totalorder %s97, %s98
    %p112 = scmp.eq.s32.totalorder %s17, 1
    %p113 = por %p111, %p112
    %p115 = scmp.ne.s32.totalorder %s98, %s114
    %p116 = scmp.eq.s32.totalorder %s17, 0
    %p117 = por %p115, %p116
    %s118 = ssub.s32 %s11, %s18
    %p119 = scmp.eq.s32.totalorder %s118, 0
    %s121 = sadd.s32 %s120, 1
    %s122 = scalar_select %p119, %s120, %s121
    %p125 = pneg %p119
    %p126 = scmp.eq.s32.totalorder %s11, 1
    %p127 = por %p125, %p126
    %p128 = scmp.ne.s32.totalorder %s120, %s123
    %p129 = scmp.eq.s32.totalorder %s11, 0
    %p130 = por %p128, %p129
    %p131 = scmp.ne.s32.totalorder %s120, %s123
    %p132 = scmp.eq.s32.totalorder %s16, 1
    %p133 = por %p131, %p132
    %p134 = scmp.ne.s32.totalorder %s123, %s124
    %p135 = scmp.eq.s32.totalorder %s16, 0
    %p136 = por %p134, %p135
    %p137 = scmp.ne.s32.totalorder %s123, %s124
    %p138 = scmp.eq.s32.totalorder %s17, 1
    %p139 = por %p137, %p138
    %p141 = scmp.ne.s32.totalorder %s124, %s140
    %p142 = scmp.eq.s32.totalorder %s17, 0
    %p143 = por %p141, %p142
    %p144 = scmp.le.s32.totalorder 1, %s11
    %p145 = scmp.lt.s32.totalorder %s11, 3
    %p146 = pnand %p144, %p145
    %p147 = pneg %p146
    // Predicated region
    $region9: #{_lambda_.11} parent=5 // pred_check
      _
    $region10: #{_lambda_.11} parent=5 // pred_check_branch
      %149 = sbr.rel (%p146) target = $region12
    $region11: #{_lambda_.11} parent=5 // pred_region
      %s150 = ssub.s32 %s11, 1
      // Predicated region
      $region13: #{_lambda_.11} parent=11 // pred_check
        %p151 = pneg %p58
      $region14: #{_lambda_.11} parent=11 // pred_check_branch
        %153 = sbr.rel (%p151) target = $region16
      $region15: #{_lambda_.11} parent=11 // pred_region
        _
      $region16: #{_lambda_.11} parent=11 // pred_fallthru
        _
    $region12: #{_lambda_.11} parent=5 // pred_fallthru
      _
    %p154 = scmp.lt.s32.totalorder %s11, 2
    // Predicated region
    $region17: #{_lambda_.11} parent=5 // pred_check
      %p155 = pneg %p154
    $region18: #{_lambda_.11} parent=5 // pred_check_branch
      %157 = sbr.rel (%p155) target = $region20
    $region19: #{_lambda_.11} parent=5 // pred_region
      // Predicated region
      $region21: #{_lambda_.11} parent=19 // pred_check
        %p158 = pneg %p31
      $region22: #{_lambda_.11} parent=19 // pred_check_branch
        %160 = sbr.rel (%p158) target = $region24
      $region23: #{_lambda_.11} parent=19 // pred_region
        %p161 = scmp.lt.s32.totalorder %s11, 1
        %s162 = scalar_select %p161, %s11, 1
        %s163 = smul.addr %s162, 20
        %s164 = smul.addr %s163, 4
        %s165 = scalar_lea.vmem %s0, %s164
      $region24: #{_lambda_.11} parent=19 // pred_fallthru
        _
    $region20: #{_lambda_.11} parent=5 // pred_fallthru
      _
    %p166 = scmp.le.s32.totalorder 1, %s11
    %p167 = scmp.lt.s32.totalorder %s11, 3
    %p168 = pnand %p166, %p167
    %p169 = pneg %p168
    // Predicated region
    $region25: #{_lambda_.11} parent=5 // pred_check
      _
    $region26: #{_lambda_.11} parent=5 // pred_check_branch
      %171 = sbr.rel (%p168) target = $region28
    $region27: #{_lambda_.11} parent=5 // pred_region
      %s172 = ssub.s32 %s11, 1
      %p173 = scmp.lt.s32.totalorder %s16, 1
      %s174 = scalar_select %p173, %s16, 1
      %s175 = smul.addr %s174, 20
      %s176 = smul.addr %s175, 4
      %s177 = scalar_lea.vmem %s0, %s176
      %p178 = pneg %p37
      %p179 = pneg %p34
      %p180 = pneg %p58
      %p181 = pneg %p55
      %p182 = pneg %p84
      %p183 = pneg %p81
      %p184 = scmp.lt.s32.totalorder %s16, 1
      %s185 = scalar_select %p184, %s16, 1
      %s186 = smul.addr %s185, 8
      %s187 = smul.addr %s186, 4
      %s188 = scalar_lea.vmem %s2, %s187
      %p189 = pneg %p110
      %p190 = pneg %p107
      %p191 = scmp.lt.s32.totalorder %s16, 1
      %s192 = scalar_select %p191, %s16, 1
      %s193 = scalar_lea.vmem %s3, %s192
      %p194 = pneg %p136
      %p195 = pneg %p133
      %p196 = scmp.lt.s32.totalorder %s16, 1
      %s197 = scalar_select %p196, %s16, 1
      %s198 = scalar_lea.vmem %s4, %s197
      %p199 = scmp.lt.s32.totalorder %s16, 1
      %s200 = scalar_select %p199, %s16, 1
      %s201 = smul.addr %s200, 20
      %s202 = smul.addr %s201, 4
      %s203 = scalar_lea.vmem %s0, %s202
      %p204 = scmp.lt.s32.totalorder %s16, 1
      %s205 = scalar_select %p204, %s16, 1
      %s206 = smul.addr %s205, 8
      %s207 = smul.addr %s206, 4
      %s208 = scalar_lea.vmem %s2, %s207
      %p209 = scmp.lt.s32.totalorder %s16, 1
      %s210 = scalar_select %p209, %s16, 1
      %s211 = scalar_lea.vmem %s3, %s210
      %p212 = scmp.lt.s32.totalorder %s16, 1
      %s213 = scalar_select %p212, %s16, 1
      %s214 = scalar_lea.vmem %s4, %s213
      loop: start=0, step=1, limit=8
      $region29: #{_lambda_.11} parent=27 // loop_pre_header
        _
      $region30: #{_lambda_.11} parent=27 // loop_header
        %s217 = sphi 0, %s221
        %p218 = scmp.ge.s32.totalorder %s217, 8
        %v222 = vphi 0.0, %v782
        %v223 = vphi 0.0, %v791
      $region31: #{_lambda_.11} parent=27 // loop_header_branch
        %220 = sbr.rel (%p218) target = $region35
      $region32: #{_lambda_.11} parent=27 // loop_body
        %s224 = smul.u32 %s217, 2
        %s225 = smul.addr %s224, 4
        %s226 = scalar_lea.vmem %s203, %s225
        %v227 = vld [vmem:[%s226] sm:$0xf]
        %v228 = vld [vmem:[%s1] sm:$0xf]
        %v229 = vld [vmem:[%s1 + $0x4] sm:$0xf]
        %v230 = vld [vmem:[%s226 + $0x4] sm:$0x1]
        %s231 = scalar_lea.vmem %s1, 8
        %v232 = vld [vmem:[%s231] sm:$0xf]
        %v233 = vld [vmem:[%s231 + $0x4] sm:$0xf]
        %v236 = vunpack.c.l.b16 %v227
        %v237 = vunpack.c.l.b16 %v230
        %v238 = vpack.c.b16 %v237, %v236
        %v240 = vshrl.u32 %v238, 16
        %v242 = vshll.u32 %v238, 16
        %v244 = vrot.slane %v242, 1
        %v245 = vor.u32 %v240, %v244
        %v248 = vunpack.c.l.b16 %v232
        %v249 = vunpack.c.l.b16 %v233
        %v250 = vpack.c.b16 %v249, %v248
        %vm252 = vcmask 130048
        %v254 = vsel %vm252, %v245, 0
        %256 = vmatprep.subr.bf16.mxu0 0
        %257 = vmatpush1.bf16.msra.mxu0 0
        %258 = vmatprep.subr.bf16.mxu0 0
        %259 = vmatpush1.bf16.msra.mxu0 0
        %260 = vmatprep.subr.bf16.mxu0 0
        %261 = vmatpush1.bf16.msra.mxu0 0
        %262 = vmatprep.subr.bf16.mxu0 0
        %263 = vmatpush1.bf16.msra.mxu0 0
        %264 = vmatprep.subr.bf16.mxu0 0
        %265 = vmatpush1.bf16.msra.mxu0 0
        %266 = vmatprep.subr.bf16.mxu0 0
        %267 = vmatpush1.bf16.msra.mxu0 0
        %268 = vmatprep.subr.bf16.mxu0 0
        %269 = vmatpush1.bf16.msra.mxu0 0
        %270 = vmatprep.subr.bf16.mxu0 0
        %271 = vmatpush1.bf16.msra.mxu0 %v250
        %272 = vmatprep.subr.bf16.mxu0 0
        %273 = vmatpush2.bf16.msra.mxu0 0
        %274 = vmatprep.subr.bf16.mxu0 0
        %275 = vmatpush2.bf16.msra.mxu0 0
        %276 = vmatprep.subr.bf16.mxu0 0
        %277 = vmatpush2.bf16.msra.mxu0 0
        %278 = vmatprep.subr.bf16.mxu0 0
        %279 = vmatpush2.bf16.msra.mxu0 0
        %280 = vmatprep.subr.bf16.mxu0 0
        %281 = vmatpush2.bf16.msra.mxu0 0
        %282 = vmatprep.subr.bf16.mxu0 0
        %283 = vmatpush2.bf16.msra.mxu0 0
        %284 = vmatprep.subr.bf16.mxu0 0
        %285 = vmatpush2.bf16.msra.mxu0 0
        %286 = vmatprep.subr.bf16.mxu0 0
        %287 = vmatpush2.bf16.msra.mxu0 0
        %288 = vmatprep.mubr.bf16.mxu0 0
        %289 = vmatmul.mubr.bf16.gmra.mxu0 %v254
        %v290 = vpop.f32.mrf.mxu0
        %v291 = vadd.f32 0.0, %v290
        %v292 = vpop.f32.mrf.mxu0
        %v293 = vpop.f32.mrf.mxu0
        %v294 = vpop.f32.mrf.mxu0
        %295 = vdwg.mxu0
        %v298 = vunpack.c.l.b16 %v228
        %v299 = vunpack.c.l.b16 %v229
        %v300 = vpack.c.b16 %v299, %v298
        %v303 = vsel %vm252, %v227, 0
        %305 = vmatprep.subr.bf16.mxu0 0
        %306 = vmatpush1.bf16.msra.mxu0 0
        %307 = vmatprep.subr.bf16.mxu0 0
        %308 = vmatpush1.bf16.msra.mxu0 0
        %309 = vmatprep.subr.bf16.mxu0 0
        %310 = vmatpush1.bf16.msra.mxu0 0
        %311 = vmatprep.subr.bf16.mxu0 0
        %312 = vmatpush1.bf16.msra.mxu0 0
        %313 = vmatprep.subr.bf16.mxu0 0
        %314 = vmatpush1.bf16.msra.mxu0 0
        %315 = vmatprep.subr.bf16.mxu0 0
        %316 = vmatpush1.bf16.msra.mxu0 0
        %317 = vmatprep.subr.bf16.mxu0 0
        %318 = vmatpush1.bf16.msra.mxu0 0
        %319 = vmatprep.subr.bf16.mxu0 0
        %320 = vmatpush1.bf16.msra.mxu0 %v300
        %321 = vmatprep.subr.bf16.mxu0 0
        %322 = vmatpush2.bf16.msra.mxu0 0
        %323 = vmatprep.subr.bf16.mxu0 0
        %324 = vmatpush2.bf16.msra.mxu0 0
        %325 = vmatprep.subr.bf16.mxu0 0
        %326 = vmatpush2.bf16.msra.mxu0 0
        %327 = vmatprep.subr.bf16.mxu0 0
        %328 = vmatpush2.bf16.msra.mxu0 0
        %329 = vmatprep.subr.bf16.mxu0 0
        %330 = vmatpush2.bf16.msra.mxu0 0
        %331 = vmatprep.subr.bf16.mxu0 0
        %332 = vmatpush2.bf16.msra.mxu0 0
        %333 = vmatprep.subr.bf16.mxu0 0
        %334 = vmatpush2.bf16.msra.mxu0 0
        %335 = vmatprep.subr.bf16.mxu0 0
        %336 = vmatpush2.bf16.msra.mxu0 0
        %337 = vmatprep.mubr.bf16.mxu0 0
        %338 = vmatmul.mubr.bf16.gmra.mxu0 %v303
        %v339 = vpop.f32.mrf.mxu0
        %v340 = vadd.f32 %v291, %v339
        %v341 = vpop.f32.mrf.mxu0
        %v342 = vpop.f32.mrf.mxu0
        %v343 = vpop.f32.mrf.mxu0
        %344 = vdwg.mxu0
        %v345 = vld [vmem:[%s226] sm:$0xe]
        %s346 = scalar_lea.vmem %s1, 16
        %v347 = vld [vmem:[%s346] sm:$0xf]
        %v348 = vld [vmem:[%s346 + $0x4] sm:$0xf]
        %v350 = vunpack.c.l.b16 %v345
        %v351 = vpack.c.b16 %v237, %v350
        %v352 = vrot.slane %v351, 1
        %v355 = vunpack.c.l.b16 %v347
        %v356 = vunpack.c.l.b16 %v348
        %v357 = vpack.c.b16 %v356, %v355
        %v360 = vsel %vm252, %v352, 0
        %362 = vmatprep.subr.bf16.mxu0 0
        %363 = vmatpush1.bf16.msra.mxu0 0
        %364 = vmatprep.subr.bf16.mxu0 0
        %365 = vmatpush1.bf16.msra.mxu0 0
        %366 = vmatprep.subr.bf16.mxu0 0
        %367 = vmatpush1.bf16.msra.mxu0 0
        %368 = vmatprep.subr.bf16.mxu0 0
        %369 = vmatpush1.bf16.msra.mxu0 0
        %370 = vmatprep.subr.bf16.mxu0 0
        %371 = vmatpush1.bf16.msra.mxu0 0
        %372 = vmatprep.subr.bf16.mxu0 0
        %373 = vmatpush1.bf16.msra.mxu0 0
        %374 = vmatprep.subr.bf16.mxu0 0
        %375 = vmatpush1.bf16.msra.mxu0 0
        %376 = vmatprep.subr.bf16.mxu0 0
        %377 = vmatpush1.bf16.msra.mxu0 %v357
        %378 = vmatprep.subr.bf16.mxu0 0
        %379 = vmatpush2.bf16.msra.mxu0 0
        %380 = vmatprep.subr.bf16.mxu0 0
        %381 = vmatpush2.bf16.msra.mxu0 0
        %382 = vmatprep.subr.bf16.mxu0 0
        %383 = vmatpush2.bf16.msra.mxu0 0
        %384 = vmatprep.subr.bf16.mxu0 0
        %385 = vmatpush2.bf16.msra.mxu0 0
        %386 = vmatprep.subr.bf16.mxu0 0
        %387 = vmatpush2.bf16.msra.mxu0 0
        %388 = vmatprep.subr.bf16.mxu0 0
        %389 = vmatpush2.bf16.msra.mxu0 0
        %390 = vmatprep.subr.bf16.mxu0 0
        %391 = vmatpush2.bf16.msra.mxu0 0
        %392 = vmatprep.subr.bf16.mxu0 0
        %393 = vmatpush2.bf16.msra.mxu0 0
        %394 = vmatprep.mubr.bf16.mxu0 0
        %395 = vmatmul.mubr.bf16.gmra.mxu0 %v360
        %v396 = vpop.f32.mrf.mxu0
        %v397 = vadd.f32 0.0, %v396
        %v398 = vpop.f32.mrf.mxu0
        %v399 = vpop.f32.mrf.mxu0
        %v400 = vpop.f32.mrf.mxu0
        %401 = vdwg.mxu0
        %v402 = vadd.f32 %v340, %v397
        %s403 = sadd.s32 %s217, 1
        %s404 = smul.u32 %s403, 2
        %s405 = smul.addr %s404, 4
        %s406 = scalar_lea.vmem %s203, %s405
        %v407 = vld [vmem:[%s406] sm:$0xf]
        %s408 = scalar_lea.vmem %s1, 24
        %v409 = vld [vmem:[%s408] sm:$0xf]
        %v410 = vld [vmem:[%s408 + $0x4] sm:$0xf]
        %v413 = vunpack.c.l.b16 %v409
        %v414 = vunpack.c.l.b16 %v410
        %v415 = vpack.c.b16 %v414, %v413
        %v418 = vsel %vm252, %v407, 0
        %420 = vmatprep.subr.bf16.mxu0 0
        %421 = vmatpush1.bf16.msra.mxu0 0
        %422 = vmatprep.subr.bf16.mxu0 0
        %423 = vmatpush1.bf16.msra.mxu0 0
        %424 = vmatprep.subr.bf16.mxu0 0
        %425 = vmatpush1.bf16.msra.mxu0 0
        %426 = vmatprep.subr.bf16.mxu0 0
        %427 = vmatpush1.bf16.msra.mxu0 0
        %428 = vmatprep.subr.bf16.mxu0 0
        %429 = vmatpush1.bf16.msra.mxu0 0
        %430 = vmatprep.subr.bf16.mxu0 0
        %431 = vmatpush1.bf16.msra.mxu0 0
        %432 = vmatprep.subr.bf16.mxu0 0
        %433 = vmatpush1.bf16.msra.mxu0 0
        %434 = vmatprep.subr.bf16.mxu0 0
        %435 = vmatpush1.bf16.msra.mxu0 %v415
        %436 = vmatprep.subr.bf16.mxu0 0
        %437 = vmatpush2.bf16.msra.mxu0 0
        %438 = vmatprep.subr.bf16.mxu0 0
        %439 = vmatpush2.bf16.msra.mxu0 0
        %440 = vmatprep.subr.bf16.mxu0 0
        %441 = vmatpush2.bf16.msra.mxu0 0
        %442 = vmatprep.subr.bf16.mxu0 0
        %443 = vmatpush2.bf16.msra.mxu0 0
        %444 = vmatprep.subr.bf16.mxu0 0
        %445 = vmatpush2.bf16.msra.mxu0 0
        %446 = vmatprep.subr.bf16.mxu0 0
        %447 = vmatpush2.bf16.msra.mxu0 0
        %448 = vmatprep.subr.bf16.mxu0 0
        %449 = vmatpush2.bf16.msra.mxu0 0
        %450 = vmatprep.subr.bf16.mxu0 0
        %451 = vmatpush2.bf16.msra.mxu0 0
        %452 = vmatprep.mubr.bf16.mxu0 0
        %453 = vmatmul.mubr.bf16.gmra.mxu0 %v418
        %v454 = vpop.f32.mrf.mxu0
        %v455 = vadd.f32 0.0, %v454
        %v456 = vpop.f32.mrf.mxu0
        %v457 = vpop.f32.mrf.mxu0
        %v458 = vpop.f32.mrf.mxu0
        %459 = vdwg.mxu0
        %v460 = vadd.f32 %v402, %v455
        %v461 = vld [vmem:[%s406] sm:$0xf]
        %v462 = vld [vmem:[%s406 + $0x4] sm:$0x1]
        %s463 = scalar_lea.vmem %s1, 32
        %v464 = vld [vmem:[%s463] sm:$0xf]
        %v465 = vld [vmem:[%s463 + $0x4] sm:$0xf]
        %v468 = vunpack.c.l.b16 %v461
        %v469 = vunpack.c.l.b16 %v462
        %v470 = vpack.c.b16 %v469, %v468
        %v472 = vshrl.u32 %v470, 16
        %v474 = vshll.u32 %v470, 16
        %v476 = vrot.slane %v474, 1
        %v477 = vor.u32 %v472, %v476
        %v480 = vunpack.c.l.b16 %v464
        %v481 = vunpack.c.l.b16 %v465
        %v482 = vpack.c.b16 %v481, %v480
        %v485 = vsel %vm252, %v477, 0
        %487 = vmatprep.subr.bf16.mxu0 0
        %488 = vmatpush1.bf16.msra.mxu0 0
        %489 = vmatprep.subr.bf16.mxu0 0
        %490 = vmatpush1.bf16.msra.mxu0 0
        %491 = vmatprep.subr.bf16.mxu0 0
        %492 = vmatpush1.bf16.msra.mxu0 0
        %493 = vmatprep.subr.bf16.mxu0 0
        %494 = vmatpush1.bf16.msra.mxu0 0
        %495 = vmatprep.subr.bf16.mxu0 0
        %496 = vmatpush1.bf16.msra.mxu0 0
        %497 = vmatprep.subr.bf16.mxu0 0
        %498 = vmatpush1.bf16.msra.mxu0 0
        %499 = vmatprep.subr.bf16.mxu0 0
        %500 = vmatpush1.bf16.msra.mxu0 0
        %501 = vmatprep.subr.bf16.mxu0 0
        %502 = vmatpush1.bf16.msra.mxu0 %v482
        %503 = vmatprep.subr.bf16.mxu0 0
        %504 = vmatpush2.bf16.msra.mxu0 0
        %505 = vmatprep.subr.bf16.mxu0 0
        %506 = vmatpush2.bf16.msra.mxu0 0
        %507 = vmatprep.subr.bf16.mxu0 0
        %508 = vmatpush2.bf16.msra.mxu0 0
        %509 = vmatprep.subr.bf16.mxu0 0
        %510 = vmatpush2.bf16.msra.mxu0 0
        %511 = vmatprep.subr.bf16.mxu0 0
        %512 = vmatpush2.bf16.msra.mxu0 0
        %513 = vmatprep.subr.bf16.mxu0 0
        %514 = vmatpush2.bf16.msra.mxu0 0
        %515 = vmatprep.subr.bf16.mxu0 0
        %516 = vmatpush2.bf16.msra.mxu0 0
        %517 = vmatprep.subr.bf16.mxu0 0
        %518 = vmatpush2.bf16.msra.mxu0 0
        %519 = vmatprep.mubr.bf16.mxu0 0
        %520 = vmatmul.mubr.bf16.gmra.mxu0 %v485
        %v521 = vpop.f32.mrf.mxu0
        %v522 = vadd.f32 0.0, %v521
        %v523 = vpop.f32.mrf.mxu0
        %v524 = vpop.f32.mrf.mxu0
        %v525 = vpop.f32.mrf.mxu0
        %526 = vdwg.mxu0
        %v527 = vadd.f32 %v460, %v522
        %v528 = vld [vmem:[%s406] sm:$0xe]
        %s529 = scalar_lea.vmem %s1, 40
        %v530 = vld [vmem:[%s529] sm:$0xf]
        %v531 = vld [vmem:[%s529 + $0x4] sm:$0xf]
        %v533 = vunpack.c.l.b16 %v528
        %v534 = vpack.c.b16 %v469, %v533
        %v535 = vrot.slane %v534, 1
        %v538 = vunpack.c.l.b16 %v530
        %v539 = vunpack.c.l.b16 %v531
        %v540 = vpack.c.b16 %v539, %v538
        %v543 = vsel %vm252, %v535, 0
        %545 = vmatprep.subr.bf16.mxu0 0
        %546 = vmatpush1.bf16.msra.mxu0 0
        %547 = vmatprep.subr.bf16.mxu0 0
        %548 = vmatpush1.bf16.msra.mxu0 0
        %549 = vmatprep.subr.bf16.mxu0 0
        %550 = vmatpush1.bf16.msra.mxu0 0
        %551 = vmatprep.subr.bf16.mxu0 0
        %552 = vmatpush1.bf16.msra.mxu0 0
        %553 = vmatprep.subr.bf16.mxu0 0
        %554 = vmatpush1.bf16.msra.mxu0 0
        %555 = vmatprep.subr.bf16.mxu0 0
        %556 = vmatpush1.bf16.msra.mxu0 0
        %557 = vmatprep.subr.bf16.mxu0 0
        %558 = vmatpush1.bf16.msra.mxu0 0
        %559 = vmatprep.subr.bf16.mxu0 0
        %560 = vmatpush1.bf16.msra.mxu0 %v540
        %561 = vmatprep.subr.bf16.mxu0 0
        %562 = vmatpush2.bf16.msra.mxu0 0
        %563 = vmatprep.subr.bf16.mxu0 0
        %564 = vmatpush2.bf16.msra.mxu0 0
        %565 = vmatprep.subr.bf16.mxu0 0
        %566 = vmatpush2.bf16.msra.mxu0 0
        %567 = vmatprep.subr.bf16.mxu0 0
        %568 = vmatpush2.bf16.msra.mxu0 0
        %569 = vmatprep.subr.bf16.mxu0 0
        %570 = vmatpush2.bf16.msra.mxu0 0
        %571 = vmatprep.subr.bf16.mxu0 0
        %572 = vmatpush2.bf16.msra.mxu0 0
        %573 = vmatprep.subr.bf16.mxu0 0
        %574 = vmatpush2.bf16.msra.mxu0 0
        %575 = vmatprep.subr.bf16.mxu0 0
        %576 = vmatpush2.bf16.msra.mxu0 0
        %577 = vmatprep.mubr.bf16.mxu0 0
        %578 = vmatmul.mubr.bf16.gmra.mxu0 %v543
        %v579 = vpop.f32.mrf.mxu0
        %v580 = vadd.f32 0.0, %v579
        %v581 = vpop.f32.mrf.mxu0
        %v582 = vpop.f32.mrf.mxu0
        %v583 = vpop.f32.mrf.mxu0
        %584 = vdwg.mxu0
        %v585 = vadd.f32 %v527, %v580
        %s586 = sadd.s32 %s217, 2
        %s587 = smul.u32 %s586, 2
        %s588 = smul.addr %s587, 4
        %s589 = scalar_lea.vmem %s203, %s588
        %v590 = vld [vmem:[%s589] sm:$0xf]
        %s591 = scalar_lea.vmem %s1, 48
        %v592 = vld [vmem:[%s591] sm:$0xf]
        %v593 = vld [vmem:[%s591 + $0x4] sm:$0xf]
        %v596 = vunpack.c.l.b16 %v592
        %v597 = vunpack.c.l.b16 %v593
        %v598 = vpack.c.b16 %v597, %v596
        %v601 = vsel %vm252, %v590, 0
        %603 = vmatprep.subr.bf16.mxu0 0
        %604 = vmatpush1.bf16.msra.mxu0 0
        %605 = vmatprep.subr.bf16.mxu0 0
        %606 = vmatpush1.bf16.msra.mxu0 0
        %607 = vmatprep.subr.bf16.mxu0 0
        %608 = vmatpush1.bf16.msra.mxu0 0
        %609 = vmatprep.subr.bf16.mxu0 0
        %610 = vmatpush1.bf16.msra.mxu0 0
        %611 = vmatprep.subr.bf16.mxu0 0
        %612 = vmatpush1.bf16.msra.mxu0 0
        %613 = vmatprep.subr.bf16.mxu0 0
        %614 = vmatpush1.bf16.msra.mxu0 0
        %615 = vmatprep.subr.bf16.mxu0 0
        %616 = vmatpush1.bf16.msra.mxu0 0
        %617 = vmatprep.subr.bf16.mxu0 0
        %618 = vmatpush1.bf16.msra.mxu0 %v598
        %619 = vmatprep.subr.bf16.mxu0 0
        %620 = vmatpush2.bf16.msra.mxu0 0
        %621 = vmatprep.subr.bf16.mxu0 0
        %622 = vmatpush2.bf16.msra.mxu0 0
        %623 = vmatprep.subr.bf16.mxu0 0
        %624 = vmatpush2.bf16.msra.mxu0 0
        %625 = vmatprep.subr.bf16.mxu0 0
        %626 = vmatpush2.bf16.msra.mxu0 0
        %627 = vmatprep.subr.bf16.mxu0 0
        %628 = vmatpush2.bf16.msra.mxu0 0
        %629 = vmatprep.subr.bf16.mxu0 0
        %630 = vmatpush2.bf16.msra.mxu0 0
        %631 = vmatprep.subr.bf16.mxu0 0
        %632 = vmatpush2.bf16.msra.mxu0 0
        %633 = vmatprep.subr.bf16.mxu0 0
        %634 = vmatpush2.bf16.msra.mxu0 0
        %635 = vmatprep.mubr.bf16.mxu0 0
        %636 = vmatmul.mubr.bf16.gmra.mxu0 %v601
        %v637 = vpop.f32.mrf.mxu0
        %v638 = vadd.f32 0.0, %v637
        %v639 = vpop.f32.mrf.mxu0
        %v640 = vpop.f32.mrf.mxu0
        %v641 = vpop.f32.mrf.mxu0
        %642 = vdwg.mxu0
        %v643 = vadd.f32 %v585, %v638
        %v644 = vld [vmem:[%s589] sm:$0xf]
        %v645 = vld [vmem:[%s589 + $0x4] sm:$0x1]
        %s646 = scalar_lea.vmem %s1, 56
        %v647 = vld [vmem:[%s646] sm:$0xf]
        %v648 = vld [vmem:[%s646 + $0x4] sm:$0xf]
        %v651 = vunpack.c.l.b16 %v644
        %v652 = vunpack.c.l.b16 %v645
        %v653 = vpack.c.b16 %v652, %v651
        %v655 = vshrl.u32 %v653, 16
        %v657 = vshll.u32 %v653, 16
        %v659 = vrot.slane %v657, 1
        %v660 = vor.u32 %v655, %v659
        %v663 = vunpack.c.l.b16 %v647
        %v664 = vunpack.c.l.b16 %v648
        %v665 = vpack.c.b16 %v664, %v663
        %v668 = vsel %vm252, %v660, 0
        %670 = vmatprep.subr.bf16.mxu0 0
        %671 = vmatpush1.bf16.msra.mxu0 0
        %672 = vmatprep.subr.bf16.mxu0 0
        %673 = vmatpush1.bf16.msra.mxu0 0
        %674 = vmatprep.subr.bf16.mxu0 0
        %675 = vmatpush1.bf16.msra.mxu0 0
        %676 = vmatprep.subr.bf16.mxu0 0
        %677 = vmatpush1.bf16.msra.mxu0 0
        %678 = vmatprep.subr.bf16.mxu0 0
        %679 = vmatpush1.bf16.msra.mxu0 0
        %680 = vmatprep.subr.bf16.mxu0 0
        %681 = vmatpush1.bf16.msra.mxu0 0
        %682 = vmatprep.subr.bf16.mxu0 0
        %683 = vmatpush1.bf16.msra.mxu0 0
        %684 = vmatprep.subr.bf16.mxu0 0
        %685 = vmatpush1.bf16.msra.mxu0 %v665
        %686 = vmatprep.subr.bf16.mxu0 0
        %687 = vmatpush2.bf16.msra.mxu0 0
        %688 = vmatprep.subr.bf16.mxu0 0
        %689 = vmatpush2.bf16.msra.mxu0 0
        %690 = vmatprep.subr.bf16.mxu0 0
        %691 = vmatpush2.bf16.msra.mxu0 0
        %692 = vmatprep.subr.bf16.mxu0 0
        %693 = vmatpush2.bf16.msra.mxu0 0
        %694 = vmatprep.subr.bf16.mxu0 0
        %695 = vmatpush2.bf16.msra.mxu0 0
        %696 = vmatprep.subr.bf16.mxu0 0
        %697 = vmatpush2.bf16.msra.mxu0 0
        %698 = vmatprep.subr.bf16.mxu0 0
        %699 = vmatpush2.bf16.msra.mxu0 0
        %700 = vmatprep.subr.bf16.mxu0 0
        %701 = vmatpush2.bf16.msra.mxu0 0
        %702 = vmatprep.mubr.bf16.mxu0 0
        %703 = vmatmul.mubr.bf16.gmra.mxu0 %v668
        %v704 = vpop.f32.mrf.mxu0
        %v705 = vadd.f32 0.0, %v704
        %v706 = vpop.f32.mrf.mxu0
        %v707 = vpop.f32.mrf.mxu0
        %v708 = vpop.f32.mrf.mxu0
        %709 = vdwg.mxu0
        %v710 = vadd.f32 %v643, %v705
        %v711 = vld [vmem:[%s589] sm:$0xe]
        %s712 = scalar_lea.vmem %s1, 64
        %v713 = vld [vmem:[%s712] sm:$0xf]
        %v714 = vld [vmem:[%s712 + $0x4] sm:$0xf]
        %v716 = vunpack.c.l.b16 %v711
        %v717 = vpack.c.b16 %v652, %v716
        %v718 = vrot.slane %v717, 1
        %v721 = vunpack.c.l.b16 %v713
        %v722 = vunpack.c.l.b16 %v714
        %v723 = vpack.c.b16 %v722, %v721
        %v726 = vsel %vm252, %v718, 0
        %728 = vmatprep.subr.bf16.mxu0 0
        %729 = vmatpush1.bf16.msra.mxu0 0
        %730 = vmatprep.subr.bf16.mxu0 0
        %731 = vmatpush1.bf16.msra.mxu0 0
        %732 = vmatprep.subr.bf16.mxu0 0
        %733 = vmatpush1.bf16.msra.mxu0 0
        %734 = vmatprep.subr.bf16.mxu0 0
        %735 = vmatpush1.bf16.msra.mxu0 0
        %736 = vmatprep.subr.bf16.mxu0 0
        %737 = vmatpush1.bf16.msra.mxu0 0
        %738 = vmatprep.subr.bf16.mxu0 0
        %739 = vmatpush1.bf16.msra.mxu0 0
        %740 = vmatprep.subr.bf16.mxu0 0
        %741 = vmatpush1.bf16.msra.mxu0 0
        %742 = vmatprep.subr.bf16.mxu0 0
        %743 = vmatpush1.bf16.msra.mxu0 %v723
        %744 = vmatprep.subr.bf16.mxu0 0
        %745 = vmatpush2.bf16.msra.mxu0 0
        %746 = vmatprep.subr.bf16.mxu0 0
        %747 = vmatpush2.bf16.msra.mxu0 0
        %748 = vmatprep.subr.bf16.mxu0 0
        %749 = vmatpush2.bf16.msra.mxu0 0
        %750 = vmatprep.subr.bf16.mxu0 0
        %751 = vmatpush2.bf16.msra.mxu0 0
        %752 = vmatprep.subr.bf16.mxu0 0
        %753 = vmatpush2.bf16.msra.mxu0 0
        %754 = vmatprep.subr.bf16.mxu0 0
        %755 = vmatpush2.bf16.msra.mxu0 0
        %756 = vmatprep.subr.bf16.mxu0 0
        %757 = vmatpush2.bf16.msra.mxu0 0
        %758 = vmatprep.subr.bf16.mxu0 0
        %759 = vmatpush2.bf16.msra.mxu0 0
        %760 = vmatprep.mubr.bf16.mxu0 0
        %761 = vmatmul.mubr.bf16.gmra.mxu0 %v726
        %v762 = vpop.f32.mrf.mxu0
        %v763 = vadd.f32 0.0, %v762
        %v764 = vpop.f32.mrf.mxu0
        %v765 = vpop.f32.mrf.mxu0
        %v766 = vpop.f32.mrf.mxu0
        %767 = vdwg.mxu0
        %v768 = vadd.f32 %v710, %v763
        %v769 = vpack.c.bf16 %v768, %v768
        %s770 = smul.addr %s217, 4
        %s771 = scalar_lea.vmem %s208, %s770
        %vm772 = vcmask 257024
        %773 = vst.msk [vmem:[%s771] sm:$0xf] %vm772, %v769
        %vm774 = vcmask 261120
        %v775 = vsel %vm774, %v768, 0.0
        %v776 = vrot.slane %v775, 4
        %v777 = vadd.f32 %v775, %v776
        %v778 = vrot.slane %v777, 2
        %v779 = vadd.f32 %v777, %v778
        %v780 = vrot.slane %v779, 1
        %v781 = vadd.f32 %v779, %v780
        %v782 = vadd.f32 %v222, %v781
        %v783 = vmul.f32 %v768, %v768
        %v784 = vsel %vm774, %v783, 0.0
        %v785 = vrot.slane %v784, 4
        %v786 = vadd.f32 %v784, %v785
        %v787 = vrot.slane %v786, 2
        %v788 = vadd.f32 %v786, %v787
        %v789 = vrot.slane %v788, 1
        %v790 = vadd.f32 %v788, %v789
        %v791 = vadd.f32 %v223, %v790
      $region33: #{_lambda_.11} parent=27 // loop_footer
        %s221 = sadd.s32 1, %s217
      $region34: #{_lambda_.11} parent=27 // loop_footer_branch
        %216 = sbr.rel target = $region30
      $region35: #{_lambda_.11} parent=27 // loop_exit
        _
      %vm792 = vcmask 253952
      %793 = vst.msk [vmem:[%s211] sm:$0x1] %vm792, %v222
      %794 = vst.msk [vmem:[%s214] sm:$0x1] %vm792, %v223
      %p795 = scmp.lt.s32.totalorder %s16, 1
      %s796 = scalar_select %p795, %s16, 1
      %s797 = smul.addr %s796, 8
      %s798 = smul.addr %s797, 4
      %s799 = scalar_lea.vmem %s2, %s798
      %p800 = scmp.lt.s32.totalorder %s16, 1
      %s801 = scalar_select %p800, %s16, 1
      %s802 = scalar_lea.vmem %s3, %s801
      %p803 = scmp.lt.s32.totalorder %s16, 1
      %s804 = scalar_select %p803, %s16, 1
      %s805 = scalar_lea.vmem %s4, %s804
      // Predicated region
      $region36: #{_lambda_.11} parent=27 // pred_check
        %p806 = pneg %p81
      $region37: #{_lambda_.11} parent=27 // pred_check_branch
        %808 = sbr.rel (%p806) target = $region39
      $region38: #{_lambda_.11} parent=27 // pred_region
        _
      $region39: #{_lambda_.11} parent=27 // pred_fallthru
        _
      // Predicated region
      $region40: #{_lambda_.11} parent=27 // pred_check
        %p809 = pneg %p107
      $region41: #{_lambda_.11} parent=27 // pred_check_branch
        %811 = sbr.rel (%p809) target = $region43
      $region42: #{_lambda_.11} parent=27 // pred_region
        _
      $region43: #{_lambda_.11} parent=27 // pred_fallthru
        _
      // Predicated region
      $region44: #{_lambda_.11} parent=27 // pred_check
        %p812 = pneg %p133
      $region45: #{_lambda_.11} parent=27 // pred_check_branch
        %814 = sbr.rel (%p812) target = $region47
      $region46: #{_lambda_.11} parent=27 // pred_region
        _
      $region47: #{_lambda_.11} parent=27 // pred_fallthru
        _
    $region28: #{_lambda_.11} parent=5 // pred_fallthru
      _
    %p815 = scmp.le.s32.totalorder 2, %s11
    // Predicated region
    $region48: #{_lambda_.11} parent=5 // pred_check
      %p816 = pneg %p815
    $region49: #{_lambda_.11} parent=5 // pred_check_branch
      %818 = sbr.rel (%p816) target = $region51
    $region50: #{_lambda_.11} parent=5 // pred_region
      %s819 = ssub.s32 %s11, 2
      // Predicated region
      $region52: #{_lambda_.11} parent=50 // pred_check
        %p820 = pneg %p87
      $region53: #{_lambda_.11} parent=50 // pred_check_branch
        %822 = sbr.rel (%p820) target = $region55
      $region54: #{_lambda_.11} parent=50 // pred_region
        %p823 = scmp.lt.s32.totalorder %s17, 1
        %s824 = scalar_select %p823, %s17, 1
        %s825 = smul.addr %s824, 8
        %s826 = smul.addr %s825, 4
        %s827 = scalar_lea.vmem %s2, %s826
      $region55: #{_lambda_.11} parent=50 // pred_fallthru
        _
      // Predicated region
      $region56: #{_lambda_.11} parent=50 // pred_check
        %p828 = pneg %p113
      $region57: #{_lambda_.11} parent=50 // pred_check_branch
        %830 = sbr.rel (%p828) target = $region59
      $region58: #{_lambda_.11} parent=50 // pred_region
        %p831 = scmp.lt.s32.totalorder %s17, 1
        %s832 = scalar_select %p831, %s17, 1
        %s833 = scalar_lea.vmem %s3, %s832
      $region59: #{_lambda_.11} parent=50 // pred_fallthru
        _
      // Predicated region
      $region60: #{_lambda_.11} parent=50 // pred_check
        %p834 = pneg %p139
      $region61: #{_lambda_.11} parent=50 // pred_check_branch
        %836 = sbr.rel (%p834) target = $region63
      $region62: #{_lambda_.11} parent=50 // pred_region
        %p837 = scmp.lt.s32.totalorder %s17, 1
        %s838 = scalar_select %p837, %s17, 1
        %s839 = scalar_lea.vmem %s4, %s838
      $region63: #{_lambda_.11} parent=50 // pred_fallthru
        _
    $region51: #{_lambda_.11} parent=5 // pred_fallthru
      _
  $region6: #{_lambda_.11} parent=0 // loop_footer
    %s15 = sadd.s32 1, %s11
  $region7: #{_lambda_.11} parent=0 // loop_footer_branch
    %10 = sbr.rel target = $region3
  $region8: #{_lambda_.11} parent=0 // loop_exit
    _

// kernel: _lambda_.12
$region0: #{_lambda_.12}
  #allocation0 [shape = 'u32[]', space=smem, size = 0x4, offset = 0x4, fixed_abs, tag = 'smem constant byte address 0x4 - core index']
  #allocation1 [shape = 'u32[144,128]{1,0:T(1,128)}', space=vmem, size = 0x12000, scoped, tag = 'internal scratch']
  %s0 = inlined_call_operand.vmem [shape: bf16[2,10,10,32], index: 0, kind: input, shape index: {}]
  %s1 = inlined_call_operand.vmem [shape: bf16[9,32,32], index: 1, kind: input, shape index: {}]
  %s2 = inlined_call_operand.vmem [shape: bf16[2,4,4,32], index: 2, kind: output, shape index: {0}]
  %s3 = inlined_call_operand.vmem [shape: f32[2,1,32], index: 3, kind: output, shape index: {1}]
  %s4 = inlined_call_operand.vmem [shape: f32[2,1,32], index: 4, kind: output, shape index: {2}]
  %5 = xla_tuple %s2, %s3, %s4
  %s6 = sld [smem:[#allocation0]]
  $region64: #{_lambda_.12} parent=0
    _
  %s8 = ssub.s32 1, %s6
  %s9 = scalar_select 0, %s8, %s6
  loop: start=0, step=1, limit=4
  $region2: #{_lambda_.12} parent=0 // loop_pre_header
    _
  $region3: #{_lambda_.12} parent=0 // loop_header
    %s11 = sphi 0, %s15
    %p12 = scmp.ge.s32.totalorder %s11, 4
    %s21 = sphi 0, %s23
    %s24 = sphi 0, %s21
    %s25 = sphi 0, %s24
    %s41 = sphi 0, %s25
    %s45 = sphi 0, %s45
    %s47 = sphi 0, %s45
    %s48 = sphi 0, %s47
    %s62 = sphi 0, %s48
    %s68 = sphi 0, %s70
    %s71 = sphi 0, %s68
    %s72 = sphi 0, %s71
    %s88 = sphi 0, %s72
    %s94 = sphi 0, %s96
    %s97 = sphi 0, %s94
    %s98 = sphi 0, %s97
    %s114 = sphi 0, %s98
    %s120 = sphi 0, %s122
    %s123 = sphi 0, %s120
    %s124 = sphi 0, %s123
    %s140 = sphi 0, %s124
  $region4: #{_lambda_.12} parent=0 // loop_header_branch
    %14 = sbr.rel (%p12) target = $region8
  $region5: #{_lambda_.12} parent=0 // loop_body
    %s16 = ssub.s32 %s11, 1
    %s17 = ssub.s32 %s11, 2
    %s18 = sadd.s32 %s11, 1
    %s19 = ssub.s32 %s11, %s18
    %p20 = scmp.eq.s32.totalorder %s19, 0
    %s22 = sadd.s32 %s21, 1
    %s23 = scalar_select %p20, %s21, %s22
    %p26 = pneg %p20
    %p27 = scmp.eq.s32.totalorder %s11, 1
    %p28 = por %p26, %p27
    %p29 = scmp.ne.s32.totalorder %s21, %s24
    %p30 = scmp.eq.s32.totalorder %s11, 0
    %p31 = por %p29, %p30
    %p32 = scmp.ne.s32.totalorder %s21, %s24
    %p33 = scmp.eq.s32.totalorder %s16, 1
    %p34 = por %p32, %p33
    %p35 = scmp.ne.s32.totalorder %s24, %s25
    %p36 = scmp.eq.s32.totalorder %s16, 0
    %p37 = por %p35, %p36
    %p38 = scmp.ne.s32.totalorder %s24, %s25
    %p39 = scmp.eq.s32.totalorder %s17, 1
    %p40 = por %p38, %p39
    %p42 = scmp.ne.s32.totalorder %s25, %s41
    %p43 = scmp.eq.s32.totalorder %s17, 0
    %p44 = por %p42, %p43
    %s46 = sadd.s32 %s45, 1
    %p49 = scmp.eq.s32.totalorder %s11, 1
    %p50 = scmp.ne.s32.totalorder %s45, %s47
    %p51 = scmp.eq.s32.totalorder %s11, 0
    %p52 = por %p50, %p51
    %p53 = scmp.ne.s32.totalorder %s45, %s47
    %p54 = scmp.eq.s32.totalorder %s16, 1
    %p55 = por %p53, %p54
    %p56 = scmp.ne.s32.totalorder %s47, %s48
    %p57 = scmp.eq.s32.totalorder %s16, 0
    %p58 = por %p56, %p57
    %p59 = scmp.ne.s32.totalorder %s47, %s48
    %p60 = scmp.eq.s32.totalorder %s17, 1
    %p61 = por %p59, %p60
    %p63 = scmp.ne.s32.totalorder %s48, %s62
    %p64 = scmp.eq.s32.totalorder %s17, 0
    %p65 = por %p63, %p64
    %s66 = ssub.s32 %s11, %s18
    %p67 = scmp.eq.s32.totalorder %s66, 0
    %s69 = sadd.s32 %s68, 1
    %s70 = scalar_select %p67, %s68, %s69
    %p73 = pneg %p67
    %p74 = scmp.eq.s32.totalorder %s11, 1
    %p75 = por %p73, %p74
    %p76 = scmp.ne.s32.totalorder %s68, %s71
    %p77 = scmp.eq.s32.totalorder %s11, 0
    %p78 = por %p76, %p77
    %p79 = scmp.ne.s32.totalorder %s68, %s71
    %p80 = scmp.eq.s32.totalorder %s16, 1
    %p81 = por %p79, %p80
    %p82 = scmp.ne.s32.totalorder %s71, %s72
    %p83 = scmp.eq.s32.totalorder %s16, 0
    %p84 = por %p82, %p83
    %p85 = scmp.ne.s32.totalorder %s71, %s72
    %p86 = scmp.eq.s32.totalorder %s17, 1
    %p87 = por %p85, %p86
    %p89 = scmp.ne.s32.totalorder %s72, %s88
    %p90 = scmp.eq.s32.totalorder %s17, 0
    %p91 = por %p89, %p90
    %s92 = ssub.s32 %s11, %s18
    %p93 = scmp.eq.s32.totalorder %s92, 0
    %s95 = sadd.s32 %s94, 1
    %s96 = scalar_select %p93, %s94, %s95
    %p99 = pneg %p93
    %p100 = scmp.eq.s32.totalorder %s11, 1
    %p101 = por %p99, %p100
    %p102 = scmp.ne.s32.totalorder %s94, %s97
    %p103 = scmp.eq.s32.totalorder %s11, 0
    %p104 = por %p102, %p103
    %p105 = scmp.ne.s32.totalorder %s94, %s97
    %p106 = scmp.eq.s32.totalorder %s16, 1
    %p107 = por %p105, %p106
    %p108 = scmp.ne.s32.totalorder %s97, %s98
    %p109 = scmp.eq.s32.totalorder %s16, 0
    %p110 = por %p108, %p109
    %p111 = scmp.ne.s32.totalorder %s97, %s98
    %p112 = scmp.eq.s32.totalorder %s17, 1
    %p113 = por %p111, %p112
    %p115 = scmp.ne.s32.totalorder %s98, %s114
    %p116 = scmp.eq.s32.totalorder %s17, 0
    %p117 = por %p115, %p116
    %s118 = ssub.s32 %s11, %s18
    %p119 = scmp.eq.s32.totalorder %s118, 0
    %s121 = sadd.s32 %s120, 1
    %s122 = scalar_select %p119, %s120, %s121
    %p125 = pneg %p119
    %p126 = scmp.eq.s32.totalorder %s11, 1
    %p127 = por %p125, %p126
    %p128 = scmp.ne.s32.totalorder %s120, %s123
    %p129 = scmp.eq.s32.totalorder %s11, 0
    %p130 = por %p128, %p129
    %p131 = scmp.ne.s32.totalorder %s120, %s123
    %p132 = scmp.eq.s32.totalorder %s16, 1
    %p133 = por %p131, %p132
    %p134 = scmp.ne.s32.totalorder %s123, %s124
    %p135 = scmp.eq.s32.totalorder %s16, 0
    %p136 = por %p134, %p135
    %p137 = scmp.ne.s32.totalorder %s123, %s124
    %p138 = scmp.eq.s32.totalorder %s17, 1
    %p139 = por %p137, %p138
    %p141 = scmp.ne.s32.totalorder %s124, %s140
    %p142 = scmp.eq.s32.totalorder %s17, 0
    %p143 = por %p141, %p142
    %p144 = scmp.le.s32.totalorder 1, %s11
    %p145 = scmp.lt.s32.totalorder %s11, 3
    %p146 = pnand %p144, %p145
    %p147 = pneg %p146
    // Predicated region
    $region9: #{_lambda_.12} parent=5 // pred_check
      _
    $region10: #{_lambda_.12} parent=5 // pred_check_branch
      %149 = sbr.rel (%p146) target = $region12
    $region11: #{_lambda_.12} parent=5 // pred_region
      %s150 = ssub.s32 %s11, 1
      // Predicated region
      $region13: #{_lambda_.12} parent=11 // pred_check
        %p151 = pneg %p58
      $region14: #{_lambda_.12} parent=11 // pred_check_branch
        %153 = sbr.rel (%p151) target = $region16
      $region15: #{_lambda_.12} parent=11 // pred_region
        _
      $region16: #{_lambda_.12} parent=11 // pred_fallthru
        _
    $region12: #{_lambda_.12} parent=5 // pred_fallthru
      _
    %p154 = scmp.lt.s32.totalorder %s11, 2
    // Predicated region
    $region17: #{_lambda_.12} parent=5 // pred_check
      %p155 = pneg %p154
    $region18: #{_lambda_.12} parent=5 // pred_check_branch
      %157 = sbr.rel (%p155) target = $region20
    $region19: #{_lambda_.12} parent=5 // pred_region
      // Predicated region
      $region21: #{_lambda_.12} parent=19 // pred_check
        %p158 = pneg %p31
      $region22: #{_lambda_.12} parent=19 // pred_check_branch
        %160 = sbr.rel (%p158) target = $region24
      $region23: #{_lambda_.12} parent=19 // pred_region
        %p161 = scmp.lt.s32.totalorder %s11, 1
        %s162 = scalar_select %p161, %s11, 1
        %s163 = smul.addr %s162, 20
        %s164 = smul.addr %s163, 4
        %s165 = scalar_lea.vmem %s0, %s164
      $region24: #{_lambda_.12} parent=19 // pred_fallthru
        _
    $region20: #{_lambda_.12} parent=5 // pred_fallthru
      _
    %p166 = scmp.le.s32.totalorder 1, %s11
    %p167 = scmp.lt.s32.totalorder %s11, 3
    %p168 = pnand %p166, %p167
    %p169 = pneg %p168
    // Predicated region
    $region25: #{_lambda_.12} parent=5 // pred_check
      _
    $region26: #{_lambda_.12} parent=5 // pred_check_branch
      %171 = sbr.rel (%p168) target = $region28
    $region27: #{_lambda_.12} parent=5 // pred_region
      %s172 = ssub.s32 %s11, 1
      %p173 = scmp.lt.s32.totalorder %s16, 1
      %s174 = scalar_select %p173, %s16, 1
      %s175 = smul.addr %s174, 20
      %s176 = smul.addr %s175, 4
      %s177 = scalar_lea.vmem %s0, %s176
      %p178 = pneg %p37
      %p179 = pneg %p34
      %p180 = pneg %p58
      %p181 = pneg %p55
      %p182 = pneg %p84
      %p183 = pneg %p81
      %p184 = scmp.lt.s32.totalorder %s16, 1
      %s185 = scalar_select %p184, %s16, 1
      %s186 = smul.addr %s185, 4
      %s187 = smul.addr %s186, 2
      %s188 = scalar_lea.vmem %s2, %s187
      %p189 = pneg %p110
      %p190 = pneg %p107
      %p191 = scmp.lt.s32.totalorder %s16, 1
      %s192 = scalar_select %p191, %s16, 1
      %s193 = scalar_lea.vmem %s3, %s192
      %p194 = pneg %p136
      %p195 = pneg %p133
      %p196 = scmp.lt.s32.totalorder %s16, 1
      %s197 = scalar_select %p196, %s16, 1
      %s198 = scalar_lea.vmem %s4, %s197
      %p199 = scmp.lt.s32.totalorder %s16, 1
      %s200 = scalar_select %p199, %s16, 1
      %s201 = smul.addr %s200, 20
      %s202 = smul.addr %s201, 4
      %s203 = scalar_lea.vmem %s0, %s202
      %p204 = scmp.lt.s32.totalorder %s16, 1
      %s205 = scalar_select %p204, %s16, 1
      %s206 = smul.addr %s205, 4
      %s207 = smul.addr %s206, 2
      %s208 = scalar_lea.vmem %s2, %s207
      %p209 = scmp.lt.s32.totalorder %s16, 1
      %s210 = scalar_select %p209, %s16, 1
      %s211 = scalar_lea.vmem %s3, %s210
      %p212 = scmp.lt.s32.totalorder %s16, 1
      %s213 = scalar_select %p212, %s16, 1
      %s214 = scalar_lea.vmem %s4, %s213
      loop: start=0, step=1, limit=4
      $region29: #{_lambda_.12} parent=27 // loop_pre_header
        _
      $region30: #{_lambda_.12} parent=27 // loop_header
        %s217 = sphi 0, %s221
        %p218 = scmp.ge.s32.totalorder %s217, 4
        %v222 = vphi 0.0, %v876
        %v223 = vphi 0.0, %v885
      $region31: #{_lambda_.12} parent=27 // loop_header_branch
        %220 = sbr.rel (%p218) target = $region35
      $region32: #{_lambda_.12} parent=27 // loop_body
        %s224 = smul.u32 %s217, 2
        %s225 = smul.addr %s224, 4
        %s226 = scalar_lea.vmem %s203, %s225
        %v227 = vld [vmem:[%s226] sm:$0x3]
        %v228 = vld [vmem:[%s1] sm:$0xf]
        %v229 = vld [vmem:[%s1 + $0x4] sm:$0xf]
        %v230 = vld [vmem:[%s1 + $0x8] sm:$0xf]
        %v231 = vld [vmem:[%s1 + $0xc] sm:$0xf]
        %v232 = vld [vmem:[%s226] sm:$0xc]
        %v233 = vld [vmem:[%s226 + $0x4] sm:$0x1]
        %s234 = scalar_lea.vmem %s1, 16
        %v235 = vld [vmem:[%s234] sm:$0xf]
        %v236 = vld [vmem:[%s234 + $0x4] sm:$0xf]
        %v237 = vld [vmem:[%s234 + $0x8] sm:$0xf]
        %v238 = vld [vmem:[%s234 + $0xc] sm:$0xf]
        %v241 = vunpack.c.l.b16 %v232
        %v242 = vunpack.c.l.b16 %v233
        %v243 = vpack.c.b16 %v242, %v241
        %v245 = vshrl.u32 %v243, 16
        %v247 = vrot.slane %v245, 2
        %v248 = vshll.u32 %v243, 16
        %v250 = vrot.slane %v248, 3
        %v251 = vor.u32 %v247, %v250
        %v256 = vunpack.c.l.b16 %v235
        %v257 = vunpack.c.l.b16 %v236
        %v258 = vunpack.c.l.b16 %v237
        %v259 = vunpack.c.l.b16 %v238
        %v260 = vpack.c.b16 %v257, %v256
        %v261 = vpack.c.b16 %v259, %v258
        %vm264 = vcmask 261120
        %v266 = vsel %vm264, %v251, 0
        %268 = vmatprep.subr.bf16.mxu0 0
        %269 = vmatpush1.bf16.msra.mxu0 0
        %270 = vmatprep.subr.bf16.mxu0 0
        %271 = vmatpush1.bf16.msra.mxu0 0
        %272 = vmatprep.subr.bf16.mxu0 0
        %273 = vmatpush1.bf16.msra.mxu0 0
        %274 = vmatprep.subr.bf16.mxu0 0
        %275 = vmatpush1.bf16.msra.mxu0 0
        %276 = vmatprep.subr.bf16.mxu0 0
        %277 = vmatpush1.bf16.msra.mxu0 0
        %278 = vmatprep.subr.bf16.mxu0 0
        %279 = vmatpush1.bf16.msra.mxu0 0
        %280 = vmatprep.subr.bf16.mxu0 0
        %281 = vmatpush1.bf16.msra.mxu0 %v261
        %282 = vmatprep.subr.bf16.mxu0 0
        %283 = vmatpush1.bf16.msra.mxu0 %v260
        %284 = vmatprep.subr.bf16.mxu0 0
        %285 = vmatpush2.bf16.msra.mxu0 0
        %286 = vmatprep.subr.bf16.mxu0 0
        %287 = vmatpush2.bf16.msra.mxu0 0
        %288 = vmatprep.subr.bf16.mxu0 0
        %289 = vmatpush2.bf16.msra.mxu0 0
        %290 = vmatprep.subr.bf16.mxu0 0
        %291 = vmatpush2.bf16.msra.mxu0 0
        %292 = vmatprep.subr.bf16.mxu0 0
        %293 = vmatpush2.bf16.msra.mxu0 0
        %294 = vmatprep.subr.bf16.mxu0 0
        %295 = vmatpush2.bf16.msra.mxu0 0
        %296 = vmatprep.subr.bf16.mxu0 0
        %297 = vmatpush2.bf16.msra.mxu0 0
        %298 = vmatprep.subr.bf16.mxu0 0
        %299 = vmatpush2.bf16.msra.mxu0 0
        %300 = vmatprep.mubr.bf16.mxu0 0
        %301 = vmatmul.mubr.bf16.gmra.mxu0 %v266
        %v302 = vpop.f32.mrf.mxu0
        %v303 = vadd.f32 0.0, %v302
        %v304 = vpop.f32.mrf.mxu0
        %v305 = vpop.f32.mrf.mxu0
        %v306 = vpop.f32.mrf.mxu0
        %307 = vdwg.mxu0
        %v312 = vunpack.c.l.b16 %v228
        %v313 = vunpack.c.l.b16 %v229
        %v314 = vunpack.c.l.b16 %v230
        %v315 = vunpack.c.l.b16 %v231
        %v316 = vpack.c.b16 %v313, %v312
        %v317 = vpack.c.b16 %v315, %v314
        %v321 = vsel %vm264, %v227, 0
        %323 = vmatprep.subr.bf16.mxu0 0
        %324 = vmatpush1.bf16.msra.mxu0 0
        %325 = vmatprep.subr.bf16.mxu0 0
        %326 = vmatpush1.bf16.msra.mxu0 0
        %327 = vmatprep.subr.bf16.mxu0 0
        %328 = vmatpush1.bf16.msra.mxu0 0
        %329 = vmatprep.subr.bf16.mxu0 0
        %330 = vmatpush1.bf16.msra.mxu0 0
        %331 = vmatprep.subr.bf16.mxu0 0
        %332 = vmatpush1.bf16.msra.mxu0 0
        %333 = vmatprep.subr.bf16.mxu0 0
        %334 = vmatpush1.bf16.msra.mxu0 0
        %335 = vmatprep.subr.bf16.mxu0 0
        %336 = vmatpush1.bf16.msra.mxu0 %v317
        %337 = vmatprep.subr.bf16.mxu0 0
        %338 = vmatpush1.bf16.msra.mxu0 %v316
        %339 = vmatprep.subr.bf16.mxu0 0
        %340 = vmatpush2.bf16.msra.mxu0 0
        %341 = vmatprep.subr.bf16.mxu0 0
        %342 = vmatpush2.bf16.msra.mxu0 0
        %343 = vmatprep.subr.bf16.mxu0 0
        %344 = vmatpush2.bf16.msra.mxu0 0
        %345 = vmatprep.subr.bf16.mxu0 0
        %346 = vmatpush2.bf16.msra.mxu0 0
        %347 = vmatprep.subr.bf16.mxu0 0
        %348 = vmatpush2.bf16.msra.mxu0 0
        %349 = vmatprep.subr.bf16.mxu0 0
        %350 = vmatpush2.bf16.msra.mxu0 0
        %351 = vmatprep.subr.bf16.mxu0 0
        %352 = vmatpush2.bf16.msra.mxu0 0
        %353 = vmatprep.subr.bf16.mxu0 0
        %354 = vmatpush2.bf16.msra.mxu0 0
        %355 = vmatprep.mubr.bf16.mxu0 0
        %356 = vmatmul.mubr.bf16.gmra.mxu0 %v321
        %v357 = vpop.f32.mrf.mxu0
        %v358 = vadd.f32 %v303, %v357
        %v359 = vpop.f32.mrf.mxu0
        %v360 = vpop.f32.mrf.mxu0
        %v361 = vpop.f32.mrf.mxu0
        %362 = vdwg.mxu0
        %v363 = vld [vmem:[%s226] sm:$0x7]
        %s364 = scalar_lea.vmem %s1, 32
        %v365 = vld [vmem:[%s364] sm:$0xf]
        %v366 = vld [vmem:[%s364 + $0x4] sm:$0xf]
        %v367 = vld [vmem:[%s364 + $0x8] sm:$0xf]
        %v368 = vld [vmem:[%s364 + $0xc] sm:$0xf]
        %v370 = vunpack.c.l.b16 %v363
        %v371 = vpack.c.b16 %v370, %v370
        %v373 = vshrl.u32 %v371, 16
        %v375 = vshll.u32 %v371, 16
        %v377 = vrot.slane %v375, 1
        %v378 = vor.u32 %v373, %v377
        %v383 = vunpack.c.l.b16 %v365
        %v384 = vunpack.c.l.b16 %v366
        %v385 = vunpack.c.l.b16 %v367
        %v386 = vunpack.c.l.b16 %v368
        %v387 = vpack.c.b16 %v384, %v383
        %v388 = vpack.c.b16 %v386, %v385
        %v392 = vsel %vm264, %v378, 0
        %394 = vmatprep.subr.bf16.mxu0 0
        %395 = vmatpush1.bf16.msra.mxu0 0
        %396 = vmatprep.subr.bf16.mxu0 0
        %397 = vmatpush1.bf16.msra.mxu0 0
        %398 = vmatprep.subr.bf16.mxu0 0
        %399 = vmatpush1.bf16.msra.mxu0 0
        %400 = vmatprep.subr.bf16.mxu0 0
        %401 = vmatpush1.bf16.msra.mxu0 0
        %402 = vmatprep.subr.bf16.mxu0 0
        %403 = vmatpush1.bf16.msra.mxu0 0
        %404 = vmatprep.subr.bf16.mxu0 0
        %405 = vmatpush1.bf16.msra.mxu0 0
        %406 = vmatprep.subr.bf16.mxu0 0
        %407 = vmatpush1.bf16.msra.mxu0 %v388
        %408 = vmatprep.subr.bf16.mxu0 0
        %409 = vmatpush1.bf16.msra.mxu0 %v387
        %410 = vmatprep.subr.bf16.mxu0 0
        %411 = vmatpush2.bf16.msra.mxu0 0
        %412 = vmatprep.subr.bf16.mxu0 0
        %413 = vmatpush2.bf16.msra.mxu0 0
        %414 = vmatprep.subr.bf16.mxu0 0
        %415 = vmatpush2.bf16.msra.mxu0 0
        %416 = vmatprep.subr.bf16.mxu0 0
        %417 = vmatpush2.bf16.msra.mxu0 0
        %418 = vmatprep.subr.bf16.mxu0 0
        %419 = vmatpush2.bf16.msra.mxu0 0
        %420 = vmatprep.subr.bf16.mxu0 0
        %421 = vmatpush2.bf16.msra.mxu0 0
        %422 = vmatprep.subr.bf16.mxu0 0
        %423 = vmatpush2.bf16.msra.mxu0 0
        %424 = vmatprep.subr.bf16.mxu0 0
        %425 = vmatpush2.bf16.msra.mxu0 0
        %426 = vmatprep.mubr.bf16.mxu0 0
        %427 = vmatmul.mubr.bf16.gmra.mxu0 %v392
        %v428 = vpop.f32.mrf.mxu0
        %v429 = vadd.f32 0.0, %v428
        %v430 = vpop.f32.mrf.mxu0
        %v431 = vpop.f32.mrf.mxu0
        %v432 = vpop.f32.mrf.mxu0
        %433 = vdwg.mxu0
        %v434 = vadd.f32 %v358, %v429
        %s435 = sadd.s32 %s217, 5
        %s436 = smul.u32 %s435, 2
        %s437 = smul.addr %s436, 4
        %s438 = scalar_lea.vmem %s203, %s437
        %v439 = vld [vmem:[%s438] sm:$0x3]
        %s440 = scalar_lea.vmem %s1, 48
        %v441 = vld [vmem:[%s440] sm:$0xf]
        %v442 = vld [vmem:[%s440 + $0x4] sm:$0xf]
        %v443 = vld [vmem:[%s440 + $0x8] sm:$0xf]
        %v444 = vld [vmem:[%s440 + $0xc] sm:$0xf]
        %v449 = vunpack.c.l.b16 %v441
        %v450 = vunpack.c.l.b16 %v442
        %v451 = vunpack.c.l.b16 %v443
        %v452 = vunpack.c.l.b16 %v444
        %v453 = vpack.c.b16 %v450, %v449
        %v454 = vpack.c.b16 %v452, %v451
        %v458 = vsel %vm264, %v439, 0
        %460 = vmatprep.subr.bf16.mxu0 0
        %461 = vmatpush1.bf16.msra.mxu0 0
        %462 = vmatprep.subr.bf16.mxu0 0
        %463 = vmatpush1.bf16.msra.mxu0 0
        %464 = vmatprep.subr.bf16.mxu0 0
        %465 = vmatpush1.bf16.msra.mxu0 0
        %466 = vmatprep.subr.bf16.mxu0 0
        %467 = vmatpush1.bf16.msra.mxu0 0
        %468 = vmatprep.subr.bf16.mxu0 0
        %469 = vmatpush1.bf16.msra.mxu0 0
        %470 = vmatprep.subr.bf16.mxu0 0
        %471 = vmatpush1.bf16.msra.mxu0 0
        %472 = vmatprep.subr.bf16.mxu0 0
        %473 = vmatpush1.bf16.msra.mxu0 %v454
        %474 = vmatprep.subr.bf16.mxu0 0
        %475 = vmatpush1.bf16.msra.mxu0 %v453
        %476 = vmatprep.subr.bf16.mxu0 0
        %477 = vmatpush2.bf16.msra.mxu0 0
        %478 = vmatprep.subr.bf16.mxu0 0
        %479 = vmatpush2.bf16.msra.mxu0 0
        %480 = vmatprep.subr.bf16.mxu0 0
        %481 = vmatpush2.bf16.msra.mxu0 0
        %482 = vmatprep.subr.bf16.mxu0 0
        %483 = vmatpush2.bf16.msra.mxu0 0
        %484 = vmatprep.subr.bf16.mxu0 0
        %485 = vmatpush2.bf16.msra.mxu0 0
        %486 = vmatprep.subr.bf16.mxu0 0
        %487 = vmatpush2.bf16.msra.mxu0 0
        %488 = vmatprep.subr.bf16.mxu0 0
        %489 = vmatpush2.bf16.msra.mxu0 0
        %490 = vmatprep.subr.bf16.mxu0 0
        %491 = vmatpush2.bf16.msra.mxu0 0
        %492 = vmatprep.mubr.bf16.mxu0 0
        %493 = vmatmul.mubr.bf16.gmra.mxu0 %v458
        %v494 = vpop.f32.mrf.mxu0
        %v495 = vadd.f32 0.0, %v494
        %v496 = vpop.f32.mrf.mxu0
        %v497 = vpop.f32.mrf.mxu0
        %v498 = vpop.f32.mrf.mxu0
        %499 = vdwg.mxu0
        %v500 = vadd.f32 %v434, %v495
        %v501 = vld [vmem:[%s438] sm:$0xc]
        %v502 = vld [vmem:[%s438 + $0x4] sm:$0x1]
        %s503 = scalar_lea.vmem %s1, 64
        %v504 = vld [vmem:[%s503] sm:$0xf]
        %v505 = vld [vmem:[%s503 + $0x4] sm:$0xf]
        %v506 = vld [vmem:[%s503 + $0x8] sm:$0xf]
        %v507 = vld [vmem:[%s503 + $0xc] sm:$0xf]
        %v510 = vunpack.c.l.b16 %v501
        %v511 = vunpack.c.l.b16 %v502
        %v512 = vpack.c.b16 %v511, %v510
        %v514 = vshrl.u32 %v512, 16
        %v516 = vrot.slane %v514, 2
        %v517 = vshll.u32 %v512, 16
        %v519 = vrot.slane %v517, 3
        %v520 = vor.u32 %v516, %v519
        %v525 = vunpack.c.l.b16 %v504
        %v526 = vunpack.c.l.b16 %v505
        %v527 = vunpack.c.l.b16 %v506
        %v528 = vunpack.c.l.b16 %v507
        %v529 = vpack.c.b16 %v526, %v525
        %v530 = vpack.c.b16 %v528, %v527
        %v534 = vsel %vm264, %v520, 0
        %536 = vmatprep.subr.bf16.mxu0 0
        %537 = vmatpush1.bf16.msra.mxu0 0
        %538 = vmatprep.subr.bf16.mxu0 0
        %539 = vmatpush1.bf16.msra.mxu0 0
        %540 = vmatprep.subr.bf16.mxu0 0
        %541 = vmatpush1.bf16.msra.mxu0 0
        %542 = vmatprep.subr.bf16.mxu0 0
        %543 = vmatpush1.bf16.msra.mxu0 0
        %544 = vmatprep.subr.bf16.mxu0 0
        %545 = vmatpush1.bf16.msra.mxu0 0
        %546 = vmatprep.subr.bf16.mxu0 0
        %547 = vmatpush1.bf16.msra.mxu0 0
        %548 = vmatprep.subr.bf16.mxu0 0
        %549 = vmatpush1.bf16.msra.mxu0 %v530
        %550 = vmatprep.subr.bf16.mxu0 0
        %551 = vmatpush1.bf16.msra.mxu0 %v529
        %552 = vmatprep.subr.bf16.mxu0 0
        %553 = vmatpush2.bf16.msra.mxu0 0
        %554 = vmatprep.subr.bf16.mxu0 0
        %555 = vmatpush2.bf16.msra.mxu0 0
        %556 = vmatprep.subr.bf16.mxu0 0
        %557 = vmatpush2.bf16.msra.mxu0 0
        %558 = vmatprep.subr.bf16.mxu0 0
        %559 = vmatpush2.bf16.msra.mxu0 0
        %560 = vmatprep.subr.bf16.mxu0 0
        %561 = vmatpush2.bf16.msra.mxu0 0
        %562 = vmatprep.subr.bf16.mxu0 0
        %563 = vmatpush2.bf16.msra.mxu0 0
        %564 = vmatprep.subr.bf16.mxu0 0
        %565 = vmatpush2.bf16.msra.mxu0 0
        %566 = vmatprep.subr.bf16.mxu0 0
        %567 = vmatpush2.bf16.msra.mxu0 0
        %568 = vmatprep.mubr.bf16.mxu0 0
        %569 = vmatmul.mubr.bf16.gmra.mxu0 %v534
        %v570 = vpop.f32.mrf.mxu0
        %v571 = vadd.f32 0.0, %v570
        %v572 = vpop.f32.mrf.mxu0
        %v573 = vpop.f32.mrf.mxu0
        %v574 = vpop.f32.mrf.mxu0
        %575 = vdwg.mxu0
        %v576 = vadd.f32 %v500, %v571
        %v577 = vld [vmem:[%s438] sm:$0x7]
        %s578 = scalar_lea.vmem %s1, 80
        %v579 = vld [vmem:[%s578] sm:$0xf]
        %v580 = vld [vmem:[%s578 + $0x4] sm:$0xf]
        %v581 = vld [vmem:[%s578 + $0x8] sm:$0xf]
        %v582 = vld [vmem:[%s578 + $0xc] sm:$0xf]
        %v584 = vunpack.c.l.b16 %v577
        %v585 = vpack.c.b16 %v584, %v584
        %v587 = vshrl.u32 %v585, 16
        %v589 = vshll.u32 %v585, 16
        %v591 = vrot.slane %v589, 1
        %v592 = vor.u32 %v587, %v591
        %v597 = vunpack.c.l.b16 %v579
        %v598 = vunpack.c.l.b16 %v580
        %v599 = vunpack.c.l.b16 %v581
        %v600 = vunpack.c.l.b16 %v582
        %v601 = vpack.c.b16 %v598, %v597
        %v602 = vpack.c.b16 %v600, %v599
        %v606 = vsel %vm264, %v592, 0
        %608 = vmatprep.subr.bf16.mxu0 0
        %609 = vmatpush1.bf16.msra.mxu0 0
        %610 = vmatprep.subr.bf16.mxu0 0
        %611 = vmatpush1.bf16.msra.mxu0 0
        %612 = vmatprep.subr.bf16.mxu0 0
        %613 = vmatpush1.bf16.msra.mxu0 0
        %614 = vmatprep.subr.bf16.mxu0 0
        %615 = vmatpush1.bf16.msra.mxu0 0
        %616 = vmatprep.subr.bf16.mxu0 0
        %617 = vmatpush1.bf16.msra.mxu0 0
        %618 = vmatprep.subr.bf16.mxu0 0
        %619 = vmatpush1.bf16.msra.mxu0 0
        %620 = vmatprep.subr.bf16.mxu0 0
        %621 = vmatpush1.bf16.msra.mxu0 %v602
        %622 = vmatprep.subr.bf16.mxu0 0
        %623 = vmatpush1.bf16.msra.mxu0 %v601
        %624 = vmatprep.subr.bf16.mxu0 0
        %625 = vmatpush2.bf16.msra.mxu0 0
        %626 = vmatprep.subr.bf16.mxu0 0
        %627 = vmatpush2.bf16.msra.mxu0 0
        %628 = vmatprep.subr.bf16.mxu0 0
        %629 = vmatpush2.bf16.msra.mxu0 0
        %630 = vmatprep.subr.bf16.mxu0 0
        %631 = vmatpush2.bf16.msra.mxu0 0
        %632 = vmatprep.subr.bf16.mxu0 0
        %633 = vmatpush2.bf16.msra.mxu0 0
        %634 = vmatprep.subr.bf16.mxu0 0
        %635 = vmatpush2.bf16.msra.mxu0 0
        %636 = vmatprep.subr.bf16.mxu0 0
        %637 = vmatpush2.bf16.msra.mxu0 0
        %638 = vmatprep.subr.bf16.mxu0 0
        %639 = vmatpush2.bf16.msra.mxu0 0
        %640 = vmatprep.mubr.bf16.mxu0 0
        %641 = vmatmul.mubr.bf16.gmra.mxu0 %v606
        %v642 = vpop.f32.mrf.mxu0
        %v643 = vadd.f32 0.0, %v642
        %v644 = vpop.f32.mrf.mxu0
        %v645 = vpop.f32.mrf.mxu0
        %v646 = vpop.f32.mrf.mxu0
        %647 = vdwg.mxu0
        %v648 = vadd.f32 %v576, %v643
        %s649 = sadd.s32 %s217, 1
        %s650 = smul.u32 %s649, 2
        %s651 = smul.addr %s650, 4
        %s652 = scalar_lea.vmem %s203, %s651
        %v653 = vld [vmem:[%s652] sm:$0x3]
        %s654 = scalar_lea.vmem %s1, 96
        %v655 = vld [vmem:[%s654] sm:$0xf]
        %v656 = vld [vmem:[%s654 + $0x4] sm:$0xf]
        %v657 = vld [vmem:[%s654 + $0x8] sm:$0xf]
        %v658 = vld [vmem:[%s654 + $0xc] sm:$0xf]
        %v663 = vunpack.c.l.b16 %v655
        %v664 = vunpack.c.l.b16 %v656
        %v665 = vunpack.c.l.b16 %v657
        %v666 = vunpack.c.l.b16 %v658
        %v667 = vpack.c.b16 %v664, %v663
        %v668 = vpack.c.b16 %v666, %v665
        %v672 = vsel %vm264, %v653, 0
        %674 = vmatprep.subr.bf16.mxu0 0
        %675 = vmatpush1.bf16.msra.mxu0 0
        %676 = vmatprep.subr.bf16.mxu0 0
        %677 = vmatpush1.bf16.msra.mxu0 0
        %678 = vmatprep.subr.bf16.mxu0 0
        %679 = vmatpush1.bf16.msra.mxu0 0
        %680 = vmatprep.subr.bf16.mxu0 0
        %681 = vmatpush1.bf16.msra.mxu0 0
        %682 = vmatprep.subr.bf16.mxu0 0
        %683 = vmatpush1.bf16.msra.mxu0 0
        %684 = vmatprep.subr.bf16.mxu0 0
        %685 = vmatpush1.bf16.msra.mxu0 0
        %686 = vmatprep.subr.bf16.mxu0 0
        %687 = vmatpush1.bf16.msra.mxu0 %v668
        %688 = vmatprep.subr.bf16.mxu0 0
        %689 = vmatpush1.bf16.msra.mxu0 %v667
        %690 = vmatprep.subr.bf16.mxu0 0
        %691 = vmatpush2.bf16.msra.mxu0 0
        %692 = vmatprep.subr.bf16.mxu0 0
        %693 = vmatpush2.bf16.msra.mxu0 0
        %694 = vmatprep.subr.bf16.mxu0 0
        %695 = vmatpush2.bf16.msra.mxu0 0
        %696 = vmatprep.subr.bf16.mxu0 0
        %697 = vmatpush2.bf16.msra.mxu0 0
        %698 = vmatprep.subr.bf16.mxu0 0
        %699 = vmatpush2.bf16.msra.mxu0 0
        %700 = vmatprep.subr.bf16.mxu0 0
        %701 = vmatpush2.bf16.msra.mxu0 0
        %702 = vmatprep.subr.bf16.mxu0 0
        %703 = vmatpush2.bf16.msra.mxu0 0
        %704 = vmatprep.subr.bf16.mxu0 0
        %705 = vmatpush2.bf16.msra.mxu0 0
        %706 = vmatprep.mubr.bf16.mxu0 0
        %707 = vmatmul.mubr.bf16.gmra.mxu0 %v672
        %v708 = vpop.f32.mrf.mxu0
        %v709 = vadd.f32 0.0, %v708
        %v710 = vpop.f32.mrf.mxu0
        %v711 = vpop.f32.mrf.mxu0
        %v712 = vpop.f32.mrf.mxu0
        %713 = vdwg.mxu0
        %v714 = vadd.f32 %v648, %v709
        %v715 = vld [vmem:[%s652] sm:$0xc]
        %v716 = vld [vmem:[%s652 + $0x4] sm:$0x1]
        %s717 = scalar_lea.vmem %s1, 112
        %v718 = vld [vmem:[%s717] sm:$0xf]
        %v719 = vld [vmem:[%s717 + $0x4] sm:$0xf]
        %v720 = vld [vmem:[%s717 + $0x8] sm:$0xf]
        %v721 = vld [vmem:[%s717 + $0xc] sm:$0xf]
        %v724 = vunpack.c.l.b16 %v715
        %v725 = vunpack.c.l.b16 %v716
        %v726 = vpack.c.b16 %v725, %v724
        %v728 = vshrl.u32 %v726, 16
        %v730 = vrot.slane %v728, 2
        %v731 = vshll.u32 %v726, 16
        %v733 = vrot.slane %v731, 3
        %v734 = vor.u32 %v730, %v733
        %v739 = vunpack.c.l.b16 %v718
        %v740 = vunpack.c.l.b16 %v719
        %v741 = vunpack.c.l.b16 %v720
        %v742 = vunpack.c.l.b16 %v721
        %v743 = vpack.c.b16 %v740, %v739
        %v744 = vpack.c.b16 %v742, %v741
        %v748 = vsel %vm264, %v734, 0
        %750 = vmatprep.subr.bf16.mxu0 0
        %751 = vmatpush1.bf16.msra.mxu0 0
        %752 = vmatprep.subr.bf16.mxu0 0
        %753 = vmatpush1.bf16.msra.mxu0 0
        %754 = vmatprep.subr.bf16.mxu0 0
        %755 = vmatpush1.bf16.msra.mxu0 0
        %756 = vmatprep.subr.bf16.mxu0 0
        %757 = vmatpush1.bf16.msra.mxu0 0
        %758 = vmatprep.subr.bf16.mxu0 0
        %759 = vmatpush1.bf16.msra.mxu0 0
        %760 = vmatprep.subr.bf16.mxu0 0
        %761 = vmatpush1.bf16.msra.mxu0 0
        %762 = vmatprep.subr.bf16.mxu0 0
        %763 = vmatpush1.bf16.msra.mxu0 %v744
        %764 = vmatprep.subr.bf16.mxu0 0
        %765 = vmatpush1.bf16.msra.mxu0 %v743
        %766 = vmatprep.subr.bf16.mxu0 0
        %767 = vmatpush2.bf16.msra.mxu0 0
        %768 = vmatprep.subr.bf16.mxu0 0
        %769 = vmatpush2.bf16.msra.mxu0 0
        %770 = vmatprep.subr.bf16.mxu0 0
        %771 = vmatpush2.bf16.msra.mxu0 0
        %772 = vmatprep.subr.bf16.mxu0 0
        %773 = vmatpush2.bf16.msra.mxu0 0
        %774 = vmatprep.subr.bf16.mxu0 0
        %775 = vmatpush2.bf16.msra.mxu0 0
        %776 = vmatprep.subr.bf16.mxu0 0
        %777 = vmatpush2.bf16.msra.mxu0 0
        %778 = vmatprep.subr.bf16.mxu0 0
        %779 = vmatpush2.bf16.msra.mxu0 0
        %780 = vmatprep.subr.bf16.mxu0 0
        %781 = vmatpush2.bf16.msra.mxu0 0
        %782 = vmatprep.mubr.bf16.mxu0 0
        %783 = vmatmul.mubr.bf16.gmra.mxu0 %v748
        %v784 = vpop.f32.mrf.mxu0
        %v785 = vadd.f32 0.0, %v784
        %v786 = vpop.f32.mrf.mxu0
        %v787 = vpop.f32.mrf.mxu0
        %v788 = vpop.f32.mrf.mxu0
        %789 = vdwg.mxu0
        %v790 = vadd.f32 %v714, %v785
        %v791 = vld [vmem:[%s652] sm:$0x7]
        %s792 = scalar_lea.vmem %s1, 128
        %v793 = vld [vmem:[%s792] sm:$0xf]
        %v794 = vld [vmem:[%s792 + $0x4] sm:$0xf]
        %v795 = vld [vmem:[%s792 + $0x8] sm:$0xf]
        %v796 = vld [vmem:[%s792 + $0xc] sm:$0xf]
        %v798 = vunpack.c.l.b16 %v791
        %v799 = vpack.c.b16 %v798, %v798
        %v801 = vshrl.u32 %v799, 16
        %v803 = vshll.u32 %v799, 16
        %v805 = vrot.slane %v803, 1
        %v806 = vor.u32 %v801, %v805
        %v811 = vunpack.c.l.b16 %v793
        %v812 = vunpack.c.l.b16 %v794
        %v813 = vunpack.c.l.b16 %v795
        %v814 = vunpack.c.l.b16 %v796
        %v815 = vpack.c.b16 %v812, %v811
        %v816 = vpack.c.b16 %v814, %v813
        %v820 = vsel %vm264, %v806, 0
        %822 = vmatprep.subr.bf16.mxu0 0
        %823 = vmatpush1.bf16.msra.mxu0 0
        %824 = vmatprep.subr.bf16.mxu0 0
        %825 = vmatpush1.bf16.msra.mxu0 0
        %826 = vmatprep.subr.bf16.mxu0 0
        %827 = vmatpush1.bf16.msra.mxu0 0
        %828 = vmatprep.subr.bf16.mxu0 0
        %829 = vmatpush1.bf16.msra.mxu0 0
        %830 = vmatprep.subr.bf16.mxu0 0
        %831 = vmatpush1.bf16.msra.mxu0 0
        %832 = vmatprep.subr.bf16.mxu0 0
        %833 = vmatpush1.bf16.msra.mxu0 0
        %834 = vmatprep.subr.bf16.mxu0 0
        %835 = vmatpush1.bf16.msra.mxu0 %v816
        %836 = vmatprep.subr.bf16.mxu0 0
        %837 = vmatpush1.bf16.msra.mxu0 %v815
        %838 = vmatprep.subr.bf16.mxu0 0
        %839 = vmatpush2.bf16.msra.mxu0 0
        %840 = vmatprep.subr.bf16.mxu0 0
        %841 = vmatpush2.bf16.msra.mxu0 0
        %842 = vmatprep.subr.bf16.mxu0 0
        %843 = vmatpush2.bf16.msra.mxu0 0
        %844 = vmatprep.subr.bf16.mxu0 0
        %845 = vmatpush2.bf16.msra.mxu0 0
        %846 = vmatprep.subr.bf16.mxu0 0
        %847 = vmatpush2.bf16.msra.mxu0 0
        %848 = vmatprep.subr.bf16.mxu0 0
        %849 = vmatpush2.bf16.msra.mxu0 0
        %850 = vmatprep.subr.bf16.mxu0 0
        %851 = vmatpush2.bf16.msra.mxu0 0
        %852 = vmatprep.subr.bf16.mxu0 0
        %853 = vmatpush2.bf16.msra.mxu0 0
        %854 = vmatprep.mubr.bf16.mxu0 0
        %855 = vmatmul.mubr.bf16.gmra.mxu0 %v820
        %v856 = vpop.f32.mrf.mxu0
        %v857 = vadd.f32 0.0, %v856
        %v858 = vpop.f32.mrf.mxu0
        %v859 = vpop.f32.mrf.mxu0
        %v860 = vpop.f32.mrf.mxu0
        %861 = vdwg.mxu0
        %v862 = vadd.f32 %v790, %v857
        %v863 = vpack.c.bf16 %v862, %v862
        %s864 = smul.addr %s217, 2
        %s865 = scalar_lea.vmem %s208, %s864
        %vm866 = vcmask 254976
        %867 = vst.msk [vmem:[%s865] sm:$0x3] %vm866, %v863
        %vm868 = vcmask 257024
        %v869 = vsel %vm868, %v862, 0.0
        %v870 = vrot.slane %v869, 4
        %v871 = vadd.f32 %v869, %v870
        %v872 = vrot.slane %v871, 2
        %v873 = vadd.f32 %v871, %v872
        %v874 = vrot.slane %v873, 1
        %v875 = vadd.f32 %v873, %v874
        %v876 = vadd.f32 %v222, %v875
        %v877 = vmul.f32 %v862, %v862
        %v878 = vsel %vm868, %v877, 0.0
        %v879 = vrot.slane %v878, 4
        %v880 = vadd.f32 %v878, %v879
        %v881 = vrot.slane %v880, 2
        %v882 = vadd.f32 %v880, %v881
        %v883 = vrot.slane %v882, 1
        %v884 = vadd.f32 %v882, %v883
        %v885 = vadd.f32 %v223, %v884
      $region33: #{_lambda_.12} parent=27 // loop_footer
        %s221 = sadd.s32 1, %s217
      $region34: #{_lambda_.12} parent=27 // loop_footer_branch
        %216 = sbr.rel target = $region30
      $region35: #{_lambda_.12} parent=27 // loop_exit
        _
      %vm886 = vcmask 253952
      %887 = vst.msk [vmem:[%s211] sm:$0x1] %vm886, %v222
      %888 = vst.msk [vmem:[%s214] sm:$0x1] %vm886, %v223
      %p889 = scmp.lt.s32.totalorder %s16, 1
      %s890 = scalar_select %p889, %s16, 1
      %s891 = smul.addr %s890, 4
      %s892 = smul.addr %s891, 2
      %s893 = scalar_lea.vmem %s2, %s892
      %p894 = scmp.lt.s32.totalorder %s16, 1
      %s895 = scalar_select %p894, %s16, 1
      %s896 = scalar_lea.vmem %s3, %s895
      %p897 = scmp.lt.s32.totalorder %s16, 1
      %s898 = scalar_select %p897, %s16, 1
      %s899 = scalar_lea.vmem %s4, %s898
      // Predicated region
      $region36: #{_lambda_.12} parent=27 // pred_check
        %p900 = pneg %p81
      $region37: #{_lambda_.12} parent=27 // pred_check_branch
        %902 = sbr.rel (%p900) target = $region39
      $region38: #{_lambda_.12} parent=27 // pred_region
        _
      $region39: #{_lambda_.12} parent=27 // pred_fallthru
        _
      // Predicated region
      $region40: #{_lambda_.12} parent=27 // pred_check
        %p903 = pneg %p107
      $region41: #{_lambda_.12} parent=27 // pred_check_branch
        %905 = sbr.rel (%p903) target = $region43
      $region42: #{_lambda_.12} parent=27 // pred_region
        _
      $region43: #{_lambda_.12} parent=27 // pred_fallthru
        _
      // Predicated region
      $region44: #{_lambda_.12} parent=27 // pred_check
        %p906 = pneg %p133
      $region45: #{_lambda_.12} parent=27 // pred_check_branch
        %908 = sbr.rel (%p906) target = $region47
      $region46: #{_lambda_.12} parent=27 // pred_region
        _
      $region47: #{_lambda_.12} parent=27 // pred_fallthru
        _
    $region28: #{_lambda_.12} parent=5 // pred_fallthru
      _
    %p909 = scmp.le.s32.totalorder 2, %s11
    // Predicated region
    $region48: #{_lambda_.12} parent=5 // pred_check
      %p910 = pneg %p909
    $region49: #{_lambda_.12} parent=5 // pred_check_branch
      %912 = sbr.rel (%p910) target = $region51
    $region50: #{_lambda_.12} parent=5 // pred_region
      %s913 = ssub.s32 %s11, 2
      // Predicated region
      $region52: #{_lambda_.12} parent=50 // pred_check
        %p914 = pneg %p87
      $region53: #{_lambda_.12} parent=50 // pred_check_branch
        %916 = sbr.rel (%p914) target = $region55
      $region54: #{_lambda_.12} parent=50 // pred_region
        %p917 = scmp.lt.s32.totalorder %s17, 1
        %s918 = scalar_select %p917, %s17, 1
        %s919 = smul.addr %s918, 4
        %s920 = smul.addr %s919, 2
        %s921 = scalar_lea.vmem %s2, %s920
      $region55: #{_lambda_.12} parent=50 // pred_fallthru
        _
      // Predicated region
      $region56: #{_lambda_.12} parent=50 // pred_check
        %p922 = pneg %p113
      $region57: #{_lambda_.12} parent=50 // pred_check_branch
        %924 = sbr.rel (%p922) target = $region59
      $region58: #{_lambda_.12} parent=50 // pred_region
        %p925 = scmp.lt.s32.totalorder %s17, 1
        %s926 = scalar_select %p925, %s17, 1
        %s927 = scalar_lea.vmem %s3, %s926
      $region59: #{_lambda_.12} parent=50 // pred_fallthru
        _
      // Predicated region
      $region60: #{_lambda_.12} parent=50 // pred_check
        %p928 = pneg %p139
      $region61: #{_lambda_.12} parent=50 // pred_check_branch
        %930 = sbr.rel (%p928) target = $region63
      $region62: #{_lambda_.12} parent=50 // pred_region
        %p931 = scmp.lt.s32.totalorder %s17, 1
        %s932 = scalar_select %p931, %s17, 1
        %s933 = scalar_lea.vmem %s4, %s932
      $region63: #{_lambda_.12} parent=50 // pred_fallthru
        _
    $region51: #{_lambda_.12} parent=5 // pred_fallthru
      _
  $region6: #{_lambda_.12} parent=0 // loop_footer
    %s15 = sadd.s32 1, %s11
  $region7: #{_lambda_.12} parent=0 // loop_footer_branch
    %10 = sbr.rel target = $region3
  $region8: #{_lambda_.12} parent=0 // loop_exit
    _

// kernel: _lambda_.13
$region0: #{_lambda_.13}
  #allocation0 [shape = 'u32[]', space=smem, size = 0x4, offset = 0x4, fixed_abs, tag = 'smem constant byte address 0x4 - core index']
  #allocation1 [shape = 'u32[144,128]{1,0:T(1,128)}', space=vmem, size = 0x12000, scoped, tag = 'internal scratch']
  %s0 = inlined_call_operand.vmem [shape: bf16[2,6,6,32], index: 0, kind: input, shape index: {}]
  %s1 = inlined_call_operand.vmem [shape: bf16[9,32,64], index: 1, kind: input, shape index: {}]
  %s2 = inlined_call_operand.vmem [shape: bf16[2,4,4,64], index: 2, kind: output, shape index: {0}]
  %s3 = inlined_call_operand.vmem [shape: f32[2,1,64], index: 3, kind: output, shape index: {1}]
  %s4 = inlined_call_operand.vmem [shape: f32[2,1,64], index: 4, kind: output, shape index: {2}]
  %5 = xla_tuple %s2, %s3, %s4
  %s6 = sld [smem:[#allocation0]]
  $region64: #{_lambda_.13} parent=0
    _
  %s8 = ssub.s32 1, %s6
  %s9 = scalar_select 0, %s8, %s6
  loop: start=0, step=1, limit=4
  $region2: #{_lambda_.13} parent=0 // loop_pre_header
    _
  $region3: #{_lambda_.13} parent=0 // loop_header
    %s11 = sphi 0, %s15
    %p12 = scmp.ge.s32.totalorder %s11, 4
    %s21 = sphi 0, %s23
    %s24 = sphi 0, %s21
    %s25 = sphi 0, %s24
    %s41 = sphi 0, %s25
    %s45 = sphi 0, %s45
    %s47 = sphi 0, %s45
    %s48 = sphi 0, %s47
    %s62 = sphi 0, %s48
    %s68 = sphi 0, %s70
    %s71 = sphi 0, %s68
    %s72 = sphi 0, %s71
    %s88 = sphi 0, %s72
    %s94 = sphi 0, %s96
    %s97 = sphi 0, %s94
    %s98 = sphi 0, %s97
    %s114 = sphi 0, %s98
    %s120 = sphi 0, %s122
    %s123 = sphi 0, %s120
    %s124 = sphi 0, %s123
    %s140 = sphi 0, %s124
  $region4: #{_lambda_.13} parent=0 // loop_header_branch
    %14 = sbr.rel (%p12) target = $region8
  $region5: #{_lambda_.13} parent=0 // loop_body
    %s16 = ssub.s32 %s11, 1
    %s17 = ssub.s32 %s11, 2
    %s18 = sadd.s32 %s11, 1
    %s19 = ssub.s32 %s11, %s18
    %p20 = scmp.eq.s32.totalorder %s19, 0
    %s22 = sadd.s32 %s21, 1
    %s23 = scalar_select %p20, %s21, %s22
    %p26 = pneg %p20
    %p27 = scmp.eq.s32.totalorder %s11, 1
    %p28 = por %p26, %p27
    %p29 = scmp.ne.s32.totalorder %s21, %s24
    %p30 = scmp.eq.s32.totalorder %s11, 0
    %p31 = por %p29, %p30
    %p32 = scmp.ne.s32.totalorder %s21, %s24
    %p33 = scmp.eq.s32.totalorder %s16, 1
    %p34 = por %p32, %p33
    %p35 = scmp.ne.s32.totalorder %s24, %s25
    %p36 = scmp.eq.s32.totalorder %s16, 0
    %p37 = por %p35, %p36
    %p38 = scmp.ne.s32.totalorder %s24, %s25
    %p39 = scmp.eq.s32.totalorder %s17, 1
    %p40 = por %p38, %p39
    %p42 = scmp.ne.s32.totalorder %s25, %s41
    %p43 = scmp.eq.s32.totalorder %s17, 0
    %p44 = por %p42, %p43
    %s46 = sadd.s32 %s45, 1
    %p49 = scmp.eq.s32.totalorder %s11, 1
    %p50 = scmp.ne.s32.totalorder %s45, %s47
    %p51 = scmp.eq.s32.totalorder %s11, 0
    %p52 = por %p50, %p51
    %p53 = scmp.ne.s32.totalorder %s45, %s47
    %p54 = scmp.eq.s32.totalorder %s16, 1
    %p55 = por %p53, %p54
    %p56 = scmp.ne.s32.totalorder %s47, %s48
    %p57 = scmp.eq.s32.totalorder %s16, 0
    %p58 = por %p56, %p57
    %p59 = scmp.ne.s32.totalorder %s47, %s48
    %p60 = scmp.eq.s32.totalorder %s17, 1
    %p61 = por %p59, %p60
    %p63 = scmp.ne.s32.totalorder %s48, %s62
    %p64 = scmp.eq.s32.totalorder %s17, 0
    %p65 = por %p63, %p64
    %s66 = ssub.s32 %s11, %s18
    %p67 = scmp.eq.s32.totalorder %s66, 0
    %s69 = sadd.s32 %s68, 1
    %s70 = scalar_select %p67, %s68, %s69
    %p73 = pneg %p67
    %p74 = scmp.eq.s32.totalorder %s11, 1
    %p75 = por %p73, %p74
    %p76 = scmp.ne.s32.totalorder %s68, %s71
    %p77 = scmp.eq.s32.totalorder %s11, 0
    %p78 = por %p76, %p77
    %p79 = scmp.ne.s32.totalorder %s68, %s71
    %p80 = scmp.eq.s32.totalorder %s16, 1
    %p81 = por %p79, %p80
    %p82 = scmp.ne.s32.totalorder %s71, %s72
    %p83 = scmp.eq.s32.totalorder %s16, 0
    %p84 = por %p82, %p83
    %p85 = scmp.ne.s32.totalorder %s71, %s72
    %p86 = scmp.eq.s32.totalorder %s17, 1
    %p87 = por %p85, %p86
    %p89 = scmp.ne.s32.totalorder %s72, %s88
    %p90 = scmp.eq.s32.totalorder %s17, 0
    %p91 = por %p89, %p90
    %s92 = ssub.s32 %s11, %s18
    %p93 = scmp.eq.s32.totalorder %s92, 0
    %s95 = sadd.s32 %s94, 1
    %s96 = scalar_select %p93, %s94, %s95
    %p99 = pneg %p93
    %p100 = scmp.eq.s32.totalorder %s11, 1
    %p101 = por %p99, %p100
    %p102 = scmp.ne.s32.totalorder %s94, %s97
    %p103 = scmp.eq.s32.totalorder %s11, 0
    %p104 = por %p102, %p103
    %p105 = scmp.ne.s32.totalorder %s94, %s97
    %p106 = scmp.eq.s32.totalorder %s16, 1
    %p107 = por %p105, %p106
    %p108 = scmp.ne.s32.totalorder %s97, %s98
    %p109 = scmp.eq.s32.totalorder %s16, 0
    %p110 = por %p108, %p109
    %p111 = scmp.ne.s32.totalorder %s97, %s98
    %p112 = scmp.eq.s32.totalorder %s17, 1
    %p113 = por %p111, %p112
    %p115 = scmp.ne.s32.totalorder %s98, %s114
    %p116 = scmp.eq.s32.totalorder %s17, 0
    %p117 = por %p115, %p116
    %s118 = ssub.s32 %s11, %s18
    %p119 = scmp.eq.s32.totalorder %s118, 0
    %s121 = sadd.s32 %s120, 1
    %s122 = scalar_select %p119, %s120, %s121
    %p125 = pneg %p119
    %p126 = scmp.eq.s32.totalorder %s11, 1
    %p127 = por %p125, %p126
    %p128 = scmp.ne.s32.totalorder %s120, %s123
    %p129 = scmp.eq.s32.totalorder %s11, 0
    %p130 = por %p128, %p129
    %p131 = scmp.ne.s32.totalorder %s120, %s123
    %p132 = scmp.eq.s32.totalorder %s16, 1
    %p133 = por %p131, %p132
    %p134 = scmp.ne.s32.totalorder %s123, %s124
    %p135 = scmp.eq.s32.totalorder %s16, 0
    %p136 = por %p134, %p135
    %p137 = scmp.ne.s32.totalorder %s123, %s124
    %p138 = scmp.eq.s32.totalorder %s17, 1
    %p139 = por %p137, %p138
    %p141 = scmp.ne.s32.totalorder %s124, %s140
    %p142 = scmp.eq.s32.totalorder %s17, 0
    %p143 = por %p141, %p142
    %p144 = scmp.le.s32.totalorder 1, %s11
    %p145 = scmp.lt.s32.totalorder %s11, 3
    %p146 = pnand %p144, %p145
    %p147 = pneg %p146
    // Predicated region
    $region9: #{_lambda_.13} parent=5 // pred_check
      _
    $region10: #{_lambda_.13} parent=5 // pred_check_branch
      %149 = sbr.rel (%p146) target = $region12
    $region11: #{_lambda_.13} parent=5 // pred_region
      %s150 = ssub.s32 %s11, 1
      // Predicated region
      $region13: #{_lambda_.13} parent=11 // pred_check
        %p151 = pneg %p58
      $region14: #{_lambda_.13} parent=11 // pred_check_branch
        %153 = sbr.rel (%p151) target = $region16
      $region15: #{_lambda_.13} parent=11 // pred_region
        _
      $region16: #{_lambda_.13} parent=11 // pred_fallthru
        _
    $region12: #{_lambda_.13} parent=5 // pred_fallthru
      _
    %p154 = scmp.lt.s32.totalorder %s11, 2
    // Predicated region
    $region17: #{_lambda_.13} parent=5 // pred_check
      %p155 = pneg %p154
    $region18: #{_lambda_.13} parent=5 // pred_check_branch
      %157 = sbr.rel (%p155) target = $region20
    $region19: #{_lambda_.13} parent=5 // pred_region
      // Predicated region
      $region21: #{_lambda_.13} parent=19 // pred_check
        %p158 = pneg %p31
      $region22: #{_lambda_.13} parent=19 // pred_check_branch
        %160 = sbr.rel (%p158) target = $region24
      $region23: #{_lambda_.13} parent=19 // pred_region
        %p161 = scmp.lt.s32.totalorder %s11, 1
        %s162 = scalar_select %p161, %s11, 1
        %s163 = smul.addr %s162, 6
        %s164 = smul.addr %s163, 4
        %s165 = scalar_lea.vmem %s0, %s164
      $region24: #{_lambda_.13} parent=19 // pred_fallthru
        _
    $region20: #{_lambda_.13} parent=5 // pred_fallthru
      _
    %p166 = scmp.le.s32.totalorder 1, %s11
    %p167 = scmp.lt.s32.totalorder %s11, 3
    %p168 = pnand %p166, %p167
    %p169 = pneg %p168
    // Predicated region
    $region25: #{_lambda_.13} parent=5 // pred_check
      _
    $region26: #{_lambda_.13} parent=5 // pred_check_branch
      %171 = sbr.rel (%p168) target = $region28
    $region27: #{_lambda_.13} parent=5 // pred_region
      %s172 = ssub.s32 %s11, 1
      %p173 = scmp.lt.s32.totalorder %s16, 1
      %s174 = scalar_select %p173, %s16, 1
      %s175 = smul.addr %s174, 6
      %s176 = smul.addr %s175, 4
      %s177 = scalar_lea.vmem %s0, %s176
      %p178 = pneg %p37
      %p179 = pneg %p34
      %p180 = pneg %p58
      %p181 = pneg %p55
      %p182 = pneg %p84
      %p183 = pneg %p81
      %p184 = scmp.lt.s32.totalorder %s16, 1
      %s185 = scalar_select %p184, %s16, 1
      %s186 = smul.addr %s185, 4
      %s187 = smul.addr %s186, 2
      %s188 = scalar_lea.vmem %s2, %s187
      %p189 = pneg %p110
      %p190 = pneg %p107
      %p191 = scmp.lt.s32.totalorder %s16, 1
      %s192 = scalar_select %p191, %s16, 1
      %s193 = scalar_lea.vmem %s3, %s192
      %p194 = pneg %p136
      %p195 = pneg %p133
      %p196 = scmp.lt.s32.totalorder %s16, 1
      %s197 = scalar_select %p196, %s16, 1
      %s198 = scalar_lea.vmem %s4, %s197
      %p199 = scmp.lt.s32.totalorder %s16, 1
      %s200 = scalar_select %p199, %s16, 1
      %s201 = smul.addr %s200, 6
      %s202 = smul.addr %s201, 4
      %s203 = scalar_lea.vmem %s0, %s202
      %p204 = scmp.lt.s32.totalorder %s16, 1
      %s205 = scalar_select %p204, %s16, 1
      %s206 = smul.addr %s205, 4
      %s207 = smul.addr %s206, 2
      %s208 = scalar_lea.vmem %s2, %s207
      %p209 = scmp.lt.s32.totalorder %s16, 1
      %s210 = scalar_select %p209, %s16, 1
      %s211 = scalar_lea.vmem %s3, %s210
      %p212 = scmp.lt.s32.totalorder %s16, 1
      %s213 = scalar_select %p212, %s16, 1
      %s214 = scalar_lea.vmem %s4, %s213
      loop: start=0, step=1, limit=4
      $region29: #{_lambda_.13} parent=27 // loop_pre_header
        _
      $region30: #{_lambda_.13} parent=27 // loop_header
        %s217 = sphi 0, %s221
        %p218 = scmp.ge.s32.totalorder %s217, 4
        %v222 = vphi 0.0, %v843
        %v223 = vphi 0.0, %v852
      $region31: #{_lambda_.13} parent=27 // loop_header_branch
        %220 = sbr.rel (%p218) target = $region35
      $region32: #{_lambda_.13} parent=27 // loop_body
        %s224 = smul.addr %s217, 4
        %s225 = scalar_lea.vmem %s203, %s224
        %v226 = vld [vmem:[%s225] sm:$0x3]
        %v227 = vld [vmem:[%s1] sm:$0xf]
        %v228 = vld [vmem:[%s1 + $0x4] sm:$0xf]
        %v229 = vld [vmem:[%s1 + $0x8] sm:$0xf]
        %v230 = vld [vmem:[%s1 + $0xc] sm:$0xf]
        %v231 = vld [vmem:[%s225] sm:$0x7]
        %s232 = scalar_lea.vmem %s1, 16
        %v233 = vld [vmem:[%s232] sm:$0xf]
        %v234 = vld [vmem:[%s232 + $0x4] sm:$0xf]
        %v235 = vld [vmem:[%s232 + $0x8] sm:$0xf]
        %v236 = vld [vmem:[%s232 + $0xc] sm:$0xf]
        %v238 = vunpack.c.l.b16 %v231
        %v239 = vpack.c.b16 %v238, %v238
        %v241 = vshrl.u32 %v239, 16
        %v243 = vshll.u32 %v239, 16
        %v245 = vrot.slane %v243, 1
        %v246 = vor.u32 %v241, %v245
        %v251 = vunpack.c.l.b16 %v233
        %v252 = vunpack.c.l.b16 %v234
        %v253 = vunpack.c.l.b16 %v235
        %v254 = vunpack.c.l.b16 %v236
        %v255 = vpack.c.b16 %v252, %v251
        %v256 = vpack.c.b16 %v254, %v253
        %vm259 = vcmask 261120
        %v261 = vsel %vm259, %v246, 0
        %263 = vmatprep.subr.bf16.mxu0 0
        %264 = vmatpush1.bf16.msra.mxu0 0
        %265 = vmatprep.subr.bf16.mxu0 0
        %266 = vmatpush1.bf16.msra.mxu0 0
        %267 = vmatprep.subr.bf16.mxu0 0
        %268 = vmatpush1.bf16.msra.mxu0 0
        %269 = vmatprep.subr.bf16.mxu0 0
        %270 = vmatpush1.bf16.msra.mxu0 0
        %271 = vmatprep.subr.bf16.mxu0 0
        %272 = vmatpush1.bf16.msra.mxu0 0
        %273 = vmatprep.subr.bf16.mxu0 0
        %274 = vmatpush1.bf16.msra.mxu0 0
        %275 = vmatprep.subr.bf16.mxu0 0
        %276 = vmatpush1.bf16.msra.mxu0 %v256
        %277 = vmatprep.subr.bf16.mxu0 0
        %278 = vmatpush1.bf16.msra.mxu0 %v255
        %279 = vmatprep.subr.bf16.mxu0 0
        %280 = vmatpush2.bf16.msra.mxu0 0
        %281 = vmatprep.subr.bf16.mxu0 0
        %282 = vmatpush2.bf16.msra.mxu0 0
        %283 = vmatprep.subr.bf16.mxu0 0
        %284 = vmatpush2.bf16.msra.mxu0 0
        %285 = vmatprep.subr.bf16.mxu0 0
        %286 = vmatpush2.bf16.msra.mxu0 0
        %287 = vmatprep.subr.bf16.mxu0 0
        %288 = vmatpush2.bf16.msra.mxu0 0
        %289 = vmatprep.subr.bf16.mxu0 0
        %290 = vmatpush2.bf16.msra.mxu0 0
        %291 = vmatprep.subr.bf16.mxu0 0
        %292 = vmatpush2.bf16.msra.mxu0 0
        %293 = vmatprep.subr.bf16.mxu0 0
        %294 = vmatpush2.bf16.msra.mxu0 0
        %295 = vmatprep.mubr.bf16.mxu0 0
        %296 = vmatmul.mubr.bf16.gmra.mxu0 %v261
        %v297 = vpop.f32.mrf.mxu0
        %v298 = vadd.f32 0.0, %v297
        %v299 = vpop.f32.mrf.mxu0
        %v300 = vpop.f32.mrf.mxu0
        %v301 = vpop.f32.mrf.mxu0
        %302 = vdwg.mxu0
        %v307 = vunpack.c.l.b16 %v227
        %v308 = vunpack.c.l.b16 %v228
        %v309 = vunpack.c.l.b16 %v229
        %v310 = vunpack.c.l.b16 %v230
        %v311 = vpack.c.b16 %v308, %v307
        %v312 = vpack.c.b16 %v310, %v309
        %v316 = vsel %vm259, %v226, 0
        %318 = vmatprep.subr.bf16.mxu0 0
        %319 = vmatpush1.bf16.msra.mxu0 0
        %320 = vmatprep.subr.bf16.mxu0 0
        %321 = vmatpush1.bf16.msra.mxu0 0
        %322 = vmatprep.subr.bf16.mxu0 0
        %323 = vmatpush1.bf16.msra.mxu0 0
        %324 = vmatprep.subr.bf16.mxu0 0
        %325 = vmatpush1.bf16.msra.mxu0 0
        %326 = vmatprep.subr.bf16.mxu0 0
        %327 = vmatpush1.bf16.msra.mxu0 0
        %328 = vmatprep.subr.bf16.mxu0 0
        %329 = vmatpush1.bf16.msra.mxu0 0
        %330 = vmatprep.subr.bf16.mxu0 0
        %331 = vmatpush1.bf16.msra.mxu0 %v312
        %332 = vmatprep.subr.bf16.mxu0 0
        %333 = vmatpush1.bf16.msra.mxu0 %v311
        %334 = vmatprep.subr.bf16.mxu0 0
        %335 = vmatpush2.bf16.msra.mxu0 0
        %336 = vmatprep.subr.bf16.mxu0 0
        %337 = vmatpush2.bf16.msra.mxu0 0
        %338 = vmatprep.subr.bf16.mxu0 0
        %339 = vmatpush2.bf16.msra.mxu0 0
        %340 = vmatprep.subr.bf16.mxu0 0
        %341 = vmatpush2.bf16.msra.mxu0 0
        %342 = vmatprep.subr.bf16.mxu0 0
        %343 = vmatpush2.bf16.msra.mxu0 0
        %344 = vmatprep.subr.bf16.mxu0 0
        %345 = vmatpush2.bf16.msra.mxu0 0
        %346 = vmatprep.subr.bf16.mxu0 0
        %347 = vmatpush2.bf16.msra.mxu0 0
        %348 = vmatprep.subr.bf16.mxu0 0
        %349 = vmatpush2.bf16.msra.mxu0 0
        %350 = vmatprep.mubr.bf16.mxu0 0
        %351 = vmatmul.mubr.bf16.gmra.mxu0 %v316
        %v352 = vpop.f32.mrf.mxu0
        %v353 = vadd.f32 %v298, %v352
        %v354 = vpop.f32.mrf.mxu0
        %v355 = vpop.f32.mrf.mxu0
        %v356 = vpop.f32.mrf.mxu0
        %357 = vdwg.mxu0
        %v358 = vld [vmem:[%s225] sm:$0x6]
        %s359 = scalar_lea.vmem %s1, 32
        %v360 = vld [vmem:[%s359] sm:$0xf]
        %v361 = vld [vmem:[%s359 + $0x4] sm:$0xf]
        %v362 = vld [vmem:[%s359 + $0x8] sm:$0xf]
        %v363 = vld [vmem:[%s359 + $0xc] sm:$0xf]
        %v365 = vunpack.c.l.b16 %v358
        %v366 = vpack.c.b16 %v365, %v365
        %v367 = vrot.slane %v366, 1
        %v372 = vunpack.c.l.b16 %v360
        %v373 = vunpack.c.l.b16 %v361
        %v374 = vunpack.c.l.b16 %v362
        %v375 = vunpack.c.l.b16 %v363
        %v376 = vpack.c.b16 %v373, %v372
        %v377 = vpack.c.b16 %v375, %v374
        %v381 = vsel %vm259, %v367, 0
        %383 = vmatprep.subr.bf16.mxu0 0
        %384 = vmatpush1.bf16.msra.mxu0 0
        %385 = vmatprep.subr.bf16.mxu0 0
        %386 = vmatpush1.bf16.msra.mxu0 0
        %387 = vmatprep.subr.bf16.mxu0 0
        %388 = vmatpush1.bf16.msra.mxu0 0
        %389 = vmatprep.subr.bf16.mxu0 0
        %390 = vmatpush1.bf16.msra.mxu0 0
        %391 = vmatprep.subr.bf16.mxu0 0
        %392 = vmatpush1.bf16.msra.mxu0 0
        %393 = vmatprep.subr.bf16.mxu0 0
        %394 = vmatpush1.bf16.msra.mxu0 0
        %395 = vmatprep.subr.bf16.mxu0 0
        %396 = vmatpush1.bf16.msra.mxu0 %v377
        %397 = vmatprep.subr.bf16.mxu0 0
        %398 = vmatpush1.bf16.msra.mxu0 %v376
        %399 = vmatprep.subr.bf16.mxu0 0
        %400 = vmatpush2.bf16.msra.mxu0 0
        %401 = vmatprep.subr.bf16.mxu0 0
        %402 = vmatpush2.bf16.msra.mxu0 0
        %403 = vmatprep.subr.bf16.mxu0 0
        %404 = vmatpush2.bf16.msra.mxu0 0
        %405 = vmatprep.subr.bf16.mxu0 0
        %406 = vmatpush2.bf16.msra.mxu0 0
        %407 = vmatprep.subr.bf16.mxu0 0
        %408 = vmatpush2.bf16.msra.mxu0 0
        %409 = vmatprep.subr.bf16.mxu0 0
        %410 = vmatpush2.bf16.msra.mxu0 0
        %411 = vmatprep.subr.bf16.mxu0 0
        %412 = vmatpush2.bf16.msra.mxu0 0
        %413 = vmatprep.subr.bf16.mxu0 0
        %414 = vmatpush2.bf16.msra.mxu0 0
        %415 = vmatprep.mubr.bf16.mxu0 0
        %416 = vmatmul.mubr.bf16.gmra.mxu0 %v381
        %v417 = vpop.f32.mrf.mxu0
        %v418 = vadd.f32 0.0, %v417
        %v419 = vpop.f32.mrf.mxu0
        %v420 = vpop.f32.mrf.mxu0
        %v421 = vpop.f32.mrf.mxu0
        %422 = vdwg.mxu0
        %v423 = vadd.f32 %v353, %v418
        %s424 = sadd.s32 %s217, 1
        %s425 = smul.addr %s424, 4
        %s426 = scalar_lea.vmem %s203, %s425
        %v427 = vld [vmem:[%s426] sm:$0x3]
        %s428 = scalar_lea.vmem %s1, 48
        %v429 = vld [vmem:[%s428] sm:$0xf]
        %v430 = vld [vmem:[%s428 + $0x4] sm:$0xf]
        %v431 = vld [vmem:[%s428 + $0x8] sm:$0xf]
        %v432 = vld [vmem:[%s428 + $0xc] sm:$0xf]
        %v437 = vunpack.c.l.b16 %v429
        %v438 = vunpack.c.l.b16 %v430
        %v439 = vunpack.c.l.b16 %v431
        %v440 = vunpack.c.l.b16 %v432
        %v441 = vpack.c.b16 %v438, %v437
        %v442 = vpack.c.b16 %v440, %v439
        %v446 = vsel %vm259, %v427, 0
        %448 = vmatprep.subr.bf16.mxu0 0
        %449 = vmatpush1.bf16.msra.mxu0 0
        %450 = vmatprep.subr.bf16.mxu0 0
        %451 = vmatpush1.bf16.msra.mxu0 0
        %452 = vmatprep.subr.bf16.mxu0 0
        %453 = vmatpush1.bf16.msra.mxu0 0
        %454 = vmatprep.subr.bf16.mxu0 0
        %455 = vmatpush1.bf16.msra.mxu0 0
        %456 = vmatprep.subr.bf16.mxu0 0
        %457 = vmatpush1.bf16.msra.mxu0 0
        %458 = vmatprep.subr.bf16.mxu0 0
        %459 = vmatpush1.bf16.msra.mxu0 0
        %460 = vmatprep.subr.bf16.mxu0 0
        %461 = vmatpush1.bf16.msra.mxu0 %v442
        %462 = vmatprep.subr.bf16.mxu0 0
        %463 = vmatpush1.bf16.msra.mxu0 %v441
        %464 = vmatprep.subr.bf16.mxu0 0
        %465 = vmatpush2.bf16.msra.mxu0 0
        %466 = vmatprep.subr.bf16.mxu0 0
        %467 = vmatpush2.bf16.msra.mxu0 0
        %468 = vmatprep.subr.bf16.mxu0 0
        %469 = vmatpush2.bf16.msra.mxu0 0
        %470 = vmatprep.subr.bf16.mxu0 0
        %471 = vmatpush2.bf16.msra.mxu0 0
        %472 = vmatprep.subr.bf16.mxu0 0
        %473 = vmatpush2.bf16.msra.mxu0 0
        %474 = vmatprep.subr.bf16.mxu0 0
        %475 = vmatpush2.bf16.msra.mxu0 0
        %476 = vmatprep.subr.bf16.mxu0 0
        %477 = vmatpush2.bf16.msra.mxu0 0
        %478 = vmatprep.subr.bf16.mxu0 0
        %479 = vmatpush2.bf16.msra.mxu0 0
        %480 = vmatprep.mubr.bf16.mxu0 0
        %481 = vmatmul.mubr.bf16.gmra.mxu0 %v446
        %v482 = vpop.f32.mrf.mxu0
        %v483 = vadd.f32 0.0, %v482
        %v484 = vpop.f32.mrf.mxu0
        %v485 = vpop.f32.mrf.mxu0
        %v486 = vpop.f32.mrf.mxu0
        %487 = vdwg.mxu0
        %v488 = vadd.f32 %v423, %v483
        %v489 = vld [vmem:[%s426] sm:$0x7]
        %s490 = scalar_lea.vmem %s1, 64
        %v491 = vld [vmem:[%s490] sm:$0xf]
        %v492 = vld [vmem:[%s490 + $0x4] sm:$0xf]
        %v493 = vld [vmem:[%s490 + $0x8] sm:$0xf]
        %v494 = vld [vmem:[%s490 + $0xc] sm:$0xf]
        %v496 = vunpack.c.l.b16 %v489
        %v497 = vpack.c.b16 %v496, %v496
        %v499 = vshrl.u32 %v497, 16
        %v501 = vshll.u32 %v497, 16
        %v503 = vrot.slane %v501, 1
        %v504 = vor.u32 %v499, %v503
        %v509 = vunpack.c.l.b16 %v491
        %v510 = vunpack.c.l.b16 %v492
        %v511 = vunpack.c.l.b16 %v493
        %v512 = vunpack.c.l.b16 %v494
        %v513 = vpack.c.b16 %v510, %v509
        %v514 = vpack.c.b16 %v512, %v511
        %v518 = vsel %vm259, %v504, 0
        %520 = vmatprep.subr.bf16.mxu0 0
        %521 = vmatpush1.bf16.msra.mxu0 0
        %522 = vmatprep.subr.bf16.mxu0 0
        %523 = vmatpush1.bf16.msra.mxu0 0
        %524 = vmatprep.subr.bf16.mxu0 0
        %525 = vmatpush1.bf16.msra.mxu0 0
        %526 = vmatprep.subr.bf16.mxu0 0
        %527 = vmatpush1.bf16.msra.mxu0 0
        %528 = vmatprep.subr.bf16.mxu0 0
        %529 = vmatpush1.bf16.msra.mxu0 0
        %530 = vmatprep.subr.bf16.mxu0 0
        %531 = vmatpush1.bf16.msra.mxu0 0
        %532 = vmatprep.subr.bf16.mxu0 0
        %533 = vmatpush1.bf16.msra.mxu0 %v514
        %534 = vmatprep.subr.bf16.mxu0 0
        %535 = vmatpush1.bf16.msra.mxu0 %v513
        %536 = vmatprep.subr.bf16.mxu0 0
        %537 = vmatpush2.bf16.msra.mxu0 0
        %538 = vmatprep.subr.bf16.mxu0 0
        %539 = vmatpush2.bf16.msra.mxu0 0
        %540 = vmatprep.subr.bf16.mxu0 0
        %541 = vmatpush2.bf16.msra.mxu0 0
        %542 = vmatprep.subr.bf16.mxu0 0
        %543 = vmatpush2.bf16.msra.mxu0 0
        %544 = vmatprep.subr.bf16.mxu0 0
        %545 = vmatpush2.bf16.msra.mxu0 0
        %546 = vmatprep.subr.bf16.mxu0 0
        %547 = vmatpush2.bf16.msra.mxu0 0
        %548 = vmatprep.subr.bf16.mxu0 0
        %549 = vmatpush2.bf16.msra.mxu0 0
        %550 = vmatprep.subr.bf16.mxu0 0
        %551 = vmatpush2.bf16.msra.mxu0 0
        %552 = vmatprep.mubr.bf16.mxu0 0
        %553 = vmatmul.mubr.bf16.gmra.mxu0 %v518
        %v554 = vpop.f32.mrf.mxu0
        %v555 = vadd.f32 0.0, %v554
        %v556 = vpop.f32.mrf.mxu0
        %v557 = vpop.f32.mrf.mxu0
        %v558 = vpop.f32.mrf.mxu0
        %559 = vdwg.mxu0
        %v560 = vadd.f32 %v488, %v555
        %v561 = vld [vmem:[%s426] sm:$0x6]
        %s562 = scalar_lea.vmem %s1, 80
        %v563 = vld [vmem:[%s562] sm:$0xf]
        %v564 = vld [vmem:[%s562 + $0x4] sm:$0xf]
        %v565 = vld [vmem:[%s562 + $0x8] sm:$0xf]
        %v566 = vld [vmem:[%s562 + $0xc] sm:$0xf]
        %v568 = vunpack.c.l.b16 %v561
        %v569 = vpack.c.b16 %v568, %v568
        %v570 = vrot.slane %v569, 1
        %v575 = vunpack.c.l.b16 %v563
        %v576 = vunpack.c.l.b16 %v564
        %v577 = vunpack.c.l.b16 %v565
        %v578 = vunpack.c.l.b16 %v566
        %v579 = vpack.c.b16 %v576, %v575
        %v580 = vpack.c.b16 %v578, %v577
        %v584 = vsel %vm259, %v570, 0
        %586 = vmatprep.subr.bf16.mxu0 0
        %587 = vmatpush1.bf16.msra.mxu0 0
        %588 = vmatprep.subr.bf16.mxu0 0
        %589 = vmatpush1.bf16.msra.mxu0 0
        %590 = vmatprep.subr.bf16.mxu0 0
        %591 = vmatpush1.bf16.msra.mxu0 0
        %592 = vmatprep.subr.bf16.mxu0 0
        %593 = vmatpush1.bf16.msra.mxu0 0
        %594 = vmatprep.subr.bf16.mxu0 0
        %595 = vmatpush1.bf16.msra.mxu0 0
        %596 = vmatprep.subr.bf16.mxu0 0
        %597 = vmatpush1.bf16.msra.mxu0 0
        %598 = vmatprep.subr.bf16.mxu0 0
        %599 = vmatpush1.bf16.msra.mxu0 %v580
        %600 = vmatprep.subr.bf16.mxu0 0
        %601 = vmatpush1.bf16.msra.mxu0 %v579
        %602 = vmatprep.subr.bf16.mxu0 0
        %603 = vmatpush2.bf16.msra.mxu0 0
        %604 = vmatprep.subr.bf16.mxu0 0
        %605 = vmatpush2.bf16.msra.mxu0 0
        %606 = vmatprep.subr.bf16.mxu0 0
        %607 = vmatpush2.bf16.msra.mxu0 0
        %608 = vmatprep.subr.bf16.mxu0 0
        %609 = vmatpush2.bf16.msra.mxu0 0
        %610 = vmatprep.subr.bf16.mxu0 0
        %611 = vmatpush2.bf16.msra.mxu0 0
        %612 = vmatprep.subr.bf16.mxu0 0
        %613 = vmatpush2.bf16.msra.mxu0 0
        %614 = vmatprep.subr.bf16.mxu0 0
        %615 = vmatpush2.bf16.msra.mxu0 0
        %616 = vmatprep.subr.bf16.mxu0 0
        %617 = vmatpush2.bf16.msra.mxu0 0
        %618 = vmatprep.mubr.bf16.mxu0 0
        %619 = vmatmul.mubr.bf16.gmra.mxu0 %v584
        %v620 = vpop.f32.mrf.mxu0
        %v621 = vadd.f32 0.0, %v620
        %v622 = vpop.f32.mrf.mxu0
        %v623 = vpop.f32.mrf.mxu0
        %v624 = vpop.f32.mrf.mxu0
        %625 = vdwg.mxu0
        %v626 = vadd.f32 %v560, %v621
        %s627 = sadd.s32 %s217, 2
        %s628 = smul.addr %s627, 4
        %s629 = scalar_lea.vmem %s203, %s628
        %v630 = vld [vmem:[%s629] sm:$0x3]
        %s631 = scalar_lea.vmem %s1, 96
        %v632 = vld [vmem:[%s631] sm:$0xf]
        %v633 = vld [vmem:[%s631 + $0x4] sm:$0xf]
        %v634 = vld [vmem:[%s631 + $0x8] sm:$0xf]
        %v635 = vld [vmem:[%s631 + $0xc] sm:$0xf]
        %v640 = vunpack.c.l.b16 %v632
        %v641 = vunpack.c.l.b16 %v633
        %v642 = vunpack.c.l.b16 %v634
        %v643 = vunpack.c.l.b16 %v635
        %v644 = vpack.c.b16 %v641, %v640
        %v645 = vpack.c.b16 %v643, %v642
        %v649 = vsel %vm259, %v630, 0
        %651 = vmatprep.subr.bf16.mxu0 0
        %652 = vmatpush1.bf16.msra.mxu0 0
        %653 = vmatprep.subr.bf16.mxu0 0
        %654 = vmatpush1.bf16.msra.mxu0 0
        %655 = vmatprep.subr.bf16.mxu0 0
        %656 = vmatpush1.bf16.msra.mxu0 0
        %657 = vmatprep.subr.bf16.mxu0 0
        %658 = vmatpush1.bf16.msra.mxu0 0
        %659 = vmatprep.subr.bf16.mxu0 0
        %660 = vmatpush1.bf16.msra.mxu0 0
        %661 = vmatprep.subr.bf16.mxu0 0
        %662 = vmatpush1.bf16.msra.mxu0 0
        %663 = vmatprep.subr.bf16.mxu0 0
        %664 = vmatpush1.bf16.msra.mxu0 %v645
        %665 = vmatprep.subr.bf16.mxu0 0
        %666 = vmatpush1.bf16.msra.mxu0 %v644
        %667 = vmatprep.subr.bf16.mxu0 0
        %668 = vmatpush2.bf16.msra.mxu0 0
        %669 = vmatprep.subr.bf16.mxu0 0
        %670 = vmatpush2.bf16.msra.mxu0 0
        %671 = vmatprep.subr.bf16.mxu0 0
        %672 = vmatpush2.bf16.msra.mxu0 0
        %673 = vmatprep.subr.bf16.mxu0 0
        %674 = vmatpush2.bf16.msra.mxu0 0
        %675 = vmatprep.subr.bf16.mxu0 0
        %676 = vmatpush2.bf16.msra.mxu0 0
        %677 = vmatprep.subr.bf16.mxu0 0
        %678 = vmatpush2.bf16.msra.mxu0 0
        %679 = vmatprep.subr.bf16.mxu0 0
        %680 = vmatpush2.bf16.msra.mxu0 0
        %681 = vmatprep.subr.bf16.mxu0 0
        %682 = vmatpush2.bf16.msra.mxu0 0
        %683 = vmatprep.mubr.bf16.mxu0 0
        %684 = vmatmul.mubr.bf16.gmra.mxu0 %v649
        %v685 = vpop.f32.mrf.mxu0
        %v686 = vadd.f32 0.0, %v685
        %v687 = vpop.f32.mrf.mxu0
        %v688 = vpop.f32.mrf.mxu0
        %v689 = vpop.f32.mrf.mxu0
        %690 = vdwg.mxu0
        %v691 = vadd.f32 %v626, %v686
        %v692 = vld [vmem:[%s629] sm:$0x7]
        %s693 = scalar_lea.vmem %s1, 112
        %v694 = vld [vmem:[%s693] sm:$0xf]
        %v695 = vld [vmem:[%s693 + $0x4] sm:$0xf]
        %v696 = vld [vmem:[%s693 + $0x8] sm:$0xf]
        %v697 = vld [vmem:[%s693 + $0xc] sm:$0xf]
        %v699 = vunpack.c.l.b16 %v692
        %v700 = vpack.c.b16 %v699, %v699
        %v702 = vshrl.u32 %v700, 16
        %v704 = vshll.u32 %v700, 16
        %v706 = vrot.slane %v704, 1
        %v707 = vor.u32 %v702, %v706
        %v712 = vunpack.c.l.b16 %v694
        %v713 = vunpack.c.l.b16 %v695
        %v714 = vunpack.c.l.b16 %v696
        %v715 = vunpack.c.l.b16 %v697
        %v716 = vpack.c.b16 %v713, %v712
        %v717 = vpack.c.b16 %v715, %v714
        %v721 = vsel %vm259, %v707, 0
        %723 = vmatprep.subr.bf16.mxu0 0
        %724 = vmatpush1.bf16.msra.mxu0 0
        %725 = vmatprep.subr.bf16.mxu0 0
        %726 = vmatpush1.bf16.msra.mxu0 0
        %727 = vmatprep.subr.bf16.mxu0 0
        %728 = vmatpush1.bf16.msra.mxu0 0
        %729 = vmatprep.subr.bf16.mxu0 0
        %730 = vmatpush1.bf16.msra.mxu0 0
        %731 = vmatprep.subr.bf16.mxu0 0
        %732 = vmatpush1.bf16.msra.mxu0 0
        %733 = vmatprep.subr.bf16.mxu0 0
        %734 = vmatpush1.bf16.msra.mxu0 0
        %735 = vmatprep.subr.bf16.mxu0 0
        %736 = vmatpush1.bf16.msra.mxu0 %v717
        %737 = vmatprep.subr.bf16.mxu0 0
        %738 = vmatpush1.bf16.msra.mxu0 %v716
        %739 = vmatprep.subr.bf16.mxu0 0
        %740 = vmatpush2.bf16.msra.mxu0 0
        %741 = vmatprep.subr.bf16.mxu0 0
        %742 = vmatpush2.bf16.msra.mxu0 0
        %743 = vmatprep.subr.bf16.mxu0 0
        %744 = vmatpush2.bf16.msra.mxu0 0
        %745 = vmatprep.subr.bf16.mxu0 0
        %746 = vmatpush2.bf16.msra.mxu0 0
        %747 = vmatprep.subr.bf16.mxu0 0
        %748 = vmatpush2.bf16.msra.mxu0 0
        %749 = vmatprep.subr.bf16.mxu0 0
        %750 = vmatpush2.bf16.msra.mxu0 0
        %751 = vmatprep.subr.bf16.mxu0 0
        %752 = vmatpush2.bf16.msra.mxu0 0
        %753 = vmatprep.subr.bf16.mxu0 0
        %754 = vmatpush2.bf16.msra.mxu0 0
        %755 = vmatprep.mubr.bf16.mxu0 0
        %756 = vmatmul.mubr.bf16.gmra.mxu0 %v721
        %v757 = vpop.f32.mrf.mxu0
        %v758 = vadd.f32 0.0, %v757
        %v759 = vpop.f32.mrf.mxu0
        %v760 = vpop.f32.mrf.mxu0
        %v761 = vpop.f32.mrf.mxu0
        %762 = vdwg.mxu0
        %v763 = vadd.f32 %v691, %v758
        %v764 = vld [vmem:[%s629] sm:$0x6]
        %s765 = scalar_lea.vmem %s1, 128
        %v766 = vld [vmem:[%s765] sm:$0xf]
        %v767 = vld [vmem:[%s765 + $0x4] sm:$0xf]
        %v768 = vld [vmem:[%s765 + $0x8] sm:$0xf]
        %v769 = vld [vmem:[%s765 + $0xc] sm:$0xf]
        %v771 = vunpack.c.l.b16 %v764
        %v772 = vpack.c.b16 %v771, %v771
        %v773 = vrot.slane %v772, 1
        %v778 = vunpack.c.l.b16 %v766
        %v779 = vunpack.c.l.b16 %v767
        %v780 = vunpack.c.l.b16 %v768
        %v781 = vunpack.c.l.b16 %v769
        %v782 = vpack.c.b16 %v779, %v778
        %v783 = vpack.c.b16 %v781, %v780
        %v787 = vsel %vm259, %v773, 0
        %789 = vmatprep.subr.bf16.mxu0 0
        %790 = vmatpush1.bf16.msra.mxu0 0
        %791 = vmatprep.subr.bf16.mxu0 0
        %792 = vmatpush1.bf16.msra.mxu0 0
        %793 = vmatprep.subr.bf16.mxu0 0
        %794 = vmatpush1.bf16.msra.mxu0 0
        %795 = vmatprep.subr.bf16.mxu0 0
        %796 = vmatpush1.bf16.msra.mxu0 0
        %797 = vmatprep.subr.bf16.mxu0 0
        %798 = vmatpush1.bf16.msra.mxu0 0
        %799 = vmatprep.subr.bf16.mxu0 0
        %800 = vmatpush1.bf16.msra.mxu0 0
        %801 = vmatprep.subr.bf16.mxu0 0
        %802 = vmatpush1.bf16.msra.mxu0 %v783
        %803 = vmatprep.subr.bf16.mxu0 0
        %804 = vmatpush1.bf16.msra.mxu0 %v782
        %805 = vmatprep.subr.bf16.mxu0 0
        %806 = vmatpush2.bf16.msra.mxu0 0
        %807 = vmatprep.subr.bf16.mxu0 0
        %808 = vmatpush2.bf16.msra.mxu0 0
        %809 = vmatprep.subr.bf16.mxu0 0
        %810 = vmatpush2.bf16.msra.mxu0 0
        %811 = vmatprep.subr.bf16.mxu0 0
        %812 = vmatpush2.bf16.msra.mxu0 0
        %813 = vmatprep.subr.bf16.mxu0 0
        %814 = vmatpush2.bf16.msra.mxu0 0
        %815 = vmatprep.subr.bf16.mxu0 0
        %816 = vmatpush2.bf16.msra.mxu0 0
        %817 = vmatprep.subr.bf16.mxu0 0
        %818 = vmatpush2.bf16.msra.mxu0 0
        %819 = vmatprep.subr.bf16.mxu0 0
        %820 = vmatpush2.bf16.msra.mxu0 0
        %821 = vmatprep.mubr.bf16.mxu0 0
        %822 = vmatmul.mubr.bf16.gmra.mxu0 %v787
        %v823 = vpop.f32.mrf.mxu0
        %v824 = vadd.f32 0.0, %v823
        %v825 = vpop.f32.mrf.mxu0
        %v826 = vpop.f32.mrf.mxu0
        %v827 = vpop.f32.mrf.mxu0
        %828 = vdwg.mxu0
        %v829 = vadd.f32 %v763, %v824
        %v830 = vpack.c.bf16 %v829, %v829
        %s831 = smul.addr %s217, 2
        %s832 = scalar_lea.vmem %s208, %s831
        %vm833 = vcmask 517120
        %834 = vst.msk [vmem:[%s832] sm:$0x3] %vm833, %v830
        %vm835 = vcmask 519168
        %v836 = vsel %vm835, %v829, 0.0
        %v837 = vrot.slane %v836, 4
        %v838 = vadd.f32 %v836, %v837
        %v839 = vrot.slane %v838, 2
        %v840 = vadd.f32 %v838, %v839
        %v841 = vrot.slane %v840, 1
        %v842 = vadd.f32 %v840, %v841
        %v843 = vadd.f32 %v222, %v842
        %v844 = vmul.f32 %v829, %v829
        %v845 = vsel %vm835, %v844, 0.0
        %v846 = vrot.slane %v845, 4
        %v847 = vadd.f32 %v845, %v846
        %v848 = vrot.slane %v847, 2
        %v849 = vadd.f32 %v847, %v848
        %v850 = vrot.slane %v849, 1
        %v851 = vadd.f32 %v849, %v850
        %v852 = vadd.f32 %v223, %v851
      $region33: #{_lambda_.13} parent=27 // loop_footer
        %s221 = sadd.s32 1, %s217
      $region34: #{_lambda_.13} parent=27 // loop_footer_branch
        %216 = sbr.rel target = $region30
      $region35: #{_lambda_.13} parent=27 // loop_exit
        _
      %vm853 = vcmask 516096
      %854 = vst.msk [vmem:[%s211] sm:$0x1] %vm853, %v222
      %855 = vst.msk [vmem:[%s214] sm:$0x1] %vm853, %v223
      %p856 = scmp.lt.s32.totalorder %s16, 1
      %s857 = scalar_select %p856, %s16, 1
      %s858 = smul.addr %s857, 4
      %s859 = smul.addr %s858, 2
      %s860 = scalar_lea.vmem %s2, %s859
      %p861 = scmp.lt.s32.totalorder %s16, 1
      %s862 = scalar_select %p861, %s16, 1
      %s863 = scalar_lea.vmem %s3, %s862
      %p864 = scmp.lt.s32.totalorder %s16, 1
      %s865 = scalar_select %p864, %s16, 1
      %s866 = scalar_lea.vmem %s4, %s865
      // Predicated region
      $region36: #{_lambda_.13} parent=27 // pred_check
        %p867 = pneg %p81
      $region37: #{_lambda_.13} parent=27 // pred_check_branch
        %869 = sbr.rel (%p867) target = $region39
      $region38: #{_lambda_.13} parent=27 // pred_region
        _
      $region39: #{_lambda_.13} parent=27 // pred_fallthru
        _
      // Predicated region
      $region40: #{_lambda_.13} parent=27 // pred_check
        %p870 = pneg %p107
      $region41: #{_lambda_.13} parent=27 // pred_check_branch
        %872 = sbr.rel (%p870) target = $region43
      $region42: #{_lambda_.13} parent=27 // pred_region
        _
      $region43: #{_lambda_.13} parent=27 // pred_fallthru
        _
      // Predicated region
      $region44: #{_lambda_.13} parent=27 // pred_check
        %p873 = pneg %p133
      $region45: #{_lambda_.13} parent=27 // pred_check_branch
        %875 = sbr.rel (%p873) target = $region47
      $region46: #{_lambda_.13} parent=27 // pred_region
        _
      $region47: #{_lambda_.13} parent=27 // pred_fallthru
        _
    $region28: #{_lambda_.13} parent=5 // pred_fallthru
      _
    %p876 = scmp.le.s32.totalorder 2, %s11
    // Predicated region
    $region48: #{_lambda_.13} parent=5 // pred_check
      %p877 = pneg %p876
    $region49: #{_lambda_.13} parent=5 // pred_check_branch
      %879 = sbr.rel (%p877) target = $region51
    $region50: #{_lambda_.13} parent=5 // pred_region
      %s880 = ssub.s32 %s11, 2
      // Predicated region
      $region52: #{_lambda_.13} parent=50 // pred_check
        %p881 = pneg %p87
      $region53: #{_lambda_.13} parent=50 // pred_check_branch
        %883 = sbr.rel (%p881) target = $region55
      $region54: #{_lambda_.13} parent=50 // pred_region
        %p884 = scmp.lt.s32.totalorder %s17, 1
        %s885 = scalar_select %p884, %s17, 1
        %s886 = smul.addr %s885, 4
        %s887 = smul.addr %s886, 2
        %s888 = scalar_lea.vmem %s2, %s887
      $region55: #{_lambda_.13} parent=50 // pred_fallthru
        _
      // Predicated region
      $region56: #{_lambda_.13} parent=50 // pred_check
        %p889 = pneg %p113
      $region57: #{_lambda_.13} parent=50 // pred_check_branch
        %891 = sbr.rel (%p889) target = $region59
      $region58: #{_lambda_.13} parent=50 // pred_region
        %p892 = scmp.lt.s32.totalorder %s17, 1
        %s893 = scalar_select %p892, %s17, 1
        %s894 = scalar_lea.vmem %s3, %s893
      $region59: #{_lambda_.13} parent=50 // pred_fallthru
        _
      // Predicated region
      $region60: #{_lambda_.13} parent=50 // pred_check
        %p895 = pneg %p139
      $region61: #{_lambda_.13} parent=50 // pred_check_branch
        %897 = sbr.rel (%p895) target = $region63
      $region62: #{_lambda_.13} parent=50 // pred_region
        %p898 = scmp.lt.s32.totalorder %s17, 1
        %s899 = scalar_select %p898, %s17, 1
        %s900 = scalar_lea.vmem %s4, %s899
      $region63: #{_lambda_.13} parent=50 // pred_fallthru
        _
    $region51: #{_lambda_.13} parent=5 // pred_fallthru
      _
  $region6: #{_lambda_.13} parent=0 // loop_footer
    %s15 = sadd.s32 1, %s11
  $region7: #{_lambda_.13} parent=0 // loop_footer_branch
    %10 = sbr.rel target = $region3
  $region8: #{_lambda_.13} parent=0 // loop_exit
    _

// kernel: _lambda_.14
$region0: #{_lambda_.14}
  #allocation0 [shape = 'u32[]', space=smem, size = 0x4, offset = 0x4, fixed_abs, tag = 'smem constant byte address 0x4 - core index']
  #allocation1 [shape = 'u32[144,128]{1,0:T(1,128)}', space=vmem, size = 0x12000, scoped, tag = 'internal scratch']
  %s0 = inlined_call_operand.vmem [shape: bf16[2,6,6,64], index: 0, kind: input, shape index: {}]
  %s1 = inlined_call_operand.vmem [shape: bf16[9,64,64], index: 1, kind: input, shape index: {}]
  %s2 = inlined_call_operand.vmem [shape: bf16[2,2,2,64], index: 2, kind: output, shape index: {0}]
  %s3 = inlined_call_operand.vmem [shape: f32[2,1,64], index: 3, kind: output, shape index: {1}]
  %s4 = inlined_call_operand.vmem [shape: f32[2,1,64], index: 4, kind: output, shape index: {2}]
  %5 = xla_tuple %s2, %s3, %s4
  %s6 = sld [smem:[#allocation0]]
  $region64: #{_lambda_.14} parent=0
    _
  %s8 = ssub.s32 1, %s6
  %s9 = scalar_select 0, %s8, %s6
  loop: start=0, step=1, limit=4
  $region2: #{_lambda_.14} parent=0 // loop_pre_header
    _
  $region3: #{_lambda_.14} parent=0 // loop_header
    %s11 = sphi 0, %s15
    %p12 = scmp.ge.s32.totalorder %s11, 4
    %s21 = sphi 0, %s23
    %s24 = sphi 0, %s21
    %s25 = sphi 0, %s24
    %s41 = sphi 0, %s25
    %s45 = sphi 0, %s45
    %s47 = sphi 0, %s45
    %s48 = sphi 0, %s47
    %s62 = sphi 0, %s48
    %s68 = sphi 0, %s70
    %s71 = sphi 0, %s68
    %s72 = sphi 0, %s71
    %s88 = sphi 0, %s72
    %s94 = sphi 0, %s96
    %s97 = sphi 0, %s94
    %s98 = sphi 0, %s97
    %s114 = sphi 0, %s98
    %s120 = sphi 0, %s122
    %s123 = sphi 0, %s120
    %s124 = sphi 0, %s123
    %s140 = sphi 0, %s124
  $region4: #{_lambda_.14} parent=0 // loop_header_branch
    %14 = sbr.rel (%p12) target = $region8
  $region5: #{_lambda_.14} parent=0 // loop_body
    %s16 = ssub.s32 %s11, 1
    %s17 = ssub.s32 %s11, 2
    %s18 = sadd.s32 %s11, 1
    %s19 = ssub.s32 %s11, %s18
    %p20 = scmp.eq.s32.totalorder %s19, 0
    %s22 = sadd.s32 %s21, 1
    %s23 = scalar_select %p20, %s21, %s22
    %p26 = pneg %p20
    %p27 = scmp.eq.s32.totalorder %s11, 1
    %p28 = por %p26, %p27
    %p29 = scmp.ne.s32.totalorder %s21, %s24
    %p30 = scmp.eq.s32.totalorder %s11, 0
    %p31 = por %p29, %p30
    %p32 = scmp.ne.s32.totalorder %s21, %s24
    %p33 = scmp.eq.s32.totalorder %s16, 1
    %p34 = por %p32, %p33
    %p35 = scmp.ne.s32.totalorder %s24, %s25
    %p36 = scmp.eq.s32.totalorder %s16, 0
    %p37 = por %p35, %p36
    %p38 = scmp.ne.s32.totalorder %s24, %s25
    %p39 = scmp.eq.s32.totalorder %s17, 1
    %p40 = por %p38, %p39
    %p42 = scmp.ne.s32.totalorder %s25, %s41
    %p43 = scmp.eq.s32.totalorder %s17, 0
    %p44 = por %p42, %p43
    %s46 = sadd.s32 %s45, 1
    %p49 = scmp.eq.s32.totalorder %s11, 1
    %p50 = scmp.ne.s32.totalorder %s45, %s47
    %p51 = scmp.eq.s32.totalorder %s11, 0
    %p52 = por %p50, %p51
    %p53 = scmp.ne.s32.totalorder %s45, %s47
    %p54 = scmp.eq.s32.totalorder %s16, 1
    %p55 = por %p53, %p54
    %p56 = scmp.ne.s32.totalorder %s47, %s48
    %p57 = scmp.eq.s32.totalorder %s16, 0
    %p58 = por %p56, %p57
    %p59 = scmp.ne.s32.totalorder %s47, %s48
    %p60 = scmp.eq.s32.totalorder %s17, 1
    %p61 = por %p59, %p60
    %p63 = scmp.ne.s32.totalorder %s48, %s62
    %p64 = scmp.eq.s32.totalorder %s17, 0
    %p65 = por %p63, %p64
    %s66 = ssub.s32 %s11, %s18
    %p67 = scmp.eq.s32.totalorder %s66, 0
    %s69 = sadd.s32 %s68, 1
    %s70 = scalar_select %p67, %s68, %s69
    %p73 = pneg %p67
    %p74 = scmp.eq.s32.totalorder %s11, 1
    %p75 = por %p73, %p74
    %p76 = scmp.ne.s32.totalorder %s68, %s71
    %p77 = scmp.eq.s32.totalorder %s11, 0
    %p78 = por %p76, %p77
    %p79 = scmp.ne.s32.totalorder %s68, %s71
    %p80 = scmp.eq.s32.totalorder %s16, 1
    %p81 = por %p79, %p80
    %p82 = scmp.ne.s32.totalorder %s71, %s72
    %p83 = scmp.eq.s32.totalorder %s16, 0
    %p84 = por %p82, %p83
    %p85 = scmp.ne.s32.totalorder %s71, %s72
    %p86 = scmp.eq.s32.totalorder %s17, 1
    %p87 = por %p85, %p86
    %p89 = scmp.ne.s32.totalorder %s72, %s88
    %p90 = scmp.eq.s32.totalorder %s17, 0
    %p91 = por %p89, %p90
    %s92 = ssub.s32 %s11, %s18
    %p93 = scmp.eq.s32.totalorder %s92, 0
    %s95 = sadd.s32 %s94, 1
    %s96 = scalar_select %p93, %s94, %s95
    %p99 = pneg %p93
    %p100 = scmp.eq.s32.totalorder %s11, 1
    %p101 = por %p99, %p100
    %p102 = scmp.ne.s32.totalorder %s94, %s97
    %p103 = scmp.eq.s32.totalorder %s11, 0
    %p104 = por %p102, %p103
    %p105 = scmp.ne.s32.totalorder %s94, %s97
    %p106 = scmp.eq.s32.totalorder %s16, 1
    %p107 = por %p105, %p106
    %p108 = scmp.ne.s32.totalorder %s97, %s98
    %p109 = scmp.eq.s32.totalorder %s16, 0
    %p110 = por %p108, %p109
    %p111 = scmp.ne.s32.totalorder %s97, %s98
    %p112 = scmp.eq.s32.totalorder %s17, 1
    %p113 = por %p111, %p112
    %p115 = scmp.ne.s32.totalorder %s98, %s114
    %p116 = scmp.eq.s32.totalorder %s17, 0
    %p117 = por %p115, %p116
    %s118 = ssub.s32 %s11, %s18
    %p119 = scmp.eq.s32.totalorder %s118, 0
    %s121 = sadd.s32 %s120, 1
    %s122 = scalar_select %p119, %s120, %s121
    %p125 = pneg %p119
    %p126 = scmp.eq.s32.totalorder %s11, 1
    %p127 = por %p125, %p126
    %p128 = scmp.ne.s32.totalorder %s120, %s123
    %p129 = scmp.eq.s32.totalorder %s11, 0
    %p130 = por %p128, %p129
    %p131 = scmp.ne.s32.totalorder %s120, %s123
    %p132 = scmp.eq.s32.totalorder %s16, 1
    %p133 = por %p131, %p132
    %p134 = scmp.ne.s32.totalorder %s123, %s124
    %p135 = scmp.eq.s32.totalorder %s16, 0
    %p136 = por %p134, %p135
    %p137 = scmp.ne.s32.totalorder %s123, %s124
    %p138 = scmp.eq.s32.totalorder %s17, 1
    %p139 = por %p137, %p138
    %p141 = scmp.ne.s32.totalorder %s124, %s140
    %p142 = scmp.eq.s32.totalorder %s17, 0
    %p143 = por %p141, %p142
    %p144 = scmp.le.s32.totalorder 1, %s11
    %p145 = scmp.lt.s32.totalorder %s11, 3
    %p146 = pnand %p144, %p145
    %p147 = pneg %p146
    // Predicated region
    $region9: #{_lambda_.14} parent=5 // pred_check
      _
    $region10: #{_lambda_.14} parent=5 // pred_check_branch
      %149 = sbr.rel (%p146) target = $region12
    $region11: #{_lambda_.14} parent=5 // pred_region
      %s150 = ssub.s32 %s11, 1
      // Predicated region
      $region13: #{_lambda_.14} parent=11 // pred_check
        %p151 = pneg %p58
      $region14: #{_lambda_.14} parent=11 // pred_check_branch
        %153 = sbr.rel (%p151) target = $region16
      $region15: #{_lambda_.14} parent=11 // pred_region
        _
      $region16: #{_lambda_.14} parent=11 // pred_fallthru
        _
    $region12: #{_lambda_.14} parent=5 // pred_fallthru
      _
    %p154 = scmp.lt.s32.totalorder %s11, 2
    // Predicated region
    $region17: #{_lambda_.14} parent=5 // pred_check
      %p155 = pneg %p154
    $region18: #{_lambda_.14} parent=5 // pred_check_branch
      %157 = sbr.rel (%p155) target = $region20
    $region19: #{_lambda_.14} parent=5 // pred_region
      // Predicated region
      $region21: #{_lambda_.14} parent=19 // pred_check
        %p158 = pneg %p31
      $region22: #{_lambda_.14} parent=19 // pred_check_branch
        %160 = sbr.rel (%p158) target = $region24
      $region23: #{_lambda_.14} parent=19 // pred_region
        %p161 = scmp.lt.s32.totalorder %s11, 1
        %s162 = scalar_select %p161, %s11, 1
        %s163 = smul.addr %s162, 6
        %s164 = smul.addr %s163, 4
        %s165 = scalar_lea.vmem %s0, %s164
      $region24: #{_lambda_.14} parent=19 // pred_fallthru
        _
    $region20: #{_lambda_.14} parent=5 // pred_fallthru
      _
    %p166 = scmp.le.s32.totalorder 1, %s11
    %p167 = scmp.lt.s32.totalorder %s11, 3
    %p168 = pnand %p166, %p167
    %p169 = pneg %p168
    // Predicated region
    $region25: #{_lambda_.14} parent=5 // pred_check
      _
    $region26: #{_lambda_.14} parent=5 // pred_check_branch
      %171 = sbr.rel (%p168) target = $region28
    $region27: #{_lambda_.14} parent=5 // pred_region
      %s172 = ssub.s32 %s11, 1
      %p173 = scmp.lt.s32.totalorder %s16, 1
      %s174 = scalar_select %p173, %s16, 1
      %s175 = smul.addr %s174, 6
      %s176 = smul.addr %s175, 4
      %s177 = scalar_lea.vmem %s0, %s176
      %p178 = pneg %p37
      %p179 = pneg %p34
      %p180 = pneg %p58
      %p181 = pneg %p55
      %p182 = pneg %p84
      %p183 = pneg %p81
      %p184 = scmp.lt.s32.totalorder %s16, 1
      %s185 = scalar_select %p184, %s16, 1
      %s186 = smul.addr %s185, 2
      %s187 = scalar_lea.vmem %s2, %s186
      %p188 = pneg %p110
      %p189 = pneg %p107
      %p190 = scmp.lt.s32.totalorder %s16, 1
      %s191 = scalar_select %p190, %s16, 1
      %s192 = scalar_lea.vmem %s3, %s191
      %p193 = pneg %p136
      %p194 = pneg %p133
      %p195 = scmp.lt.s32.totalorder %s16, 1
      %s196 = scalar_select %p195, %s16, 1
      %s197 = scalar_lea.vmem %s4, %s196
      %p198 = scmp.lt.s32.totalorder %s16, 1
      %s199 = scalar_select %p198, %s16, 1
      %s200 = smul.addr %s199, 6
      %s201 = smul.addr %s200, 4
      %s202 = scalar_lea.vmem %s0, %s201
      %p203 = scmp.lt.s32.totalorder %s16, 1
      %s204 = scalar_select %p203, %s16, 1
      %s205 = smul.addr %s204, 2
      %s206 = scalar_lea.vmem %s2, %s205
      %p207 = scmp.lt.s32.totalorder %s16, 1
      %s208 = scalar_select %p207, %s16, 1
      %s209 = scalar_lea.vmem %s3, %s208
      %p210 = scmp.lt.s32.totalorder %s16, 1
      %s211 = scalar_select %p210, %s16, 1
      %s212 = scalar_lea.vmem %s4, %s211
      loop: start=0, step=1, limit=2
      $region29: #{_lambda_.14} parent=27 // loop_pre_header
        _
      $region30: #{_lambda_.14} parent=27 // loop_header
        %s215 = sphi 0, %s219
        %p216 = scmp.ge.s32.totalorder %s215, 2
        %v220 = vphi 0.0, %v1005
        %v221 = vphi 0.0, %v1014
      $region31: #{_lambda_.14} parent=27 // loop_header_branch
        %218 = sbr.rel (%p216) target = $region35
      $region32: #{_lambda_.14} parent=27 // loop_body
        %s222 = smul.addr %s215, 4
        %s223 = scalar_lea.vmem %s202, %s222
        %v224 = vld [vmem:[%s223] sm:$0x1]
        %v225 = vld [vmem:[%s1] sm:$0xf]
        %v226 = vld [vmem:[%s1 + $0x4] sm:$0xf]
        %v227 = vld [vmem:[%s1 + $0x8] sm:$0xf]
        %v228 = vld [vmem:[%s1 + $0xc] sm:$0xf]
        %v229 = vld [vmem:[%s1 + $0x10] sm:$0xf]
        %v230 = vld [vmem:[%s1 + $0x14] sm:$0xf]
        %v231 = vld [vmem:[%s1 + $0x18] sm:$0xf]
        %v232 = vld [vmem:[%s1 + $0x1c] sm:$0xf]
        %v233 = vld [vmem:[%s223] sm:$0x6]
        %s234 = scalar_lea.vmem %s1, 32
        %v235 = vld [vmem:[%s234] sm:$0xf]
        %v236 = vld [vmem:[%s234 + $0x4] sm:$0xf]
        %v237 = vld [vmem:[%s234 + $0x8] sm:$0xf]
        %v238 = vld [vmem:[%s234 + $0xc] sm:$0xf]
        %v239 = vld [vmem:[%s234 + $0x10] sm:$0xf]
        %v240 = vld [vmem:[%s234 + $0x14] sm:$0xf]
        %v241 = vld [vmem:[%s234 + $0x18] sm:$0xf]
        %v242 = vld [vmem:[%s234 + $0x1c] sm:$0xf]
        %v244 = vunpack.c.l.b16 %v233
        %v245 = vpack.c.b16 %v244, %v244
        %v247 = vshrl.u32 %v245, 16
        %v249 = vrot.slane %v247, 1
        %v250 = vshll.u32 %v245, 16
        %v252 = vrot.slane %v250, 2
        %v253 = vor.u32 %v249, %v252
        %v262 = vunpack.c.l.b16 %v235
        %v263 = vunpack.c.l.b16 %v236
        %v264 = vunpack.c.l.b16 %v237
        %v265 = vunpack.c.l.b16 %v238
        %v266 = vunpack.c.l.b16 %v239
        %v267 = vunpack.c.l.b16 %v240
        %v268 = vunpack.c.l.b16 %v241
        %v269 = vunpack.c.l.b16 %v242
        %v270 = vpack.c.b16 %v263, %v262
        %v271 = vpack.c.b16 %v265, %v264
        %v272 = vpack.c.b16 %v267, %v266
        %v273 = vpack.c.b16 %v269, %v268
        %vm278 = vcmask 523264
        %v280 = vsel %vm278, %v253, 0
        %282 = vmatprep.subr.bf16.mxu0 0
        %283 = vmatpush1.bf16.msra.mxu0 0
        %284 = vmatprep.subr.bf16.mxu0 0
        %285 = vmatpush1.bf16.msra.mxu0 0
        %286 = vmatprep.subr.bf16.mxu0 0
        %287 = vmatpush1.bf16.msra.mxu0 0
        %288 = vmatprep.subr.bf16.mxu0 0
        %289 = vmatpush1.bf16.msra.mxu0 0
        %290 = vmatprep.subr.bf16.mxu0 0
        %291 = vmatpush1.bf16.msra.mxu0 %v273
        %292 = vmatprep.subr.bf16.mxu0 0
        %293 = vmatpush1.bf16.msra.mxu0 %v272
        %294 = vmatprep.subr.bf16.mxu0 0
        %295 = vmatpush1.bf16.msra.mxu0 %v271
        %296 = vmatprep.subr.bf16.mxu0 0
        %297 = vmatpush1.bf16.msra.mxu0 %v270
        %298 = vmatprep.subr.bf16.mxu0 0
        %299 = vmatpush2.bf16.msra.mxu0 0
        %300 = vmatprep.subr.bf16.mxu0 0
        %301 = vmatpush2.bf16.msra.mxu0 0
        %302 = vmatprep.subr.bf16.mxu0 0
        %303 = vmatpush2.bf16.msra.mxu0 0
        %304 = vmatprep.subr.bf16.mxu0 0
        %305 = vmatpush2.bf16.msra.mxu0 0
        %306 = vmatprep.subr.bf16.mxu0 0
        %307 = vmatpush2.bf16.msra.mxu0 0
        %308 = vmatprep.subr.bf16.mxu0 0
        %309 = vmatpush2.bf16.msra.mxu0 0
        %310 = vmatprep.subr.bf16.mxu0 0
        %311 = vmatpush2.bf16.msra.mxu0 0
        %312 = vmatprep.subr.bf16.mxu0 0
        %313 = vmatpush2.bf16.msra.mxu0 0
        %314 = vmatprep.mubr.bf16.mxu0 0
        %315 = vmatmul.mubr.bf16.gmra.mxu0 %v280
        %v316 = vpop.f32.mrf.mxu0
        %v317 = vadd.f32 0.0, %v316
        %v318 = vpop.f32.mrf.mxu0
        %v319 = vpop.f32.mrf.mxu0
        %v320 = vpop.f32.mrf.mxu0
        %321 = vdwg.mxu0
        %v330 = vunpack.c.l.b16 %v225
        %v331 = vunpack.c.l.b16 %v226
        %v332 = vunpack.c.l.b16 %v227
        %v333 = vunpack.c.l.b16 %v228
        %v334 = vunpack.c.l.b16 %v229
        %v335 = vunpack.c.l.b16 %v230
        %v336 = vunpack.c.l.b16 %v231
        %v337 = vunpack.c.l.b16 %v232
        %v338 = vpack.c.b16 %v331, %v330
        %v339 = vpack.c.b16 %v333, %v332
        %v340 = vpack.c.b16 %v335, %v334
        %v341 = vpack.c.b16 %v337, %v336
        %v347 = vsel %vm278, %v224, 0
        %349 = vmatprep.subr.bf16.mxu0 0
        %350 = vmatpush1.bf16.msra.mxu0 0
        %351 = vmatprep.subr.bf16.mxu0 0
        %352 = vmatpush1.bf16.msra.mxu0 0
        %353 = vmatprep.subr.bf16.mxu0 0
        %354 = vmatpush1.bf16.msra.mxu0 0
        %355 = vmatprep.subr.bf16.mxu0 0
        %356 = vmatpush1.bf16.msra.mxu0 0
        %357 = vmatprep.subr.bf16.mxu0 0
        %358 = vmatpush1.bf16.msra.mxu0 %v341
        %359 = vmatprep.subr.bf16.mxu0 0
        %360 = vmatpush1.bf16.msra.mxu0 %v340
        %361 = vmatprep.subr.bf16.mxu0 0
        %362 = vmatpush1.bf16.msra.mxu0 %v339
        %363 = vmatprep.subr.bf16.mxu0 0
        %364 = vmatpush1.bf16.msra.mxu0 %v338
        %365 = vmatprep.subr.bf16.mxu0 0
        %366 = vmatpush2.bf16.msra.mxu0 0
        %367 = vmatprep.subr.bf16.mxu0 0
        %368 = vmatpush2.bf16.msra.mxu0 0
        %369 = vmatprep.subr.bf16.mxu0 0
        %370 = vmatpush2.bf16.msra.mxu0 0
        %371 = vmatprep.subr.bf16.mxu0 0
        %372 = vmatpush2.bf16.msra.mxu0 0
        %373 = vmatprep.subr.bf16.mxu0 0
        %374 = vmatpush2.bf16.msra.mxu0 0
        %375 = vmatprep.subr.bf16.mxu0 0
        %376 = vmatpush2.bf16.msra.mxu0 0
        %377 = vmatprep.subr.bf16.mxu0 0
        %378 = vmatpush2.bf16.msra.mxu0 0
        %379 = vmatprep.subr.bf16.mxu0 0
        %380 = vmatpush2.bf16.msra.mxu0 0
        %381 = vmatprep.mubr.bf16.mxu0 0
        %382 = vmatmul.mubr.bf16.gmra.mxu0 %v347
        %v383 = vpop.f32.mrf.mxu0
        %v384 = vadd.f32 %v317, %v383
        %v385 = vpop.f32.mrf.mxu0
        %v386 = vpop.f32.mrf.mxu0
        %v387 = vpop.f32.mrf.mxu0
        %388 = vdwg.mxu0
        %v389 = vld [vmem:[%s223] sm:$0x3]
        %s390 = scalar_lea.vmem %s1, 64
        %v391 = vld [vmem:[%s390] sm:$0xf]
        %v392 = vld [vmem:[%s390 + $0x4] sm:$0xf]
        %v393 = vld [vmem:[%s390 + $0x8] sm:$0xf]
        %v394 = vld [vmem:[%s390 + $0xc] sm:$0xf]
        %v395 = vld [vmem:[%s390 + $0x10] sm:$0xf]
        %v396 = vld [vmem:[%s390 + $0x14] sm:$0xf]
        %v397 = vld [vmem:[%s390 + $0x18] sm:$0xf]
        %v398 = vld [vmem:[%s390 + $0x1c] sm:$0xf]
        %v400 = vunpack.c.l.b16 %v389
        %v401 = vpack.c.b16 %v400, %v400
        %v403 = vshrl.u32 %v401, 16
        %v405 = vshll.u32 %v401, 16
        %v407 = vrot.slane %v405, 1
        %v408 = vor.u32 %v403, %v407
        %v417 = vunpack.c.l.b16 %v391
        %v418 = vunpack.c.l.b16 %v392
        %v419 = vunpack.c.l.b16 %v393
        %v420 = vunpack.c.l.b16 %v394
        %v421 = vunpack.c.l.b16 %v395
        %v422 = vunpack.c.l.b16 %v396
        %v423 = vunpack.c.l.b16 %v397
        %v424 = vunpack.c.l.b16 %v398
        %v425 = vpack.c.b16 %v418, %v417
        %v426 = vpack.c.b16 %v420, %v419
        %v427 = vpack.c.b16 %v422, %v421
        %v428 = vpack.c.b16 %v424, %v423
        %v434 = vsel %vm278, %v408, 0
        %436 = vmatprep.subr.bf16.mxu0 0
        %437 = vmatpush1.bf16.msra.mxu0 0
        %438 = vmatprep.subr.bf16.mxu0 0
        %439 = vmatpush1.bf16.msra.mxu0 0
        %440 = vmatprep.subr.bf16.mxu0 0
        %441 = vmatpush1.bf16.msra.mxu0 0
        %442 = vmatprep.subr.bf16.mxu0 0
        %443 = vmatpush1.bf16.msra.mxu0 0
        %444 = vmatprep.subr.bf16.mxu0 0
        %445 = vmatpush1.bf16.msra.mxu0 %v428
        %446 = vmatprep.subr.bf16.mxu0 0
        %447 = vmatpush1.bf16.msra.mxu0 %v427
        %448 = vmatprep.subr.bf16.mxu0 0
        %449 = vmatpush1.bf16.msra.mxu0 %v426
        %450 = vmatprep.subr.bf16.mxu0 0
        %451 = vmatpush1.bf16.msra.mxu0 %v425
        %452 = vmatprep.subr.bf16.mxu0 0
        %453 = vmatpush2.bf16.msra.mxu0 0
        %454 = vmatprep.subr.bf16.mxu0 0
        %455 = vmatpush2.bf16.msra.mxu0 0
        %456 = vmatprep.subr.bf16.mxu0 0
        %457 = vmatpush2.bf16.msra.mxu0 0
        %458 = vmatprep.subr.bf16.mxu0 0
        %459 = vmatpush2.bf16.msra.mxu0 0
        %460 = vmatprep.subr.bf16.mxu0 0
        %461 = vmatpush2.bf16.msra.mxu0 0
        %462 = vmatprep.subr.bf16.mxu0 0
        %463 = vmatpush2.bf16.msra.mxu0 0
        %464 = vmatprep.subr.bf16.mxu0 0
        %465 = vmatpush2.bf16.msra.mxu0 0
        %466 = vmatprep.subr.bf16.mxu0 0
        %467 = vmatpush2.bf16.msra.mxu0 0
        %468 = vmatprep.mubr.bf16.mxu0 0
        %469 = vmatmul.mubr.bf16.gmra.mxu0 %v434
        %v470 = vpop.f32.mrf.mxu0
        %v471 = vadd.f32 0.0, %v470
        %v472 = vpop.f32.mrf.mxu0
        %v473 = vpop.f32.mrf.mxu0
        %v474 = vpop.f32.mrf.mxu0
        %475 = vdwg.mxu0
        %v476 = vadd.f32 %v384, %v471
        %s477 = sadd.s32 %s215, 3
        %s478 = smul.addr %s477, 4
        %s479 = scalar_lea.vmem %s202, %s478
        %v480 = vld [vmem:[%s479] sm:$0x1]
        %s481 = scalar_lea.vmem %s1, 96
        %v482 = vld [vmem:[%s481] sm:$0xf]
        %v483 = vld [vmem:[%s481 + $0x4] sm:$0xf]
        %v484 = vld [vmem:[%s481 + $0x8] sm:$0xf]
        %v485 = vld [vmem:[%s481 + $0xc] sm:$0xf]
        %v486 = vld [vmem:[%s481 + $0x10] sm:$0xf]
        %v487 = vld [vmem:[%s481 + $0x14] sm:$0xf]
        %v488 = vld [vmem:[%s481 + $0x18] sm:$0xf]
        %v489 = vld [vmem:[%s481 + $0x1c] sm:$0xf]
        %v498 = vunpack.c.l.b16 %v482
        %v499 = vunpack.c.l.b16 %v483
        %v500 = vunpack.c.l.b16 %v484
        %v501 = vunpack.c.l.b16 %v485
        %v502 = vunpack.c.l.b16 %v486
        %v503 = vunpack.c.l.b16 %v487
        %v504 = vunpack.c.l.b16 %v488
        %v505 = vunpack.c.l.b16 %v489
        %v506 = vpack.c.b16 %v499, %v498
        %v507 = vpack.c.b16 %v501, %v500
        %v508 = vpack.c.b16 %v503, %v502
        %v509 = vpack.c.b16 %v505, %v504
        %v515 = vsel %vm278, %v480, 0
        %517 = vmatprep.subr.bf16.mxu0 0
        %518 = vmatpush1.bf16.msra.mxu0 0
        %519 = vmatprep.subr.bf16.mxu0 0
        %520 = vmatpush1.bf16.msra.mxu0 0
        %521 = vmatprep.subr.bf16.mxu0 0
        %522 = vmatpush1.bf16.msra.mxu0 0
        %523 = vmatprep.subr.bf16.mxu0 0
        %524 = vmatpush1.bf16.msra.mxu0 0
        %525 = vmatprep.subr.bf16.mxu0 0
        %526 = vmatpush1.bf16.msra.mxu0 %v509
        %527 = vmatprep.subr.bf16.mxu0 0
        %528 = vmatpush1.bf16.msra.mxu0 %v508
        %529 = vmatprep.subr.bf16.mxu0 0
        %530 = vmatpush1.bf16.msra.mxu0 %v507
        %531 = vmatprep.subr.bf16.mxu0 0
        %532 = vmatpush1.bf16.msra.mxu0 %v506
        %533 = vmatprep.subr.bf16.mxu0 0
        %534 = vmatpush2.bf16.msra.mxu0 0
        %535 = vmatprep.subr.bf16.mxu0 0
        %536 = vmatpush2.bf16.msra.mxu0 0
        %537 = vmatprep.subr.bf16.mxu0 0
        %538 = vmatpush2.bf16.msra.mxu0 0
        %539 = vmatprep.subr.bf16.mxu0 0
        %540 = vmatpush2.bf16.msra.mxu0 0
        %541 = vmatprep.subr.bf16.mxu0 0
        %542 = vmatpush2.bf16.msra.mxu0 0
        %543 = vmatprep.subr.bf16.mxu0 0
        %544 = vmatpush2.bf16.msra.mxu0 0
        %545 = vmatprep.subr.bf16.mxu0 0
        %546 = vmatpush2.bf16.msra.mxu0 0
        %547 = vmatprep.subr.bf16.mxu0 0
        %548 = vmatpush2.bf16.msra.mxu0 0
        %549 = vmatprep.mubr.bf16.mxu0 0
        %550 = vmatmul.mubr.bf16.gmra.mxu0 %v515
        %v551 = vpop.f32.mrf.mxu0
        %v552 = vadd.f32 0.0, %v551
        %v553 = vpop.f32.mrf.mxu0
        %v554 = vpop.f32.mrf.mxu0
        %v555 = vpop.f32.mrf.mxu0
        %556 = vdwg.mxu0
        %v557 = vadd.f32 %v476, %v552
        %v558 = vld [vmem:[%s479] sm:$0x6]
        %s559 = scalar_lea.vmem %s1, 128
        %v560 = vld [vmem:[%s559] sm:$0xf]
        %v561 = vld [vmem:[%s559 + $0x4] sm:$0xf]
        %v562 = vld [vmem:[%s559 + $0x8] sm:$0xf]
        %v563 = vld [vmem:[%s559 + $0xc] sm:$0xf]
        %v564 = vld [vmem:[%s559 + $0x10] sm:$0xf]
        %v565 = vld [vmem:[%s559 + $0x14] sm:$0xf]
        %v566 = vld [vmem:[%s559 + $0x18] sm:$0xf]
        %v567 = vld [vmem:[%s559 + $0x1c] sm:$0xf]
        %v569 = vunpack.c.l.b16 %v558
        %v570 = vpack.c.b16 %v569, %v569
        %v572 = vshrl.u32 %v570, 16
        %v574 = vrot.slane %v572, 1
        %v575 = vshll.u32 %v570, 16
        %v577 = vrot.slane %v575, 2
        %v578 = vor.u32 %v574, %v577
        %v587 = vunpack.c.l.b16 %v560
        %v588 = vunpack.c.l.b16 %v561
        %v589 = vunpack.c.l.b16 %v562
        %v590 = vunpack.c.l.b16 %v563
        %v591 = vunpack.c.l.b16 %v564
        %v592 = vunpack.c.l.b16 %v565
        %v593 = vunpack.c.l.b16 %v566
        %v594 = vunpack.c.l.b16 %v567
        %v595 = vpack.c.b16 %v588, %v587
        %v596 = vpack.c.b16 %v590, %v589
        %v597 = vpack.c.b16 %v592, %v591
        %v598 = vpack.c.b16 %v594, %v593
        %v604 = vsel %vm278, %v578, 0
        %606 = vmatprep.subr.bf16.mxu0 0
        %607 = vmatpush1.bf16.msra.mxu0 0
        %608 = vmatprep.subr.bf16.mxu0 0
        %609 = vmatpush1.bf16.msra.mxu0 0
        %610 = vmatprep.subr.bf16.mxu0 0
        %611 = vmatpush1.bf16.msra.mxu0 0
        %612 = vmatprep.subr.bf16.mxu0 0
        %613 = vmatpush1.bf16.msra.mxu0 0
        %614 = vmatprep.subr.bf16.mxu0 0
        %615 = vmatpush1.bf16.msra.mxu0 %v598
        %616 = vmatprep.subr.bf16.mxu0 0
        %617 = vmatpush1.bf16.msra.mxu0 %v597
        %618 = vmatprep.subr.bf16.mxu0 0
        %619 = vmatpush1.bf16.msra.mxu0 %v596
        %620 = vmatprep.subr.bf16.mxu0 0
        %621 = vmatpush1.bf16.msra.mxu0 %v595
        %622 = vmatprep.subr.bf16.mxu0 0
        %623 = vmatpush2.bf16.msra.mxu0 0
        %624 = vmatprep.subr.bf16.mxu0 0
        %625 = vmatpush2.bf16.msra.mxu0 0
        %626 = vmatprep.subr.bf16.mxu0 0
        %627 = vmatpush2.bf16.msra.mxu0 0
        %628 = vmatprep.subr.bf16.mxu0 0
        %629 = vmatpush2.bf16.msra.mxu0 0
        %630 = vmatprep.subr.bf16.mxu0 0
        %631 = vmatpush2.bf16.msra.mxu0 0
        %632 = vmatprep.subr.bf16.mxu0 0
        %633 = vmatpush2.bf16.msra.mxu0 0
        %634 = vmatprep.subr.bf16.mxu0 0
        %635 = vmatpush2.bf16.msra.mxu0 0
        %636 = vmatprep.subr.bf16.mxu0 0
        %637 = vmatpush2.bf16.msra.mxu0 0
        %638 = vmatprep.mubr.bf16.mxu0 0
        %639 = vmatmul.mubr.bf16.gmra.mxu0 %v604
        %v640 = vpop.f32.mrf.mxu0
        %v641 = vadd.f32 0.0, %v640
        %v642 = vpop.f32.mrf.mxu0
        %v643 = vpop.f32.mrf.mxu0
        %v644 = vpop.f32.mrf.mxu0
        %645 = vdwg.mxu0
        %v646 = vadd.f32 %v557, %v641
        %v647 = vld [vmem:[%s479] sm:$0x3]
        %s648 = scalar_lea.vmem %s1, 160
        %v649 = vld [vmem:[%s648] sm:$0xf]
        %v650 = vld [vmem:[%s648 + $0x4] sm:$0xf]
        %v651 = vld [vmem:[%s648 + $0x8] sm:$0xf]
        %v652 = vld [vmem:[%s648 + $0xc] sm:$0xf]
        %v653 = vld [vmem:[%s648 + $0x10] sm:$0xf]
        %v654 = vld [vmem:[%s648 + $0x14] sm:$0xf]
        %v655 = vld [vmem:[%s648 + $0x18] sm:$0xf]
        %v656 = vld [vmem:[%s648 + $0x1c] sm:$0xf]
        %v658 = vunpack.c.l.b16 %v647
        %v659 = vpack.c.b16 %v658, %v658
        %v661 = vshrl.u32 %v659, 16
        %v663 = vshll.u32 %v659, 16
        %v665 = vrot.slane %v663, 1
        %v666 = vor.u32 %v661, %v665
        %v675 = vunpack.c.l.b16 %v649
        %v676 = vunpack.c.l.b16 %v650
        %v677 = vunpack.c.l.b16 %v651
        %v678 = vunpack.c.l.b16 %v652
        %v679 = vunpack.c.l.b16 %v653
        %v680 = vunpack.c.l.b16 %v654
        %v681 = vunpack.c.l.b16 %v655
        %v682 = vunpack.c.l.b16 %v656
        %v683 = vpack.c.b16 %v676, %v675
        %v684 = vpack.c.b16 %v678, %v677
        %v685 = vpack.c.b16 %v680, %v679
        %v686 = vpack.c.b16 %v682, %v681
        %v692 = vsel %vm278, %v666, 0
        %694 = vmatprep.subr.bf16.mxu0 0
        %695 = vmatpush1.bf16.msra.mxu0 0
        %696 = vmatprep.subr.bf16.mxu0 0
        %697 = vmatpush1.bf16.msra.mxu0 0
        %698 = vmatprep.subr.bf16.mxu0 0
        %699 = vmatpush1.bf16.msra.mxu0 0
        %700 = vmatprep.subr.bf16.mxu0 0
        %701 = vmatpush1.bf16.msra.mxu0 0
        %702 = vmatprep.subr.bf16.mxu0 0
        %703 = vmatpush1.bf16.msra.mxu0 %v686
        %704 = vmatprep.subr.bf16.mxu0 0
        %705 = vmatpush1.bf16.msra.mxu0 %v685
        %706 = vmatprep.subr.bf16.mxu0 0
        %707 = vmatpush1.bf16.msra.mxu0 %v684
        %708 = vmatprep.subr.bf16.mxu0 0
        %709 = vmatpush1.bf16.msra.mxu0 %v683
        %710 = vmatprep.subr.bf16.mxu0 0
        %711 = vmatpush2.bf16.msra.mxu0 0
        %712 = vmatprep.subr.bf16.mxu0 0
        %713 = vmatpush2.bf16.msra.mxu0 0
        %714 = vmatprep.subr.bf16.mxu0 0
        %715 = vmatpush2.bf16.msra.mxu0 0
        %716 = vmatprep.subr.bf16.mxu0 0
        %717 = vmatpush2.bf16.msra.mxu0 0
        %718 = vmatprep.subr.bf16.mxu0 0
        %719 = vmatpush2.bf16.msra.mxu0 0
        %720 = vmatprep.subr.bf16.mxu0 0
        %721 = vmatpush2.bf16.msra.mxu0 0
        %722 = vmatprep.subr.bf16.mxu0 0
        %723 = vmatpush2.bf16.msra.mxu0 0
        %724 = vmatprep.subr.bf16.mxu0 0
        %725 = vmatpush2.bf16.msra.mxu0 0
        %726 = vmatprep.mubr.bf16.mxu0 0
        %727 = vmatmul.mubr.bf16.gmra.mxu0 %v692
        %v728 = vpop.f32.mrf.mxu0
        %v729 = vadd.f32 0.0, %v728
        %v730 = vpop.f32.mrf.mxu0
        %v731 = vpop.f32.mrf.mxu0
        %v732 = vpop.f32.mrf.mxu0
        %733 = vdwg.mxu0
        %v734 = vadd.f32 %v646, %v729
        %s735 = sadd.s32 %s215, 1
        %s736 = smul.addr %s735, 4
        %s737 = scalar_lea.vmem %s202, %s736
        %v738 = vld [vmem:[%s737] sm:$0x1]
        %s739 = scalar_lea.vmem %s1, 192
        %v740 = vld [vmem:[%s739] sm:$0xf]
        %v741 = vld [vmem:[%s739 + $0x4] sm:$0xf]
        %v742 = vld [vmem:[%s739 + $0x8] sm:$0xf]
        %v743 = vld [vmem:[%s739 + $0xc] sm:$0xf]
        %v744 = vld [vmem:[%s739 + $0x10] sm:$0xf]
        %v745 = vld [vmem:[%s739 + $0x14] sm:$0xf]
        %v746 = vld [vmem:[%s739 + $0x18] sm:$0xf]
        %v747 = vld [vmem:[%s739 + $0x1c] sm:$0xf]
        %v756 = vunpack.c.l.b16 %v740
        %v757 = vunpack.c.l.b16 %v741
        %v758 = vunpack.c.l.b16 %v742
        %v759 = vunpack.c.l.b16 %v743
        %v760 = vunpack.c.l.b16 %v744
        %v761 = vunpack.c.l.b16 %v745
        %v762 = vunpack.c.l.b16 %v746
        %v763 = vunpack.c.l.b16 %v747
        %v764 = vpack.c.b16 %v757, %v756
        %v765 = vpack.c.b16 %v759, %v758
        %v766 = vpack.c.b16 %v761, %v760
        %v767 = vpack.c.b16 %v763, %v762
        %v773 = vsel %vm278, %v738, 0
        %775 = vmatprep.subr.bf16.mxu0 0
        %776 = vmatpush1.bf16.msra.mxu0 0
        %777 = vmatprep.subr.bf16.mxu0 0
        %778 = vmatpush1.bf16.msra.mxu0 0
        %779 = vmatprep.subr.bf16.mxu0 0
        %780 = vmatpush1.bf16.msra.mxu0 0
        %781 = vmatprep.subr.bf16.mxu0 0
        %782 = vmatpush1.bf16.msra.mxu0 0
        %783 = vmatprep.subr.bf16.mxu0 0
        %784 = vmatpush1.bf16.msra.mxu0 %v767
        %785 = vmatprep.subr.bf16.mxu0 0
        %786 = vmatpush1.bf16.msra.mxu0 %v766
        %787 = vmatprep.subr.bf16.mxu0 0
        %788 = vmatpush1.bf16.msra.mxu0 %v765
        %789 = vmatprep.subr.bf16.mxu0 0
        %790 = vmatpush1.bf16.msra.mxu0 %v764
        %791 = vmatprep.subr.bf16.mxu0 0
        %792 = vmatpush2.bf16.msra.mxu0 0
        %793 = vmatprep.subr.bf16.mxu0 0
        %794 = vmatpush2.bf16.msra.mxu0 0
        %795 = vmatprep.subr.bf16.mxu0 0
        %796 = vmatpush2.bf16.msra.mxu0 0
        %797 = vmatprep.subr.bf16.mxu0 0
        %798 = vmatpush2.bf16.msra.mxu0 0
        %799 = vmatprep.subr.bf16.mxu0 0
        %800 = vmatpush2.bf16.msra.mxu0 0
        %801 = vmatprep.subr.bf16.mxu0 0
        %802 = vmatpush2.bf16.msra.mxu0 0
        %803 = vmatprep.subr.bf16.mxu0 0
        %804 = vmatpush2.bf16.msra.mxu0 0
        %805 = vmatprep.subr.bf16.mxu0 0
        %806 = vmatpush2.bf16.msra.mxu0 0
        %807 = vmatprep.mubr.bf16.mxu0 0
        %808 = vmatmul.mubr.bf16.gmra.mxu0 %v773
        %v809 = vpop.f32.mrf.mxu0
        %v810 = vadd.f32 0.0, %v809
        %v811 = vpop.f32.mrf.mxu0
        %v812 = vpop.f32.mrf.mxu0
        %v813 = vpop.f32.mrf.mxu0
        %814 = vdwg.mxu0
        %v815 = vadd.f32 %v734, %v810
        %v816 = vld [vmem:[%s737] sm:$0x6]
        %s817 = scalar_lea.vmem %s1, 224
        %v818 = vld [vmem:[%s817] sm:$0xf]
        %v819 = vld [vmem:[%s817 + $0x4] sm:$0xf]
        %v820 = vld [vmem:[%s817 + $0x8] sm:$0xf]
        %v821 = vld [vmem:[%s817 + $0xc] sm:$0xf]
        %v822 = vld [vmem:[%s817 + $0x10] sm:$0xf]
        %v823 = vld [vmem:[%s817 + $0x14] sm:$0xf]
        %v824 = vld [vmem:[%s817 + $0x18] sm:$0xf]
        %v825 = vld [vmem:[%s817 + $0x1c] sm:$0xf]
        %v827 = vunpack.c.l.b16 %v816
        %v828 = vpack.c.b16 %v827, %v827
        %v830 = vshrl.u32 %v828, 16
        %v832 = vrot.slane %v830, 1
        %v833 = vshll.u32 %v828, 16
        %v835 = vrot.slane %v833, 2
        %v836 = vor.u32 %v832, %v835
        %v845 = vunpack.c.l.b16 %v818
        %v846 = vunpack.c.l.b16 %v819
        %v847 = vunpack.c.l.b16 %v820
        %v848 = vunpack.c.l.b16 %v821
        %v849 = vunpack.c.l.b16 %v822
        %v850 = vunpack.c.l.b16 %v823
        %v851 = vunpack.c.l.b16 %v824
        %v852 = vunpack.c.l.b16 %v825
        %v853 = vpack.c.b16 %v846, %v845
        %v854 = vpack.c.b16 %v848, %v847
        %v855 = vpack.c.b16 %v850, %v849
        %v856 = vpack.c.b16 %v852, %v851
        %v862 = vsel %vm278, %v836, 0
        %864 = vmatprep.subr.bf16.mxu0 0
        %865 = vmatpush1.bf16.msra.mxu0 0
        %866 = vmatprep.subr.bf16.mxu0 0
        %867 = vmatpush1.bf16.msra.mxu0 0
        %868 = vmatprep.subr.bf16.mxu0 0
        %869 = vmatpush1.bf16.msra.mxu0 0
        %870 = vmatprep.subr.bf16.mxu0 0
        %871 = vmatpush1.bf16.msra.mxu0 0
        %872 = vmatprep.subr.bf16.mxu0 0
        %873 = vmatpush1.bf16.msra.mxu0 %v856
        %874 = vmatprep.subr.bf16.mxu0 0
        %875 = vmatpush1.bf16.msra.mxu0 %v855
        %876 = vmatprep.subr.bf16.mxu0 0
        %877 = vmatpush1.bf16.msra.mxu0 %v854
        %878 = vmatprep.subr.bf16.mxu0 0
        %879 = vmatpush1.bf16.msra.mxu0 %v853
        %880 = vmatprep.subr.bf16.mxu0 0
        %881 = vmatpush2.bf16.msra.mxu0 0
        %882 = vmatprep.subr.bf16.mxu0 0
        %883 = vmatpush2.bf16.msra.mxu0 0
        %884 = vmatprep.subr.bf16.mxu0 0
        %885 = vmatpush2.bf16.msra.mxu0 0
        %886 = vmatprep.subr.bf16.mxu0 0
        %887 = vmatpush2.bf16.msra.mxu0 0
        %888 = vmatprep.subr.bf16.mxu0 0
        %889 = vmatpush2.bf16.msra.mxu0 0
        %890 = vmatprep.subr.bf16.mxu0 0
        %891 = vmatpush2.bf16.msra.mxu0 0
        %892 = vmatprep.subr.bf16.mxu0 0
        %893 = vmatpush2.bf16.msra.mxu0 0
        %894 = vmatprep.subr.bf16.mxu0 0
        %895 = vmatpush2.bf16.msra.mxu0 0
        %896 = vmatprep.mubr.bf16.mxu0 0
        %897 = vmatmul.mubr.bf16.gmra.mxu0 %v862
        %v898 = vpop.f32.mrf.mxu0
        %v899 = vadd.f32 0.0, %v898
        %v900 = vpop.f32.mrf.mxu0
        %v901 = vpop.f32.mrf.mxu0
        %v902 = vpop.f32.mrf.mxu0
        %903 = vdwg.mxu0
        %v904 = vadd.f32 %v815, %v899
        %v905 = vld [vmem:[%s737] sm:$0x3]
        %s906 = scalar_lea.vmem %s1, 256
        %v907 = vld [vmem:[%s906] sm:$0xf]
        %v908 = vld [vmem:[%s906 + $0x4] sm:$0xf]
        %v909 = vld [vmem:[%s906 + $0x8] sm:$0xf]
        %v910 = vld [vmem:[%s906 + $0xc] sm:$0xf]
        %v911 = vld [vmem:[%s906 + $0x10] sm:$0xf]
        %v912 = vld [vmem:[%s906 + $0x14] sm:$0xf]
        %v913 = vld [vmem:[%s906 + $0x18] sm:$0xf]
        %v914 = vld [vmem:[%s906 + $0x1c] sm:$0xf]
        %v916 = vunpack.c.l.b16 %v905
        %v917 = vpack.c.b16 %v916, %v916
        %v919 = vshrl.u32 %v917, 16
        %v921 = vshll.u32 %v917, 16
        %v923 = vrot.slane %v921, 1
        %v924 = vor.u32 %v919, %v923
        %v933 = vunpack.c.l.b16 %v907
        %v934 = vunpack.c.l.b16 %v908
        %v935 = vunpack.c.l.b16 %v909
        %v936 = vunpack.c.l.b16 %v910
        %v937 = vunpack.c.l.b16 %v911
        %v938 = vunpack.c.l.b16 %v912
        %v939 = vunpack.c.l.b16 %v913
        %v940 = vunpack.c.l.b16 %v914
        %v941 = vpack.c.b16 %v934, %v933
        %v942 = vpack.c.b16 %v936, %v935
        %v943 = vpack.c.b16 %v938, %v937
        %v944 = vpack.c.b16 %v940, %v939
        %v950 = vsel %vm278, %v924, 0
        %952 = vmatprep.subr.bf16.mxu0 0
        %953 = vmatpush1.bf16.msra.mxu0 0
        %954 = vmatprep.subr.bf16.mxu0 0
        %955 = vmatpush1.bf16.msra.mxu0 0
        %956 = vmatprep.subr.bf16.mxu0 0
        %957 = vmatpush1.bf16.msra.mxu0 0
        %958 = vmatprep.subr.bf16.mxu0 0
        %959 = vmatpush1.bf16.msra.mxu0 0
        %960 = vmatprep.subr.bf16.mxu0 0
        %961 = vmatpush1.bf16.msra.mxu0 %v944
        %962 = vmatprep.subr.bf16.mxu0 0
        %963 = vmatpush1.bf16.msra.mxu0 %v943
        %964 = vmatprep.subr.bf16.mxu0 0
        %965 = vmatpush1.bf16.msra.mxu0 %v942
        %966 = vmatprep.subr.bf16.mxu0 0
        %967 = vmatpush1.bf16.msra.mxu0 %v941
        %968 = vmatprep.subr.bf16.mxu0 0
        %969 = vmatpush2.bf16.msra.mxu0 0
        %970 = vmatprep.subr.bf16.mxu0 0
        %971 = vmatpush2.bf16.msra.mxu0 0
        %972 = vmatprep.subr.bf16.mxu0 0
        %973 = vmatpush2.bf16.msra.mxu0 0
        %974 = vmatprep.subr.bf16.mxu0 0
        %975 = vmatpush2.bf16.msra.mxu0 0
        %976 = vmatprep.subr.bf16.mxu0 0
        %977 = vmatpush2.bf16.msra.mxu0 0
        %978 = vmatprep.subr.bf16.mxu0 0
        %979 = vmatpush2.bf16.msra.mxu0 0
        %980 = vmatprep.subr.bf16.mxu0 0
        %981 = vmatpush2.bf16.msra.mxu0 0
        %982 = vmatprep.subr.bf16.mxu0 0
        %983 = vmatpush2.bf16.msra.mxu0 0
        %984 = vmatprep.mubr.bf16.mxu0 0
        %985 = vmatmul.mubr.bf16.gmra.mxu0 %v950
        %v986 = vpop.f32.mrf.mxu0
        %v987 = vadd.f32 0.0, %v986
        %v988 = vpop.f32.mrf.mxu0
        %v989 = vpop.f32.mrf.mxu0
        %v990 = vpop.f32.mrf.mxu0
        %991 = vdwg.mxu0
        %v992 = vadd.f32 %v904, %v987
        %v993 = vpack.c.bf16 %v992, %v992
        %s994 = scalar_lea.vmem %s206, %s215
        %vm995 = vcmask 516096
        %996 = vst.msk [vmem:[%s994] sm:$0x1] %vm995, %v993
        %vm997 = vcmask 517120
        %v998 = vsel %vm997, %v992, 0.0
        %v999 = vrot.slane %v998, 4
        %v1000 = vadd.f32 %v998, %v999
        %v1001 = vrot.slane %v1000, 2
        %v1002 = vadd.f32 %v1000, %v1001
        %v1003 = vrot.slane %v1002, 1
        %v1004 = vadd.f32 %v1002, %v1003
        %v1005 = vadd.f32 %v220, %v1004
        %v1006 = vmul.f32 %v992, %v992
        %v1007 = vsel %vm997, %v1006, 0.0
        %v1008 = vrot.slane %v1007, 4
        %v1009 = vadd.f32 %v1007, %v1008
        %v1010 = vrot.slane %v1009, 2
        %v1011 = vadd.f32 %v1009, %v1010
        %v1012 = vrot.slane %v1011, 1
        %v1013 = vadd.f32 %v1011, %v1012
        %v1014 = vadd.f32 %v221, %v1013
      $region33: #{_lambda_.14} parent=27 // loop_footer
        %s219 = sadd.s32 1, %s215
      $region34: #{_lambda_.14} parent=27 // loop_footer_branch
        %214 = sbr.rel target = $region30
      $region35: #{_lambda_.14} parent=27 // loop_exit
        _
      %vm1015 = vcmask 516096
      %1016 = vst.msk [vmem:[%s209] sm:$0x1] %vm1015, %v220
      %1017 = vst.msk [vmem:[%s212] sm:$0x1] %vm1015, %v221
      %p1018 = scmp.lt.s32.totalorder %s16, 1
      %s1019 = scalar_select %p1018, %s16, 1
      %s1020 = smul.addr %s1019, 2
      %s1021 = scalar_lea.vmem %s2, %s1020
      %p1022 = scmp.lt.s32.totalorder %s16, 1
      %s1023 = scalar_select %p1022, %s16, 1
      %s1024 = scalar_lea.vmem %s3, %s1023
      %p1025 = scmp.lt.s32.totalorder %s16, 1
      %s1026 = scalar_select %p1025, %s16, 1
      %s1027 = scalar_lea.vmem %s4, %s1026
      // Predicated region
      $region36: #{_lambda_.14} parent=27 // pred_check
        %p1028 = pneg %p81
      $region37: #{_lambda_.14} parent=27 // pred_check_branch
        %1030 = sbr.rel (%p1028) target = $region39
      $region38: #{_lambda_.14} parent=27 // pred_region
        _
      $region39: #{_lambda_.14} parent=27 // pred_fallthru
        _
      // Predicated region
      $region40: #{_lambda_.14} parent=27 // pred_check
        %p1031 = pneg %p107
      $region41: #{_lambda_.14} parent=27 // pred_check_branch
        %1033 = sbr.rel (%p1031) target = $region43
      $region42: #{_lambda_.14} parent=27 // pred_region
        _
      $region43: #{_lambda_.14} parent=27 // pred_fallthru
        _
      // Predicated region
      $region44: #{_lambda_.14} parent=27 // pred_check
        %p1034 = pneg %p133
      $region45: #{_lambda_.14} parent=27 // pred_check_branch
        %1036 = sbr.rel (%p1034) target = $region47
      $region46: #{_lambda_.14} parent=27 // pred_region
        _
      $region47: #{_lambda_.14} parent=27 // pred_fallthru
        _
    $region28: #{_lambda_.14} parent=5 // pred_fallthru
      _
    %p1037 = scmp.le.s32.totalorder 2, %s11
    // Predicated region
    $region48: #{_lambda_.14} parent=5 // pred_check
      %p1038 = pneg %p1037
    $region49: #{_lambda_.14} parent=5 // pred_check_branch
      %1040 = sbr.rel (%p1038) target = $region51
    $region50: #{_lambda_.14} parent=5 // pred_region
      %s1041 = ssub.s32 %s11, 2
      // Predicated region
      $region52: #{_lambda_.14} parent=50 // pred_check
        %p1042 = pneg %p87
      $region53: #{_lambda_.14} parent=50 // pred_check_branch
        %1044 = sbr.rel (%p1042) target = $region55
      $region54: #{_lambda_.14} parent=50 // pred_region
        %p1045 = scmp.lt.s32.totalorder %s17, 1
        %s1046 = scalar_select %p1045, %s17, 1
        %s1047 = smul.addr %s1046, 2
        %s1048 = scalar_lea.vmem %s2, %s1047
      $region55: #{_lambda_.14} parent=50 // pred_fallthru
        _
      // Predicated region
      $region56: #{_lambda_.14} parent=50 // pred_check
        %p1049 = pneg %p113
      $region57: #{_lambda_.14} parent=50 // pred_check_branch
        %1051 = sbr.rel (%p1049) target = $region59
      $region58: #{_lambda_.14} parent=50 // pred_region
        %p1052 = scmp.lt.s32.totalorder %s17, 1
        %s1053 = scalar_select %p1052, %s17, 1
        %s1054 = scalar_lea.vmem %s3, %s1053
      $region59: #{_lambda_.14} parent=50 // pred_fallthru
        _
      // Predicated region
      $region60: #{_lambda_.14} parent=50 // pred_check
        %p1055 = pneg %p139
      $region61: #{_lambda_.14} parent=50 // pred_check_branch
        %1057 = sbr.rel (%p1055) target = $region63
      $region62: #{_lambda_.14} parent=50 // pred_region
        %p1058 = scmp.lt.s32.totalorder %s17, 1
        %s1059 = scalar_select %p1058, %s17, 1
        %s1060 = scalar_lea.vmem %s4, %s1059
      $region63: #{_lambda_.14} parent=50 // pred_fallthru
        _
    $region51: #{_lambda_.14} parent=5 // pred_fallthru
      _
  $region6: #{_lambda_.14} parent=0 // loop_footer
    %s15 = sadd.s32 1, %s11
  $region7: #{_lambda_.14} parent=0 // loop_footer_branch
    %10 = sbr.rel target = $region3
  $region8: #{_lambda_.14} parent=0 // loop_exit
    _

// kernel: _lambda_.15
$region0: #{_lambda_.15}
  #allocation0 [shape = 'u32[]', space=smem, size = 0x4, offset = 0x4, fixed_abs, tag = 'smem constant byte address 0x4 - core index']
  #allocation1 [shape = 'u32[144,128]{1,0:T(1,128)}', space=vmem, size = 0x12000, scoped, tag = 'internal scratch']
  %s0 = inlined_call_operand.vmem [shape: bf16[2,4,4,64], index: 0, kind: input, shape index: {}]
  %s1 = inlined_call_operand.vmem [shape: bf16[9,64,128], index: 1, kind: input, shape index: {}]
  %s2 = inlined_call_operand.vmem [shape: bf16[2,2,2,128], index: 2, kind: output, shape index: {0}]
  %s3 = inlined_call_operand.vmem [shape: f32[2,1,128], index: 3, kind: output, shape index: {1}]
  %s4 = inlined_call_operand.vmem [shape: f32[2,1,128], index: 4, kind: output, shape index: {2}]
  %5 = xla_tuple %s2, %s3, %s4
  %s6 = sld [smem:[#allocation0]]
  $region64: #{_lambda_.15} parent=0
    _
  %s8 = ssub.s32 1, %s6
  %s9 = scalar_select 0, %s8, %s6
  loop: start=0, step=1, limit=4
  $region2: #{_lambda_.15} parent=0 // loop_pre_header
    _
  $region3: #{_lambda_.15} parent=0 // loop_header
    %s11 = sphi 0, %s15
    %p12 = scmp.ge.s32.totalorder %s11, 4
    %s21 = sphi 0, %s23
    %s24 = sphi 0, %s21
    %s25 = sphi 0, %s24
    %s41 = sphi 0, %s25
    %s45 = sphi 0, %s45
    %s47 = sphi 0, %s45
    %s48 = sphi 0, %s47
    %s62 = sphi 0, %s48
    %s68 = sphi 0, %s70
    %s71 = sphi 0, %s68
    %s72 = sphi 0, %s71
    %s88 = sphi 0, %s72
    %s94 = sphi 0, %s96
    %s97 = sphi 0, %s94
    %s98 = sphi 0, %s97
    %s114 = sphi 0, %s98
    %s120 = sphi 0, %s122
    %s123 = sphi 0, %s120
    %s124 = sphi 0, %s123
    %s140 = sphi 0, %s124
  $region4: #{_lambda_.15} parent=0 // loop_header_branch
    %14 = sbr.rel (%p12) target = $region8
  $region5: #{_lambda_.15} parent=0 // loop_body
    %s16 = ssub.s32 %s11, 1
    %s17 = ssub.s32 %s11, 2
    %s18 = sadd.s32 %s11, 1
    %s19 = ssub.s32 %s11, %s18
    %p20 = scmp.eq.s32.totalorder %s19, 0
    %s22 = sadd.s32 %s21, 1
    %s23 = scalar_select %p20, %s21, %s22
    %p26 = pneg %p20
    %p27 = scmp.eq.s32.totalorder %s11, 1
    %p28 = por %p26, %p27
    %p29 = scmp.ne.s32.totalorder %s21, %s24
    %p30 = scmp.eq.s32.totalorder %s11, 0
    %p31 = por %p29, %p30
    %p32 = scmp.ne.s32.totalorder %s21, %s24
    %p33 = scmp.eq.s32.totalorder %s16, 1
    %p34 = por %p32, %p33
    %p35 = scmp.ne.s32.totalorder %s24, %s25
    %p36 = scmp.eq.s32.totalorder %s16, 0
    %p37 = por %p35, %p36
    %p38 = scmp.ne.s32.totalorder %s24, %s25
    %p39 = scmp.eq.s32.totalorder %s17, 1
    %p40 = por %p38, %p39
    %p42 = scmp.ne.s32.totalorder %s25, %s41
    %p43 = scmp.eq.s32.totalorder %s17, 0
    %p44 = por %p42, %p43
    %s46 = sadd.s32 %s45, 1
    %p49 = scmp.eq.s32.totalorder %s11, 1
    %p50 = scmp.ne.s32.totalorder %s45, %s47
    %p51 = scmp.eq.s32.totalorder %s11, 0
    %p52 = por %p50, %p51
    %p53 = scmp.ne.s32.totalorder %s45, %s47
    %p54 = scmp.eq.s32.totalorder %s16, 1
    %p55 = por %p53, %p54
    %p56 = scmp.ne.s32.totalorder %s47, %s48
    %p57 = scmp.eq.s32.totalorder %s16, 0
    %p58 = por %p56, %p57
    %p59 = scmp.ne.s32.totalorder %s47, %s48
    %p60 = scmp.eq.s32.totalorder %s17, 1
    %p61 = por %p59, %p60
    %p63 = scmp.ne.s32.totalorder %s48, %s62
    %p64 = scmp.eq.s32.totalorder %s17, 0
    %p65 = por %p63, %p64
    %s66 = ssub.s32 %s11, %s18
    %p67 = scmp.eq.s32.totalorder %s66, 0
    %s69 = sadd.s32 %s68, 1
    %s70 = scalar_select %p67, %s68, %s69
    %p73 = pneg %p67
    %p74 = scmp.eq.s32.totalorder %s11, 1
    %p75 = por %p73, %p74
    %p76 = scmp.ne.s32.totalorder %s68, %s71
    %p77 = scmp.eq.s32.totalorder %s11, 0
    %p78 = por %p76, %p77
    %p79 = scmp.ne.s32.totalorder %s68, %s71
    %p80 = scmp.eq.s32.totalorder %s16, 1
    %p81 = por %p79, %p80
    %p82 = scmp.ne.s32.totalorder %s71, %s72
    %p83 = scmp.eq.s32.totalorder %s16, 0
    %p84 = por %p82, %p83
    %p85 = scmp.ne.s32.totalorder %s71, %s72
    %p86 = scmp.eq.s32.totalorder %s17, 1
    %p87 = por %p85, %p86
    %p89 = scmp.ne.s32.totalorder %s72, %s88
    %p90 = scmp.eq.s32.totalorder %s17, 0
    %p91 = por %p89, %p90
    %s92 = ssub.s32 %s11, %s18
    %p93 = scmp.eq.s32.totalorder %s92, 0
    %s95 = sadd.s32 %s94, 1
    %s96 = scalar_select %p93, %s94, %s95
    %p99 = pneg %p93
    %p100 = scmp.eq.s32.totalorder %s11, 1
    %p101 = por %p99, %p100
    %p102 = scmp.ne.s32.totalorder %s94, %s97
    %p103 = scmp.eq.s32.totalorder %s11, 0
    %p104 = por %p102, %p103
    %p105 = scmp.ne.s32.totalorder %s94, %s97
    %p106 = scmp.eq.s32.totalorder %s16, 1
    %p107 = por %p105, %p106
    %p108 = scmp.ne.s32.totalorder %s97, %s98
    %p109 = scmp.eq.s32.totalorder %s16, 0
    %p110 = por %p108, %p109
    %p111 = scmp.ne.s32.totalorder %s97, %s98
    %p112 = scmp.eq.s32.totalorder %s17, 1
    %p113 = por %p111, %p112
    %p115 = scmp.ne.s32.totalorder %s98, %s114
    %p116 = scmp.eq.s32.totalorder %s17, 0
    %p117 = por %p115, %p116
    %s118 = ssub.s32 %s11, %s18
    %p119 = scmp.eq.s32.totalorder %s118, 0
    %s121 = sadd.s32 %s120, 1
    %s122 = scalar_select %p119, %s120, %s121
    %p125 = pneg %p119
    %p126 = scmp.eq.s32.totalorder %s11, 1
    %p127 = por %p125, %p126
    %p128 = scmp.ne.s32.totalorder %s120, %s123
    %p129 = scmp.eq.s32.totalorder %s11, 0
    %p130 = por %p128, %p129
    %p131 = scmp.ne.s32.totalorder %s120, %s123
    %p132 = scmp.eq.s32.totalorder %s16, 1
    %p133 = por %p131, %p132
    %p134 = scmp.ne.s32.totalorder %s123, %s124
    %p135 = scmp.eq.s32.totalorder %s16, 0
    %p136 = por %p134, %p135
    %p137 = scmp.ne.s32.totalorder %s123, %s124
    %p138 = scmp.eq.s32.totalorder %s17, 1
    %p139 = por %p137, %p138
    %p141 = scmp.ne.s32.totalorder %s124, %s140
    %p142 = scmp.eq.s32.totalorder %s17, 0
    %p143 = por %p141, %p142
    %p144 = scmp.le.s32.totalorder 1, %s11
    %p145 = scmp.lt.s32.totalorder %s11, 3
    %p146 = pnand %p144, %p145
    %p147 = pneg %p146
    // Predicated region
    $region9: #{_lambda_.15} parent=5 // pred_check
      _
    $region10: #{_lambda_.15} parent=5 // pred_check_branch
      %149 = sbr.rel (%p146) target = $region12
    $region11: #{_lambda_.15} parent=5 // pred_region
      %s150 = ssub.s32 %s11, 1
      // Predicated region
      $region13: #{_lambda_.15} parent=11 // pred_check
        %p151 = pneg %p58
      $region14: #{_lambda_.15} parent=11 // pred_check_branch
        %153 = sbr.rel (%p151) target = $region16
      $region15: #{_lambda_.15} parent=11 // pred_region
        _
      $region16: #{_lambda_.15} parent=11 // pred_fallthru
        _
    $region12: #{_lambda_.15} parent=5 // pred_fallthru
      _
    %p154 = scmp.lt.s32.totalorder %s11, 2
    // Predicated region
    $region17: #{_lambda_.15} parent=5 // pred_check
      %p155 = pneg %p154
    $region18: #{_lambda_.15} parent=5 // pred_check_branch
      %157 = sbr.rel (%p155) target = $region20
    $region19: #{_lambda_.15} parent=5 // pred_region
      // Predicated region
      $region21: #{_lambda_.15} parent=19 // pred_check
        %p158 = pneg %p31
      $region22: #{_lambda_.15} parent=19 // pred_check_branch
        %160 = sbr.rel (%p158) target = $region24
      $region23: #{_lambda_.15} parent=19 // pred_region
        %p161 = scmp.lt.s32.totalorder %s11, 1
        %s162 = scalar_select %p161, %s11, 1
        %s163 = smul.addr %s162, 4
        %s164 = smul.addr %s163, 2
        %s165 = scalar_lea.vmem %s0, %s164
      $region24: #{_lambda_.15} parent=19 // pred_fallthru
        _
    $region20: #{_lambda_.15} parent=5 // pred_fallthru
      _
    %p166 = scmp.le.s32.totalorder 1, %s11
    %p167 = scmp.lt.s32.totalorder %s11, 3
    %p168 = pnand %p166, %p167
    %p169 = pneg %p168
    // Predicated region
    $region25: #{_lambda_.15} parent=5 // pred_check
      _
    $region26: #{_lambda_.15} parent=5 // pred_check_branch
      %171 = sbr.rel (%p168) target = $region28
    $region27: #{_lambda_.15} parent=5 // pred_region
      %s172 = ssub.s32 %s11, 1
      %p173 = scmp.lt.s32.totalorder %s16, 1
      %s174 = scalar_select %p173, %s16, 1
      %s175 = smul.addr %s174, 4
      %s176 = smul.addr %s175, 2
      %s177 = scalar_lea.vmem %s0, %s176
      %p178 = pneg %p37
      %p179 = pneg %p34
      %p180 = pneg %p58
      %p181 = pneg %p55
      %p182 = pneg %p84
      %p183 = pneg %p81
      %p184 = scmp.lt.s32.totalorder %s16, 1
      %s185 = scalar_select %p184, %s16, 1
      %s186 = smul.addr %s185, 2
      %s187 = scalar_lea.vmem %s2, %s186
      %p188 = pneg %p110
      %p189 = pneg %p107
      %p190 = scmp.lt.s32.totalorder %s16, 1
      %s191 = scalar_select %p190, %s16, 1
      %s192 = scalar_lea.vmem %s3, %s191
      %p193 = pneg %p136
      %p194 = pneg %p133
      %p195 = scmp.lt.s32.totalorder %s16, 1
      %s196 = scalar_select %p195, %s16, 1
      %s197 = scalar_lea.vmem %s4, %s196
      %p198 = scmp.lt.s32.totalorder %s16, 1
      %s199 = scalar_select %p198, %s16, 1
      %s200 = smul.addr %s199, 4
      %s201 = smul.addr %s200, 2
      %s202 = scalar_lea.vmem %s0, %s201
      %p203 = scmp.lt.s32.totalorder %s16, 1
      %s204 = scalar_select %p203, %s16, 1
      %s205 = smul.addr %s204, 2
      %s206 = scalar_lea.vmem %s2, %s205
      %p207 = scmp.lt.s32.totalorder %s16, 1
      %s208 = scalar_select %p207, %s16, 1
      %s209 = scalar_lea.vmem %s3, %s208
      %p210 = scmp.lt.s32.totalorder %s16, 1
      %s211 = scalar_select %p210, %s16, 1
      %s212 = scalar_lea.vmem %s4, %s211
      loop: start=0, step=1, limit=2
      $region29: #{_lambda_.15} parent=27 // loop_pre_header
        _
      $region30: #{_lambda_.15} parent=27 // loop_header
        %s215 = sphi 0, %s219
        %p216 = scmp.ge.s32.totalorder %s215, 2
        %v220 = vphi 0.0, %v1013
        %v221 = vphi 0.0, %v1022
      $region31: #{_lambda_.15} parent=27 // loop_header_branch
        %218 = sbr.rel (%p216) target = $region35
      $region32: #{_lambda_.15} parent=27 // loop_body
        %s222 = smul.addr %s215, 2
        %s223 = scalar_lea.vmem %s202, %s222
        %v224 = vld [vmem:[%s223] sm:$0x1]
        %v225 = vld [vmem:[%s1] sm:$0xf]
        %v226 = vld [vmem:[%s1 + $0x4] sm:$0xf]
        %v227 = vld [vmem:[%s1 + $0x8] sm:$0xf]
        %v228 = vld [vmem:[%s1 + $0xc] sm:$0xf]
        %v229 = vld [vmem:[%s1 + $0x10] sm:$0xf]
        %v230 = vld [vmem:[%s1 + $0x14] sm:$0xf]
        %v231 = vld [vmem:[%s1 + $0x18] sm:$0xf]
        %v232 = vld [vmem:[%s1 + $0x1c] sm:$0xf]
        %v233 = vld [vmem:[%s223] sm:$0x3]
        %s234 = scalar_lea.vmem %s1, 32
        %v235 = vld [vmem:[%s234] sm:$0xf]
        %v236 = vld [vmem:[%s234 + $0x4] sm:$0xf]
        %v237 = vld [vmem:[%s234 + $0x8] sm:$0xf]
        %v238 = vld [vmem:[%s234 + $0xc] sm:$0xf]
        %v239 = vld [vmem:[%s234 + $0x10] sm:$0xf]
        %v240 = vld [vmem:[%s234 + $0x14] sm:$0xf]
        %v241 = vld [vmem:[%s234 + $0x18] sm:$0xf]
        %v242 = vld [vmem:[%s234 + $0x1c] sm:$0xf]
        %v245 = vunpack.c.l.s4 1983009808
        %v246 = vunpack.c.0.s8 %v245
        %v247 = vlaneseq
        %v248 = vshrl.u32 %v247, 7
        %v249 = vsub.s32 %v246, %v248
        %v250 = vrot.slane %v233, %v249
        %v252 = vshrl.u32 %v250, 16
        %v254 = vshll.u32 %v250, 16
        %v256 = vrot.slane %v254, 1
        %v257 = vor.u32 %v252, %v256
        %v266 = vunpack.c.l.b16 %v235
        %v267 = vunpack.c.l.b16 %v236
        %v268 = vunpack.c.l.b16 %v237
        %v269 = vunpack.c.l.b16 %v238
        %v270 = vunpack.c.l.b16 %v239
        %v271 = vunpack.c.l.b16 %v240
        %v272 = vunpack.c.l.b16 %v241
        %v273 = vunpack.c.l.b16 %v242
        %v274 = vpack.c.b16 %v267, %v266
        %v275 = vpack.c.b16 %v269, %v268
        %v276 = vpack.c.b16 %v271, %v270
        %v277 = vpack.c.b16 %v273, %v272
        %vm282 = vcmask 523264
        %v284 = vsel %vm282, %v257, 0
        %286 = vmatprep.subr.bf16.mxu0 0
        %287 = vmatpush1.bf16.msra.mxu0 0
        %288 = vmatprep.subr.bf16.mxu0 0
        %289 = vmatpush1.bf16.msra.mxu0 0
        %290 = vmatprep.subr.bf16.mxu0 0
        %291 = vmatpush1.bf16.msra.mxu0 0
        %292 = vmatprep.subr.bf16.mxu0 0
        %293 = vmatpush1.bf16.msra.mxu0 0
        %294 = vmatprep.subr.bf16.mxu0 0
        %295 = vmatpush1.bf16.msra.mxu0 %v277
        %296 = vmatprep.subr.bf16.mxu0 0
        %297 = vmatpush1.bf16.msra.mxu0 %v276
        %298 = vmatprep.subr.bf16.mxu0 0
        %299 = vmatpush1.bf16.msra.mxu0 %v275
        %300 = vmatprep.subr.bf16.mxu0 0
        %301 = vmatpush1.bf16.msra.mxu0 %v274
        %302 = vmatprep.subr.bf16.mxu0 0
        %303 = vmatpush2.bf16.msra.mxu0 0
        %304 = vmatprep.subr.bf16.mxu0 0
        %305 = vmatpush2.bf16.msra.mxu0 0
        %306 = vmatprep.subr.bf16.mxu0 0
        %307 = vmatpush2.bf16.msra.mxu0 0
        %308 = vmatprep.subr.bf16.mxu0 0
        %309 = vmatpush2.bf16.msra.mxu0 0
        %310 = vmatprep.subr.bf16.mxu0 0
        %311 = vmatpush2.bf16.msra.mxu0 0
        %312 = vmatprep.subr.bf16.mxu0 0
        %313 = vmatpush2.bf16.msra.mxu0 0
        %314 = vmatprep.subr.bf16.mxu0 0
        %315 = vmatpush2.bf16.msra.mxu0 0
        %316 = vmatprep.subr.bf16.mxu0 0
        %317 = vmatpush2.bf16.msra.mxu0 0
        %318 = vmatprep.mubr.bf16.mxu0 0
        %319 = vmatmul.mubr.bf16.gmra.mxu0 %v284
        %v320 = vpop.f32.mrf.mxu0
        %v321 = vadd.f32 0.0, %v320
        %v322 = vpop.f32.mrf.mxu0
        %v323 = vpop.f32.mrf.mxu0
        %v324 = vpop.f32.mrf.mxu0
        %325 = vdwg.mxu0
        %v334 = vunpack.c.l.b16 %v225
        %v335 = vunpack.c.l.b16 %v226
        %v336 = vunpack.c.l.b16 %v227
        %v337 = vunpack.c.l.b16 %v228
        %v338 = vunpack.c.l.b16 %v229
        %v339 = vunpack.c.l.b16 %v230
        %v340 = vunpack.c.l.b16 %v231
        %v341 = vunpack.c.l.b16 %v232
        %v342 = vpack.c.b16 %v335, %v334
        %v343 = vpack.c.b16 %v337, %v336
        %v344 = vpack.c.b16 %v339, %v338
        %v345 = vpack.c.b16 %v341, %v340
        %v351 = vsel %vm282, %v224, 0
        %353 = vmatprep.subr.bf16.mxu0 0
        %354 = vmatpush1.bf16.msra.mxu0 0
        %355 = vmatprep.subr.bf16.mxu0 0
        %356 = vmatpush1.bf16.msra.mxu0 0
        %357 = vmatprep.subr.bf16.mxu0 0
        %358 = vmatpush1.bf16.msra.mxu0 0
        %359 = vmatprep.subr.bf16.mxu0 0
        %360 = vmatpush1.bf16.msra.mxu0 0
        %361 = vmatprep.subr.bf16.mxu0 0
        %362 = vmatpush1.bf16.msra.mxu0 %v345
        %363 = vmatprep.subr.bf16.mxu0 0
        %364 = vmatpush1.bf16.msra.mxu0 %v344
        %365 = vmatprep.subr.bf16.mxu0 0
        %366 = vmatpush1.bf16.msra.mxu0 %v343
        %367 = vmatprep.subr.bf16.mxu0 0
        %368 = vmatpush1.bf16.msra.mxu0 %v342
        %369 = vmatprep.subr.bf16.mxu0 0
        %370 = vmatpush2.bf16.msra.mxu0 0
        %371 = vmatprep.subr.bf16.mxu0 0
        %372 = vmatpush2.bf16.msra.mxu0 0
        %373 = vmatprep.subr.bf16.mxu0 0
        %374 = vmatpush2.bf16.msra.mxu0 0
        %375 = vmatprep.subr.bf16.mxu0 0
        %376 = vmatpush2.bf16.msra.mxu0 0
        %377 = vmatprep.subr.bf16.mxu0 0
        %378 = vmatpush2.bf16.msra.mxu0 0
        %379 = vmatprep.subr.bf16.mxu0 0
        %380 = vmatpush2.bf16.msra.mxu0 0
        %381 = vmatprep.subr.bf16.mxu0 0
        %382 = vmatpush2.bf16.msra.mxu0 0
        %383 = vmatprep.subr.bf16.mxu0 0
        %384 = vmatpush2.bf16.msra.mxu0 0
        %385 = vmatprep.mubr.bf16.mxu0 0
        %386 = vmatmul.mubr.bf16.gmra.mxu0 %v351
        %v387 = vpop.f32.mrf.mxu0
        %v388 = vadd.f32 %v321, %v387
        %v389 = vpop.f32.mrf.mxu0
        %v390 = vpop.f32.mrf.mxu0
        %v391 = vpop.f32.mrf.mxu0
        %392 = vdwg.mxu0
        %v393 = vld [vmem:[%s223] sm:$0x2]
        %s394 = scalar_lea.vmem %s1, 64
        %v395 = vld [vmem:[%s394] sm:$0xf]
        %v396 = vld [vmem:[%s394 + $0x4] sm:$0xf]
        %v397 = vld [vmem:[%s394 + $0x8] sm:$0xf]
        %v398 = vld [vmem:[%s394 + $0xc] sm:$0xf]
        %v399 = vld [vmem:[%s394 + $0x10] sm:$0xf]
        %v400 = vld [vmem:[%s394 + $0x14] sm:$0xf]
        %v401 = vld [vmem:[%s394 + $0x18] sm:$0xf]
        %v402 = vld [vmem:[%s394 + $0x1c] sm:$0xf]
        %v405 = vunpack.c.l.s4 1983009808
        %v406 = vunpack.c.0.s8 %v405
        %v407 = vlaneseq
        %v408 = vshrl.u32 %v407, 7
        %v409 = vsub.s32 %v406, %v408
        %v410 = vrot.slane %v393, %v409
        %v411 = vrot.slane %v410, 1
        %v420 = vunpack.c.l.b16 %v395
        %v421 = vunpack.c.l.b16 %v396
        %v422 = vunpack.c.l.b16 %v397
        %v423 = vunpack.c.l.b16 %v398
        %v424 = vunpack.c.l.b16 %v399
        %v425 = vunpack.c.l.b16 %v400
        %v426 = vunpack.c.l.b16 %v401
        %v427 = vunpack.c.l.b16 %v402
        %v428 = vpack.c.b16 %v421, %v420
        %v429 = vpack.c.b16 %v423, %v422
        %v430 = vpack.c.b16 %v425, %v424
        %v431 = vpack.c.b16 %v427, %v426
        %v437 = vsel %vm282, %v411, 0
        %439 = vmatprep.subr.bf16.mxu0 0
        %440 = vmatpush1.bf16.msra.mxu0 0
        %441 = vmatprep.subr.bf16.mxu0 0
        %442 = vmatpush1.bf16.msra.mxu0 0
        %443 = vmatprep.subr.bf16.mxu0 0
        %444 = vmatpush1.bf16.msra.mxu0 0
        %445 = vmatprep.subr.bf16.mxu0 0
        %446 = vmatpush1.bf16.msra.mxu0 0
        %447 = vmatprep.subr.bf16.mxu0 0
        %448 = vmatpush1.bf16.msra.mxu0 %v431
        %449 = vmatprep.subr.bf16.mxu0 0
        %450 = vmatpush1.bf16.msra.mxu0 %v430
        %451 = vmatprep.subr.bf16.mxu0 0
        %452 = vmatpush1.bf16.msra.mxu0 %v429
        %453 = vmatprep.subr.bf16.mxu0 0
        %454 = vmatpush1.bf16.msra.mxu0 %v428
        %455 = vmatprep.subr.bf16.mxu0 0
        %456 = vmatpush2.bf16.msra.mxu0 0
        %457 = vmatprep.subr.bf16.mxu0 0
        %458 = vmatpush2.bf16.msra.mxu0 0
        %459 = vmatprep.subr.bf16.mxu0 0
        %460 = vmatpush2.bf16.msra.mxu0 0
        %461 = vmatprep.subr.bf16.mxu0 0
        %462 = vmatpush2.bf16.msra.mxu0 0
        %463 = vmatprep.subr.bf16.mxu0 0
        %464 = vmatpush2.bf16.msra.mxu0 0
        %465 = vmatprep.subr.bf16.mxu0 0
        %466 = vmatpush2.bf16.msra.mxu0 0
        %467 = vmatprep.subr.bf16.mxu0 0
        %468 = vmatpush2.bf16.msra.mxu0 0
        %469 = vmatprep.subr.bf16.mxu0 0
        %470 = vmatpush2.bf16.msra.mxu0 0
        %471 = vmatprep.mubr.bf16.mxu0 0
        %472 = vmatmul.mubr.bf16.gmra.mxu0 %v437
        %v473 = vpop.f32.mrf.mxu0
        %v474 = vadd.f32 0.0, %v473
        %v475 = vpop.f32.mrf.mxu0
        %v476 = vpop.f32.mrf.mxu0
        %v477 = vpop.f32.mrf.mxu0
        %478 = vdwg.mxu0
        %v479 = vadd.f32 %v388, %v474
        %s480 = sadd.s32 %s215, 1
        %s481 = smul.addr %s480, 2
        %s482 = scalar_lea.vmem %s202, %s481
        %v483 = vld [vmem:[%s482] sm:$0x1]
        %s484 = scalar_lea.vmem %s1, 96
        %v485 = vld [vmem:[%s484] sm:$0xf]
        %v486 = vld [vmem:[%s484 + $0x4] sm:$0xf]
        %v487 = vld [vmem:[%s484 + $0x8] sm:$0xf]
        %v488 = vld [vmem:[%s484 + $0xc] sm:$0xf]
        %v489 = vld [vmem:[%s484 + $0x10] sm:$0xf]
        %v490 = vld [vmem:[%s484 + $0x14] sm:$0xf]
        %v491 = vld [vmem:[%s484 + $0x18] sm:$0xf]
        %v492 = vld [vmem:[%s484 + $0x1c] sm:$0xf]
        %v501 = vunpack.c.l.b16 %v485
        %v502 = vunpack.c.l.b16 %v486
        %v503 = vunpack.c.l.b16 %v487
        %v504 = vunpack.c.l.b16 %v488
        %v505 = vunpack.c.l.b16 %v489
        %v506 = vunpack.c.l.b16 %v490
        %v507 = vunpack.c.l.b16 %v491
        %v508 = vunpack.c.l.b16 %v492
        %v509 = vpack.c.b16 %v502, %v501
        %v510 = vpack.c.b16 %v504, %v503
        %v511 = vpack.c.b16 %v506, %v505
        %v512 = vpack.c.b16 %v508, %v507
        %v518 = vsel %vm282, %v483, 0
        %520 = vmatprep.subr.bf16.mxu0 0
        %521 = vmatpush1.bf16.msra.mxu0 0
        %522 = vmatprep.subr.bf16.mxu0 0
        %523 = vmatpush1.bf16.msra.mxu0 0
        %524 = vmatprep.subr.bf16.mxu0 0
        %525 = vmatpush1.bf16.msra.mxu0 0
        %526 = vmatprep.subr.bf16.mxu0 0
        %527 = vmatpush1.bf16.msra.mxu0 0
        %528 = vmatprep.subr.bf16.mxu0 0
        %529 = vmatpush1.bf16.msra.mxu0 %v512
        %530 = vmatprep.subr.bf16.mxu0 0
        %531 = vmatpush1.bf16.msra.mxu0 %v511
        %532 = vmatprep.subr.bf16.mxu0 0
        %533 = vmatpush1.bf16.msra.mxu0 %v510
        %534 = vmatprep.subr.bf16.mxu0 0
        %535 = vmatpush1.bf16.msra.mxu0 %v509
        %536 = vmatprep.subr.bf16.mxu0 0
        %537 = vmatpush2.bf16.msra.mxu0 0
        %538 = vmatprep.subr.bf16.mxu0 0
        %539 = vmatpush2.bf16.msra.mxu0 0
        %540 = vmatprep.subr.bf16.mxu0 0
        %541 = vmatpush2.bf16.msra.mxu0 0
        %542 = vmatprep.subr.bf16.mxu0 0
        %543 = vmatpush2.bf16.msra.mxu0 0
        %544 = vmatprep.subr.bf16.mxu0 0
        %545 = vmatpush2.bf16.msra.mxu0 0
        %546 = vmatprep.subr.bf16.mxu0 0
        %547 = vmatpush2.bf16.msra.mxu0 0
        %548 = vmatprep.subr.bf16.mxu0 0
        %549 = vmatpush2.bf16.msra.mxu0 0
        %550 = vmatprep.subr.bf16.mxu0 0
        %551 = vmatpush2.bf16.msra.mxu0 0
        %552 = vmatprep.mubr.bf16.mxu0 0
        %553 = vmatmul.mubr.bf16.gmra.mxu0 %v518
        %v554 = vpop.f32.mrf.mxu0
        %v555 = vadd.f32 0.0, %v554
        %v556 = vpop.f32.mrf.mxu0
        %v557 = vpop.f32.mrf.mxu0
        %v558 = vpop.f32.mrf.mxu0
        %559 = vdwg.mxu0
        %v560 = vadd.f32 %v479, %v555
        %v561 = vld [vmem:[%s482] sm:$0x3]
        %s562 = scalar_lea.vmem %s1, 128
        %v563 = vld [vmem:[%s562] sm:$0xf]
        %v564 = vld [vmem:[%s562 + $0x4] sm:$0xf]
        %v565 = vld [vmem:[%s562 + $0x8] sm:$0xf]
        %v566 = vld [vmem:[%s562 + $0xc] sm:$0xf]
        %v567 = vld [vmem:[%s562 + $0x10] sm:$0xf]
        %v568 = vld [vmem:[%s562 + $0x14] sm:$0xf]
        %v569 = vld [vmem:[%s562 + $0x18] sm:$0xf]
        %v570 = vld [vmem:[%s562 + $0x1c] sm:$0xf]
        %v573 = vunpack.c.l.s4 1983009808
        %v574 = vunpack.c.0.s8 %v573
        %v575 = vlaneseq
        %v576 = vshrl.u32 %v575, 7
        %v577 = vsub.s32 %v574, %v576
        %v578 = vrot.slane %v561, %v577
        %v580 = vshrl.u32 %v578, 16
        %v582 = vshll.u32 %v578, 16
        %v584 = vrot.slane %v582, 1
        %v585 = vor.u32 %v580, %v584
        %v594 = vunpack.c.l.b16 %v563
        %v595 = vunpack.c.l.b16 %v564
        %v596 = vunpack.c.l.b16 %v565
        %v597 = vunpack.c.l.b16 %v566
        %v598 = vunpack.c.l.b16 %v567
        %v599 = vunpack.c.l.b16 %v568
        %v600 = vunpack.c.l.b16 %v569
        %v601 = vunpack.c.l.b16 %v570
        %v602 = vpack.c.b16 %v595, %v594
        %v603 = vpack.c.b16 %v597, %v596
        %v604 = vpack.c.b16 %v599, %v598
        %v605 = vpack.c.b16 %v601, %v600
        %v611 = vsel %vm282, %v585, 0
        %613 = vmatprep.subr.bf16.mxu0 0
        %614 = vmatpush1.bf16.msra.mxu0 0
        %615 = vmatprep.subr.bf16.mxu0 0
        %616 = vmatpush1.bf16.msra.mxu0 0
        %617 = vmatprep.subr.bf16.mxu0 0
        %618 = vmatpush1.bf16.msra.mxu0 0
        %619 = vmatprep.subr.bf16.mxu0 0
        %620 = vmatpush1.bf16.msra.mxu0 0
        %621 = vmatprep.subr.bf16.mxu0 0
        %622 = vmatpush1.bf16.msra.mxu0 %v605
        %623 = vmatprep.subr.bf16.mxu0 0
        %624 = vmatpush1.bf16.msra.mxu0 %v604
        %625 = vmatprep.subr.bf16.mxu0 0
        %626 = vmatpush1.bf16.msra.mxu0 %v603
        %627 = vmatprep.subr.bf16.mxu0 0
        %628 = vmatpush1.bf16.msra.mxu0 %v602
        %629 = vmatprep.subr.bf16.mxu0 0
        %630 = vmatpush2.bf16.msra.mxu0 0
        %631 = vmatprep.subr.bf16.mxu0 0
        %632 = vmatpush2.bf16.msra.mxu0 0
        %633 = vmatprep.subr.bf16.mxu0 0
        %634 = vmatpush2.bf16.msra.mxu0 0
        %635 = vmatprep.subr.bf16.mxu0 0
        %636 = vmatpush2.bf16.msra.mxu0 0
        %637 = vmatprep.subr.bf16.mxu0 0
        %638 = vmatpush2.bf16.msra.mxu0 0
        %639 = vmatprep.subr.bf16.mxu0 0
        %640 = vmatpush2.bf16.msra.mxu0 0
        %641 = vmatprep.subr.bf16.mxu0 0
        %642 = vmatpush2.bf16.msra.mxu0 0
        %643 = vmatprep.subr.bf16.mxu0 0
        %644 = vmatpush2.bf16.msra.mxu0 0
        %645 = vmatprep.mubr.bf16.mxu0 0
        %646 = vmatmul.mubr.bf16.gmra.mxu0 %v611
        %v647 = vpop.f32.mrf.mxu0
        %v648 = vadd.f32 0.0, %v647
        %v649 = vpop.f32.mrf.mxu0
        %v650 = vpop.f32.mrf.mxu0
        %v651 = vpop.f32.mrf.mxu0
        %652 = vdwg.mxu0
        %v653 = vadd.f32 %v560, %v648
        %v654 = vld [vmem:[%s482] sm:$0x2]
        %s655 = scalar_lea.vmem %s1, 160
        %v656 = vld [vmem:[%s655] sm:$0xf]
        %v657 = vld [vmem:[%s655 + $0x4] sm:$0xf]
        %v658 = vld [vmem:[%s655 + $0x8] sm:$0xf]
        %v659 = vld [vmem:[%s655 + $0xc] sm:$0xf]
        %v660 = vld [vmem:[%s655 + $0x10] sm:$0xf]
        %v661 = vld [vmem:[%s655 + $0x14] sm:$0xf]
        %v662 = vld [vmem:[%s655 + $0x18] sm:$0xf]
        %v663 = vld [vmem:[%s655 + $0x1c] sm:$0xf]
        %v666 = vunpack.c.l.s4 1983009808
        %v667 = vunpack.c.0.s8 %v666
        %v668 = vlaneseq
        %v669 = vshrl.u32 %v668, 7
        %v670 = vsub.s32 %v667, %v669
        %v671 = vrot.slane %v654, %v670
        %v672 = vrot.slane %v671, 1
        %v681 = vunpack.c.l.b16 %v656
        %v682 = vunpack.c.l.b16 %v657
        %v683 = vunpack.c.l.b16 %v658
        %v684 = vunpack.c.l.b16 %v659
        %v685 = vunpack.c.l.b16 %v660
        %v686 = vunpack.c.l.b16 %v661
        %v687 = vunpack.c.l.b16 %v662
        %v688 = vunpack.c.l.b16 %v663
        %v689 = vpack.c.b16 %v682, %v681
        %v690 = vpack.c.b16 %v684, %v683
        %v691 = vpack.c.b16 %v686, %v685
        %v692 = vpack.c.b16 %v688, %v687
        %v698 = vsel %vm282, %v672, 0
        %700 = vmatprep.subr.bf16.mxu0 0
        %701 = vmatpush1.bf16.msra.mxu0 0
        %702 = vmatprep.subr.bf16.mxu0 0
        %703 = vmatpush1.bf16.msra.mxu0 0
        %704 = vmatprep.subr.bf16.mxu0 0
        %705 = vmatpush1.bf16.msra.mxu0 0
        %706 = vmatprep.subr.bf16.mxu0 0
        %707 = vmatpush1.bf16.msra.mxu0 0
        %708 = vmatprep.subr.bf16.mxu0 0
        %709 = vmatpush1.bf16.msra.mxu0 %v692
        %710 = vmatprep.subr.bf16.mxu0 0
        %711 = vmatpush1.bf16.msra.mxu0 %v691
        %712 = vmatprep.subr.bf16.mxu0 0
        %713 = vmatpush1.bf16.msra.mxu0 %v690
        %714 = vmatprep.subr.bf16.mxu0 0
        %715 = vmatpush1.bf16.msra.mxu0 %v689
        %716 = vmatprep.subr.bf16.mxu0 0
        %717 = vmatpush2.bf16.msra.mxu0 0
        %718 = vmatprep.subr.bf16.mxu0 0
        %719 = vmatpush2.bf16.msra.mxu0 0
        %720 = vmatprep.subr.bf16.mxu0 0
        %721 = vmatpush2.bf16.msra.mxu0 0
        %722 = vmatprep.subr.bf16.mxu0 0
        %723 = vmatpush2.bf16.msra.mxu0 0
        %724 = vmatprep.subr.bf16.mxu0 0
        %725 = vmatpush2.bf16.msra.mxu0 0
        %726 = vmatprep.subr.bf16.mxu0 0
        %727 = vmatpush2.bf16.msra.mxu0 0
        %728 = vmatprep.subr.bf16.mxu0 0
        %729 = vmatpush2.bf16.msra.mxu0 0
        %730 = vmatprep.subr.bf16.mxu0 0
        %731 = vmatpush2.bf16.msra.mxu0 0
        %732 = vmatprep.mubr.bf16.mxu0 0
        %733 = vmatmul.mubr.bf16.gmra.mxu0 %v698
        %v734 = vpop.f32.mrf.mxu0
        %v735 = vadd.f32 0.0, %v734
        %v736 = vpop.f32.mrf.mxu0
        %v737 = vpop.f32.mrf.mxu0
        %v738 = vpop.f32.mrf.mxu0
        %739 = vdwg.mxu0
        %v740 = vadd.f32 %v653, %v735
        %s741 = sadd.s32 %s215, 2
        %s742 = smul.addr %s741, 2
        %s743 = scalar_lea.vmem %s202, %s742
        %v744 = vld [vmem:[%s743] sm:$0x1]
        %s745 = scalar_lea.vmem %s1, 192
        %v746 = vld [vmem:[%s745] sm:$0xf]
        %v747 = vld [vmem:[%s745 + $0x4] sm:$0xf]
        %v748 = vld [vmem:[%s745 + $0x8] sm:$0xf]
        %v749 = vld [vmem:[%s745 + $0xc] sm:$0xf]
        %v750 = vld [vmem:[%s745 + $0x10] sm:$0xf]
        %v751 = vld [vmem:[%s745 + $0x14] sm:$0xf]
        %v752 = vld [vmem:[%s745 + $0x18] sm:$0xf]
        %v753 = vld [vmem:[%s745 + $0x1c] sm:$0xf]
        %v762 = vunpack.c.l.b16 %v746
        %v763 = vunpack.c.l.b16 %v747
        %v764 = vunpack.c.l.b16 %v748
        %v765 = vunpack.c.l.b16 %v749
        %v766 = vunpack.c.l.b16 %v750
        %v767 = vunpack.c.l.b16 %v751
        %v768 = vunpack.c.l.b16 %v752
        %v769 = vunpack.c.l.b16 %v753
        %v770 = vpack.c.b16 %v763, %v762
        %v771 = vpack.c.b16 %v765, %v764
        %v772 = vpack.c.b16 %v767, %v766
        %v773 = vpack.c.b16 %v769, %v768
        %v779 = vsel %vm282, %v744, 0
        %781 = vmatprep.subr.bf16.mxu0 0
        %782 = vmatpush1.bf16.msra.mxu0 0
        %783 = vmatprep.subr.bf16.mxu0 0
        %784 = vmatpush1.bf16.msra.mxu0 0
        %785 = vmatprep.subr.bf16.mxu0 0
        %786 = vmatpush1.bf16.msra.mxu0 0
        %787 = vmatprep.subr.bf16.mxu0 0
        %788 = vmatpush1.bf16.msra.mxu0 0
        %789 = vmatprep.subr.bf16.mxu0 0
        %790 = vmatpush1.bf16.msra.mxu0 %v773
        %791 = vmatprep.subr.bf16.mxu0 0
        %792 = vmatpush1.bf16.msra.mxu0 %v772
        %793 = vmatprep.subr.bf16.mxu0 0
        %794 = vmatpush1.bf16.msra.mxu0 %v771
        %795 = vmatprep.subr.bf16.mxu0 0
        %796 = vmatpush1.bf16.msra.mxu0 %v770
        %797 = vmatprep.subr.bf16.mxu0 0
        %798 = vmatpush2.bf16.msra.mxu0 0
        %799 = vmatprep.subr.bf16.mxu0 0
        %800 = vmatpush2.bf16.msra.mxu0 0
        %801 = vmatprep.subr.bf16.mxu0 0
        %802 = vmatpush2.bf16.msra.mxu0 0
        %803 = vmatprep.subr.bf16.mxu0 0
        %804 = vmatpush2.bf16.msra.mxu0 0
        %805 = vmatprep.subr.bf16.mxu0 0
        %806 = vmatpush2.bf16.msra.mxu0 0
        %807 = vmatprep.subr.bf16.mxu0 0
        %808 = vmatpush2.bf16.msra.mxu0 0
        %809 = vmatprep.subr.bf16.mxu0 0
        %810 = vmatpush2.bf16.msra.mxu0 0
        %811 = vmatprep.subr.bf16.mxu0 0
        %812 = vmatpush2.bf16.msra.mxu0 0
        %813 = vmatprep.mubr.bf16.mxu0 0
        %814 = vmatmul.mubr.bf16.gmra.mxu0 %v779
        %v815 = vpop.f32.mrf.mxu0
        %v816 = vadd.f32 0.0, %v815
        %v817 = vpop.f32.mrf.mxu0
        %v818 = vpop.f32.mrf.mxu0
        %v819 = vpop.f32.mrf.mxu0
        %820 = vdwg.mxu0
        %v821 = vadd.f32 %v740, %v816
        %v822 = vld [vmem:[%s743] sm:$0x3]
        %s823 = scalar_lea.vmem %s1, 224
        %v824 = vld [vmem:[%s823] sm:$0xf]
        %v825 = vld [vmem:[%s823 + $0x4] sm:$0xf]
        %v826 = vld [vmem:[%s823 + $0x8] sm:$0xf]
        %v827 = vld [vmem:[%s823 + $0xc] sm:$0xf]
        %v828 = vld [vmem:[%s823 + $0x10] sm:$0xf]
        %v829 = vld [vmem:[%s823 + $0x14] sm:$0xf]
        %v830 = vld [vmem:[%s823 + $0x18] sm:$0xf]
        %v831 = vld [vmem:[%s823 + $0x1c] sm:$0xf]
        %v834 = vunpack.c.l.s4 1983009808
        %v835 = vunpack.c.0.s8 %v834
        %v836 = vlaneseq
        %v837 = vshrl.u32 %v836, 7
        %v838 = vsub.s32 %v835, %v837
        %v839 = vrot.slane %v822, %v838
        %v841 = vshrl.u32 %v839, 16
        %v843 = vshll.u32 %v839, 16
        %v845 = vrot.slane %v843, 1
        %v846 = vor.u32 %v841, %v845
        %v855 = vunpack.c.l.b16 %v824
        %v856 = vunpack.c.l.b16 %v825
        %v857 = vunpack.c.l.b16 %v826
        %v858 = vunpack.c.l.b16 %v827
        %v859 = vunpack.c.l.b16 %v828
        %v860 = vunpack.c.l.b16 %v829
        %v861 = vunpack.c.l.b16 %v830
        %v862 = vunpack.c.l.b16 %v831
        %v863 = vpack.c.b16 %v856, %v855
        %v864 = vpack.c.b16 %v858, %v857
        %v865 = vpack.c.b16 %v860, %v859
        %v866 = vpack.c.b16 %v862, %v861
        %v872 = vsel %vm282, %v846, 0
        %874 = vmatprep.subr.bf16.mxu0 0
        %875 = vmatpush1.bf16.msra.mxu0 0
        %876 = vmatprep.subr.bf16.mxu0 0
        %877 = vmatpush1.bf16.msra.mxu0 0
        %878 = vmatprep.subr.bf16.mxu0 0
        %879 = vmatpush1.bf16.msra.mxu0 0
        %880 = vmatprep.subr.bf16.mxu0 0
        %881 = vmatpush1.bf16.msra.mxu0 0
        %882 = vmatprep.subr.bf16.mxu0 0
        %883 = vmatpush1.bf16.msra.mxu0 %v866
        %884 = vmatprep.subr.bf16.mxu0 0
        %885 = vmatpush1.bf16.msra.mxu0 %v865
        %886 = vmatprep.subr.bf16.mxu0 0
        %887 = vmatpush1.bf16.msra.mxu0 %v864
        %888 = vmatprep.subr.bf16.mxu0 0
        %889 = vmatpush1.bf16.msra.mxu0 %v863
        %890 = vmatprep.subr.bf16.mxu0 0
        %891 = vmatpush2.bf16.msra.mxu0 0
        %892 = vmatprep.subr.bf16.mxu0 0
        %893 = vmatpush2.bf16.msra.mxu0 0
        %894 = vmatprep.subr.bf16.mxu0 0
        %895 = vmatpush2.bf16.msra.mxu0 0
        %896 = vmatprep.subr.bf16.mxu0 0
        %897 = vmatpush2.bf16.msra.mxu0 0
        %898 = vmatprep.subr.bf16.mxu0 0
        %899 = vmatpush2.bf16.msra.mxu0 0
        %900 = vmatprep.subr.bf16.mxu0 0
        %901 = vmatpush2.bf16.msra.mxu0 0
        %902 = vmatprep.subr.bf16.mxu0 0
        %903 = vmatpush2.bf16.msra.mxu0 0
        %904 = vmatprep.subr.bf16.mxu0 0
        %905 = vmatpush2.bf16.msra.mxu0 0
        %906 = vmatprep.mubr.bf16.mxu0 0
        %907 = vmatmul.mubr.bf16.gmra.mxu0 %v872
        %v908 = vpop.f32.mrf.mxu0
        %v909 = vadd.f32 0.0, %v908
        %v910 = vpop.f32.mrf.mxu0
        %v911 = vpop.f32.mrf.mxu0
        %v912 = vpop.f32.mrf.mxu0
        %913 = vdwg.mxu0
        %v914 = vadd.f32 %v821, %v909
        %v915 = vld [vmem:[%s743] sm:$0x2]
        %s916 = scalar_lea.vmem %s1, 256
        %v917 = vld [vmem:[%s916] sm:$0xf]
        %v918 = vld [vmem:[%s916 + $0x4] sm:$0xf]
        %v919 = vld [vmem:[%s916 + $0x8] sm:$0xf]
        %v920 = vld [vmem:[%s916 + $0xc] sm:$0xf]
        %v921 = vld [vmem:[%s916 + $0x10] sm:$0xf]
        %v922 = vld [vmem:[%s916 + $0x14] sm:$0xf]
        %v923 = vld [vmem:[%s916 + $0x18] sm:$0xf]
        %v924 = vld [vmem:[%s916 + $0x1c] sm:$0xf]
        %v927 = vunpack.c.l.s4 1983009808
        %v928 = vunpack.c.0.s8 %v927
        %v929 = vlaneseq
        %v930 = vshrl.u32 %v929, 7
        %v931 = vsub.s32 %v928, %v930
        %v932 = vrot.slane %v915, %v931
        %v933 = vrot.slane %v932, 1
        %v942 = vunpack.c.l.b16 %v917
        %v943 = vunpack.c.l.b16 %v918
        %v944 = vunpack.c.l.b16 %v919
        %v945 = vunpack.c.l.b16 %v920
        %v946 = vunpack.c.l.b16 %v921
        %v947 = vunpack.c.l.b16 %v922
        %v948 = vunpack.c.l.b16 %v923
        %v949 = vunpack.c.l.b16 %v924
        %v950 = vpack.c.b16 %v943, %v942
        %v951 = vpack.c.b16 %v945, %v944
        %v952 = vpack.c.b16 %v947, %v946
        %v953 = vpack.c.b16 %v949, %v948
        %v959 = vsel %vm282, %v933, 0
        %961 = vmatprep.subr.bf16.mxu0 0
        %962 = vmatpush1.bf16.msra.mxu0 0
        %963 = vmatprep.subr.bf16.mxu0 0
        %964 = vmatpush1.bf16.msra.mxu0 0
        %965 = vmatprep.subr.bf16.mxu0 0
        %966 = vmatpush1.bf16.msra.mxu0 0
        %967 = vmatprep.subr.bf16.mxu0 0
        %968 = vmatpush1.bf16.msra.mxu0 0
        %969 = vmatprep.subr.bf16.mxu0 0
        %970 = vmatpush1.bf16.msra.mxu0 %v953
        %971 = vmatprep.subr.bf16.mxu0 0
        %972 = vmatpush1.bf16.msra.mxu0 %v952
        %973 = vmatprep.subr.bf16.mxu0 0
        %974 = vmatpush1.bf16.msra.mxu0 %v951
        %975 = vmatprep.subr.bf16.mxu0 0
        %976 = vmatpush1.bf16.msra.mxu0 %v950
        %977 = vmatprep.subr.bf16.mxu0 0
        %978 = vmatpush2.bf16.msra.mxu0 0
        %979 = vmatprep.subr.bf16.mxu0 0
        %980 = vmatpush2.bf16.msra.mxu0 0
        %981 = vmatprep.subr.bf16.mxu0 0
        %982 = vmatpush2.bf16.msra.mxu0 0
        %983 = vmatprep.subr.bf16.mxu0 0
        %984 = vmatpush2.bf16.msra.mxu0 0
        %985 = vmatprep.subr.bf16.mxu0 0
        %986 = vmatpush2.bf16.msra.mxu0 0
        %987 = vmatprep.subr.bf16.mxu0 0
        %988 = vmatpush2.bf16.msra.mxu0 0
        %989 = vmatprep.subr.bf16.mxu0 0
        %990 = vmatpush2.bf16.msra.mxu0 0
        %991 = vmatprep.subr.bf16.mxu0 0
        %992 = vmatpush2.bf16.msra.mxu0 0
        %993 = vmatprep.mubr.bf16.mxu0 0
        %994 = vmatmul.mubr.bf16.gmra.mxu0 %v959
        %v995 = vpop.f32.mrf.mxu0
        %v996 = vadd.f32 0.0, %v995
        %v997 = vpop.f32.mrf.mxu0
        %v998 = vpop.f32.mrf.mxu0
        %v999 = vpop.f32.mrf.mxu0
        %1000 = vdwg.mxu0
        %v1001 = vadd.f32 %v914, %v996
        %v1002 = vpack.c.bf16 %v1001, %v1001
        %s1003 = scalar_lea.vmem %s206, %s215
        %1004 = vst [vmem:[%s1003] sm:$0x1] %v1002
        %vm1005 = vcmask 1041408
        %v1006 = vsel %vm1005, %v1001, 0.0
        %v1007 = vrot.slane %v1006, 4
        %v1008 = vadd.f32 %v1006, %v1007
        %v1009 = vrot.slane %v1008, 2
        %v1010 = vadd.f32 %v1008, %v1009
        %v1011 = vrot.slane %v1010, 1
        %v1012 = vadd.f32 %v1010, %v1011
        %v1013 = vadd.f32 %v220, %v1012
        %v1014 = vmul.f32 %v1001, %v1001
        %v1015 = vsel %vm1005, %v1014, 0.0
        %v1016 = vrot.slane %v1015, 4
        %v1017 = vadd.f32 %v1015, %v1016
        %v1018 = vrot.slane %v1017, 2
        %v1019 = vadd.f32 %v1017, %v1018
        %v1020 = vrot.slane %v1019, 1
        %v1021 = vadd.f32 %v1019, %v1020
        %v1022 = vadd.f32 %v221, %v1021
      $region33: #{_lambda_.15} parent=27 // loop_footer
        %s219 = sadd.s32 1, %s215
      $region34: #{_lambda_.15} parent=27 // loop_footer_branch
        %214 = sbr.rel target = $region30
      $region35: #{_lambda_.15} parent=27 // loop_exit
        _
      %1023 = vst [vmem:[%s209] sm:$0x1] %v220
      %1024 = vst [vmem:[%s212] sm:$0x1] %v221
      %p1025 = scmp.lt.s32.totalorder %s16, 1
      %s1026 = scalar_select %p1025, %s16, 1
      %s1027 = smul.addr %s1026, 2
      %s1028 = scalar_lea.vmem %s2, %s1027
      %p1029 = scmp.lt.s32.totalorder %s16, 1
      %s1030 = scalar_select %p1029, %s16, 1
      %s1031 = scalar_lea.vmem %s3, %s1030
      %p1032 = scmp.lt.s32.totalorder %s16, 1
      %s1033 = scalar_select %p1032, %s16, 1
      %s1034 = scalar_lea.vmem %s4, %s1033
      // Predicated region
      $region36: #{_lambda_.15} parent=27 // pred_check
        %p1035 = pneg %p81
      $region37: #{_lambda_.15} parent=27 // pred_check_branch
        %1037 = sbr.rel (%p1035) target = $region39
      $region38: #{_lambda_.15} parent=27 // pred_region
        _
      $region39: #{_lambda_.15} parent=27 // pred_fallthru
        _
      // Predicated region
      $region40: #{_lambda_.15} parent=27 // pred_check
        %p1038 = pneg %p107
      $region41: #{_lambda_.15} parent=27 // pred_check_branch
        %1040 = sbr.rel (%p1038) target = $region43
      $region42: #{_lambda_.15} parent=27 // pred_region
        _
      $region43: #{_lambda_.15} parent=27 // pred_fallthru
        _
      // Predicated region
      $region44: #{_lambda_.15} parent=27 // pred_check
        %p1041 = pneg %p133
      $region45: #{_lambda_.15} parent=27 // pred_check_branch
        %1043 = sbr.rel (%p1041) target = $region47
      $region46: #{_lambda_.15} parent=27 // pred_region
        _
      $region47: #{_lambda_.15} parent=27 // pred_fallthru
        _
    $region28: #{_lambda_.15} parent=5 // pred_fallthru
      _
    %p1044 = scmp.le.s32.totalorder 2, %s11
    // Predicated region
    $region48: #{_lambda_.15} parent=5 // pred_check
      %p1045 = pneg %p1044
    $region49: #{_lambda_.15} parent=5 // pred_check_branch
      %1047 = sbr.rel (%p1045) target = $region51
    $region50: #{_lambda_.15} parent=5 // pred_region
      %s1048 = ssub.s32 %s11, 2
      // Predicated region
      $region52: #{_lambda_.15} parent=50 // pred_check
        %p1049 = pneg %p87
      $region53: #{_lambda_.15} parent=50 // pred_check_branch
        %1051 = sbr.rel (%p1049) target = $region55
      $region54: #{_lambda_.15} parent=50 // pred_region
        %p1052 = scmp.lt.s32.totalorder %s17, 1
        %s1053 = scalar_select %p1052, %s17, 1
        %s1054 = smul.addr %s1053, 2
        %s1055 = scalar_lea.vmem %s2, %s1054
      $region55: #{_lambda_.15} parent=50 // pred_fallthru
        _
      // Predicated region
      $region56: #{_lambda_.15} parent=50 // pred_check
        %p1056 = pneg %p113
      $region57: #{_lambda_.15} parent=50 // pred_check_branch
        %1058 = sbr.rel (%p1056) target = $region59
      $region58: #{_lambda_.15} parent=50 // pred_region
        %p1059 = scmp.lt.s32.totalorder %s17, 1
        %s1060 = scalar_select %p1059, %s17, 1
        %s1061 = scalar_lea.vmem %s3, %s1060
      $region59: #{_lambda_.15} parent=50 // pred_fallthru
        _
      // Predicated region
      $region60: #{_lambda_.15} parent=50 // pred_check
        %p1062 = pneg %p139
      $region61: #{_lambda_.15} parent=50 // pred_check_branch
        %1064 = sbr.rel (%p1062) target = $region63
      $region62: #{_lambda_.15} parent=50 // pred_region
        %p1065 = scmp.lt.s32.totalorder %s17, 1
        %s1066 = scalar_select %p1065, %s17, 1
        %s1067 = scalar_lea.vmem %s4, %s1066
      $region63: #{_lambda_.15} parent=50 // pred_fallthru
        _
    $region51: #{_lambda_.15} parent=5 // pred_fallthru
      _
  $region6: #{_lambda_.15} parent=0 // loop_footer
    %s15 = sadd.s32 1, %s11
  $region7: #{_lambda_.15} parent=0 // loop_footer_branch
    %10 = sbr.rel target = $region3
  $region8: #{_lambda_.15} parent=0 // loop_exit
    _

// kernel: _lambda_.17
$region0: #{_lambda_.17}
  #allocation0 [shape = 'u32[]', space=smem, size = 0x4, offset = 0x4, fixed_abs, tag = 'smem constant byte address 0x4 - core index']
  #allocation1 [shape = 'u32[144,128]{1,0:T(1,128)}', space=vmem, size = 0x12000, scoped, tag = 'internal scratch']
  %s0 = inlined_call_operand.vmem [shape: bf16[2,1,128], index: 0, kind: input, shape index: {}]
  %s1 = inlined_call_operand.vmem [shape: f32[1,128], index: 1, kind: input, shape index: {}]
  %s2 = inlined_call_operand.vmem [shape: f32[1,128], index: 2, kind: input, shape index: {}]
  %s3 = inlined_call_operand.vmem [shape: bf16[128,256], index: 3, kind: input, shape index: {}]
  %s4 = inlined_call_operand.vmem [shape: f32[1,256], index: 4, kind: input, shape index: {}, may-alias: {4,6}]
  %s5 = inlined_call_operand.vmem [shape: bf16[256,256], index: 5, kind: input, shape index: {}]
  %s6 = inlined_call_operand.vmem [shape: f32[1,256], index: 6, kind: input, shape index: {}, may-alias: {4,6}]
  %s7 = inlined_call_operand.vmem [shape: bf16[256,8], index: 7, kind: input, shape index: {}]
  %s8 = inlined_call_operand.vmem [shape: f32[1,8], index: 8, kind: input, shape index: {}]
  %s9 = inlined_call_operand.vmem [shape: f32[2,1,8], index: 9, kind: output, shape index: {}]
  %s10 = sld [smem:[#allocation0]]
  $region69: #{_lambda_.17} parent=0
    _
  %s12 = ssub.s32 1, %s10
  %s13 = scalar_select 0, %s12, %s10
  loop: start=0, step=1, limit=4
  $region2: #{_lambda_.17} parent=0 // loop_pre_header
    _
  $region3: #{_lambda_.17} parent=0 // loop_header
    %s15 = sphi 0, %s19
    %p16 = scmp.ge.s32.totalorder %s15, 4
    %s25 = sphi 0, %s27
    %s28 = sphi 0, %s25
    %s29 = sphi 0, %s28
    %s45 = sphi 0, %s29
    %s49 = sphi 0, %s49
    %s51 = sphi 0, %s49
    %s52 = sphi 0, %s51
    %s66 = sphi 0, %s52
    %s70 = sphi 0, %s70
    %s72 = sphi 0, %s70
    %s73 = sphi 0, %s72
    %s87 = sphi 0, %s73
    %s91 = sphi 0, %s91
    %s93 = sphi 0, %s91
    %s94 = sphi 0, %s93
    %s108 = sphi 0, %s94
    %s112 = sphi 0, %s112
    %s114 = sphi 0, %s112
    %s115 = sphi 0, %s114
    %s129 = sphi 0, %s115
    %s133 = sphi 0, %s133
    %s135 = sphi 0, %s133
    %s136 = sphi 0, %s135
    %s150 = sphi 0, %s136
    %s154 = sphi 0, %s154
    %s156 = sphi 0, %s154
    %s157 = sphi 0, %s156
    %s171 = sphi 0, %s157
    %s175 = sphi 0, %s175
    %s177 = sphi 0, %s175
    %s178 = sphi 0, %s177
    %s192 = sphi 0, %s178
    %s196 = sphi 0, %s196
    %s198 = sphi 0, %s196
    %s199 = sphi 0, %s198
    %s213 = sphi 0, %s199
    %s219 = sphi 0, %s221
    %s222 = sphi 0, %s219
    %s223 = sphi 0, %s222
    %s239 = sphi 0, %s223
  $region4: #{_lambda_.17} parent=0 // loop_header_branch
    %18 = sbr.rel (%p16) target = $region8
  $region5: #{_lambda_.17} parent=0 // loop_body
    %s20 = ssub.s32 %s15, 1
    %s21 = ssub.s32 %s15, 2
    %s22 = sadd.s32 %s15, 1
    %s23 = ssub.s32 %s15, %s22
    %p24 = scmp.eq.s32.totalorder %s23, 0
    %s26 = sadd.s32 %s25, 1
    %s27 = scalar_select %p24, %s25, %s26
    %p30 = pneg %p24
    %p31 = scmp.eq.s32.totalorder %s15, 1
    %p32 = por %p30, %p31
    %p33 = scmp.ne.s32.totalorder %s25, %s28
    %p34 = scmp.eq.s32.totalorder %s15, 0
    %p35 = por %p33, %p34
    %p36 = scmp.ne.s32.totalorder %s25, %s28
    %p37 = scmp.eq.s32.totalorder %s20, 1
    %p38 = por %p36, %p37
    %p39 = scmp.ne.s32.totalorder %s28, %s29
    %p40 = scmp.eq.s32.totalorder %s20, 0
    %p41 = por %p39, %p40
    %p42 = scmp.ne.s32.totalorder %s28, %s29
    %p43 = scmp.eq.s32.totalorder %s21, 1
    %p44 = por %p42, %p43
    %p46 = scmp.ne.s32.totalorder %s29, %s45
    %p47 = scmp.eq.s32.totalorder %s21, 0
    %p48 = por %p46, %p47
    %s50 = sadd.s32 %s49, 1
    %p53 = scmp.eq.s32.totalorder %s15, 1
    %p54 = scmp.ne.s32.totalorder %s49, %s51
    %p55 = scmp.eq.s32.totalorder %s15, 0
    %p56 = por %p54, %p55
    %p57 = scmp.ne.s32.totalorder %s49, %s51
    %p58 = scmp.eq.s32.totalorder %s20, 1
    %p59 = por %p57, %p58
    %p60 = scmp.ne.s32.totalorder %s51, %s52
    %p61 = scmp.eq.s32.totalorder %s20, 0
    %p62 = por %p60, %p61
    %p63 = scmp.ne.s32.totalorder %s51, %s52
    %p64 = scmp.eq.s32.totalorder %s21, 1
    %p65 = por %p63, %p64
    %p67 = scmp.ne.s32.totalorder %s52, %s66
    %p68 = scmp.eq.s32.totalorder %s21, 0
    %p69 = por %p67, %p68
    %s71 = sadd.s32 %s70, 1
    %p74 = scmp.eq.s32.totalorder %s15, 1
    %p75 = scmp.ne.s32.totalorder %s70, %s72
    %p76 = scmp.eq.s32.totalorder %s15, 0
    %p77 = por %p75, %p76
    %p78 = scmp.ne.s32.totalorder %s70, %s72
    %p79 = scmp.eq.s32.totalorder %s20, 1
    %p80 = por %p78, %p79
    %p81 = scmp.ne.s32.totalorder %s72, %s73
    %p82 = scmp.eq.s32.totalorder %s20, 0
    %p83 = por %p81, %p82
    %p84 = scmp.ne.s32.totalorder %s72, %s73
    %p85 = scmp.eq.s32.totalorder %s21, 1
    %p86 = por %p84, %p85
    %p88 = scmp.ne.s32.totalorder %s73, %s87
    %p89 = scmp.eq.s32.totalorder %s21, 0
    %p90 = por %p88, %p89
    %s92 = sadd.s32 %s91, 1
    %p95 = scmp.eq.s32.totalorder %s15, 1
    %p96 = scmp.ne.s32.totalorder %s91, %s93
    %p97 = scmp.eq.s32.totalorder %s15, 0
    %p98 = por %p96, %p97
    %p99 = scmp.ne.s32.totalorder %s91, %s93
    %p100 = scmp.eq.s32.totalorder %s20, 1
    %p101 = por %p99, %p100
    %p102 = scmp.ne.s32.totalorder %s93, %s94
    %p103 = scmp.eq.s32.totalorder %s20, 0
    %p104 = por %p102, %p103
    %p105 = scmp.ne.s32.totalorder %s93, %s94
    %p106 = scmp.eq.s32.totalorder %s21, 1
    %p107 = por %p105, %p106
    %p109 = scmp.ne.s32.totalorder %s94, %s108
    %p110 = scmp.eq.s32.totalorder %s21, 0
    %p111 = por %p109, %p110
    %s113 = sadd.s32 %s112, 1
    %p116 = scmp.eq.s32.totalorder %s15, 1
    %p117 = scmp.ne.s32.totalorder %s112, %s114
    %p118 = scmp.eq.s32.totalorder %s15, 0
    %p119 = por %p117, %p118
    %p120 = scmp.ne.s32.totalorder %s112, %s114
    %p121 = scmp.eq.s32.totalorder %s20, 1
    %p122 = por %p120, %p121
    %p123 = scmp.ne.s32.totalorder %s114, %s115
    %p124 = scmp.eq.s32.totalorder %s20, 0
    %p125 = por %p123, %p124
    %p126 = scmp.ne.s32.totalorder %s114, %s115
    %p127 = scmp.eq.s32.totalorder %s21, 1
    %p128 = por %p126, %p127
    %p130 = scmp.ne.s32.totalorder %s115, %s129
    %p131 = scmp.eq.s32.totalorder %s21, 0
    %p132 = por %p130, %p131
    %s134 = sadd.s32 %s133, 1
    %p137 = scmp.eq.s32.totalorder %s15, 1
    %p138 = scmp.ne.s32.totalorder %s133, %s135
    %p139 = scmp.eq.s32.totalorder %s15, 0
    %p140 = por %p138, %p139
    %p141 = scmp.ne.s32.totalorder %s133, %s135
    %p142 = scmp.eq.s32.totalorder %s20, 1
    %p143 = por %p141, %p142
    %p144 = scmp.ne.s32.totalorder %s135, %s136
    %p145 = scmp.eq.s32.totalorder %s20, 0
    %p146 = por %p144, %p145
    %p147 = scmp.ne.s32.totalorder %s135, %s136
    %p148 = scmp.eq.s32.totalorder %s21, 1
    %p149 = por %p147, %p148
    %p151 = scmp.ne.s32.totalorder %s136, %s150
    %p152 = scmp.eq.s32.totalorder %s21, 0
    %p153 = por %p151, %p152
    %s155 = sadd.s32 %s154, 1
    %p158 = scmp.eq.s32.totalorder %s15, 1
    %p159 = scmp.ne.s32.totalorder %s154, %s156
    %p160 = scmp.eq.s32.totalorder %s15, 0
    %p161 = por %p159, %p160
    %p162 = scmp.ne.s32.totalorder %s154, %s156
    %p163 = scmp.eq.s32.totalorder %s20, 1
    %p164 = por %p162, %p163
    %p165 = scmp.ne.s32.totalorder %s156, %s157
    %p166 = scmp.eq.s32.totalorder %s20, 0
    %p167 = por %p165, %p166
    %p168 = scmp.ne.s32.totalorder %s156, %s157
    %p169 = scmp.eq.s32.totalorder %s21, 1
    %p170 = por %p168, %p169
    %p172 = scmp.ne.s32.totalorder %s157, %s171
    %p173 = scmp.eq.s32.totalorder %s21, 0
    %p174 = por %p172, %p173
    %s176 = sadd.s32 %s175, 1
    %p179 = scmp.eq.s32.totalorder %s15, 1
    %p180 = scmp.ne.s32.totalorder %s175, %s177
    %p181 = scmp.eq.s32.totalorder %s15, 0
    %p182 = por %p180, %p181
    %p183 = scmp.ne.s32.totalorder %s175, %s177
    %p184 = scmp.eq.s32.totalorder %s20, 1
    %p185 = por %p183, %p184
    %p186 = scmp.ne.s32.totalorder %s177, %s178
    %p187 = scmp.eq.s32.totalorder %s20, 0
    %p188 = por %p186, %p187
    %p189 = scmp.ne.s32.totalorder %s177, %s178
    %p190 = scmp.eq.s32.totalorder %s21, 1
    %p191 = por %p189, %p190
    %p193 = scmp.ne.s32.totalorder %s178, %s192
    %p194 = scmp.eq.s32.totalorder %s21, 0
    %p195 = por %p193, %p194
    %s197 = sadd.s32 %s196, 1
    %p200 = scmp.eq.s32.totalorder %s15, 1
    %p201 = scmp.ne.s32.totalorder %s196, %s198
    %p202 = scmp.eq.s32.totalorder %s15, 0
    %p203 = por %p201, %p202
    %p204 = scmp.ne.s32.totalorder %s196, %s198
    %p205 = scmp.eq.s32.totalorder %s20, 1
    %p206 = por %p204, %p205
    %p207 = scmp.ne.s32.totalorder %s198, %s199
    %p208 = scmp.eq.s32.totalorder %s20, 0
    %p209 = por %p207, %p208
    %p210 = scmp.ne.s32.totalorder %s198, %s199
    %p211 = scmp.eq.s32.totalorder %s21, 1
    %p212 = por %p210, %p211
    %p214 = scmp.ne.s32.totalorder %s199, %s213
    %p215 = scmp.eq.s32.totalorder %s21, 0
    %p216 = por %p214, %p215
    %s217 = ssub.s32 %s15, %s22
    %p218 = scmp.eq.s32.totalorder %s217, 0
    %s220 = sadd.s32 %s219, 1
    %s221 = scalar_select %p218, %s219, %s220
    %p224 = pneg %p218
    %p225 = scmp.eq.s32.totalorder %s15, 1
    %p226 = por %p224, %p225
    %p227 = scmp.ne.s32.totalorder %s219, %s222
    %p228 = scmp.eq.s32.totalorder %s15, 0
    %p229 = por %p227, %p228
    %p230 = scmp.ne.s32.totalorder %s219, %s222
    %p231 = scmp.eq.s32.totalorder %s20, 1
    %p232 = por %p230, %p231
    %p233 = scmp.ne.s32.totalorder %s222, %s223
    %p234 = scmp.eq.s32.totalorder %s20, 0
    %p235 = por %p233, %p234
    %p236 = scmp.ne.s32.totalorder %s222, %s223
    %p237 = scmp.eq.s32.totalorder %s21, 1
    %p238 = por %p236, %p237
    %p240 = scmp.ne.s32.totalorder %s223, %s239
    %p241 = scmp.eq.s32.totalorder %s21, 0
    %p242 = por %p240, %p241
    %p243 = scmp.le.s32.totalorder 1, %s15
    %p244 = scmp.lt.s32.totalorder %s15, 3
    %p245 = pnand %p243, %p244
    %p246 = pneg %p245
    // Predicated region
    $region9: #{_lambda_.17} parent=5 // pred_check
      _
    $region10: #{_lambda_.17} parent=5 // pred_check_branch
      %248 = sbr.rel (%p245) target = $region12
    $region11: #{_lambda_.17} parent=5 // pred_region
      %s249 = ssub.s32 %s15, 1
      // Predicated region
      $region13: #{_lambda_.17} parent=11 // pred_check
        %p250 = pneg %p62
      $region14: #{_lambda_.17} parent=11 // pred_check_branch
        %252 = sbr.rel (%p250) target = $region16
      $region15: #{_lambda_.17} parent=11 // pred_region
        _
      $region16: #{_lambda_.17} parent=11 // pred_fallthru
        _
      // Predicated region
      $region17: #{_lambda_.17} parent=11 // pred_check
        %p253 = pneg %p83
      $region18: #{_lambda_.17} parent=11 // pred_check_branch
        %255 = sbr.rel (%p253) target = $region20
      $region19: #{_lambda_.17} parent=11 // pred_region
        _
      $region20: #{_lambda_.17} parent=11 // pred_fallthru
        _
      // Predicated region
      $region21: #{_lambda_.17} parent=11 // pred_check
        %p256 = pneg %p104
      $region22: #{_lambda_.17} parent=11 // pred_check_branch
        %258 = sbr.rel (%p256) target = $region24
      $region23: #{_lambda_.17} parent=11 // pred_region
        _
      $region24: #{_lambda_.17} parent=11 // pred_fallthru
        _
      // Predicated region
      $region25: #{_lambda_.17} parent=11 // pred_check
        %p259 = pneg %p125
      $region26: #{_lambda_.17} parent=11 // pred_check_branch
        %261 = sbr.rel (%p259) target = $region28
      $region27: #{_lambda_.17} parent=11 // pred_region
        _
      $region28: #{_lambda_.17} parent=11 // pred_fallthru
        _
      // Predicated region
      $region29: #{_lambda_.17} parent=11 // pred_check
        %p262 = pneg %p146
      $region30: #{_lambda_.17} parent=11 // pred_check_branch
        %264 = sbr.rel (%p262) target = $region32
      $region31: #{_lambda_.17} parent=11 // pred_region
        _
      $region32: #{_lambda_.17} parent=11 // pred_fallthru
        _
      // Predicated region
      $region33: #{_lambda_.17} parent=11 // pred_check
        %p265 = pneg %p167
      $region34: #{_lambda_.17} parent=11 // pred_check_branch
        %267 = sbr.rel (%p265) target = $region36
      $region35: #{_lambda_.17} parent=11 // pred_region
        _
      $region36: #{_lambda_.17} parent=11 // pred_fallthru
        _
      // Predicated region
      $region37: #{_lambda_.17} parent=11 // pred_check
        %p268 = pneg %p188
      $region38: #{_lambda_.17} parent=11 // pred_check_branch
        %270 = sbr.rel (%p268) target = $region40
      $region39: #{_lambda_.17} parent=11 // pred_region
        _
      $region40: #{_lambda_.17} parent=11 // pred_fallthru
        _
      // Predicated region
      $region41: #{_lambda_.17} parent=11 // pred_check
        %p271 = pneg %p209
      $region42: #{_lambda_.17} parent=11 // pred_check_branch
        %273 = sbr.rel (%p271) target = $region44
      $region43: #{_lambda_.17} parent=11 // pred_region
        _
      $region44: #{_lambda_.17} parent=11 // pred_fallthru
        _
    $region12: #{_lambda_.17} parent=5 // pred_fallthru
      _
    %p274 = scmp.lt.s32.totalorder %s15, 2
    // Predicated region
    $region45: #{_lambda_.17} parent=5 // pred_check
      %p275 = pneg %p274
    $region46: #{_lambda_.17} parent=5 // pred_check_branch
      %277 = sbr.rel (%p275) target = $region48
    $region47: #{_lambda_.17} parent=5 // pred_region
      // Predicated region
      $region49: #{_lambda_.17} parent=47 // pred_check
        %p278 = pneg %p35
      $region50: #{_lambda_.17} parent=47 // pred_check_branch
        %280 = sbr.rel (%p278) target = $region52
      $region51: #{_lambda_.17} parent=47 // pred_region
        %p281 = scmp.lt.s32.totalorder %s15, 1
        %s282 = scalar_select %p281, %s15, 1
        %s283 = scalar_lea.vmem %s0, %s282
      $region52: #{_lambda_.17} parent=47 // pred_fallthru
        _
    $region48: #{_lambda_.17} parent=5 // pred_fallthru
      _
    %p284 = scmp.le.s32.totalorder 1, %s15
    %p285 = scmp.lt.s32.totalorder %s15, 3
    %p286 = pnand %p284, %p285
    %p287 = pneg %p286
    // Predicated region
    $region53: #{_lambda_.17} parent=5 // pred_check
      _
    $region54: #{_lambda_.17} parent=5 // pred_check_branch
      %289 = sbr.rel (%p286) target = $region56
    $region55: #{_lambda_.17} parent=5 // pred_region
      %s290 = ssub.s32 %s15, 1
      %p291 = scmp.lt.s32.totalorder %s20, 1
      %s292 = scalar_select %p291, %s20, 1
      %s293 = scalar_lea.vmem %s0, %s292
      %p294 = pneg %p41
      %p295 = pneg %p38
      %p296 = pneg %p62
      %p297 = pneg %p59
      %p298 = pneg %p83
      %p299 = pneg %p80
      %p300 = pneg %p104
      %p301 = pneg %p101
      %p302 = pneg %p125
      %p303 = pneg %p122
      %p304 = pneg %p146
      %p305 = pneg %p143
      %p306 = pneg %p167
      %p307 = pneg %p164
      %p308 = pneg %p188
      %p309 = pneg %p185
      %p310 = pneg %p209
      %p311 = pneg %p206
      %p312 = pneg %p235
      %p313 = pneg %p232
      %p314 = scmp.lt.s32.totalorder %s20, 1
      %s315 = scalar_select %p314, %s20, 1
      %s316 = scalar_lea.vmem %s9, %s315
      %p317 = scmp.lt.s32.totalorder %s20, 1
      %s318 = scalar_select %p317, %s20, 1
      %s319 = scalar_lea.vmem %s0, %s318
      %p320 = scmp.lt.s32.totalorder %s20, 1
      %s321 = scalar_select %p320, %s20, 1
      %s322 = scalar_lea.vmem %s9, %s321
      %v324 = vld [vmem:[%s319] sm:$0x1]
      %v325 = vunpack.c.l.bf16 %v324
      %v326 = vld [vmem:[%s1] sm:$0x1]
      %v327 = vmul.f32 %v325, %v326
      %v328 = vld [vmem:[%s2] sm:$0x1]
      %v329 = vadd.f32 %v327, %v328
      %vm330 = vcmp.ge.f32.partialorder %v329, 0.0
      %v331 = vmul.f32 %v329, 0.2
      %v332 = vsel %vm330, %v329, %v331
      %v333 = vadd.f32 %v332, 0.0
      %v334 = vpack.c.bf16 %v333, %v333
      %v335 = vld [vmem:[%s3] sm:$0xff]
      %v336 = vld [vmem:[%s3 + $0x8] sm:$0xff]
      %v337 = vld [vmem:[%s3 + $0x10] sm:$0xff]
      %v338 = vld [vmem:[%s3 + $0x18] sm:$0xff]
      %v339 = vld [vmem:[%s3 + $0x20] sm:$0xff]
      %v340 = vld [vmem:[%s3 + $0x28] sm:$0xff]
      %v341 = vld [vmem:[%s3 + $0x30] sm:$0xff]
      %v342 = vld [vmem:[%s3 + $0x38] sm:$0xff]
      %v343 = vld [vmem:[%s3 + $0x40] sm:$0xff]
      %v344 = vld [vmem:[%s3 + $0x48] sm:$0xff]
      %v345 = vld [vmem:[%s3 + $0x50] sm:$0xff]
      %v346 = vld [vmem:[%s3 + $0x58] sm:$0xff]
      %v347 = vld [vmem:[%s3 + $0x60] sm:$0xff]
      %v348 = vld [vmem:[%s3 + $0x68] sm:$0xff]
      %v349 = vld [vmem:[%s3 + $0x70] sm:$0xff]
      %v350 = vld [vmem:[%s3 + $0x78] sm:$0xff]
      %v351 = vld [vmem:[%s4] sm:$0x3]
      %v368 = vunpack.c.l.b16 %v335
      %v369 = vunpack.c.h.b16 %v335
      %v370 = vunpack.c.l.b16 %v336
      %v371 = vunpack.c.h.b16 %v336
      %v372 = vunpack.c.l.b16 %v337
      %v373 = vunpack.c.h.b16 %v337
      %v374 = vunpack.c.l.b16 %v338
      %v375 = vunpack.c.h.b16 %v338
      %v376 = vunpack.c.l.b16 %v339
      %v377 = vunpack.c.h.b16 %v339
      %v378 = vunpack.c.l.b16 %v340
      %v379 = vunpack.c.h.b16 %v340
      %v380 = vunpack.c.l.b16 %v341
      %v381 = vunpack.c.h.b16 %v341
      %v382 = vunpack.c.l.b16 %v342
      %v383 = vunpack.c.h.b16 %v342
      %v384 = vunpack.c.l.b16 %v343
      %v385 = vunpack.c.h.b16 %v343
      %v386 = vunpack.c.l.b16 %v344
      %v387 = vunpack.c.h.b16 %v344
      %v388 = vunpack.c.l.b16 %v345
      %v389 = vunpack.c.h.b16 %v345
      %v390 = vunpack.c.l.b16 %v346
      %v391 = vunpack.c.h.b16 %v346
      %v392 = vunpack.c.l.b16 %v347
      %v393 = vunpack.c.h.b16 %v347
      %v394 = vunpack.c.l.b16 %v348
      %v395 = vunpack.c.h.b16 %v348
      %v396 = vunpack.c.l.b16 %v349
      %v397 = vunpack.c.h.b16 %v349
      %v398 = vunpack.c.l.b16 %v350
      %v399 = vunpack.c.h.b16 %v350
      %v400 = vpack.c.b16 %v370, %v368
      %v401 = vpack.c.b16 %v371, %v369
      %v402 = vpack.c.b16 %v374, %v372
      %v403 = vpack.c.b16 %v375, %v373
      %v404 = vpack.c.b16 %v378, %v376
      %v405 = vpack.c.b16 %v379, %v377
      %v406 = vpack.c.b16 %v382, %v380
      %v407 = vpack.c.b16 %v383, %v381
      %v408 = vpack.c.b16 %v386, %v384
      %v409 = vpack.c.b16 %v387, %v385
      %v410 = vpack.c.b16 %v390, %v388
      %v411 = vpack.c.b16 %v391, %v389
      %v412 = vpack.c.b16 %v394, %v392
      %v413 = vpack.c.b16 %v395, %v393
      %v414 = vpack.c.b16 %v398, %v396
      %v415 = vpack.c.b16 %v399, %v397
      %v433 = vlaneseq
      %v434 = vshrl.u32 %v433, 7
      %v435 = vsub.s32 0, %v434
      %v436 = vrot.slane %v351, %v435
      %v437 = vlaneseq
      %v438 = vshrl.u32 %v437, 7
      %v439 = vsub.s32 1, %v438
      %v440 = vrot.slane %v351, %v439
      %443 = vmatprep.subr.bf16.mxu0 %v415
      %444 = vmatpush1.bf16.msra.mxu0 %v414
      %445 = vmatprep.subr.bf16.mxu0 %v413
      %446 = vmatpush1.bf16.msra.mxu0 %v412
      %447 = vmatprep.subr.bf16.mxu0 %v411
      %448 = vmatpush1.bf16.msra.mxu0 %v410
      %449 = vmatprep.subr.bf16.mxu0 %v409
      %450 = vmatpush1.bf16.msra.mxu0 %v408
      %451 = vmatprep.subr.bf16.mxu0 %v407
      %452 = vmatpush1.bf16.msra.mxu0 %v406
      %453 = vmatprep.subr.bf16.mxu0 %v405
      %454 = vmatpush1.bf16.msra.mxu0 %v404
      %455 = vmatprep.subr.bf16.mxu0 %v403
      %456 = vmatpush1.bf16.msra.mxu0 %v402
      %457 = vmatprep.subr.bf16.mxu0 %v401
      %458 = vmatpush1.bf16.msra.mxu0 %v400
      %459 = vmatprep.subr.bf16.mxu0 0
      %460 = vmatpush2.bf16.msra.mxu0 0
      %461 = vmatprep.subr.bf16.mxu0 0
      %462 = vmatpush2.bf16.msra.mxu0 0
      %463 = vmatprep.subr.bf16.mxu0 0
      %464 = vmatpush2.bf16.msra.mxu0 0
      %465 = vmatprep.subr.bf16.mxu0 0
      %466 = vmatpush2.bf16.msra.mxu0 0
      %467 = vmatprep.subr.bf16.mxu0 0
      %468 = vmatpush2.bf16.msra.mxu0 0
      %469 = vmatprep.subr.bf16.mxu0 0
      %470 = vmatpush2.bf16.msra.mxu0 0
      %471 = vmatprep.subr.bf16.mxu0 0
      %472 = vmatpush2.bf16.msra.mxu0 0
      %473 = vmatprep.subr.bf16.mxu0 0
      %474 = vmatpush2.bf16.msra.mxu0 0
      %475 = vmatprep.mubr.bf16.mxu0 0
      %476 = vmatmul.mubr.bf16.gmra.mxu0 %v334
      %v477 = vpop.f32.mrf.mxu0
      %v478 = vadd.f32 %v436, %v477
      %v479 = vpop.f32.mrf.mxu0
      %v480 = vadd.f32 %v440, %v479
      %v481 = vpop.f32.mrf.mxu0
      %v482 = vpop.f32.mrf.mxu0
      %483 = vdwg.mxu0
      %vm484 = vcmp.ge.f32.partialorder %v478, 0.0
      %vm485 = vcmp.ge.f32.partialorder %v480, 0.0
      %v486 = vmul.f32 %v478, 0.2
      %v487 = vmul.f32 %v480, 0.2
      %v488 = vsel %vm484, %v478, %v486
      %v489 = vsel %vm485, %v480, %v487
      %v490 = vpack.c.bf16 %v488, %v488
      %v491 = vpack.c.bf16 %v489, %v489
      %v492 = vld [vmem:[%s5] sm:$0xff]
      %v493 = vld [vmem:[%s5 + $0x8] sm:$0xff]
      %v494 = vld [vmem:[%s5 + $0x10] sm:$0xff]
      %v495 = vld [vmem:[%s5 + $0x18] sm:$0xff]
      %v496 = vld [vmem:[%s5 + $0x20] sm:$0xff]
      %v497 = vld [vmem:[%s5 + $0x28] sm:$0xff]
      %v498 = vld [vmem:[%s5 + $0x30] sm:$0xff]
      %v499 = vld [vmem:[%s5 + $0x38] sm:$0xff]
      %v500 = vld [vmem:[%s5 + $0x40] sm:$0xff]
      %v501 = vld [vmem:[%s5 + $0x48] sm:$0xff]
      %v502 = vld [vmem:[%s5 + $0x50] sm:$0xff]
      %v503 = vld [vmem:[%s5 + $0x58] sm:$0xff]
      %v504 = vld [vmem:[%s5 + $0x60] sm:$0xff]
      %v505 = vld [vmem:[%s5 + $0x68] sm:$0xff]
      %v506 = vld [vmem:[%s5 + $0x70] sm:$0xff]
      %v507 = vld [vmem:[%s5 + $0x78] sm:$0xff]
      %v508 = vld [vmem:[%s5 + $0x80] sm:$0xff]
      %v509 = vld [vmem:[%s5 + $0x88] sm:$0xff]
      %v510 = vld [vmem:[%s5 + $0x90] sm:$0xff]
      %v511 = vld [vmem:[%s5 + $0x98] sm:$0xff]
      %v512 = vld [vmem:[%s5 + $0xa0] sm:$0xff]
      %v513 = vld [vmem:[%s5 + $0xa8] sm:$0xff]
      %v514 = vld [vmem:[%s5 + $0xb0] sm:$0xff]
      %v515 = vld [vmem:[%s5 + $0xb8] sm:$0xff]
      %v516 = vld [vmem:[%s5 + $0xc0] sm:$0xff]
      %v517 = vld [vmem:[%s5 + $0xc8] sm:$0xff]
      %v518 = vld [vmem:[%s5 + $0xd0] sm:$0xff]
      %v519 = vld [vmem:[%s5 + $0xd8] sm:$0xff]
      %v520 = vld [vmem:[%s5 + $0xe0] sm:$0xff]
      %v521 = vld [vmem:[%s5 + $0xe8] sm:$0xff]
      %v522 = vld [vmem:[%s5 + $0xf0] sm:$0xff]
      %v523 = vld [vmem:[%s5 + $0xf8] sm:$0xff]
      %v524 = vld [vmem:[%s6] sm:$0x3]
      %v557 = vunpack.c.l.b16 %v492
      %v558 = vunpack.c.h.b16 %v492
      %v559 = vunpack.c.l.b16 %v493
      %v560 = vunpack.c.h.b16 %v493
      %v561 = vunpack.c.l.b16 %v494
      %v562 = vunpack.c.h.b16 %v494
      %v563 = vunpack.c.l.b16 %v495
      %v564 = vunpack.c.h.b16 %v495
      %v565 = vunpack.c.l.b16 %v496
      %v566 = vunpack.c.h.b16 %v496
      %v567 = vunpack.c.l.b16 %v497
      %v568 = vunpack.c.h.b16 %v497
      %v569 = vunpack.c.l.b16 %v498
      %v570 = vunpack.c.h.b16 %v498
      %v571 = vunpack.c.l.b16 %v499
      %v572 = vunpack.c.h.b16 %v499
      %v573 = vunpack.c.l.b16 %v500
      %v574 = vunpack.c.h.b16 %v500
      %v575 = vunpack.c.l.b16 %v501
      %v576 = vunpack.c.h.b16 %v501
      %v577 = vunpack.c.l.b16 %v502
      %v578 = vunpack.c.h.b16 %v502
      %v579 = vunpack.c.l.b16 %v503
      %v580 = vunpack.c.h.b16 %v503
      %v581 = vunpack.c.l.b16 %v504
      %v582 = vunpack.c.h.b16 %v504
      %v583 = vunpack.c.l.b16 %v505
      %v584 = vunpack.c.h.b16 %v505
      %v585 = vunpack.c.l.b16 %v506
      %v586 = vunpack.c.h.b16 %v506
      %v587 = vunpack.c.l.b16 %v507
      %v588 = vunpack.c.h.b16 %v507
      %v589 = vunpack.c.l.b16 %v508
      %v590 = vunpack.c.h.b16 %v508
      %v591 = vunpack.c.l.b16 %v509
      %v592 = vunpack.c.h.b16 %v509
      %v593 = vunpack.c.l.b16 %v510
      %v594 = vunpack.c.h.b16 %v510
      %v595 = vunpack.c.l.b16 %v511
      %v596 = vunpack.c.h.b16 %v511
      %v597 = vunpack.c.l.b16 %v512
      %v598 = vunpack.c.h.b16 %v512
      %v599 = vunpack.c.l.b16 %v513
      %v600 = vunpack.c.h.b16 %v513
      %v601 = vunpack.c.l.b16 %v514
      %v602 = vunpack.c.h.b16 %v514
      %v603 = vunpack.c.l.b16 %v515
      %v604 = vunpack.c.h.b16 %v515
      %v605 = vunpack.c.l.b16 %v516
      %v606 = vunpack.c.h.b16 %v516
      %v607 = vunpack.c.l.b16 %v517
      %v608 = vunpack.c.h.b16 %v517
      %v609 = vunpack.c.l.b16 %v518
      %v610 = vunpack.c.h.b16 %v518
      %v611 = vunpack.c.l.b16 %v519
      %v612 = vunpack.c.h.b16 %v519
      %v613 = vunpack.c.l.b16 %v520
      %v614 = vunpack.c.h.b16 %v520
      %v615 = vunpack.c.l.b16 %v521
      %v616 = vunpack.c.h.b16 %v521
      %v617 = vunpack.c.l.b16 %v522
      %v618 = vunpack.c.h.b16 %v522
      %v619 = vunpack.c.l.b16 %v523
      %v620 = vunpack.c.h.b16 %v523
      %v621 = vpack.c.b16 %v559, %v557
      %v622 = vpack.c.b16 %v560, %v558
      %v623 = vpack.c.b16 %v563, %v561
      %v624 = vpack.c.b16 %v564, %v562
      %v625 = vpack.c.b16 %v567, %v565
      %v626 = vpack.c.b16 %v568, %v566
      %v627 = vpack.c.b16 %v571, %v569
      %v628 = vpack.c.b16 %v572, %v570
      %v629 = vpack.c.b16 %v575, %v573
      %v630 = vpack.c.b16 %v576, %v574
      %v631 = vpack.c.b16 %v579, %v577
      %v632 = vpack.c.b16 %v580, %v578
      %v633 = vpack.c.b16 %v583, %v581
      %v634 = vpack.c.b16 %v584, %v582
      %v635 = vpack.c.b16 %v587, %v585
      %v636 = vpack.c.b16 %v588, %v586
      %v637 = vpack.c.b16 %v591, %v589
      %v638 = vpack.c.b16 %v592, %v590
      %v639 = vpack.c.b16 %v595, %v593
      %v640 = vpack.c.b16 %v596, %v594
      %v641 = vpack.c.b16 %v599, %v597
      %v642 = vpack.c.b16 %v600, %v598
      %v643 = vpack.c.b16 %v603, %v601
      %v644 = vpack.c.b16 %v604, %v602
      %v645 = vpack.c.b16 %v607, %v605
      %v646 = vpack.c.b16 %v608, %v606
      %v647 = vpack.c.b16 %v611, %v609
      %v648 = vpack.c.b16 %v612, %v610
      %v649 = vpack.c.b16 %v615, %v613
      %v650 = vpack.c.b16 %v616, %v614
      %v651 = vpack.c.b16 %v619, %v617
      %v652 = vpack.c.b16 %v620, %v618
      %v686 = vlaneseq
      %v687 = vshrl.u32 %v686, 7
      %v688 = vsub.s32 0, %v687
      %v689 = vrot.slane %v524, %v688
      %v690 = vlaneseq
      %v691 = vshrl.u32 %v690, 7
      %v692 = vsub.s32 1, %v691
      %v693 = vrot.slane %v524, %v692
      %696 = vmatprep.subr.bf16.mxu0 %v636
      %697 = vmatpush1.bf16.msra.mxu0 %v635
      %698 = vmatprep.subr.bf16.mxu0 %v634
      %699 = vmatpush1.bf16.msra.mxu0 %v633
      %700 = vmatprep.subr.bf16.mxu0 %v632
      %701 = vmatpush1.bf16.msra.mxu0 %v631
      %702 = vmatprep.subr.bf16.mxu0 %v630
      %703 = vmatpush1.bf16.msra.mxu0 %v629
      %704 = vmatprep.subr.bf16.mxu0 %v628
      %705 = vmatpush1.bf16.msra.mxu0 %v627
      %706 = vmatprep.subr.bf16.mxu0 %v626
      %707 = vmatpush1.bf16.msra.mxu0 %v625
      %708 = vmatprep.subr.bf16.mxu0 %v624
      %709 = vmatpush1.bf16.msra.mxu0 %v623
      %710 = vmatprep.subr.bf16.mxu0 %v622
      %711 = vmatpush1.bf16.msra.mxu0 %v621
      %712 = vmatprep.subr.bf16.mxu0 %v652
      %713 = vmatpush2.bf16.msra.mxu0 %v651
      %714 = vmatprep.subr.bf16.mxu0 %v650
      %715 = vmatpush2.bf16.msra.mxu0 %v649
      %716 = vmatprep.subr.bf16.mxu0 %v648
      %717 = vmatpush2.bf16.msra.mxu0 %v647
      %718 = vmatprep.subr.bf16.mxu0 %v646
      %719 = vmatpush2.bf16.msra.mxu0 %v645
      %720 = vmatprep.subr.bf16.mxu0 %v644
      %721 = vmatpush2.bf16.msra.mxu0 %v643
      %722 = vmatprep.subr.bf16.mxu0 %v642
      %723 = vmatpush2.bf16.msra.mxu0 %v641
      %724 = vmatprep.subr.bf16.mxu0 %v640
      %725 = vmatpush2.bf16.msra.mxu0 %v639
      %726 = vmatprep.subr.bf16.mxu0 %v638
      %727 = vmatpush2.bf16.msra.mxu0 %v637
      %728 = vmatprep.mubr.bf16.mxu0 %v491
      %729 = vmatmul.mubr.bf16.gmra.mxu0 %v490
      %v730 = vpop.f32.mrf.mxu0
      %v731 = vadd.f32 %v689, %v730
      %v732 = vpop.f32.mrf.mxu0
      %v733 = vadd.f32 %v693, %v732
      %v734 = vpop.f32.mrf.mxu0
      %v735 = vpop.f32.mrf.mxu0
      %736 = vdwg.mxu0
      %vm737 = vcmp.ge.f32.partialorder %v731, 0.0
      %vm738 = vcmp.ge.f32.partialorder %v733, 0.0
      %v739 = vmul.f32 %v731, 0.2
      %v740 = vmul.f32 %v733, 0.2
      %v741 = vsel %vm737, %v731, %v739
      %v742 = vsel %vm738, %v733, %v740
      %v743 = vpack.c.bf16 %v741, %v741
      %v744 = vpack.c.bf16 %v742, %v742
      %v745 = vld [vmem:[%s7] sm:$0xf]
      %v746 = vld [vmem:[%s7 + $0x4] sm:$0xf]
      %v747 = vld [vmem:[%s7 + $0x8] sm:$0xf]
      %v748 = vld [vmem:[%s7 + $0xc] sm:$0xf]
      %v749 = vld [vmem:[%s7 + $0x10] sm:$0xf]
      %v750 = vld [vmem:[%s7 + $0x14] sm:$0xf]
      %v751 = vld [vmem:[%s7 + $0x18] sm:$0xf]
      %v752 = vld [vmem:[%s7 + $0x1c] sm:$0xf]
      %v753 = vld [vmem:[%s7 + $0x20] sm:$0xf]
      %v754 = vld [vmem:[%s7 + $0x24] sm:$0xf]
      %v755 = vld [vmem:[%s7 + $0x28] sm:$0xf]
      %v756 = vld [vmem:[%s7 + $0x2c] sm:$0xf]
      %v757 = vld [vmem:[%s7 + $0x30] sm:$0xf]
      %v758 = vld [vmem:[%s7 + $0x34] sm:$0xf]
      %v759 = vld [vmem:[%s7 + $0x38] sm:$0xf]
      %v760 = vld [vmem:[%s7 + $0x3c] sm:$0xf]
      %v761 = vld [vmem:[%s7 + $0x40] sm:$0xf]
      %v762 = vld [vmem:[%s7 + $0x44] sm:$0xf]
      %v763 = vld [vmem:[%s7 + $0x48] sm:$0xf]
      %v764 = vld [vmem:[%s7 + $0x4c] sm:$0xf]
      %v765 = vld [vmem:[%s7 + $0x50] sm:$0xf]
      %v766 = vld [vmem:[%s7 + $0x54] sm:$0xf]
      %v767 = vld [vmem:[%s7 + $0x58] sm:$0xf]
      %v768 = vld [vmem:[%s7 + $0x5c] sm:$0xf]
      %v769 = vld [vmem:[%s7 + $0x60] sm:$0xf]
      %v770 = vld [vmem:[%s7 + $0x64] sm:$0xf]
      %v771 = vld [vmem:[%s7 + $0x68] sm:$0xf]
      %v772 = vld [vmem:[%s7 + $0x6c] sm:$0xf]
      %v773 = vld [vmem:[%s7 + $0x70] sm:$0xf]
      %v774 = vld [vmem:[%s7 + $0x74] sm:$0xf]
      %v775 = vld [vmem:[%s7 + $0x78] sm:$0xf]
      %v776 = vld [vmem:[%s7 + $0x7c] sm:$0xf]
      %v777 = vld [vmem:[%s8] sm:$0x1]
      %v810 = vunpack.c.l.b16 %v745
      %v811 = vunpack.c.l.b16 %v746
      %v812 = vunpack.c.l.b16 %v747
      %v813 = vunpack.c.l.b16 %v748
      %v814 = vunpack.c.l.b16 %v749
      %v815 = vunpack.c.l.b16 %v750
      %v816 = vunpack.c.l.b16 %v751
      %v817 = vunpack.c.l.b16 %v752
      %v818 = vunpack.c.l.b16 %v753
      %v819 = vunpack.c.l.b16 %v754
      %v820 = vunpack.c.l.b16 %v755
      %v821 = vunpack.c.l.b16 %v756
      %v822 = vunpack.c.l.b16 %v757
      %v823 = vunpack.c.l.b16 %v758
      %v824 = vunpack.c.l.b16 %v759
      %v825 = vunpack.c.l.b16 %v760
      %v826 = vunpack.c.l.b16 %v761
      %v827 = vunpack.c.l.b16 %v762
      %v828 = vunpack.c.l.b16 %v763
      %v829 = vunpack.c.l.b16 %v764
      %v830 = vunpack.c.l.b16 %v765
      %v831 = vunpack.c.l.b16 %v766
      %v832 = vunpack.c.l.b16 %v767
      %v833 = vunpack.c.l.b16 %v768
      %v834 = vunpack.c.l.b16 %v769
      %v835 = vunpack.c.l.b16 %v770
      %v836 = vunpack.c.l.b16 %v771
      %v837 = vunpack.c.l.b16 %v772
      %v838 = vunpack.c.l.b16 %v773
      %v839 = vunpack.c.l.b16 %v774
      %v840 = vunpack.c.l.b16 %v775
      %v841 = vunpack.c.l.b16 %v776
      %v842 = vpack.c.b16 %v811, %v810
      %v843 = vpack.c.b16 %v813, %v812
      %v844 = vpack.c.b16 %v815, %v814
      %v845 = vpack.c.b16 %v817, %v816
      %v846 = vpack.c.b16 %v819, %v818
      %v847 = vpack.c.b16 %v821, %v820
      %v848 = vpack.c.b16 %v823, %v822
      %v849 = vpack.c.b16 %v825, %v824
      %v850 = vpack.c.b16 %v827, %v826
      %v851 = vpack.c.b16 %v829, %v828
      %v852 = vpack.c.b16 %v831, %v830
      %v853 = vpack.c.b16 %v833, %v832
      %v854 = vpack.c.b16 %v835, %v834
      %v855 = vpack.c.b16 %v837, %v836
      %v856 = vpack.c.b16 %v839, %v838
      %v857 = vpack.c.b16 %v841, %v840
      %874 = vmatprep.subr.bf16.mxu0 0
      %875 = vmatpush1.bf16.msra.mxu0 %v849
      %876 = vmatprep.subr.bf16.mxu0 0
      %877 = vmatpush1.bf16.msra.mxu0 %v848
      %878 = vmatprep.subr.bf16.mxu0 0
      %879 = vmatpush1.bf16.msra.mxu0 %v847
      %880 = vmatprep.subr.bf16.mxu0 0
      %881 = vmatpush1.bf16.msra.mxu0 %v846
      %882 = vmatprep.subr.bf16.mxu0 0
      %883 = vmatpush1.bf16.msra.mxu0 %v845
      %884 = vmatprep.subr.bf16.mxu0 0
      %885 = vmatpush1.bf16.msra.mxu0 %v844
      %886 = vmatprep.subr.bf16.mxu0 0
      %887 = vmatpush1.bf16.msra.mxu0 %v843
      %888 = vmatprep.subr.bf16.mxu0 0
      %889 = vmatpush1.bf16.msra.mxu0 %v842
      %890 = vmatprep.subr.bf16.mxu0 0
      %891 = vmatpush2.bf16.msra.mxu0 %v857
      %892 = vmatprep.subr.bf16.mxu0 0
      %893 = vmatpush2.bf16.msra.mxu0 %v856
      %894 = vmatprep.subr.bf16.mxu0 0
      %895 = vmatpush2.bf16.msra.mxu0 %v855
      %896 = vmatprep.subr.bf16.mxu0 0
      %897 = vmatpush2.bf16.msra.mxu0 %v854
      %898 = vmatprep.subr.bf16.mxu0 0
      %899 = vmatpush2.bf16.msra.mxu0 %v853
      %900 = vmatprep.subr.bf16.mxu0 0
      %901 = vmatpush2.bf16.msra.mxu0 %v852
      %902 = vmatprep.subr.bf16.mxu0 0
      %903 = vmatpush2.bf16.msra.mxu0 %v851
      %904 = vmatprep.subr.bf16.mxu0 0
      %905 = vmatpush2.bf16.msra.mxu0 %v850
      %906 = vmatprep.mubr.bf16.mxu0 %v744
      %907 = vmatmul.mubr.bf16.gmra.mxu0 %v743
      %v908 = vpop.f32.mrf.mxu0
      %v909 = vadd.f32 %v777, %v908
      %v910 = vpop.f32.mrf.mxu0
      %v911 = vpop.f32.mrf.mxu0
      %v912 = vpop.f32.mrf.mxu0
      %913 = vdwg.mxu0
      %vm914 = vcmask 57344
      %915 = vst.msk [vmem:[%s322] sm:$0x1] %vm914, %v909
      %p916 = scmp.lt.s32.totalorder %s20, 1
      %s917 = scalar_select %p916, %s20, 1
      %s918 = scalar_lea.vmem %s9, %s917
      // Predicated region
      $region57: #{_lambda_.17} parent=55 // pred_check
        %p919 = pneg %p232
      $region58: #{_lambda_.17} parent=55 // pred_check_branch
        %921 = sbr.rel (%p919) target = $region60
      $region59: #{_lambda_.17} parent=55 // pred_region
        _
      $region60: #{_lambda_.17} parent=55 // pred_fallthru
        _
    $region56: #{_lambda_.17} parent=5 // pred_fallthru
      _
    %p922 = scmp.le.s32.totalorder 2, %s15
    // Predicated region
    $region61: #{_lambda_.17} parent=5 // pred_check
      %p923 = pneg %p922
    $region62: #{_lambda_.17} parent=5 // pred_check_branch
      %925 = sbr.rel (%p923) target = $region64
    $region63: #{_lambda_.17} parent=5 // pred_region
      %s926 = ssub.s32 %s15, 2
      // Predicated region
      $region65: #{_lambda_.17} parent=63 // pred_check
        %p927 = pneg %p238
      $region66: #{_lambda_.17} parent=63 // pred_check_branch
        %929 = sbr.rel (%p927) target = $region68
      $region67: #{_lambda_.17} parent=63 // pred_region
        %p930 = scmp.lt.s32.totalorder %s21, 1
        %s931 = scalar_select %p930, %s21, 1
        %s932 = scalar_lea.vmem %s9, %s931
      $region68: #{_lambda_.17} parent=63 // pred_fallthru
        _
    $region64: #{_lambda_.17} parent=5 // pred_fallthru
      _
  $region6: #{_lambda_.17} parent=0 // loop_footer
    %s19 = sadd.s32 1, %s15
  $region7: #{_lambda_.17} parent=0 // loop_footer_branch
    %14 = sbr.rel target = $region3
  $region8: #{_lambda_.17} parent=0 // loop_exit
    _

// kernel: _lambda_.16
$region0: #{_lambda_.16}
  #allocation0 [shape = 'u32[]', space=smem, size = 0x4, offset = 0x4, fixed_abs, tag = 'smem constant byte address 0x4 - core index']
  #allocation1 [shape = 'u32[144,128]{1,0:T(1,128)}', space=vmem, size = 0x12000, scoped, tag = 'internal scratch']
  %s0 = inlined_call_operand.vmem [shape: bf16[2,4,4,128], index: 0, kind: input, shape index: {}]
  %s1 = inlined_call_operand.vmem [shape: bf16[9,128,128], index: 1, kind: input, shape index: {}]
  %s2 = inlined_call_operand.vmem [shape: bf16[2,1,1,128], index: 2, kind: output, shape index: {0}]
  %s3 = inlined_call_operand.vmem [shape: f32[2,1,128], index: 3, kind: output, shape index: {1}]
  %s4 = inlined_call_operand.vmem [shape: f32[2,1,128], index: 4, kind: output, shape index: {2}]
  %5 = xla_tuple %s2, %s3, %s4
  %s6 = sld [smem:[#allocation0]]
  $region57: #{_lambda_.16} parent=0
    _
  %s8 = ssub.s32 1, %s6
  %s9 = scalar_select 0, %s8, %s6
  loop: start=0, step=1, limit=4
  $region2: #{_lambda_.16} parent=0 // loop_pre_header
    _
  $region3: #{_lambda_.16} parent=0 // loop_header
    %s11 = sphi 0, %s15
    %p12 = scmp.ge.s32.totalorder %s11, 4
    %s21 = sphi 0, %s23
    %s24 = sphi 0, %s21
    %s25 = sphi 0, %s24
    %s41 = sphi 0, %s25
    %s45 = sphi 0, %s45
    %s47 = sphi 0, %s45
    %s48 = sphi 0, %s47
    %s62 = sphi 0, %s48
    %s68 = sphi 0, %s70
    %s71 = sphi 0, %s68
    %s72 = sphi 0, %s71
    %s88 = sphi 0, %s72
    %s94 = sphi 0, %s96
    %s97 = sphi 0, %s94
    %s98 = sphi 0, %s97
    %s114 = sphi 0, %s98
    %s120 = sphi 0, %s122
    %s123 = sphi 0, %s120
    %s124 = sphi 0, %s123
    %s140 = sphi 0, %s124
  $region4: #{_lambda_.16} parent=0 // loop_header_branch
    %14 = sbr.rel (%p12) target = $region8
  $region5: #{_lambda_.16} parent=0 // loop_body
    %s16 = ssub.s32 %s11, 1
    %s17 = ssub.s32 %s11, 2
    %s18 = sadd.s32 %s11, 1
    %s19 = ssub.s32 %s11, %s18
    %p20 = scmp.eq.s32.totalorder %s19, 0
    %s22 = sadd.s32 %s21, 1
    %s23 = scalar_select %p20, %s21, %s22
    %p26 = pneg %p20
    %p27 = scmp.eq.s32.totalorder %s11, 1
    %p28 = por %p26, %p27
    %p29 = scmp.ne.s32.totalorder %s21, %s24
    %p30 = scmp.eq.s32.totalorder %s11, 0
    %p31 = por %p29, %p30
    %p32 = scmp.ne.s32.totalorder %s21, %s24
    %p33 = scmp.eq.s32.totalorder %s16, 1
    %p34 = por %p32, %p33
    %p35 = scmp.ne.s32.totalorder %s24, %s25
    %p36 = scmp.eq.s32.totalorder %s16, 0
    %p37 = por %p35, %p36
    %p38 = scmp.ne.s32.totalorder %s24, %s25
    %p39 = scmp.eq.s32.totalorder %s17, 1
    %p40 = por %p38, %p39
    %p42 = scmp.ne.s32.totalorder %s25, %s41
    %p43 = scmp.eq.s32.totalorder %s17, 0
    %p44 = por %p42, %p43
    %s46 = sadd.s32 %s45, 1
    %p49 = scmp.eq.s32.totalorder %s11, 1
    %p50 = scmp.ne.s32.totalorder %s45, %s47
    %p51 = scmp.eq.s32.totalorder %s11, 0
    %p52 = por %p50, %p51
    %p53 = scmp.ne.s32.totalorder %s45, %s47
    %p54 = scmp.eq.s32.totalorder %s16, 1
    %p55 = por %p53, %p54
    %p56 = scmp.ne.s32.totalorder %s47, %s48
    %p57 = scmp.eq.s32.totalorder %s16, 0
    %p58 = por %p56, %p57
    %p59 = scmp.ne.s32.totalorder %s47, %s48
    %p60 = scmp.eq.s32.totalorder %s17, 1
    %p61 = por %p59, %p60
    %p63 = scmp.ne.s32.totalorder %s48, %s62
    %p64 = scmp.eq.s32.totalorder %s17, 0
    %p65 = por %p63, %p64
    %s66 = ssub.s32 %s11, %s18
    %p67 = scmp.eq.s32.totalorder %s66, 0
    %s69 = sadd.s32 %s68, 1
    %s70 = scalar_select %p67, %s68, %s69
    %p73 = pneg %p67
    %p74 = scmp.eq.s32.totalorder %s11, 1
    %p75 = por %p73, %p74
    %p76 = scmp.ne.s32.totalorder %s68, %s71
    %p77 = scmp.eq.s32.totalorder %s11, 0
    %p78 = por %p76, %p77
    %p79 = scmp.ne.s32.totalorder %s68, %s71
    %p80 = scmp.eq.s32.totalorder %s16, 1
    %p81 = por %p79, %p80
    %p82 = scmp.ne.s32.totalorder %s71, %s72
    %p83 = scmp.eq.s32.totalorder %s16, 0
    %p84 = por %p82, %p83
    %p85 = scmp.ne.s32.totalorder %s71, %s72
    %p86 = scmp.eq.s32.totalorder %s17, 1
    %p87 = por %p85, %p86
    %p89 = scmp.ne.s32.totalorder %s72, %s88
    %p90 = scmp.eq.s32.totalorder %s17, 0
    %p91 = por %p89, %p90
    %s92 = ssub.s32 %s11, %s18
    %p93 = scmp.eq.s32.totalorder %s92, 0
    %s95 = sadd.s32 %s94, 1
    %s96 = scalar_select %p93, %s94, %s95
    %p99 = pneg %p93
    %p100 = scmp.eq.s32.totalorder %s11, 1
    %p101 = por %p99, %p100
    %p102 = scmp.ne.s32.totalorder %s94, %s97
    %p103 = scmp.eq.s32.totalorder %s11, 0
    %p104 = por %p102, %p103
    %p105 = scmp.ne.s32.totalorder %s94, %s97
    %p106 = scmp.eq.s32.totalorder %s16, 1
    %p107 = por %p105, %p106
    %p108 = scmp.ne.s32.totalorder %s97, %s98
    %p109 = scmp.eq.s32.totalorder %s16, 0
    %p110 = por %p108, %p109
    %p111 = scmp.ne.s32.totalorder %s97, %s98
    %p112 = scmp.eq.s32.totalorder %s17, 1
    %p113 = por %p111, %p112
    %p115 = scmp.ne.s32.totalorder %s98, %s114
    %p116 = scmp.eq.s32.totalorder %s17, 0
    %p117 = por %p115, %p116
    %s118 = ssub.s32 %s11, %s18
    %p119 = scmp.eq.s32.totalorder %s118, 0
    %s121 = sadd.s32 %s120, 1
    %s122 = scalar_select %p119, %s120, %s121
    %p125 = pneg %p119
    %p126 = scmp.eq.s32.totalorder %s11, 1
    %p127 = por %p125, %p126
    %p128 = scmp.ne.s32.totalorder %s120, %s123
    %p129 = scmp.eq.s32.totalorder %s11, 0
    %p130 = por %p128, %p129
    %p131 = scmp.ne.s32.totalorder %s120, %s123
    %p132 = scmp.eq.s32.totalorder %s16, 1
    %p133 = por %p131, %p132
    %p134 = scmp.ne.s32.totalorder %s123, %s124
    %p135 = scmp.eq.s32.totalorder %s16, 0
    %p136 = por %p134, %p135
    %p137 = scmp.ne.s32.totalorder %s123, %s124
    %p138 = scmp.eq.s32.totalorder %s17, 1
    %p139 = por %p137, %p138
    %p141 = scmp.ne.s32.totalorder %s124, %s140
    %p142 = scmp.eq.s32.totalorder %s17, 0
    %p143 = por %p141, %p142
    %p144 = scmp.le.s32.totalorder 1, %s11
    %p145 = scmp.lt.s32.totalorder %s11, 3
    %p146 = pnand %p144, %p145
    %p147 = pneg %p146
    // Predicated region
    $region9: #{_lambda_.16} parent=5 // pred_check
      _
    $region10: #{_lambda_.16} parent=5 // pred_check_branch
      %149 = sbr.rel (%p146) target = $region12
    $region11: #{_lambda_.16} parent=5 // pred_region
      %s150 = ssub.s32 %s11, 1
      // Predicated region
      $region13: #{_lambda_.16} parent=11 // pred_check
        %p151 = pneg %p58
      $region14: #{_lambda_.16} parent=11 // pred_check_branch
        %153 = sbr.rel (%p151) target = $region16
      $region15: #{_lambda_.16} parent=11 // pred_region
        _
      $region16: #{_lambda_.16} parent=11 // pred_fallthru
        _
    $region12: #{_lambda_.16} parent=5 // pred_fallthru
      _
    %p154 = scmp.lt.s32.totalorder %s11, 2
    // Predicated region
    $region17: #{_lambda_.16} parent=5 // pred_check
      %p155 = pneg %p154
    $region18: #{_lambda_.16} parent=5 // pred_check_branch
      %157 = sbr.rel (%p155) target = $region20
    $region19: #{_lambda_.16} parent=5 // pred_region
      // Predicated region
      $region21: #{_lambda_.16} parent=19 // pred_check
        %p158 = pneg %p31
      $region22: #{_lambda_.16} parent=19 // pred_check_branch
        %160 = sbr.rel (%p158) target = $region24
      $region23: #{_lambda_.16} parent=19 // pred_region
        %p161 = scmp.lt.s32.totalorder %s11, 1
        %s162 = scalar_select %p161, %s11, 1
        %s163 = smul.addr %s162, 4
        %s164 = smul.addr %s163, 2
        %s165 = scalar_lea.vmem %s0, %s164
      $region24: #{_lambda_.16} parent=19 // pred_fallthru
        _
    $region20: #{_lambda_.16} parent=5 // pred_fallthru
      _
    %p166 = scmp.le.s32.totalorder 1, %s11
    %p167 = scmp.lt.s32.totalorder %s11, 3
    %p168 = pnand %p166, %p167
    %p169 = pneg %p168
    // Predicated region
    $region25: #{_lambda_.16} parent=5 // pred_check
      _
    $region26: #{_lambda_.16} parent=5 // pred_check_branch
      %171 = sbr.rel (%p168) target = $region28
    $region27: #{_lambda_.16} parent=5 // pred_region
      %s172 = ssub.s32 %s11, 1
      %p173 = scmp.lt.s32.totalorder %s16, 1
      %s174 = scalar_select %p173, %s16, 1
      %s175 = smul.addr %s174, 4
      %s176 = smul.addr %s175, 2
      %s177 = scalar_lea.vmem %s0, %s176
      %p178 = pneg %p37
      %p179 = pneg %p34
      %p180 = pneg %p58
      %p181 = pneg %p55
      %p182 = pneg %p84
      %p183 = pneg %p81
      %p184 = scmp.lt.s32.totalorder %s16, 1
      %s185 = scalar_select %p184, %s16, 1
      %s186 = scalar_lea.vmem %s2, %s185
      %p187 = pneg %p110
      %p188 = pneg %p107
      %p189 = scmp.lt.s32.totalorder %s16, 1
      %s190 = scalar_select %p189, %s16, 1
      %s191 = scalar_lea.vmem %s3, %s190
      %p192 = pneg %p136
      %p193 = pneg %p133
      %p194 = scmp.lt.s32.totalorder %s16, 1
      %s195 = scalar_select %p194, %s16, 1
      %s196 = scalar_lea.vmem %s4, %s195
      %p197 = scmp.lt.s32.totalorder %s16, 1
      %s198 = scalar_select %p197, %s16, 1
      %s199 = smul.addr %s198, 4
      %s200 = smul.addr %s199, 2
      %s201 = scalar_lea.vmem %s0, %s200
      %p202 = scmp.lt.s32.totalorder %s16, 1
      %s203 = scalar_select %p202, %s16, 1
      %s204 = scalar_lea.vmem %s2, %s203
      %p205 = scmp.lt.s32.totalorder %s16, 1
      %s206 = scalar_select %p205, %s16, 1
      %s207 = scalar_lea.vmem %s3, %s206
      %p208 = scmp.lt.s32.totalorder %s16, 1
      %s209 = scalar_select %p208, %s16, 1
      %s210 = scalar_lea.vmem %s4, %s209
      %v212 = vld [vmem:[%s201] sm:$0x1]
      %v213 = vld [vmem:[%s1] sm:$0xf]
      %v214 = vld [vmem:[%s1 + $0x4] sm:$0xf]
      %v215 = vld [vmem:[%s1 + $0x8] sm:$0xf]
      %v216 = vld [vmem:[%s1 + $0xc] sm:$0xf]
      %v217 = vld [vmem:[%s1 + $0x10] sm:$0xf]
      %v218 = vld [vmem:[%s1 + $0x14] sm:$0xf]
      %v219 = vld [vmem:[%s1 + $0x18] sm:$0xf]
      %v220 = vld [vmem:[%s1 + $0x1c] sm:$0xf]
      %v221 = vld [vmem:[%s1 + $0x20] sm:$0xf]
      %v222 = vld [vmem:[%s1 + $0x24] sm:$0xf]
      %v223 = vld [vmem:[%s1 + $0x28] sm:$0xf]
      %v224 = vld [vmem:[%s1 + $0x2c] sm:$0xf]
      %v225 = vld [vmem:[%s1 + $0x30] sm:$0xf]
      %v226 = vld [vmem:[%s1 + $0x34] sm:$0xf]
      %v227 = vld [vmem:[%s1 + $0x38] sm:$0xf]
      %v228 = vld [vmem:[%s1 + $0x3c] sm:$0xf]
      %v229 = vld [vmem:[%s201] sm:$0x2]
      %s230 = scalar_lea.vmem %s1, 64
      %v231 = vld [vmem:[%s230] sm:$0xf]
      %v232 = vld [vmem:[%s230 + $0x4] sm:$0xf]
      %v233 = vld [vmem:[%s230 + $0x8] sm:$0xf]
      %v234 = vld [vmem:[%s230 + $0xc] sm:$0xf]
      %v235 = vld [vmem:[%s230 + $0x10] sm:$0xf]
      %v236 = vld [vmem:[%s230 + $0x14] sm:$0xf]
      %v237 = vld [vmem:[%s230 + $0x18] sm:$0xf]
      %v238 = vld [vmem:[%s230 + $0x1c] sm:$0xf]
      %v239 = vld [vmem:[%s230 + $0x20] sm:$0xf]
      %v240 = vld [vmem:[%s230 + $0x24] sm:$0xf]
      %v241 = vld [vmem:[%s230 + $0x28] sm:$0xf]
      %v242 = vld [vmem:[%s230 + $0x2c] sm:$0xf]
      %v243 = vld [vmem:[%s230 + $0x30] sm:$0xf]
      %v244 = vld [vmem:[%s230 + $0x34] sm:$0xf]
      %v245 = vld [vmem:[%s230 + $0x38] sm:$0xf]
      %v246 = vld [vmem:[%s230 + $0x3c] sm:$0xf]
      %v249 = vunpack.c.l.s4 1983009808
      %v250 = vunpack.c.0.s8 %v249
      %v251 = vlaneseq
      %v252 = vshrl.u32 %v251, 7
      %v253 = vsub.s32 %v250, %v252
      %v254 = vrot.slane %v229, %v253
      %v255 = vrot.slane %v254, 1
      %v273 = vunpack.c.l.b16 %v231
      %v274 = vunpack.c.l.b16 %v232
      %v275 = vunpack.c.l.b16 %v233
      %v276 = vunpack.c.l.b16 %v234
      %v277 = vunpack.c.l.b16 %v235
      %v278 = vunpack.c.l.b16 %v236
      %v279 = vunpack.c.l.b16 %v237
      %v280 = vunpack.c.l.b16 %v238
      %v281 = vunpack.c.l.b16 %v239
      %v282 = vunpack.c.l.b16 %v240
      %v283 = vunpack.c.l.b16 %v241
      %v284 = vunpack.c.l.b16 %v242
      %v285 = vunpack.c.l.b16 %v243
      %v286 = vunpack.c.l.b16 %v244
      %v287 = vunpack.c.l.b16 %v245
      %v288 = vunpack.c.l.b16 %v246
      %v289 = vpack.c.b16 %v274, %v273
      %v290 = vpack.c.b16 %v276, %v275
      %v291 = vpack.c.b16 %v278, %v277
      %v292 = vpack.c.b16 %v280, %v279
      %v293 = vpack.c.b16 %v282, %v281
      %v294 = vpack.c.b16 %v284, %v283
      %v295 = vpack.c.b16 %v286, %v285
      %v296 = vpack.c.b16 %v288, %v287
      %305 = vmatprep.subr.bf16.mxu0 0
      %306 = vmatpush1.bf16.msra.mxu0 %v296
      %307 = vmatprep.subr.bf16.mxu0 0
      %308 = vmatpush1.bf16.msra.mxu0 %v295
      %309 = vmatprep.subr.bf16.mxu0 0
      %310 = vmatpush1.bf16.msra.mxu0 %v294
      %311 = vmatprep.subr.bf16.mxu0 0
      %312 = vmatpush1.bf16.msra.mxu0 %v293
      %313 = vmatprep.subr.bf16.mxu0 0
      %314 = vmatpush1.bf16.msra.mxu0 %v292
      %315 = vmatprep.subr.bf16.mxu0 0
      %316 = vmatpush1.bf16.msra.mxu0 %v291
      %317 = vmatprep.subr.bf16.mxu0 0
      %318 = vmatpush1.bf16.msra.mxu0 %v290
      %319 = vmatprep.subr.bf16.mxu0 0
      %320 = vmatpush1.bf16.msra.mxu0 %v289
      %321 = vmatprep.subr.bf16.mxu0 0
      %322 = vmatpush2.bf16.msra.mxu0 0
      %323 = vmatprep.subr.bf16.mxu0 0
      %324 = vmatpush2.bf16.msra.mxu0 0
      %325 = vmatprep.subr.bf16.mxu0 0
      %326 = vmatpush2.bf16.msra.mxu0 0
      %327 = vmatprep.subr.bf16.mxu0 0
      %328 = vmatpush2.bf16.msra.mxu0 0
      %329 = vmatprep.subr.bf16.mxu0 0
      %330 = vmatpush2.bf16.msra.mxu0 0
      %331 = vmatprep.subr.bf16.mxu0 0
      %332 = vmatpush2.bf16.msra.mxu0 0
      %333 = vmatprep.subr.bf16.mxu0 0
      %334 = vmatpush2.bf16.msra.mxu0 0
      %335 = vmatprep.subr.bf16.mxu0 0
      %336 = vmatpush2.bf16.msra.mxu0 0
      %337 = vmatprep.mubr.bf16.mxu0 0
      %338 = vmatmul.mubr.bf16.gmra.mxu0 %v255
      %v339 = vpop.f32.mrf.mxu0
      %v340 = vadd.f32 0.0, %v339
      %v341 = vpop.f32.mrf.mxu0
      %v342 = vpop.f32.mrf.mxu0
      %v343 = vpop.f32.mrf.mxu0
      %344 = vdwg.mxu0
      %v361 = vunpack.c.l.b16 %v213
      %v362 = vunpack.c.l.b16 %v214
      %v363 = vunpack.c.l.b16 %v215
      %v364 = vunpack.c.l.b16 %v216
      %v365 = vunpack.c.l.b16 %v217
      %v366 = vunpack.c.l.b16 %v218
      %v367 = vunpack.c.l.b16 %v219
      %v368 = vunpack.c.l.b16 %v220
      %v369 = vunpack.c.l.b16 %v221
      %v370 = vunpack.c.l.b16 %v222
      %v371 = vunpack.c.l.b16 %v223
      %v372 = vunpack.c.l.b16 %v224
      %v373 = vunpack.c.l.b16 %v225
      %v374 = vunpack.c.l.b16 %v226
      %v375 = vunpack.c.l.b16 %v227
      %v376 = vunpack.c.l.b16 %v228
      %v377 = vpack.c.b16 %v362, %v361
      %v378 = vpack.c.b16 %v364, %v363
      %v379 = vpack.c.b16 %v366, %v365
      %v380 = vpack.c.b16 %v368, %v367
      %v381 = vpack.c.b16 %v370, %v369
      %v382 = vpack.c.b16 %v372, %v371
      %v383 = vpack.c.b16 %v374, %v373
      %v384 = vpack.c.b16 %v376, %v375
      %393 = vmatprep.subr.bf16.mxu0 0
      %394 = vmatpush1.bf16.msra.mxu0 %v384
      %395 = vmatprep.subr.bf16.mxu0 0
      %396 = vmatpush1.bf16.msra.mxu0 %v383
      %397 = vmatprep.subr.bf16.mxu0 0
      %398 = vmatpush1.bf16.msra.mxu0 %v382
      %399 = vmatprep.subr.bf16.mxu0 0
      %400 = vmatpush1.bf16.msra.mxu0 %v381
      %401 = vmatprep.subr.bf16.mxu0 0
      %402 = vmatpush1.bf16.msra.mxu0 %v380
      %403 = vmatprep.subr.bf16.mxu0 0
      %404 = vmatpush1.bf16.msra.mxu0 %v379
      %405 = vmatprep.subr.bf16.mxu0 0
      %406 = vmatpush1.bf16.msra.mxu0 %v378
      %407 = vmatprep.subr.bf16.mxu0 0
      %408 = vmatpush1.bf16.msra.mxu0 %v377
      %409 = vmatprep.subr.bf16.mxu0 0
      %410 = vmatpush2.bf16.msra.mxu0 0
      %411 = vmatprep.subr.bf16.mxu0 0
      %412 = vmatpush2.bf16.msra.mxu0 0
      %413 = vmatprep.subr.bf16.mxu0 0
      %414 = vmatpush2.bf16.msra.mxu0 0
      %415 = vmatprep.subr.bf16.mxu0 0
      %416 = vmatpush2.bf16.msra.mxu0 0
      %417 = vmatprep.subr.bf16.mxu0 0
      %418 = vmatpush2.bf16.msra.mxu0 0
      %419 = vmatprep.subr.bf16.mxu0 0
      %420 = vmatpush2.bf16.msra.mxu0 0
      %421 = vmatprep.subr.bf16.mxu0 0
      %422 = vmatpush2.bf16.msra.mxu0 0
      %423 = vmatprep.subr.bf16.mxu0 0
      %424 = vmatpush2.bf16.msra.mxu0 0
      %425 = vmatprep.mubr.bf16.mxu0 0
      %426 = vmatmul.mubr.bf16.gmra.mxu0 %v212
      %v427 = vpop.f32.mrf.mxu0
      %v428 = vadd.f32 %v340, %v427
      %v429 = vpop.f32.mrf.mxu0
      %v430 = vpop.f32.mrf.mxu0
      %v431 = vpop.f32.mrf.mxu0
      %432 = vdwg.mxu0
      %v433 = vld [vmem:[%s201] sm:$0x1]
      %s434 = scalar_lea.vmem %s1, 128
      %v435 = vld [vmem:[%s434] sm:$0xf]
      %v436 = vld [vmem:[%s434 + $0x4] sm:$0xf]
      %v437 = vld [vmem:[%s434 + $0x8] sm:$0xf]
      %v438 = vld [vmem:[%s434 + $0xc] sm:$0xf]
      %v439 = vld [vmem:[%s434 + $0x10] sm:$0xf]
      %v440 = vld [vmem:[%s434 + $0x14] sm:$0xf]
      %v441 = vld [vmem:[%s434 + $0x18] sm:$0xf]
      %v442 = vld [vmem:[%s434 + $0x1c] sm:$0xf]
      %v443 = vld [vmem:[%s434 + $0x20] sm:$0xf]
      %v444 = vld [vmem:[%s434 + $0x24] sm:$0xf]
      %v445 = vld [vmem:[%s434 + $0x28] sm:$0xf]
      %v446 = vld [vmem:[%s434 + $0x2c] sm:$0xf]
      %v447 = vld [vmem:[%s434 + $0x30] sm:$0xf]
      %v448 = vld [vmem:[%s434 + $0x34] sm:$0xf]
      %v449 = vld [vmem:[%s434 + $0x38] sm:$0xf]
      %v450 = vld [vmem:[%s434 + $0x3c] sm:$0xf]
      %v453 = vunpack.c.l.s4 1983009808
      %v454 = vunpack.c.0.s8 %v453
      %v455 = vlaneseq
      %v456 = vshrl.u32 %v455, 7
      %v457 = vsub.s32 %v454, %v456
      %v458 = vrot.slane %v433, %v457
      %v460 = vshrl.u32 %v458, 16
      %v479 = vunpack.c.l.b16 %v435
      %v480 = vunpack.c.l.b16 %v436
      %v481 = vunpack.c.l.b16 %v437
      %v482 = vunpack.c.l.b16 %v438
      %v483 = vunpack.c.l.b16 %v439
      %v484 = vunpack.c.l.b16 %v440
      %v485 = vunpack.c.l.b16 %v441
      %v486 = vunpack.c.l.b16 %v442
      %v487 = vunpack.c.l.b16 %v443
      %v488 = vunpack.c.l.b16 %v444
      %v489 = vunpack.c.l.b16 %v445
      %v490 = vunpack.c.l.b16 %v446
      %v491 = vunpack.c.l.b16 %v447
      %v492 = vunpack.c.l.b16 %v448
      %v493 = vunpack.c.l.b16 %v449
      %v494 = vunpack.c.l.b16 %v450
      %v495 = vpack.c.b16 %v480, %v479
      %v496 = vpack.c.b16 %v482, %v481
      %v497 = vpack.c.b16 %v484, %v483
      %v498 = vpack.c.b16 %v486, %v485
      %v499 = vpack.c.b16 %v488, %v487
      %v500 = vpack.c.b16 %v490, %v489
      %v501 = vpack.c.b16 %v492, %v491
      %v502 = vpack.c.b16 %v494, %v493
      %511 = vmatprep.subr.bf16.mxu0 0
      %512 = vmatpush1.bf16.msra.mxu0 %v502
      %513 = vmatprep.subr.bf16.mxu0 0
      %514 = vmatpush1.bf16.msra.mxu0 %v501
      %515 = vmatprep.subr.bf16.mxu0 0
      %516 = vmatpush1.bf16.msra.mxu0 %v500
      %517 = vmatprep.subr.bf16.mxu0 0
      %518 = vmatpush1.bf16.msra.mxu0 %v499
      %519 = vmatprep.subr.bf16.mxu0 0
      %520 = vmatpush1.bf16.msra.mxu0 %v498
      %521 = vmatprep.subr.bf16.mxu0 0
      %522 = vmatpush1.bf16.msra.mxu0 %v497
      %523 = vmatprep.subr.bf16.mxu0 0
      %524 = vmatpush1.bf16.msra.mxu0 %v496
      %525 = vmatprep.subr.bf16.mxu0 0
      %526 = vmatpush1.bf16.msra.mxu0 %v495
      %527 = vmatprep.subr.bf16.mxu0 0
      %528 = vmatpush2.bf16.msra.mxu0 0
      %529 = vmatprep.subr.bf16.mxu0 0
      %530 = vmatpush2.bf16.msra.mxu0 0
      %531 = vmatprep.subr.bf16.mxu0 0
      %532 = vmatpush2.bf16.msra.mxu0 0
      %533 = vmatprep.subr.bf16.mxu0 0
      %534 = vmatpush2.bf16.msra.mxu0 0
      %535 = vmatprep.subr.bf16.mxu0 0
      %536 = vmatpush2.bf16.msra.mxu0 0
      %537 = vmatprep.subr.bf16.mxu0 0
      %538 = vmatpush2.bf16.msra.mxu0 0
      %539 = vmatprep.subr.bf16.mxu0 0
      %540 = vmatpush2.bf16.msra.mxu0 0
      %541 = vmatprep.subr.bf16.mxu0 0
      %542 = vmatpush2.bf16.msra.mxu0 0
      %543 = vmatprep.mubr.bf16.mxu0 0
      %544 = vmatmul.mubr.bf16.gmra.mxu0 %v460
      %v545 = vpop.f32.mrf.mxu0
      %v546 = vadd.f32 0.0, %v545
      %v547 = vpop.f32.mrf.mxu0
      %v548 = vpop.f32.mrf.mxu0
      %v549 = vpop.f32.mrf.mxu0
      %550 = vdwg.mxu0
      %v551 = vadd.f32 %v428, %v546
      %s552 = scalar_lea.vmem %s201, 4
      %v553 = vld [vmem:[%s552] sm:$0x1]
      %s554 = scalar_lea.vmem %s1, 192
      %v555 = vld [vmem:[%s554] sm:$0xf]
      %v556 = vld [vmem:[%s554 + $0x4] sm:$0xf]
      %v557 = vld [vmem:[%s554 + $0x8] sm:$0xf]
      %v558 = vld [vmem:[%s554 + $0xc] sm:$0xf]
      %v559 = vld [vmem:[%s554 + $0x10] sm:$0xf]
      %v560 = vld [vmem:[%s554 + $0x14] sm:$0xf]
      %v561 = vld [vmem:[%s554 + $0x18] sm:$0xf]
      %v562 = vld [vmem:[%s554 + $0x1c] sm:$0xf]
      %v563 = vld [vmem:[%s554 + $0x20] sm:$0xf]
      %v564 = vld [vmem:[%s554 + $0x24] sm:$0xf]
      %v565 = vld [vmem:[%s554 + $0x28] sm:$0xf]
      %v566 = vld [vmem:[%s554 + $0x2c] sm:$0xf]
      %v567 = vld [vmem:[%s554 + $0x30] sm:$0xf]
      %v568 = vld [vmem:[%s554 + $0x34] sm:$0xf]
      %v569 = vld [vmem:[%s554 + $0x38] sm:$0xf]
      %v570 = vld [vmem:[%s554 + $0x3c] sm:$0xf]
      %v587 = vunpack.c.l.b16 %v555
      %v588 = vunpack.c.l.b16 %v556
      %v589 = vunpack.c.l.b16 %v557
      %v590 = vunpack.c.l.b16 %v558
      %v591 = vunpack.c.l.b16 %v559
      %v592 = vunpack.c.l.b16 %v560
      %v593 = vunpack.c.l.b16 %v561
      %v594 = vunpack.c.l.b16 %v562
      %v595 = vunpack.c.l.b16 %v563
      %v596 = vunpack.c.l.b16 %v564
      %v597 = vunpack.c.l.b16 %v565
      %v598 = vunpack.c.l.b16 %v566
      %v599 = vunpack.c.l.b16 %v567
      %v600 = vunpack.c.l.b16 %v568
      %v601 = vunpack.c.l.b16 %v569
      %v602 = vunpack.c.l.b16 %v570
      %v603 = vpack.c.b16 %v588, %v587
      %v604 = vpack.c.b16 %v590, %v589
      %v605 = vpack.c.b16 %v592, %v591
      %v606 = vpack.c.b16 %v594, %v593
      %v607 = vpack.c.b16 %v596, %v595
      %v608 = vpack.c.b16 %v598, %v597
      %v609 = vpack.c.b16 %v600, %v599
      %v610 = vpack.c.b16 %v602, %v601
      %619 = vmatprep.subr.bf16.mxu0 0
      %620 = vmatpush1.bf16.msra.mxu0 %v610
      %621 = vmatprep.subr.bf16.mxu0 0
      %622 = vmatpush1.bf16.msra.mxu0 %v609
      %623 = vmatprep.subr.bf16.mxu0 0
      %624 = vmatpush1.bf16.msra.mxu0 %v608
      %625 = vmatprep.subr.bf16.mxu0 0
      %626 = vmatpush1.bf16.msra.mxu0 %v607
      %627 = vmatprep.subr.bf16.mxu0 0
      %628 = vmatpush1.bf16.msra.mxu0 %v606
      %629 = vmatprep.subr.bf16.mxu0 0
      %630 = vmatpush1.bf16.msra.mxu0 %v605
      %631 = vmatprep.subr.bf16.mxu0 0
      %632 = vmatpush1.bf16.msra.mxu0 %v604
      %633 = vmatprep.subr.bf16.mxu0 0
      %634 = vmatpush1.bf16.msra.mxu0 %v603
      %635 = vmatprep.subr.bf16.mxu0 0
      %636 = vmatpush2.bf16.msra.mxu0 0
      %637 = vmatprep.subr.bf16.mxu0 0
      %638 = vmatpush2.bf16.msra.mxu0 0
      %639 = vmatprep.subr.bf16.mxu0 0
      %640 = vmatpush2.bf16.msra.mxu0 0
      %641 = vmatprep.subr.bf16.mxu0 0
      %642 = vmatpush2.bf16.msra.mxu0 0
      %643 = vmatprep.subr.bf16.mxu0 0
      %644 = vmatpush2.bf16.msra.mxu0 0
      %645 = vmatprep.subr.bf16.mxu0 0
      %646 = vmatpush2.bf16.msra.mxu0 0
      %647 = vmatprep.subr.bf16.mxu0 0
      %648 = vmatpush2.bf16.msra.mxu0 0
      %649 = vmatprep.subr.bf16.mxu0 0
      %650 = vmatpush2.bf16.msra.mxu0 0
      %651 = vmatprep.mubr.bf16.mxu0 0
      %652 = vmatmul.mubr.bf16.gmra.mxu0 %v553
      %v653 = vpop.f32.mrf.mxu0
      %v654 = vadd.f32 0.0, %v653
      %v655 = vpop.f32.mrf.mxu0
      %v656 = vpop.f32.mrf.mxu0
      %v657 = vpop.f32.mrf.mxu0
      %658 = vdwg.mxu0
      %v659 = vadd.f32 %v551, %v654
      %v660 = vld [vmem:[%s552] sm:$0x2]
      %s661 = scalar_lea.vmem %s1, 256
      %v662 = vld [vmem:[%s661] sm:$0xf]
      %v663 = vld [vmem:[%s661 + $0x4] sm:$0xf]
      %v664 = vld [vmem:[%s661 + $0x8] sm:$0xf]
      %v665 = vld [vmem:[%s661 + $0xc] sm:$0xf]
      %v666 = vld [vmem:[%s661 + $0x10] sm:$0xf]
      %v667 = vld [vmem:[%s661 + $0x14] sm:$0xf]
      %v668 = vld [vmem:[%s661 + $0x18] sm:$0xf]
      %v669 = vld [vmem:[%s661 + $0x1c] sm:$0xf]
      %v670 = vld [vmem:[%s661 + $0x20] sm:$0xf]
      %v671 = vld [vmem:[%s661 + $0x24] sm:$0xf]
      %v672 = vld [vmem:[%s661 + $0x28] sm:$0xf]
      %v673 = vld [vmem:[%s661 + $0x2c] sm:$0xf]
      %v674 = vld [vmem:[%s661 + $0x30] sm:$0xf]
      %v675 = vld [vmem:[%s661 + $0x34] sm:$0xf]
      %v676 = vld [vmem:[%s661 + $0x38] sm:$0xf]
      %v677 = vld [vmem:[%s661 + $0x3c] sm:$0xf]
      %v680 = vunpack.c.l.s4 1983009808
      %v681 = vunpack.c.0.s8 %v680
      %v682 = vlaneseq
      %v683 = vshrl.u32 %v682, 7
      %v684 = vsub.s32 %v681, %v683
      %v685 = vrot.slane %v660, %v684
      %v686 = vrot.slane %v685, 1
      %v704 = vunpack.c.l.b16 %v662
      %v705 = vunpack.c.l.b16 %v663
      %v706 = vunpack.c.l.b16 %v664
      %v707 = vunpack.c.l.b16 %v665
      %v708 = vunpack.c.l.b16 %v666
      %v709 = vunpack.c.l.b16 %v667
      %v710 = vunpack.c.l.b16 %v668
      %v711 = vunpack.c.l.b16 %v669
      %v712 = vunpack.c.l.b16 %v670
      %v713 = vunpack.c.l.b16 %v671
      %v714 = vunpack.c.l.b16 %v672
      %v715 = vunpack.c.l.b16 %v673
      %v716 = vunpack.c.l.b16 %v674
      %v717 = vunpack.c.l.b16 %v675
      %v718 = vunpack.c.l.b16 %v676
      %v719 = vunpack.c.l.b16 %v677
      %v720 = vpack.c.b16 %v705, %v704
      %v721 = vpack.c.b16 %v707, %v706
      %v722 = vpack.c.b16 %v709, %v708
      %v723 = vpack.c.b16 %v711, %v710
      %v724 = vpack.c.b16 %v713, %v712
      %v725 = vpack.c.b16 %v715, %v714
      %v726 = vpack.c.b16 %v717, %v716
      %v727 = vpack.c.b16 %v719, %v718
      %736 = vmatprep.subr.bf16.mxu0 0
      %737 = vmatpush1.bf16.msra.mxu0 %v727
      %738 = vmatprep.subr.bf16.mxu0 0
      %739 = vmatpush1.bf16.msra.mxu0 %v726
      %740 = vmatprep.subr.bf16.mxu0 0
      %741 = vmatpush1.bf16.msra.mxu0 %v725
      %742 = vmatprep.subr.bf16.mxu0 0
      %743 = vmatpush1.bf16.msra.mxu0 %v724
      %744 = vmatprep.subr.bf16.mxu0 0
      %745 = vmatpush1.bf16.msra.mxu0 %v723
      %746 = vmatprep.subr.bf16.mxu0 0
      %747 = vmatpush1.bf16.msra.mxu0 %v722
      %748 = vmatprep.subr.bf16.mxu0 0
      %749 = vmatpush1.bf16.msra.mxu0 %v721
      %750 = vmatprep.subr.bf16.mxu0 0
      %751 = vmatpush1.bf16.msra.mxu0 %v720
      %752 = vmatprep.subr.bf16.mxu0 0
      %753 = vmatpush2.bf16.msra.mxu0 0
      %754 = vmatprep.subr.bf16.mxu0 0
      %755 = vmatpush2.bf16.msra.mxu0 0
      %756 = vmatprep.subr.bf16.mxu0 0
      %757 = vmatpush2.bf16.msra.mxu0 0
      %758 = vmatprep.subr.bf16.mxu0 0
      %759 = vmatpush2.bf16.msra.mxu0 0
      %760 = vmatprep.subr.bf16.mxu0 0
      %761 = vmatpush2.bf16.msra.mxu0 0
      %762 = vmatprep.subr.bf16.mxu0 0
      %763 = vmatpush2.bf16.msra.mxu0 0
      %764 = vmatprep.subr.bf16.mxu0 0
      %765 = vmatpush2.bf16.msra.mxu0 0
      %766 = vmatprep.subr.bf16.mxu0 0
      %767 = vmatpush2.bf16.msra.mxu0 0
      %768 = vmatprep.mubr.bf16.mxu0 0
      %769 = vmatmul.mubr.bf16.gmra.mxu0 %v686
      %v770 = vpop.f32.mrf.mxu0
      %v771 = vadd.f32 0.0, %v770
      %v772 = vpop.f32.mrf.mxu0
      %v773 = vpop.f32.mrf.mxu0
      %v774 = vpop.f32.mrf.mxu0
      %775 = vdwg.mxu0
      %v776 = vadd.f32 %v659, %v771
      %v777 = vld [vmem:[%s552] sm:$0x1]
      %s778 = scalar_lea.vmem %s1, 320
      %v779 = vld [vmem:[%s778] sm:$0xf]
      %v780 = vld [vmem:[%s778 + $0x4] sm:$0xf]
      %v781 = vld [vmem:[%s778 + $0x8] sm:$0xf]
      %v782 = vld [vmem:[%s778 + $0xc] sm:$0xf]
      %v783 = vld [vmem:[%s778 + $0x10] sm:$0xf]
      %v784 = vld [vmem:[%s778 + $0x14] sm:$0xf]
      %v785 = vld [vmem:[%s778 + $0x18] sm:$0xf]
      %v786 = vld [vmem:[%s778 + $0x1c] sm:$0xf]
      %v787 = vld [vmem:[%s778 + $0x20] sm:$0xf]
      %v788 = vld [vmem:[%s778 + $0x24] sm:$0xf]
      %v789 = vld [vmem:[%s778 + $0x28] sm:$0xf]
      %v790 = vld [vmem:[%s778 + $0x2c] sm:$0xf]
      %v791 = vld [vmem:[%s778 + $0x30] sm:$0xf]
      %v792 = vld [vmem:[%s778 + $0x34] sm:$0xf]
      %v793 = vld [vmem:[%s778 + $0x38] sm:$0xf]
      %v794 = vld [vmem:[%s778 + $0x3c] sm:$0xf]
      %v797 = vunpack.c.l.s4 1983009808
      %v798 = vunpack.c.0.s8 %v797
      %v799 = vlaneseq
      %v800 = vshrl.u32 %v799, 7
      %v801 = vsub.s32 %v798, %v800
      %v802 = vrot.slane %v777, %v801
      %v804 = vshrl.u32 %v802, 16
      %v823 = vunpack.c.l.b16 %v779
      %v824 = vunpack.c.l.b16 %v780
      %v825 = vunpack.c.l.b16 %v781
      %v826 = vunpack.c.l.b16 %v782
      %v827 = vunpack.c.l.b16 %v783
      %v828 = vunpack.c.l.b16 %v784
      %v829 = vunpack.c.l.b16 %v785
      %v830 = vunpack.c.l.b16 %v786
      %v831 = vunpack.c.l.b16 %v787
      %v832 = vunpack.c.l.b16 %v788
      %v833 = vunpack.c.l.b16 %v789
      %v834 = vunpack.c.l.b16 %v790
      %v835 = vunpack.c.l.b16 %v791
      %v836 = vunpack.c.l.b16 %v792
      %v837 = vunpack.c.l.b16 %v793
      %v838 = vunpack.c.l.b16 %v794
      %v839 = vpack.c.b16 %v824, %v823
      %v840 = vpack.c.b16 %v826, %v825
      %v841 = vpack.c.b16 %v828, %v827
      %v842 = vpack.c.b16 %v830, %v829
      %v843 = vpack.c.b16 %v832, %v831
      %v844 = vpack.c.b16 %v834, %v833
      %v845 = vpack.c.b16 %v836, %v835
      %v846 = vpack.c.b16 %v838, %v837
      %855 = vmatprep.subr.bf16.mxu0 0
      %856 = vmatpush1.bf16.msra.mxu0 %v846
      %857 = vmatprep.subr.bf16.mxu0 0
      %858 = vmatpush1.bf16.msra.mxu0 %v845
      %859 = vmatprep.subr.bf16.mxu0 0
      %860 = vmatpush1.bf16.msra.mxu0 %v844
      %861 = vmatprep.subr.bf16.mxu0 0
      %862 = vmatpush1.bf16.msra.mxu0 %v843
      %863 = vmatprep.subr.bf16.mxu0 0
      %864 = vmatpush1.bf16.msra.mxu0 %v842
      %865 = vmatprep.subr.bf16.mxu0 0
      %866 = vmatpush1.bf16.msra.mxu0 %v841
      %867 = vmatprep.subr.bf16.mxu0 0
      %868 = vmatpush1.bf16.msra.mxu0 %v840
      %869 = vmatprep.subr.bf16.mxu0 0
      %870 = vmatpush1.bf16.msra.mxu0 %v839
      %871 = vmatprep.subr.bf16.mxu0 0
      %872 = vmatpush2.bf16.msra.mxu0 0
      %873 = vmatprep.subr.bf16.mxu0 0
      %874 = vmatpush2.bf16.msra.mxu0 0
      %875 = vmatprep.subr.bf16.mxu0 0
      %876 = vmatpush2.bf16.msra.mxu0 0
      %877 = vmatprep.subr.bf16.mxu0 0
      %878 = vmatpush2.bf16.msra.mxu0 0
      %879 = vmatprep.subr.bf16.mxu0 0
      %880 = vmatpush2.bf16.msra.mxu0 0
      %881 = vmatprep.subr.bf16.mxu0 0
      %882 = vmatpush2.bf16.msra.mxu0 0
      %883 = vmatprep.subr.bf16.mxu0 0
      %884 = vmatpush2.bf16.msra.mxu0 0
      %885 = vmatprep.subr.bf16.mxu0 0
      %886 = vmatpush2.bf16.msra.mxu0 0
      %887 = vmatprep.mubr.bf16.mxu0 0
      %888 = vmatmul.mubr.bf16.gmra.mxu0 %v804
      %v889 = vpop.f32.mrf.mxu0
      %v890 = vadd.f32 0.0, %v889
      %v891 = vpop.f32.mrf.mxu0
      %v892 = vpop.f32.mrf.mxu0
      %v893 = vpop.f32.mrf.mxu0
      %894 = vdwg.mxu0
      %v895 = vadd.f32 %v776, %v890
      %s896 = scalar_lea.vmem %s201, 2
      %v897 = vld [vmem:[%s896] sm:$0x1]
      %s898 = scalar_lea.vmem %s1, 384
      %v899 = vld [vmem:[%s898] sm:$0xf]
      %v900 = vld [vmem:[%s898 + $0x4] sm:$0xf]
      %v901 = vld [vmem:[%s898 + $0x8] sm:$0xf]
      %v902 = vld [vmem:[%s898 + $0xc] sm:$0xf]
      %v903 = vld [vmem:[%s898 + $0x10] sm:$0xf]
      %v904 = vld [vmem:[%s898 + $0x14] sm:$0xf]
      %v905 = vld [vmem:[%s898 + $0x18] sm:$0xf]
      %v906 = vld [vmem:[%s898 + $0x1c] sm:$0xf]
      %v907 = vld [vmem:[%s898 + $0x20] sm:$0xf]
      %v908 = vld [vmem:[%s898 + $0x24] sm:$0xf]
      %v909 = vld [vmem:[%s898 + $0x28] sm:$0xf]
      %v910 = vld [vmem:[%s898 + $0x2c] sm:$0xf]
      %v911 = vld [vmem:[%s898 + $0x30] sm:$0xf]
      %v912 = vld [vmem:[%s898 + $0x34] sm:$0xf]
      %v913 = vld [vmem:[%s898 + $0x38] sm:$0xf]
      %v914 = vld [vmem:[%s898 + $0x3c] sm:$0xf]
      %v931 = vunpack.c.l.b16 %v899
      %v932 = vunpack.c.l.b16 %v900
      %v933 = vunpack.c.l.b16 %v901
      %v934 = vunpack.c.l.b16 %v902
      %v935 = vunpack.c.l.b16 %v903
      %v936 = vunpack.c.l.b16 %v904
      %v937 = vunpack.c.l.b16 %v905
      %v938 = vunpack.c.l.b16 %v906
      %v939 = vunpack.c.l.b16 %v907
      %v940 = vunpack.c.l.b16 %v908
      %v941 = vunpack.c.l.b16 %v909
      %v942 = vunpack.c.l.b16 %v910
      %v943 = vunpack.c.l.b16 %v911
      %v944 = vunpack.c.l.b16 %v912
      %v945 = vunpack.c.l.b16 %v913
      %v946 = vunpack.c.l.b16 %v914
      %v947 = vpack.c.b16 %v932, %v931
      %v948 = vpack.c.b16 %v934, %v933
      %v949 = vpack.c.b16 %v936, %v935
      %v950 = vpack.c.b16 %v938, %v937
      %v951 = vpack.c.b16 %v940, %v939
      %v952 = vpack.c.b16 %v942, %v941
      %v953 = vpack.c.b16 %v944, %v943
      %v954 = vpack.c.b16 %v946, %v945
      %963 = vmatprep.subr.bf16.mxu0 0
      %964 = vmatpush1.bf16.msra.mxu0 %v954
      %965 = vmatprep.subr.bf16.mxu0 0
      %966 = vmatpush1.bf16.msra.mxu0 %v953
      %967 = vmatprep.subr.bf16.mxu0 0
      %968 = vmatpush1.bf16.msra.mxu0 %v952
      %969 = vmatprep.subr.bf16.mxu0 0
      %970 = vmatpush1.bf16.msra.mxu0 %v951
      %971 = vmatprep.subr.bf16.mxu0 0
      %972 = vmatpush1.bf16.msra.mxu0 %v950
      %973 = vmatprep.subr.bf16.mxu0 0
      %974 = vmatpush1.bf16.msra.mxu0 %v949
      %975 = vmatprep.subr.bf16.mxu0 0
      %976 = vmatpush1.bf16.msra.mxu0 %v948
      %977 = vmatprep.subr.bf16.mxu0 0
      %978 = vmatpush1.bf16.msra.mxu0 %v947
      %979 = vmatprep.subr.bf16.mxu0 0
      %980 = vmatpush2.bf16.msra.mxu0 0
      %981 = vmatprep.subr.bf16.mxu0 0
      %982 = vmatpush2.bf16.msra.mxu0 0
      %983 = vmatprep.subr.bf16.mxu0 0
      %984 = vmatpush2.bf16.msra.mxu0 0
      %985 = vmatprep.subr.bf16.mxu0 0
      %986 = vmatpush2.bf16.msra.mxu0 0
      %987 = vmatprep.subr.bf16.mxu0 0
      %988 = vmatpush2.bf16.msra.mxu0 0
      %989 = vmatprep.subr.bf16.mxu0 0
      %990 = vmatpush2.bf16.msra.mxu0 0
      %991 = vmatprep.subr.bf16.mxu0 0
      %992 = vmatpush2.bf16.msra.mxu0 0
      %993 = vmatprep.subr.bf16.mxu0 0
      %994 = vmatpush2.bf16.msra.mxu0 0
      %995 = vmatprep.mubr.bf16.mxu0 0
      %996 = vmatmul.mubr.bf16.gmra.mxu0 %v897
      %v997 = vpop.f32.mrf.mxu0
      %v998 = vadd.f32 0.0, %v997
      %v999 = vpop.f32.mrf.mxu0
      %v1000 = vpop.f32.mrf.mxu0
      %v1001 = vpop.f32.mrf.mxu0
      %1002 = vdwg.mxu0
      %v1003 = vadd.f32 %v895, %v998
      %v1004 = vld [vmem:[%s896] sm:$0x2]
      %s1005 = scalar_lea.vmem %s1, 448
      %v1006 = vld [vmem:[%s1005] sm:$0xf]
      %v1007 = vld [vmem:[%s1005 + $0x4] sm:$0xf]
      %v1008 = vld [vmem:[%s1005 + $0x8] sm:$0xf]
      %v1009 = vld [vmem:[%s1005 + $0xc] sm:$0xf]
      %v1010 = vld [vmem:[%s1005 + $0x10] sm:$0xf]
      %v1011 = vld [vmem:[%s1005 + $0x14] sm:$0xf]
      %v1012 = vld [vmem:[%s1005 + $0x18] sm:$0xf]
      %v1013 = vld [vmem:[%s1005 + $0x1c] sm:$0xf]
      %v1014 = vld [vmem:[%s1005 + $0x20] sm:$0xf]
      %v1015 = vld [vmem:[%s1005 + $0x24] sm:$0xf]
      %v1016 = vld [vmem:[%s1005 + $0x28] sm:$0xf]
      %v1017 = vld [vmem:[%s1005 + $0x2c] sm:$0xf]
      %v1018 = vld [vmem:[%s1005 + $0x30] sm:$0xf]
      %v1019 = vld [vmem:[%s1005 + $0x34] sm:$0xf]
      %v1020 = vld [vmem:[%s1005 + $0x38] sm:$0xf]
      %v1021 = vld [vmem:[%s1005 + $0x3c] sm:$0xf]
      %v1024 = vunpack.c.l.s4 1983009808
      %v1025 = vunpack.c.0.s8 %v1024
      %v1026 = vlaneseq
      %v1027 = vshrl.u32 %v1026, 7
      %v1028 = vsub.s32 %v1025, %v1027
      %v1029 = vrot.slane %v1004, %v1028
      %v1030 = vrot.slane %v1029, 1
      %v1048 = vunpack.c.l.b16 %v1006
      %v1049 = vunpack.c.l.b16 %v1007
      %v1050 = vunpack.c.l.b16 %v1008
      %v1051 = vunpack.c.l.b16 %v1009
      %v1052 = vunpack.c.l.b16 %v1010
      %v1053 = vunpack.c.l.b16 %v1011
      %v1054 = vunpack.c.l.b16 %v1012
      %v1055 = vunpack.c.l.b16 %v1013
      %v1056 = vunpack.c.l.b16 %v1014
      %v1057 = vunpack.c.l.b16 %v1015
      %v1058 = vunpack.c.l.b16 %v1016
      %v1059 = vunpack.c.l.b16 %v1017
      %v1060 = vunpack.c.l.b16 %v1018
      %v1061 = vunpack.c.l.b16 %v1019
      %v1062 = vunpack.c.l.b16 %v1020
      %v1063 = vunpack.c.l.b16 %v1021
      %v1064 = vpack.c.b16 %v1049, %v1048
      %v1065 = vpack.c.b16 %v1051, %v1050
      %v1066 = vpack.c.b16 %v1053, %v1052
      %v1067 = vpack.c.b16 %v1055, %v1054
      %v1068 = vpack.c.b16 %v1057, %v1056
      %v1069 = vpack.c.b16 %v1059, %v1058
      %v1070 = vpack.c.b16 %v1061, %v1060
      %v1071 = vpack.c.b16 %v1063, %v1062
      %1080 = vmatprep.subr.bf16.mxu0 0
      %1081 = vmatpush1.bf16.msra.mxu0 %v1071
      %1082 = vmatprep.subr.bf16.mxu0 0
      %1083 = vmatpush1.bf16.msra.mxu0 %v1070
      %1084 = vmatprep.subr.bf16.mxu0 0
      %1085 = vmatpush1.bf16.msra.mxu0 %v1069
      %1086 = vmatprep.subr.bf16.mxu0 0
      %1087 = vmatpush1.bf16.msra.mxu0 %v1068
      %1088 = vmatprep.subr.bf16.mxu0 0
      %1089 = vmatpush1.bf16.msra.mxu0 %v1067
      %1090 = vmatprep.subr.bf16.mxu0 0
      %1091 = vmatpush1.bf16.msra.mxu0 %v1066
      %1092 = vmatprep.subr.bf16.mxu0 0
      %1093 = vmatpush1.bf16.msra.mxu0 %v1065
      %1094 = vmatprep.subr.bf16.mxu0 0
      %1095 = vmatpush1.bf16.msra.mxu0 %v1064
      %1096 = vmatprep.subr.bf16.mxu0 0
      %1097 = vmatpush2.bf16.msra.mxu0 0
      %1098 = vmatprep.subr.bf16.mxu0 0
      %1099 = vmatpush2.bf16.msra.mxu0 0
      %1100 = vmatprep.subr.bf16.mxu0 0
      %1101 = vmatpush2.bf16.msra.mxu0 0
      %1102 = vmatprep.subr.bf16.mxu0 0
      %1103 = vmatpush2.bf16.msra.mxu0 0
      %1104 = vmatprep.subr.bf16.mxu0 0
      %1105 = vmatpush2.bf16.msra.mxu0 0
      %1106 = vmatprep.subr.bf16.mxu0 0
      %1107 = vmatpush2.bf16.msra.mxu0 0
      %1108 = vmatprep.subr.bf16.mxu0 0
      %1109 = vmatpush2.bf16.msra.mxu0 0
      %1110 = vmatprep.subr.bf16.mxu0 0
      %1111 = vmatpush2.bf16.msra.mxu0 0
      %1112 = vmatprep.mubr.bf16.mxu0 0
      %1113 = vmatmul.mubr.bf16.gmra.mxu0 %v1030
      %v1114 = vpop.f32.mrf.mxu0
      %v1115 = vadd.f32 0.0, %v1114
      %v1116 = vpop.f32.mrf.mxu0
      %v1117 = vpop.f32.mrf.mxu0
      %v1118 = vpop.f32.mrf.mxu0
      %1119 = vdwg.mxu0
      %v1120 = vadd.f32 %v1003, %v1115
      %v1121 = vld [vmem:[%s896] sm:$0x1]
      %s1122 = scalar_lea.vmem %s1, 512
      %v1123 = vld [vmem:[%s1122] sm:$0xf]
      %v1124 = vld [vmem:[%s1122 + $0x4] sm:$0xf]
      %v1125 = vld [vmem:[%s1122 + $0x8] sm:$0xf]
      %v1126 = vld [vmem:[%s1122 + $0xc] sm:$0xf]
      %v1127 = vld [vmem:[%s1122 + $0x10] sm:$0xf]
      %v1128 = vld [vmem:[%s1122 + $0x14] sm:$0xf]
      %v1129 = vld [vmem:[%s1122 + $0x18] sm:$0xf]
      %v1130 = vld [vmem:[%s1122 + $0x1c] sm:$0xf]
      %v1131 = vld [vmem:[%s1122 + $0x20] sm:$0xf]
      %v1132 = vld [vmem:[%s1122 + $0x24] sm:$0xf]
      %v1133 = vld [vmem:[%s1122 + $0x28] sm:$0xf]
      %v1134 = vld [vmem:[%s1122 + $0x2c] sm:$0xf]
      %v1135 = vld [vmem:[%s1122 + $0x30] sm:$0xf]
      %v1136 = vld [vmem:[%s1122 + $0x34] sm:$0xf]
      %v1137 = vld [vmem:[%s1122 + $0x38] sm:$0xf]
      %v1138 = vld [vmem:[%s1122 + $0x3c] sm:$0xf]
      %v1141 = vunpack.c.l.s4 1983009808
      %v1142 = vunpack.c.0.s8 %v1141
      %v1143 = vlaneseq
      %v1144 = vshrl.u32 %v1143, 7
      %v1145 = vsub.s32 %v1142, %v1144
      %v1146 = vrot.slane %v1121, %v1145
      %v1148 = vshrl.u32 %v1146, 16
      %v1167 = vunpack.c.l.b16 %v1123
      %v1168 = vunpack.c.l.b16 %v1124
      %v1169 = vunpack.c.l.b16 %v1125
      %v1170 = vunpack.c.l.b16 %v1126
      %v1171 = vunpack.c.l.b16 %v1127
      %v1172 = vunpack.c.l.b16 %v1128
      %v1173 = vunpack.c.l.b16 %v1129
      %v1174 = vunpack.c.l.b16 %v1130
      %v1175 = vunpack.c.l.b16 %v1131
      %v1176 = vunpack.c.l.b16 %v1132
      %v1177 = vunpack.c.l.b16 %v1133
      %v1178 = vunpack.c.l.b16 %v1134
      %v1179 = vunpack.c.l.b16 %v1135
      %v1180 = vunpack.c.l.b16 %v1136
      %v1181 = vunpack.c.l.b16 %v1137
      %v1182 = vunpack.c.l.b16 %v1138
      %v1183 = vpack.c.b16 %v1168, %v1167
      %v1184 = vpack.c.b16 %v1170, %v1169
      %v1185 = vpack.c.b16 %v1172, %v1171
      %v1186 = vpack.c.b16 %v1174, %v1173
      %v1187 = vpack.c.b16 %v1176, %v1175
      %v1188 = vpack.c.b16 %v1178, %v1177
      %v1189 = vpack.c.b16 %v1180, %v1179
      %v1190 = vpack.c.b16 %v1182, %v1181
      %1199 = vmatprep.subr.bf16.mxu0 0
      %1200 = vmatpush1.bf16.msra.mxu0 %v1190
      %1201 = vmatprep.subr.bf16.mxu0 0
      %1202 = vmatpush1.bf16.msra.mxu0 %v1189
      %1203 = vmatprep.subr.bf16.mxu0 0
      %1204 = vmatpush1.bf16.msra.mxu0 %v1188
      %1205 = vmatprep.subr.bf16.mxu0 0
      %1206 = vmatpush1.bf16.msra.mxu0 %v1187
      %1207 = vmatprep.subr.bf16.mxu0 0
      %1208 = vmatpush1.bf16.msra.mxu0 %v1186
      %1209 = vmatprep.subr.bf16.mxu0 0
      %1210 = vmatpush1.bf16.msra.mxu0 %v1185
      %1211 = vmatprep.subr.bf16.mxu0 0
      %1212 = vmatpush1.bf16.msra.mxu0 %v1184
      %1213 = vmatprep.subr.bf16.mxu0 0
      %1214 = vmatpush1.bf16.msra.mxu0 %v1183
      %1215 = vmatprep.subr.bf16.mxu0 0
      %1216 = vmatpush2.bf16.msra.mxu0 0
      %1217 = vmatprep.subr.bf16.mxu0 0
      %1218 = vmatpush2.bf16.msra.mxu0 0
      %1219 = vmatprep.subr.bf16.mxu0 0
      %1220 = vmatpush2.bf16.msra.mxu0 0
      %1221 = vmatprep.subr.bf16.mxu0 0
      %1222 = vmatpush2.bf16.msra.mxu0 0
      %1223 = vmatprep.subr.bf16.mxu0 0
      %1224 = vmatpush2.bf16.msra.mxu0 0
      %1225 = vmatprep.subr.bf16.mxu0 0
      %1226 = vmatpush2.bf16.msra.mxu0 0
      %1227 = vmatprep.subr.bf16.mxu0 0
      %1228 = vmatpush2.bf16.msra.mxu0 0
      %1229 = vmatprep.subr.bf16.mxu0 0
      %1230 = vmatpush2.bf16.msra.mxu0 0
      %1231 = vmatprep.mubr.bf16.mxu0 0
      %1232 = vmatmul.mubr.bf16.gmra.mxu0 %v1148
      %v1233 = vpop.f32.mrf.mxu0
      %v1234 = vadd.f32 0.0, %v1233
      %v1235 = vpop.f32.mrf.mxu0
      %v1236 = vpop.f32.mrf.mxu0
      %v1237 = vpop.f32.mrf.mxu0
      %1238 = vdwg.mxu0
      %v1239 = vadd.f32 %v1120, %v1234
      %v1240 = vpack.c.bf16 %v1239, %v1239
      %vm1241 = vcmask 1040384
      %vm1242 = vsmask.f32 256
      %vm1243 = vmand %vm1241, %vm1242
      %v1244 = vld [vmem:[%s204] sm:$0x1]
      %v1245 = vsel %vm1243, %v1240, %v1244
      %1246 = vst [vmem:[%s204] sm:$0x1] %v1245
      %v1247 = vadd.f32 %v1239, 0.0
      %v1248 = vadd.f32 %v1247, 0.0
      %v1249 = vmul.f32 %v1239, %v1239
      %v1250 = vadd.f32 %v1249, 0.0
      %v1251 = vadd.f32 %v1250, 0.0
      %1252 = vst [vmem:[%s207] sm:$0x1] %v1248
      %1253 = vst [vmem:[%s210] sm:$0x1] %v1251
      %p1254 = scmp.lt.s32.totalorder %s16, 1
      %s1255 = scalar_select %p1254, %s16, 1
      %s1256 = scalar_lea.vmem %s2, %s1255
      %p1257 = scmp.lt.s32.totalorder %s16, 1
      %s1258 = scalar_select %p1257, %s16, 1
      %s1259 = scalar_lea.vmem %s3, %s1258
      %p1260 = scmp.lt.s32.totalorder %s16, 1
      %s1261 = scalar_select %p1260, %s16, 1
      %s1262 = scalar_lea.vmem %s4, %s1261
      // Predicated region
      $region29: #{_lambda_.16} parent=27 // pred_check
        %p1263 = pneg %p81
      $region30: #{_lambda_.16} parent=27 // pred_check_branch
        %1265 = sbr.rel (%p1263) target = $region32
      $region31: #{_lambda_.16} parent=27 // pred_region
        _
      $region32: #{_lambda_.16} parent=27 // pred_fallthru
        _
      // Predicated region
      $region33: #{_lambda_.16} parent=27 // pred_check
        %p1266 = pneg %p107
      $region34: #{_lambda_.16} parent=27 // pred_check_branch
        %1268 = sbr.rel (%p1266) target = $region36
      $region35: #{_lambda_.16} parent=27 // pred_region
        _
      $region36: #{_lambda_.16} parent=27 // pred_fallthru
        _
      // Predicated region
      $region37: #{_lambda_.16} parent=27 // pred_check
        %p1269 = pneg %p133
      $region38: #{_lambda_.16} parent=27 // pred_check_branch
        %1271 = sbr.rel (%p1269) target = $region40
      $region39: #{_lambda_.16} parent=27 // pred_region
        _
      $region40: #{_lambda_.16} parent=27 // pred_fallthru
        _
    $region28: #{_lambda_.16} parent=5 // pred_fallthru
      _
    %p1272 = scmp.le.s32.totalorder 2, %s11
    // Predicated region
    $region41: #{_lambda_.16} parent=5 // pred_check
      %p1273 = pneg %p1272
    $region42: #{_lambda_.16} parent=5 // pred_check_branch
      %1275 = sbr.rel (%p1273) target = $region44
    $region43: #{_lambda_.16} parent=5 // pred_region
      %s1276 = ssub.s32 %s11, 2
      // Predicated region
      $region45: #{_lambda_.16} parent=43 // pred_check
        %p1277 = pneg %p87
      $region46: #{_lambda_.16} parent=43 // pred_check_branch
        %1279 = sbr.rel (%p1277) target = $region48
      $region47: #{_lambda_.16} parent=43 // pred_region
        %p1280 = scmp.lt.s32.totalorder %s17, 1
        %s1281 = scalar_select %p1280, %s17, 1
        %s1282 = scalar_lea.vmem %s2, %s1281
      $region48: #{_lambda_.16} parent=43 // pred_fallthru
        _
      // Predicated region
      $region49: #{_lambda_.16} parent=43 // pred_check
        %p1283 = pneg %p113
      $region50: #{_lambda_.16} parent=43 // pred_check_branch
        %1285 = sbr.rel (%p1283) target = $region52
      $region51: #{_lambda_.16} parent=43 // pred_region
        %p1286 = scmp.lt.s32.totalorder %s17, 1
        %s1287 = scalar_select %p1286, %s17, 1
        %s1288 = scalar_lea.vmem %s3, %s1287
      $region52: #{_lambda_.16} parent=43 // pred_fallthru
        _
      // Predicated region
      $region53: #{_lambda_.16} parent=43 // pred_check
        %p1289 = pneg %p139
      $region54: #{_lambda_.16} parent=43 // pred_check_branch
        %1291 = sbr.rel (%p1289) target = $region56
      $region55: #{_lambda_.16} parent=43 // pred_region
        %p1292 = scmp.lt.s32.totalorder %s17, 1
        %s1293 = scalar_select %p1292, %s17, 1
        %s1294 = scalar_lea.vmem %s4, %s1293
      $region56: #{_lambda_.16} parent=43 // pred_fallthru
        _
    $region44: #{_lambda_.16} parent=5 // pred_fallthru
      _
  $region6: #{_lambda_.16} parent=0 // loop_footer
    %s15 = sadd.s32 1, %s11
  $region7: #{_lambda_.16} parent=0 // loop_footer_branch
    %10 = sbr.rel target = $region3
  $region8: #{_lambda_.16} parent=0 // loop_exit
    _

</llo_original>
